<compile_context>
chip_gen: v7x
topology: tpu7x:2x2x1
jax: 0.10.0
libtpu: 0.0.40
codegen_flags: <defaults>
</compile_context>

<pallas_src>
import functools

import jax
import jax.numpy as jnp
from jax.experimental import pallas as pl

K = 5            # conv kernel size
PAD = K // 2     # "same" padding
BN_EPS = 1e-5
LANE = 128       # pad the fc class dim to a full lane width


# --------------------------------------------------------------------------
# In-kernel helpers (operate on values, Mosaic- and interpret-safe ops only).
# --------------------------------------------------------------------------
def _zero_pad_hw(x, pad):
    """Zero-pad a (N, H, W, C) value along H and W via concatenation."""
    n, h, w, c = x.shape
    zr = jnp.zeros((n, pad, w, c), x.dtype)
    x = jnp.concatenate([zr, x, zr], axis=1)
    zc = jnp.zeros((n, h + 2 * pad, pad, c), x.dtype)
    x = jnp.concatenate([zc, x, zc], axis=2)
    return x


def _conv5x5_im2col(xp, w2d, b, h, w):
    """Same-padded 5x5 conv as ONE im2col matmul.

    xp : (N, h+2*PAD, w+2*PAD, Cin)  spatially pre-padded
    w2d: (K*K*Cin, Cout) with row index = (kh*K + kw)*Cin + cin
    b  : (1, Cout)
    returns (N*h*w, Cout), rows ordered (n, y, x).
    """
    n = xp.shape[0]
    cin = xp.shape[3]
    taps = [xp[:, kh:kh + h, kw:kw + w, :] for kh in range(K) for kw in range(K)]
    patches = jnp.concatenate(taps, axis=-1)                  # (N, h, w, K*K*Cin)
    patches = patches.reshape(n * h * w, K * K * cin)
    return jnp.dot(patches, w2d, preferred_element_type=jnp.float32) + b


def _bn_relu(y, gamma, beta):
    """Training-mode BatchNorm (batch mean, biased var) + ReLU on (rows, C)."""
    mean = jnp.mean(y, axis=0, keepdims=True)
    var = jnp.mean(jnp.square(y - mean), axis=0, keepdims=True)
    scale = gamma * jax.lax.rsqrt(var + BN_EPS)
    shift = beta - mean * scale
    return jnp.maximum(y * scale + shift, 0.0)


def _maxpool2x2(x):
    """(N, H, W, C) -> (N, H//2, W//2, C) via unit-stride slices + maximum."""
    _, h, w, _ = x.shape
    xh = jnp.concatenate(
        [jnp.maximum(x[:, 2 * i:2 * i + 1], x[:, 2 * i + 1:2 * i + 2])
         for i in range(h // 2)], axis=1)                     # (N, H//2, W, C)
    xw = jnp.concatenate(
        [jnp.maximum(xh[:, :, 2 * j:2 * j + 1], xh[:, :, 2 * j + 1:2 * j + 2])
         for j in range(w // 2)], axis=2)                     # (N, H//2, W//2, C)
    return xw


# --------------------------------------------------------------------------
# Single fused kernel: conv1+BN+ReLU+pool -> conv2+BN+ReLU+pool -> flatten+fc.
# --------------------------------------------------------------------------
def _cnn_fused_kernel(xp_ref, w1_ref, b1_ref, g1_ref, be1_ref,
                      w2_ref, b2_ref, g2_ref, be2_ref,
                      wfc_ref, bfc_ref, out_ref, *, n, h, w, c1, c2):
    # ---- layer1 ----
    y1 = _conv5x5_im2col(xp_ref[...], w1_ref[...], b1_ref[...], h, w)   # (N*h*w, C1)
    y1 = _bn_relu(y1, g1_ref[...], be1_ref[...])
    p1 = _maxpool2x2(y1.reshape(n, h, w, c1))                           # (N, h/2, w/2, C1)

    # ---- layer2 ----
    h2, w2 = h // 2, w // 2
    y2 = _conv5x5_im2col(_zero_pad_hw(p1, PAD), w2_ref[...], b2_ref[...], h2, w2)
    y2 = _bn_relu(y2, g2_ref[...], be2_ref[...])
    p2 = _maxpool2x2(y2.reshape(n, h2, w2, c2))                         # (N, h/4, w/4, C2)

    # ---- flatten + fc (wfc rows were permuted at trace time so this HWC
    #      flatten order matches PyTorch's NCHW out.view(N, -1)) ----
    ho, wo = h2 // 2, w2 // 2
    flat = jnp.concatenate(
        [p2[:, i:i + 1, j:j + 1, :] for i in range(ho) for j in range(wo)],
        axis=-1)                                                        # (N,1,1,ho*wo*C2)
    flat = flat.reshape(n, ho * wo * c2)
    out = jnp.dot(flat, wfc_ref[...], preferred_element_type=jnp.float32) + bfc_ref[...]
    out_ref[...] = out.astype(out_ref.dtype)


# --------------------------------------------------------------------------
# Public forward pass (PyTorch-compatible NCHW input).
# --------------------------------------------------------------------------
def cnn_forward(x_nchw, params):
    n, c0, h, w = x_nchw.shape
    c1 = params["w1"].shape[0]
    c2 = params["w2"].shape[0]
    num_classes = params["wfc"].shape[1]
    ho, wo = h // 4, w // 4
    kpad = (-num_classes) % LANE
    ncols = num_classes + kpad

    # NCHW -> NHWC and "same" spatial padding once at the boundary.
    x = jnp.transpose(x_nchw, (0, 2, 3, 1)).astype(jnp.float32)
    xp = jnp.pad(x, ((0, 0), (PAD, PAD), (PAD, PAD), (0, 0)))

    # Conv weights OIHW -> dense 2-D im2col layout (K*K*Cin, Cout).
    w1 = jnp.transpose(params["w1"], (2, 3, 1, 0)).reshape(K * K * c0, c1)
    w2 = jnp.transpose(params["w2"], (2, 3, 1, 0)).reshape(K * K * c1, c2)
    b1 = params["b1"].reshape(1, c1)
    b2 = params["b2"].reshape(1, c2)
    g1 = params["gamma1"].reshape(1, c1)
    be1 = params["beta1"].reshape(1, c1)
    g2 = params["gamma2"].reshape(1, c2)
    be2 = params["beta2"].reshape(1, c2)

    # fc: permute rows from NCHW-flatten order (c*Ho*Wo + s) to the kernel's
    # HWC-flatten order (s*C2 + c); pad the class dim to a full lane width.
    wfc = params["wfc"].reshape(c2, ho * wo, num_classes)
    wfc = jnp.transpose(wfc, (1, 0, 2)).reshape(ho * wo * c2, num_classes)
    wfc = jnp.pad(wfc, ((0, 0), (0, kpad)))
    bfc = jnp.pad(params["bfc"], (0, kpad)).reshape(1, ncols)

    out = pl.pallas_call(
        functools.partial(_cnn_fused_kernel, n=n, h=h, w=w, c1=c1, c2=c2),
        out_shape=jax.ShapeDtypeStruct((n, ncols), jnp.float32),
    )(xp, w1, b1, g1, be1, w2, b2, g2, be2, wfc, bfc)
    return out[:, :num_classes]


def init_params(key, H, W, num_classes=10):
    ks = jax.random.split(key, 8)
    feat = 32 * (H // 4) * (W // 4)
    return {
        "w1": 0.1 * jax.random.normal(ks[0], (16, 3, 5, 5), jnp.float32),
        "b1": 0.1 * jax.random.normal(ks[1], (16,), jnp.float32),
        "gamma1": 1.0 + 0.1 * jax.random.normal(ks[2], (16,), jnp.float32),
        "beta1": 0.1 * jax.random.normal(ks[3], (16,), jnp.float32),
        "w2": 0.05 * jax.random.normal(ks[4], (32, 16, 5, 5), jnp.float32),
        "b2": 0.1 * jax.random.normal(ks[5], (32,), jnp.float32),
        "gamma2": 1.0 + 0.1 * jax.random.normal(ks[6], (32,), jnp.float32),
        "beta2": 0.1 * jax.random.normal(ks[7], (32,), jnp.float32),
        "wfc": 0.02 * jax.random.normal(jax.random.PRNGKey(42),
                                        (feat, num_classes), jnp.float32),
        "bfc": 0.1 * jax.random.normal(jax.random.PRNGKey(43),
                                       (num_classes,), jnp.float32),
    }


if __name__ == "__main__":
    key = jax.random.PRNGKey(0)
    k_x, k_p = jax.random.split(key)

    N, C, H, W = 2, 3, 16, 16
    x = jax.random.normal(k_x, (N, C, H, W), jnp.float32)   # NCHW like PyTorch
    params = init_params(k_p, H, W, num_classes=10)

    fwd = jax.jit(cnn_forward)
    out = jax.block_until_ready(fwd(x, params))

    assert out.shape == (N, 10), out.shape
    assert bool(jnp.all(jnp.isfinite(out)))
    print("KERNEL_OK")
</pallas_src>

<mosaic_0001>
module attributes {stable_mosaic.version = 11 : i64} {
  func.func @_cnn_fused_kernel(%arg0: memref<2x20x20x3xf32, #tpu.memory_space<vmem>>, %arg1: memref<75x16xf32, #tpu.memory_space<vmem>>, %arg2: memref<1x16xf32, #tpu.memory_space<vmem>>, %arg3: memref<1x16xf32, #tpu.memory_space<vmem>>, %arg4: memref<1x16xf32, #tpu.memory_space<vmem>>, %arg5: memref<400x32xf32, #tpu.memory_space<vmem>>, %arg6: memref<1x32xf32, #tpu.memory_space<vmem>>, %arg7: memref<1x32xf32, #tpu.memory_space<vmem>>, %arg8: memref<1x32xf32, #tpu.memory_space<vmem>>, %arg9: memref<512x128xf32, #tpu.memory_space<vmem>>, %arg10: memref<1x128xf32, #tpu.memory_space<vmem>>, %arg11: memref<2x128xf32, #tpu.memory_space<vmem>>) attributes {dimension_semantics = [], scalar_prefetch = 0 : i64, scratch_operands = 0 : i64, tpu.core_type = #tpu.core_type<tc>} {
    %c0 = arith.constant 0 : index
    %c0_0 = arith.constant 0 : index
    %c0_1 = arith.constant 0 : index
    %c0_2 = arith.constant 0 : index
    %0 = vector.load %arg0[%c0, %c0_0, %c0_1, %c0_2] : memref<2x20x20x3xf32, #tpu.memory_space<vmem>>, vector<2x20x20x3xf32>
    %c0_3 = arith.constant 0 : index
    %c0_4 = arith.constant 0 : index
    %1 = vector.load %arg1[%c0_3, %c0_4] : memref<75x16xf32, #tpu.memory_space<vmem>>, vector<75x16xf32>
    %c0_5 = arith.constant 0 : index
    %c0_6 = arith.constant 0 : index
    %2 = vector.load %arg2[%c0_5, %c0_6] : memref<1x16xf32, #tpu.memory_space<vmem>>, vector<1x16xf32>
    %3 = vector.extract_strided_slice %0 {offsets = [0, 0, 0, 0], sizes = [2, 16, 16, 3], strides = [1, 1, 1, 1]} : vector<2x20x20x3xf32> to vector<2x16x16x3xf32>
    %4 = vector.extract_strided_slice %0 {offsets = [0, 0, 1, 0], sizes = [2, 16, 16, 3], strides = [1, 1, 1, 1]} : vector<2x20x20x3xf32> to vector<2x16x16x3xf32>
    %5 = vector.extract_strided_slice %0 {offsets = [0, 0, 2, 0], sizes = [2, 16, 16, 3], strides = [1, 1, 1, 1]} : vector<2x20x20x3xf32> to vector<2x16x16x3xf32>
    %6 = vector.extract_strided_slice %0 {offsets = [0, 0, 3, 0], sizes = [2, 16, 16, 3], strides = [1, 1, 1, 1]} : vector<2x20x20x3xf32> to vector<2x16x16x3xf32>
    %7 = vector.extract_strided_slice %0 {offsets = [0, 0, 4, 0], sizes = [2, 16, 16, 3], strides = [1, 1, 1, 1]} : vector<2x20x20x3xf32> to vector<2x16x16x3xf32>
    %8 = vector.extract_strided_slice %0 {offsets = [0, 1, 0, 0], sizes = [2, 16, 16, 3], strides = [1, 1, 1, 1]} : vector<2x20x20x3xf32> to vector<2x16x16x3xf32>
    %9 = vector.extract_strided_slice %0 {offsets = [0, 1, 1, 0], sizes = [2, 16, 16, 3], strides = [1, 1, 1, 1]} : vector<2x20x20x3xf32> to vector<2x16x16x3xf32>
    %10 = vector.extract_strided_slice %0 {offsets = [0, 1, 2, 0], sizes = [2, 16, 16, 3], strides = [1, 1, 1, 1]} : vector<2x20x20x3xf32> to vector<2x16x16x3xf32>
    %11 = vector.extract_strided_slice %0 {offsets = [0, 1, 3, 0], sizes = [2, 16, 16, 3], strides = [1, 1, 1, 1]} : vector<2x20x20x3xf32> to vector<2x16x16x3xf32>
    %12 = vector.extract_strided_slice %0 {offsets = [0, 1, 4, 0], sizes = [2, 16, 16, 3], strides = [1, 1, 1, 1]} : vector<2x20x20x3xf32> to vector<2x16x16x3xf32>
    %13 = vector.extract_strided_slice %0 {offsets = [0, 2, 0, 0], sizes = [2, 16, 16, 3], strides = [1, 1, 1, 1]} : vector<2x20x20x3xf32> to vector<2x16x16x3xf32>
    %14 = vector.extract_strided_slice %0 {offsets = [0, 2, 1, 0], sizes = [2, 16, 16, 3], strides = [1, 1, 1, 1]} : vector<2x20x20x3xf32> to vector<2x16x16x3xf32>
    %15 = vector.extract_strided_slice %0 {offsets = [0, 2, 2, 0], sizes = [2, 16, 16, 3], strides = [1, 1, 1, 1]} : vector<2x20x20x3xf32> to vector<2x16x16x3xf32>
    %16 = vector.extract_strided_slice %0 {offsets = [0, 2, 3, 0], sizes = [2, 16, 16, 3], strides = [1, 1, 1, 1]} : vector<2x20x20x3xf32> to vector<2x16x16x3xf32>
    %17 = vector.extract_strided_slice %0 {offsets = [0, 2, 4, 0], sizes = [2, 16, 16, 3], strides = [1, 1, 1, 1]} : vector<2x20x20x3xf32> to vector<2x16x16x3xf32>
    %18 = vector.extract_strided_slice %0 {offsets = [0, 3, 0, 0], sizes = [2, 16, 16, 3], strides = [1, 1, 1, 1]} : vector<2x20x20x3xf32> to vector<2x16x16x3xf32>
    %19 = vector.extract_strided_slice %0 {offsets = [0, 3, 1, 0], sizes = [2, 16, 16, 3], strides = [1, 1, 1, 1]} : vector<2x20x20x3xf32> to vector<2x16x16x3xf32>
    %20 = vector.extract_strided_slice %0 {offsets = [0, 3, 2, 0], sizes = [2, 16, 16, 3], strides = [1, 1, 1, 1]} : vector<2x20x20x3xf32> to vector<2x16x16x3xf32>
    %21 = vector.extract_strided_slice %0 {offsets = [0, 3, 3, 0], sizes = [2, 16, 16, 3], strides = [1, 1, 1, 1]} : vector<2x20x20x3xf32> to vector<2x16x16x3xf32>
    %22 = vector.extract_strided_slice %0 {offsets = [0, 3, 4, 0], sizes = [2, 16, 16, 3], strides = [1, 1, 1, 1]} : vector<2x20x20x3xf32> to vector<2x16x16x3xf32>
    %23 = vector.extract_strided_slice %0 {offsets = [0, 4, 0, 0], sizes = [2, 16, 16, 3], strides = [1, 1, 1, 1]} : vector<2x20x20x3xf32> to vector<2x16x16x3xf32>
    %24 = vector.extract_strided_slice %0 {offsets = [0, 4, 1, 0], sizes = [2, 16, 16, 3], strides = [1, 1, 1, 1]} : vector<2x20x20x3xf32> to vector<2x16x16x3xf32>
    %25 = vector.extract_strided_slice %0 {offsets = [0, 4, 2, 0], sizes = [2, 16, 16, 3], strides = [1, 1, 1, 1]} : vector<2x20x20x3xf32> to vector<2x16x16x3xf32>
    %26 = vector.extract_strided_slice %0 {offsets = [0, 4, 3, 0], sizes = [2, 16, 16, 3], strides = [1, 1, 1, 1]} : vector<2x20x20x3xf32> to vector<2x16x16x3xf32>
    %27 = vector.extract_strided_slice %0 {offsets = [0, 4, 4, 0], sizes = [2, 16, 16, 3], strides = [1, 1, 1, 1]} : vector<2x20x20x3xf32> to vector<2x16x16x3xf32>
    %28 = tpu.concatenate %3, %4, %5, %6, %7, %8, %9, %10, %11, %12, %13, %14, %15, %16, %17, %18 in 3 : vector<2x16x16x3xf32>, vector<2x16x16x3xf32>, vector<2x16x16x3xf32>, vector<2x16x16x3xf32>, vector<2x16x16x3xf32>, vector<2x16x16x3xf32>, vector<2x16x16x3xf32>, vector<2x16x16x3xf32>, vector<2x16x16x3xf32>, vector<2x16x16x3xf32>, vector<2x16x16x3xf32>, vector<2x16x16x3xf32>, vector<2x16x16x3xf32>, vector<2x16x16x3xf32>, vector<2x16x16x3xf32>, vector<2x16x16x3xf32> -> vector<2x16x16x48xf32>
    %29 = tpu.concatenate %19, %20, %21, %22, %23, %24, %25, %26, %27 in 3 : vector<2x16x16x3xf32>, vector<2x16x16x3xf32>, vector<2x16x16x3xf32>, vector<2x16x16x3xf32>, vector<2x16x16x3xf32>, vector<2x16x16x3xf32>, vector<2x16x16x3xf32>, vector<2x16x16x3xf32>, vector<2x16x16x3xf32> -> vector<2x16x16x27xf32>
    %30 = tpu.concatenate %28, %29 in 3 : vector<2x16x16x48xf32>, vector<2x16x16x27xf32> -> vector<2x16x16x75xf32>
    %31 = vector.shape_cast %30 : vector<2x16x16x75xf32> to vector<512x75xf32>
    %cst = arith.constant dense<0.000000e+00> : vector<512x16xf32>
    %32 = tpu.matmul %31, %1, %cst {dimension_numbers = #tpu.dot_dimension_numbers<[1], [0], [0], [1], [0, 0, 1, 1], [], []>} : vector<512x75xf32>, vector<75x16xf32>, vector<512x16xf32> -> vector<512x16xf32>
    %33 = vector.broadcast %2 : vector<1x16xf32> to vector<512x16xf32>
    %34 = arith.addf %32, %33 : vector<512x16xf32>
    %c0_7 = arith.constant 0 : index
    %c0_8 = arith.constant 0 : index
    %35 = vector.load %arg3[%c0_7, %c0_8] : memref<1x16xf32, #tpu.memory_space<vmem>>, vector<1x16xf32>
    %c0_9 = arith.constant 0 : index
    %c0_10 = arith.constant 0 : index
    %36 = vector.load %arg4[%c0_9, %c0_10] : memref<1x16xf32, #tpu.memory_space<vmem>>, vector<1x16xf32>
    %cst_11 = arith.constant dense<0.000000e+00> : vector<16xf32>
    %37 = vector.multi_reduction <add>, %34, %cst_11 [0] : vector<512x16xf32> to vector<16xf32>
    %38 = vector.shape_cast %37 : vector<16xf32> to vector<1x16xf32>
    %cst_12 = arith.constant 5.120000e+02 : f32
    %39 = vector.broadcast %cst_12 : f32 to vector<1x16xf32>
    %40 = arith.divf %38, %39 : vector<1x16xf32>
    %41 = vector.broadcast %40 : vector<1x16xf32> to vector<512x16xf32>
    %42 = arith.subf %34, %41 : vector<512x16xf32>
    %43 = arith.mulf %42, %42 : vector<512x16xf32>
    %cst_13 = arith.constant dense<0.000000e+00> : vector<16xf32>
    %44 = vector.multi_reduction <add>, %43, %cst_13 [0] : vector<512x16xf32> to vector<16xf32>
    %45 = vector.shape_cast %44 : vector<16xf32> to vector<1x16xf32>
    %cst_14 = arith.constant 5.120000e+02 : f32
    %46 = vector.broadcast %cst_14 : f32 to vector<1x16xf32>
    %47 = arith.divf %45, %46 : vector<1x16xf32>
    %cst_15 = arith.constant 9.99999974E-6 : f32
    %48 = vector.broadcast %cst_15 : f32 to vector<1x16xf32>
    %49 = arith.addf %47, %48 : vector<1x16xf32>
    %50 = math.rsqrt %49 : vector<1x16xf32>
    %51 = arith.mulf %35, %50 : vector<1x16xf32>
    %52 = arith.mulf %40, %51 : vector<1x16xf32>
    %53 = arith.subf %36, %52 : vector<1x16xf32>
    %54 = vector.broadcast %51 : vector<1x16xf32> to vector<512x16xf32>
    %55 = arith.mulf %34, %54 : vector<512x16xf32>
    %56 = vector.broadcast %53 : vector<1x16xf32> to vector<512x16xf32>
    %57 = arith.addf %55, %56 : vector<512x16xf32>
    %cst_16 = arith.constant 0.000000e+00 : f32
    %58 = vector.broadcast %cst_16 : f32 to vector<512x16xf32>
    %59 = arith.maximumf %57, %58 : vector<512x16xf32>
    %60 = vector.shape_cast %59 : vector<512x16xf32> to vector<2x16x16x16xf32>
    %61 = vector.extract_strided_slice %60 {offsets = [0, 0, 0, 0], sizes = [2, 1, 16, 16], strides = [1, 1, 1, 1]} : vector<2x16x16x16xf32> to vector<2x1x16x16xf32>
    %62 = vector.extract_strided_slice %60 {offsets = [0, 1, 0, 0], sizes = [2, 1, 16, 16], strides = [1, 1, 1, 1]} : vector<2x16x16x16xf32> to vector<2x1x16x16xf32>
    %63 = arith.maximumf %61, %62 : vector<2x1x16x16xf32>
    %64 = vector.extract_strided_slice %60 {offsets = [0, 2, 0, 0], sizes = [2, 1, 16, 16], strides = [1, 1, 1, 1]} : vector<2x16x16x16xf32> to vector<2x1x16x16xf32>
    %65 = vector.extract_strided_slice %60 {offsets = [0, 3, 0, 0], sizes = [2, 1, 16, 16], strides = [1, 1, 1, 1]} : vector<2x16x16x16xf32> to vector<2x1x16x16xf32>
    %66 = arith.maximumf %64, %65 : vector<2x1x16x16xf32>
    %67 = vector.extract_strided_slice %60 {offsets = [0, 4, 0, 0], sizes = [2, 1, 16, 16], strides = [1, 1, 1, 1]} : vector<2x16x16x16xf32> to vector<2x1x16x16xf32>
    %68 = vector.extract_strided_slice %60 {offsets = [0, 5, 0, 0], sizes = [2, 1, 16, 16], strides = [1, 1, 1, 1]} : vector<2x16x16x16xf32> to vector<2x1x16x16xf32>
    %69 = arith.maximumf %67, %68 : vector<2x1x16x16xf32>
    %70 = vector.extract_strided_slice %60 {offsets = [0, 6, 0, 0], sizes = [2, 1, 16, 16], strides = [1, 1, 1, 1]} : vector<2x16x16x16xf32> to vector<2x1x16x16xf32>
    %71 = vector.extract_strided_slice %60 {offsets = [0, 7, 0, 0], sizes = [2, 1, 16, 16], strides = [1, 1, 1, 1]} : vector<2x16x16x16xf32> to vector<2x1x16x16xf32>
    %72 = arith.maximumf %70, %71 : vector<2x1x16x16xf32>
    %73 = vector.extract_strided_slice %60 {offsets = [0, 8, 0, 0], sizes = [2, 1, 16, 16], strides = [1, 1, 1, 1]} : vector<2x16x16x16xf32> to vector<2x1x16x16xf32>
    %74 = vector.extract_strided_slice %60 {offsets = [0, 9, 0, 0], sizes = [2, 1, 16, 16], strides = [1, 1, 1, 1]} : vector<2x16x16x16xf32> to vector<2x1x16x16xf32>
    %75 = arith.maximumf %73, %74 : vector<2x1x16x16xf32>
    %76 = vector.extract_strided_slice %60 {offsets = [0, 10, 0, 0], sizes = [2, 1, 16, 16], strides = [1, 1, 1, 1]} : vector<2x16x16x16xf32> to vector<2x1x16x16xf32>
    %77 = vector.extract_strided_slice %60 {offsets = [0, 11, 0, 0], sizes = [2, 1, 16, 16], strides = [1, 1, 1, 1]} : vector<2x16x16x16xf32> to vector<2x1x16x16xf32>
    %78 = arith.maximumf %76, %77 : vector<2x1x16x16xf32>
    %79 = vector.extract_strided_slice %60 {offsets = [0, 12, 0, 0], sizes = [2, 1, 16, 16], strides = [1, 1, 1, 1]} : vector<2x16x16x16xf32> to vector<2x1x16x16xf32>
    %80 = vector.extract_strided_slice %60 {offsets = [0, 13, 0, 0], sizes = [2, 1, 16, 16], strides = [1, 1, 1, 1]} : vector<2x16x16x16xf32> to vector<2x1x16x16xf32>
    %81 = arith.maximumf %79, %80 : vector<2x1x16x16xf32>
    %82 = vector.extract_strided_slice %60 {offsets = [0, 14, 0, 0], sizes = [2, 1, 16, 16], strides = [1, 1, 1, 1]} : vector<2x16x16x16xf32> to vector<2x1x16x16xf32>
    %83 = vector.extract_strided_slice %60 {offsets = [0, 15, 0, 0], sizes = [2, 1, 16, 16], strides = [1, 1, 1, 1]} : vector<2x16x16x16xf32> to vector<2x1x16x16xf32>
    %84 = arith.maximumf %82, %83 : vector<2x1x16x16xf32>
    %85 = tpu.concatenate %63, %66, %69, %72, %75, %78, %81, %84 in 1 : vector<2x1x16x16xf32>, vector<2x1x16x16xf32>, vector<2x1x16x16xf32>, vector<2x1x16x16xf32>, vector<2x1x16x16xf32>, vector<2x1x16x16xf32>, vector<2x1x16x16xf32>, vector<2x1x16x16xf32> -> vector<2x8x16x16xf32>
    %86 = vector.extract_strided_slice %85 {offsets = [0, 0, 0, 0], sizes = [2, 8, 1, 16], strides = [1, 1, 1, 1]} : vector<2x8x16x16xf32> to vector<2x8x1x16xf32>
    %87 = vector.extract_strided_slice %85 {offsets = [0, 0, 1, 0], sizes = [2, 8, 1, 16], strides = [1, 1, 1, 1]} : vector<2x8x16x16xf32> to vector<2x8x1x16xf32>
    %88 = arith.maximumf %86, %87 : vector<2x8x1x16xf32>
    %89 = vector.extract_strided_slice %85 {offsets = [0, 0, 2, 0], sizes = [2, 8, 1, 16], strides = [1, 1, 1, 1]} : vector<2x8x16x16xf32> to vector<2x8x1x16xf32>
    %90 = vector.extract_strided_slice %85 {offsets = [0, 0, 3, 0], sizes = [2, 8, 1, 16], strides = [1, 1, 1, 1]} : vector<2x8x16x16xf32> to vector<2x8x1x16xf32>
    %91 = arith.maximumf %89, %90 : vector<2x8x1x16xf32>
    %92 = vector.extract_strided_slice %85 {offsets = [0, 0, 4, 0], sizes = [2, 8, 1, 16], strides = [1, 1, 1, 1]} : vector<2x8x16x16xf32> to vector<2x8x1x16xf32>
    %93 = vector.extract_strided_slice %85 {offsets = [0, 0, 5, 0], sizes = [2, 8, 1, 16], strides = [1, 1, 1, 1]} : vector<2x8x16x16xf32> to vector<2x8x1x16xf32>
    %94 = arith.maximumf %92, %93 : vector<2x8x1x16xf32>
    %95 = vector.extract_strided_slice %85 {offsets = [0, 0, 6, 0], sizes = [2, 8, 1, 16], strides = [1, 1, 1, 1]} : vector<2x8x16x16xf32> to vector<2x8x1x16xf32>
    %96 = vector.extract_strided_slice %85 {offsets = [0, 0, 7, 0], sizes = [2, 8, 1, 16], strides = [1, 1, 1, 1]} : vector<2x8x16x16xf32> to vector<2x8x1x16xf32>
    %97 = arith.maximumf %95, %96 : vector<2x8x1x16xf32>
    %98 = vector.extract_strided_slice %85 {offsets = [0, 0, 8, 0], sizes = [2, 8, 1, 16], strides = [1, 1, 1, 1]} : vector<2x8x16x16xf32> to vector<2x8x1x16xf32>
    %99 = vector.extract_strided_slice %85 {offsets = [0, 0, 9, 0], sizes = [2, 8, 1, 16], strides = [1, 1, 1, 1]} : vector<2x8x16x16xf32> to vector<2x8x1x16xf32>
    %100 = arith.maximumf %98, %99 : vector<2x8x1x16xf32>
    %101 = vector.extract_strided_slice %85 {offsets = [0, 0, 10, 0], sizes = [2, 8, 1, 16], strides = [1, 1, 1, 1]} : vector<2x8x16x16xf32> to vector<2x8x1x16xf32>
    %102 = vector.extract_strided_slice %85 {offsets = [0, 0, 11, 0], sizes = [2, 8, 1, 16], strides = [1, 1, 1, 1]} : vector<2x8x16x16xf32> to vector<2x8x1x16xf32>
    %103 = arith.maximumf %101, %102 : vector<2x8x1x16xf32>
    %104 = vector.extract_strided_slice %85 {offsets = [0, 0, 12, 0], sizes = [2, 8, 1, 16], strides = [1, 1, 1, 1]} : vector<2x8x16x16xf32> to vector<2x8x1x16xf32>
    %105 = vector.extract_strided_slice %85 {offsets = [0, 0, 13, 0], sizes = [2, 8, 1, 16], strides = [1, 1, 1, 1]} : vector<2x8x16x16xf32> to vector<2x8x1x16xf32>
    %106 = arith.maximumf %104, %105 : vector<2x8x1x16xf32>
    %107 = vector.extract_strided_slice %85 {offsets = [0, 0, 14, 0], sizes = [2, 8, 1, 16], strides = [1, 1, 1, 1]} : vector<2x8x16x16xf32> to vector<2x8x1x16xf32>
    %108 = vector.extract_strided_slice %85 {offsets = [0, 0, 15, 0], sizes = [2, 8, 1, 16], strides = [1, 1, 1, 1]} : vector<2x8x16x16xf32> to vector<2x8x1x16xf32>
    %109 = arith.maximumf %107, %108 : vector<2x8x1x16xf32>
    %110 = tpu.concatenate %88, %91, %94, %97, %100, %103, %106, %109 in 2 : vector<2x8x1x16xf32>, vector<2x8x1x16xf32>, vector<2x8x1x16xf32>, vector<2x8x1x16xf32>, vector<2x8x1x16xf32>, vector<2x8x1x16xf32>, vector<2x8x1x16xf32>, vector<2x8x1x16xf32> -> vector<2x8x8x16xf32>
    %cst_17 = arith.constant 0.000000e+00 : f32
    %111 = vector.broadcast %cst_17 : f32 to vector<2x2x8x16xf32>
    %112 = tpu.concatenate %111, %110, %111 in 1 : vector<2x2x8x16xf32>, vector<2x8x8x16xf32>, vector<2x2x8x16xf32> -> vector<2x12x8x16xf32>
    %cst_18 = arith.constant 0.000000e+00 : f32
    %113 = vector.broadcast %cst_18 : f32 to vector<2x12x2x16xf32>
    %114 = tpu.concatenate %113, %112, %113 in 2 : vector<2x12x2x16xf32>, vector<2x12x8x16xf32>, vector<2x12x2x16xf32> -> vector<2x12x12x16xf32>
    %c0_19 = arith.constant 0 : index
    %c0_20 = arith.constant 0 : index
    %115 = vector.load %arg5[%c0_19, %c0_20] : memref<400x32xf32, #tpu.memory_space<vmem>>, vector<400x32xf32>
    %c0_21 = arith.constant 0 : index
    %c0_22 = arith.constant 0 : index
    %116 = vector.load %arg6[%c0_21, %c0_22] : memref<1x32xf32, #tpu.memory_space<vmem>>, vector<1x32xf32>
    %117 = vector.extract_strided_slice %114 {offsets = [0, 0, 0, 0], sizes = [2, 8, 8, 16], strides = [1, 1, 1, 1]} : vector<2x12x12x16xf32> to vector<2x8x8x16xf32>
    %118 = vector.extract_strided_slice %114 {offsets = [0, 0, 1, 0], sizes = [2, 8, 8, 16], strides = [1, 1, 1, 1]} : vector<2x12x12x16xf32> to vector<2x8x8x16xf32>
    %119 = vector.extract_strided_slice %114 {offsets = [0, 0, 2, 0], sizes = [2, 8, 8, 16], strides = [1, 1, 1, 1]} : vector<2x12x12x16xf32> to vector<2x8x8x16xf32>
    %120 = vector.extract_strided_slice %114 {offsets = [0, 0, 3, 0], sizes = [2, 8, 8, 16], strides = [1, 1, 1, 1]} : vector<2x12x12x16xf32> to vector<2x8x8x16xf32>
    %121 = vector.extract_strided_slice %114 {offsets = [0, 0, 4, 0], sizes = [2, 8, 8, 16], strides = [1, 1, 1, 1]} : vector<2x12x12x16xf32> to vector<2x8x8x16xf32>
    %122 = vector.extract_strided_slice %114 {offsets = [0, 1, 0, 0], sizes = [2, 8, 8, 16], strides = [1, 1, 1, 1]} : vector<2x12x12x16xf32> to vector<2x8x8x16xf32>
    %123 = vector.extract_strided_slice %114 {offsets = [0, 1, 1, 0], sizes = [2, 8, 8, 16], strides = [1, 1, 1, 1]} : vector<2x12x12x16xf32> to vector<2x8x8x16xf32>
    %124 = vector.extract_strided_slice %114 {offsets = [0, 1, 2, 0], sizes = [2, 8, 8, 16], strides = [1, 1, 1, 1]} : vector<2x12x12x16xf32> to vector<2x8x8x16xf32>
    %125 = vector.extract_strided_slice %114 {offsets = [0, 1, 3, 0], sizes = [2, 8, 8, 16], strides = [1, 1, 1, 1]} : vector<2x12x12x16xf32> to vector<2x8x8x16xf32>
    %126 = vector.extract_strided_slice %114 {offsets = [0, 1, 4, 0], sizes = [2, 8, 8, 16], strides = [1, 1, 1, 1]} : vector<2x12x12x16xf32> to vector<2x8x8x16xf32>
    %127 = vector.extract_strided_slice %114 {offsets = [0, 2, 0, 0], sizes = [2, 8, 8, 16], strides = [1, 1, 1, 1]} : vector<2x12x12x16xf32> to vector<2x8x8x16xf32>
    %128 = vector.extract_strided_slice %114 {offsets = [0, 2, 1, 0], sizes = [2, 8, 8, 16], strides = [1, 1, 1, 1]} : vector<2x12x12x16xf32> to vector<2x8x8x16xf32>
    %129 = vector.extract_strided_slice %114 {offsets = [0, 2, 2, 0], sizes = [2, 8, 8, 16], strides = [1, 1, 1, 1]} : vector<2x12x12x16xf32> to vector<2x8x8x16xf32>
    %130 = vector.extract_strided_slice %114 {offsets = [0, 2, 3, 0], sizes = [2, 8, 8, 16], strides = [1, 1, 1, 1]} : vector<2x12x12x16xf32> to vector<2x8x8x16xf32>
    %131 = vector.extract_strided_slice %114 {offsets = [0, 2, 4, 0], sizes = [2, 8, 8, 16], strides = [1, 1, 1, 1]} : vector<2x12x12x16xf32> to vector<2x8x8x16xf32>
    %132 = vector.extract_strided_slice %114 {offsets = [0, 3, 0, 0], sizes = [2, 8, 8, 16], strides = [1, 1, 1, 1]} : vector<2x12x12x16xf32> to vector<2x8x8x16xf32>
    %133 = vector.extract_strided_slice %114 {offsets = [0, 3, 1, 0], sizes = [2, 8, 8, 16], strides = [1, 1, 1, 1]} : vector<2x12x12x16xf32> to vector<2x8x8x16xf32>
    %134 = vector.extract_strided_slice %114 {offsets = [0, 3, 2, 0], sizes = [2, 8, 8, 16], strides = [1, 1, 1, 1]} : vector<2x12x12x16xf32> to vector<2x8x8x16xf32>
    %135 = vector.extract_strided_slice %114 {offsets = [0, 3, 3, 0], sizes = [2, 8, 8, 16], strides = [1, 1, 1, 1]} : vector<2x12x12x16xf32> to vector<2x8x8x16xf32>
    %136 = vector.extract_strided_slice %114 {offsets = [0, 3, 4, 0], sizes = [2, 8, 8, 16], strides = [1, 1, 1, 1]} : vector<2x12x12x16xf32> to vector<2x8x8x16xf32>
    %137 = vector.extract_strided_slice %114 {offsets = [0, 4, 0, 0], sizes = [2, 8, 8, 16], strides = [1, 1, 1, 1]} : vector<2x12x12x16xf32> to vector<2x8x8x16xf32>
    %138 = vector.extract_strided_slice %114 {offsets = [0, 4, 1, 0], sizes = [2, 8, 8, 16], strides = [1, 1, 1, 1]} : vector<2x12x12x16xf32> to vector<2x8x8x16xf32>
    %139 = vector.extract_strided_slice %114 {offsets = [0, 4, 2, 0], sizes = [2, 8, 8, 16], strides = [1, 1, 1, 1]} : vector<2x12x12x16xf32> to vector<2x8x8x16xf32>
    %140 = vector.extract_strided_slice %114 {offsets = [0, 4, 3, 0], sizes = [2, 8, 8, 16], strides = [1, 1, 1, 1]} : vector<2x12x12x16xf32> to vector<2x8x8x16xf32>
    %141 = vector.extract_strided_slice %114 {offsets = [0, 4, 4, 0], sizes = [2, 8, 8, 16], strides = [1, 1, 1, 1]} : vector<2x12x12x16xf32> to vector<2x8x8x16xf32>
    %142 = tpu.concatenate %117, %118, %119, %120, %121, %122, %123, %124, %125, %126, %127, %128, %129, %130, %131, %132 in 3 : vector<2x8x8x16xf32>, vector<2x8x8x16xf32>, vector<2x8x8x16xf32>, vector<2x8x8x16xf32>, vector<2x8x8x16xf32>, vector<2x8x8x16xf32>, vector<2x8x8x16xf32>, vector<2x8x8x16xf32>, vector<2x8x8x16xf32>, vector<2x8x8x16xf32>, vector<2x8x8x16xf32>, vector<2x8x8x16xf32>, vector<2x8x8x16xf32>, vector<2x8x8x16xf32>, vector<2x8x8x16xf32>, vector<2x8x8x16xf32> -> vector<2x8x8x256xf32>
    %143 = tpu.concatenate %133, %134, %135, %136, %137, %138, %139, %140, %141 in 3 : vector<2x8x8x16xf32>, vector<2x8x8x16xf32>, vector<2x8x8x16xf32>, vector<2x8x8x16xf32>, vector<2x8x8x16xf32>, vector<2x8x8x16xf32>, vector<2x8x8x16xf32>, vector<2x8x8x16xf32>, vector<2x8x8x16xf32> -> vector<2x8x8x144xf32>
    %144 = tpu.concatenate %142, %143 in 3 : vector<2x8x8x256xf32>, vector<2x8x8x144xf32> -> vector<2x8x8x400xf32>
    %145 = vector.shape_cast %144 : vector<2x8x8x400xf32> to vector<128x400xf32>
    %cst_23 = arith.constant dense<0.000000e+00> : vector<128x32xf32>
    %146 = tpu.matmul %145, %115, %cst_23 {dimension_numbers = #tpu.dot_dimension_numbers<[1], [0], [0], [1], [0, 0, 1, 1], [], []>} : vector<128x400xf32>, vector<400x32xf32>, vector<128x32xf32> -> vector<128x32xf32>
    %147 = vector.broadcast %116 : vector<1x32xf32> to vector<128x32xf32>
    %148 = arith.addf %146, %147 : vector<128x32xf32>
    %c0_24 = arith.constant 0 : index
    %c0_25 = arith.constant 0 : index
    %149 = vector.load %arg7[%c0_24, %c0_25] : memref<1x32xf32, #tpu.memory_space<vmem>>, vector<1x32xf32>
    %c0_26 = arith.constant 0 : index
    %c0_27 = arith.constant 0 : index
    %150 = vector.load %arg8[%c0_26, %c0_27] : memref<1x32xf32, #tpu.memory_space<vmem>>, vector<1x32xf32>
    %cst_28 = arith.constant dense<0.000000e+00> : vector<32xf32>
    %151 = vector.multi_reduction <add>, %148, %cst_28 [0] : vector<128x32xf32> to vector<32xf32>
    %152 = vector.shape_cast %151 : vector<32xf32> to vector<1x32xf32>
    %cst_29 = arith.constant 1.280000e+02 : f32
    %153 = vector.broadcast %cst_29 : f32 to vector<1x32xf32>
    %154 = arith.divf %152, %153 : vector<1x32xf32>
    %155 = vector.broadcast %154 : vector<1x32xf32> to vector<128x32xf32>
    %156 = arith.subf %148, %155 : vector<128x32xf32>
    %157 = arith.mulf %156, %156 : vector<128x32xf32>
    %cst_30 = arith.constant dense<0.000000e+00> : vector<32xf32>
    %158 = vector.multi_reduction <add>, %157, %cst_30 [0] : vector<128x32xf32> to vector<32xf32>
    %159 = vector.shape_cast %158 : vector<32xf32> to vector<1x32xf32>
    %cst_31 = arith.constant 1.280000e+02 : f32
    %160 = vector.broadcast %cst_31 : f32 to vector<1x32xf32>
    %161 = arith.divf %159, %160 : vector<1x32xf32>
    %cst_32 = arith.constant 9.99999974E-6 : f32
    %162 = vector.broadcast %cst_32 : f32 to vector<1x32xf32>
    %163 = arith.addf %161, %162 : vector<1x32xf32>
    %164 = math.rsqrt %163 : vector<1x32xf32>
    %165 = arith.mulf %149, %164 : vector<1x32xf32>
    %166 = arith.mulf %154, %165 : vector<1x32xf32>
    %167 = arith.subf %150, %166 : vector<1x32xf32>
    %168 = vector.broadcast %165 : vector<1x32xf32> to vector<128x32xf32>
    %169 = arith.mulf %148, %168 : vector<128x32xf32>
    %170 = vector.broadcast %167 : vector<1x32xf32> to vector<128x32xf32>
    %171 = arith.addf %169, %170 : vector<128x32xf32>
    %cst_33 = arith.constant 0.000000e+00 : f32
    %172 = vector.broadcast %cst_33 : f32 to vector<128x32xf32>
    %173 = arith.maximumf %171, %172 : vector<128x32xf32>
    %174 = vector.shape_cast %173 : vector<128x32xf32> to vector<2x8x8x32xf32>
    %175 = vector.extract_strided_slice %174 {offsets = [0, 0, 0, 0], sizes = [2, 1, 8, 32], strides = [1, 1, 1, 1]} : vector<2x8x8x32xf32> to vector<2x1x8x32xf32>
    %176 = vector.extract_strided_slice %174 {offsets = [0, 1, 0, 0], sizes = [2, 1, 8, 32], strides = [1, 1, 1, 1]} : vector<2x8x8x32xf32> to vector<2x1x8x32xf32>
    %177 = arith.maximumf %175, %176 : vector<2x1x8x32xf32>
    %178 = vector.extract_strided_slice %174 {offsets = [0, 2, 0, 0], sizes = [2, 1, 8, 32], strides = [1, 1, 1, 1]} : vector<2x8x8x32xf32> to vector<2x1x8x32xf32>
    %179 = vector.extract_strided_slice %174 {offsets = [0, 3, 0, 0], sizes = [2, 1, 8, 32], strides = [1, 1, 1, 1]} : vector<2x8x8x32xf32> to vector<2x1x8x32xf32>
    %180 = arith.maximumf %178, %179 : vector<2x1x8x32xf32>
    %181 = vector.extract_strided_slice %174 {offsets = [0, 4, 0, 0], sizes = [2, 1, 8, 32], strides = [1, 1, 1, 1]} : vector<2x8x8x32xf32> to vector<2x1x8x32xf32>
    %182 = vector.extract_strided_slice %174 {offsets = [0, 5, 0, 0], sizes = [2, 1, 8, 32], strides = [1, 1, 1, 1]} : vector<2x8x8x32xf32> to vector<2x1x8x32xf32>
    %183 = arith.maximumf %181, %182 : vector<2x1x8x32xf32>
    %184 = vector.extract_strided_slice %174 {offsets = [0, 6, 0, 0], sizes = [2, 1, 8, 32], strides = [1, 1, 1, 1]} : vector<2x8x8x32xf32> to vector<2x1x8x32xf32>
    %185 = vector.extract_strided_slice %174 {offsets = [0, 7, 0, 0], sizes = [2, 1, 8, 32], strides = [1, 1, 1, 1]} : vector<2x8x8x32xf32> to vector<2x1x8x32xf32>
    %186 = arith.maximumf %184, %185 : vector<2x1x8x32xf32>
    %187 = tpu.concatenate %177, %180, %183, %186 in 1 : vector<2x1x8x32xf32>, vector<2x1x8x32xf32>, vector<2x1x8x32xf32>, vector<2x1x8x32xf32> -> vector<2x4x8x32xf32>
    %188 = vector.extract_strided_slice %187 {offsets = [0, 0, 0, 0], sizes = [2, 4, 1, 32], strides = [1, 1, 1, 1]} : vector<2x4x8x32xf32> to vector<2x4x1x32xf32>
    %189 = vector.extract_strided_slice %187 {offsets = [0, 0, 1, 0], sizes = [2, 4, 1, 32], strides = [1, 1, 1, 1]} : vector<2x4x8x32xf32> to vector<2x4x1x32xf32>
    %190 = arith.maximumf %188, %189 : vector<2x4x1x32xf32>
    %191 = vector.extract_strided_slice %187 {offsets = [0, 0, 2, 0], sizes = [2, 4, 1, 32], strides = [1, 1, 1, 1]} : vector<2x4x8x32xf32> to vector<2x4x1x32xf32>
    %192 = vector.extract_strided_slice %187 {offsets = [0, 0, 3, 0], sizes = [2, 4, 1, 32], strides = [1, 1, 1, 1]} : vector<2x4x8x32xf32> to vector<2x4x1x32xf32>
    %193 = arith.maximumf %191, %192 : vector<2x4x1x32xf32>
    %194 = vector.extract_strided_slice %187 {offsets = [0, 0, 4, 0], sizes = [2, 4, 1, 32], strides = [1, 1, 1, 1]} : vector<2x4x8x32xf32> to vector<2x4x1x32xf32>
    %195 = vector.extract_strided_slice %187 {offsets = [0, 0, 5, 0], sizes = [2, 4, 1, 32], strides = [1, 1, 1, 1]} : vector<2x4x8x32xf32> to vector<2x4x1x32xf32>
    %196 = arith.maximumf %194, %195 : vector<2x4x1x32xf32>
    %197 = vector.extract_strided_slice %187 {offsets = [0, 0, 6, 0], sizes = [2, 4, 1, 32], strides = [1, 1, 1, 1]} : vector<2x4x8x32xf32> to vector<2x4x1x32xf32>
    %198 = vector.extract_strided_slice %187 {offsets = [0, 0, 7, 0], sizes = [2, 4, 1, 32], strides = [1, 1, 1, 1]} : vector<2x4x8x32xf32> to vector<2x4x1x32xf32>
    %199 = arith.maximumf %197, %198 : vector<2x4x1x32xf32>
    %200 = tpu.concatenate %190, %193, %196, %199 in 2 : vector<2x4x1x32xf32>, vector<2x4x1x32xf32>, vector<2x4x1x32xf32>, vector<2x4x1x32xf32> -> vector<2x4x4x32xf32>
    %201 = vector.extract_strided_slice %200 {offsets = [0, 0, 0, 0], sizes = [2, 1, 1, 32], strides = [1, 1, 1, 1]} : vector<2x4x4x32xf32> to vector<2x1x1x32xf32>
    %202 = vector.extract_strided_slice %200 {offsets = [0, 0, 1, 0], sizes = [2, 1, 1, 32], strides = [1, 1, 1, 1]} : vector<2x4x4x32xf32> to vector<2x1x1x32xf32>
    %203 = vector.extract_strided_slice %200 {offsets = [0, 0, 2, 0], sizes = [2, 1, 1, 32], strides = [1, 1, 1, 1]} : vector<2x4x4x32xf32> to vector<2x1x1x32xf32>
    %204 = vector.extract_strided_slice %200 {offsets = [0, 0, 3, 0], sizes = [2, 1, 1, 32], strides = [1, 1, 1, 1]} : vector<2x4x4x32xf32> to vector<2x1x1x32xf32>
    %205 = vector.extract_strided_slice %200 {offsets = [0, 1, 0, 0], sizes = [2, 1, 1, 32], strides = [1, 1, 1, 1]} : vector<2x4x4x32xf32> to vector<2x1x1x32xf32>
    %206 = vector.extract_strided_slice %200 {offsets = [0, 1, 1, 0], sizes = [2, 1, 1, 32], strides = [1, 1, 1, 1]} : vector<2x4x4x32xf32> to vector<2x1x1x32xf32>
    %207 = vector.extract_strided_slice %200 {offsets = [0, 1, 2, 0], sizes = [2, 1, 1, 32], strides = [1, 1, 1, 1]} : vector<2x4x4x32xf32> to vector<2x1x1x32xf32>
    %208 = vector.extract_strided_slice %200 {offsets = [0, 1, 3, 0], sizes = [2, 1, 1, 32], strides = [1, 1, 1, 1]} : vector<2x4x4x32xf32> to vector<2x1x1x32xf32>
    %209 = vector.extract_strided_slice %200 {offsets = [0, 2, 0, 0], sizes = [2, 1, 1, 32], strides = [1, 1, 1, 1]} : vector<2x4x4x32xf32> to vector<2x1x1x32xf32>
    %210 = vector.extract_strided_slice %200 {offsets = [0, 2, 1, 0], sizes = [2, 1, 1, 32], strides = [1, 1, 1, 1]} : vector<2x4x4x32xf32> to vector<2x1x1x32xf32>
    %211 = vector.extract_strided_slice %200 {offsets = [0, 2, 2, 0], sizes = [2, 1, 1, 32], strides = [1, 1, 1, 1]} : vector<2x4x4x32xf32> to vector<2x1x1x32xf32>
    %212 = vector.extract_strided_slice %200 {offsets = [0, 2, 3, 0], sizes = [2, 1, 1, 32], strides = [1, 1, 1, 1]} : vector<2x4x4x32xf32> to vector<2x1x1x32xf32>
    %213 = vector.extract_strided_slice %200 {offsets = [0, 3, 0, 0], sizes = [2, 1, 1, 32], strides = [1, 1, 1, 1]} : vector<2x4x4x32xf32> to vector<2x1x1x32xf32>
    %214 = vector.extract_strided_slice %200 {offsets = [0, 3, 1, 0], sizes = [2, 1, 1, 32], strides = [1, 1, 1, 1]} : vector<2x4x4x32xf32> to vector<2x1x1x32xf32>
    %215 = vector.extract_strided_slice %200 {offsets = [0, 3, 2, 0], sizes = [2, 1, 1, 32], strides = [1, 1, 1, 1]} : vector<2x4x4x32xf32> to vector<2x1x1x32xf32>
    %216 = vector.extract_strided_slice %200 {offsets = [0, 3, 3, 0], sizes = [2, 1, 1, 32], strides = [1, 1, 1, 1]} : vector<2x4x4x32xf32> to vector<2x1x1x32xf32>
    %217 = tpu.concatenate %201, %202, %203, %204, %205, %206, %207, %208, %209, %210, %211, %212, %213, %214, %215, %216 in 3 : vector<2x1x1x32xf32>, vector<2x1x1x32xf32>, vector<2x1x1x32xf32>, vector<2x1x1x32xf32>, vector<2x1x1x32xf32>, vector<2x1x1x32xf32>, vector<2x1x1x32xf32>, vector<2x1x1x32xf32>, vector<2x1x1x32xf32>, vector<2x1x1x32xf32>, vector<2x1x1x32xf32>, vector<2x1x1x32xf32>, vector<2x1x1x32xf32>, vector<2x1x1x32xf32>, vector<2x1x1x32xf32>, vector<2x1x1x32xf32> -> vector<2x1x1x512xf32>
    %218 = vector.shape_cast %217 : vector<2x1x1x512xf32> to vector<2x512xf32>
    %c0_34 = arith.constant 0 : index
    %c0_35 = arith.constant 0 : index
    %219 = vector.load %arg9[%c0_34, %c0_35] : memref<512x128xf32, #tpu.memory_space<vmem>>, vector<512x128xf32>
    %cst_36 = arith.constant dense<0.000000e+00> : vector<2x128xf32>
    %220 = tpu.matmul %218, %219, %cst_36 {dimension_numbers = #tpu.dot_dimension_numbers<[1], [0], [0], [1], [0, 0, 1, 1], [], []>} : vector<2x512xf32>, vector<512x128xf32>, vector<2x128xf32> -> vector<2x128xf32>
    %c0_37 = arith.constant 0 : index
    %c0_38 = arith.constant 0 : index
    %221 = vector.load %arg10[%c0_37, %c0_38] : memref<1x128xf32, #tpu.memory_space<vmem>>, vector<1x128xf32>
    %222 = vector.broadcast %221 : vector<1x128xf32> to vector<2x128xf32>
    %223 = arith.addf %220, %222 : vector<2x128xf32>
    %c0_39 = arith.constant 0 : index
    %c0_40 = arith.constant 0 : index
    %224 = vector.load %arg11[%c0_39, %c0_40] : memref<2x128xf32, #tpu.memory_space<vmem>>, vector<2x128xf32>
    tpu.vector_store %arg11[%c0_39, %c0_40], %223 {strides = array<i32>} : memref<2x128xf32, #tpu.memory_space<vmem>>, vector<2x128xf32>,
    return
  }
}

</mosaic_0001>

<llo_original>
// kernel: cnn_forward.1
$region0: #{cnn_forward.1}
  #allocation0 [shape = 'u32[]', space=smem, size = 0x4, offset = 0x4, fixed_abs, tag = 'smem constant byte address 0x4 - core index']
  #allocation1 [shape = 'u32[144,128]{1,0:T(1,128)}', space=vmem, size = 0x12000, scoped, tag = 'internal scratch']
  %s0 = inlined_call_operand.vmem [shape: f32[2,20,20,3], index: 0, kind: input, shape index: {}]
  %s1 = inlined_call_operand.vmem [shape: f32[75,16], index: 1, kind: input, shape index: {}]
  %s2 = inlined_call_operand.vmem [shape: f32[1,16], index: 2, kind: input, shape index: {}]
  %s3 = inlined_call_operand.vmem [shape: f32[1,16], index: 3, kind: input, shape index: {}]
  %s4 = inlined_call_operand.vmem [shape: f32[1,16], index: 4, kind: input, shape index: {}]
  %s5 = inlined_call_operand.vmem [shape: f32[400,32], index: 5, kind: input, shape index: {}]
  %s6 = inlined_call_operand.vmem [shape: f32[1,32], index: 6, kind: input, shape index: {}]
  %s7 = inlined_call_operand.vmem [shape: f32[1,32], index: 7, kind: input, shape index: {}]
  %s8 = inlined_call_operand.vmem [shape: f32[1,32], index: 8, kind: input, shape index: {}]
  %s9 = inlined_call_operand.vmem [shape: f32[512,128], index: 9, kind: input, shape index: {}]
  %s10 = inlined_call_operand.vmem [shape: f32[1,128], index: 10, kind: input, shape index: {}]
  %s11 = inlined_call_operand.hbm [shape: f32[2,128], index: 11, kind: output, shape index: {}]
  %s12 = sld [smem:[#allocation0]]
  $region54: #{cnn_forward.1} parent=0
    _
  %s14 = ssub.s32 1, %s12
  %s15 = scalar_select 0, %s14, %s12
  $region1: #{cnn_forward.1} parent=0
    #allocation2 [shape = 'u8[1024]{0}', space=vmem, size = 0x400, scoped, tag = 'output window, operand 0, single buffered']
    #allocation3 [shape = 's32[1]{0}', space=sflag, size = 0x4, scoped, tag = 'scoped memory for cnn_forward.1']
    %16 = vsyncpa [#allocation3], 0
    // Predicated region
    $region2: #{cnn_forward.1} parent=1 // pred_check
      _
    $region3: #{cnn_forward.1} parent=1 // pred_check_branch
      %18 = sbr.rel (0) target = $region5
    $region4: #{cnn_forward.1} parent=1 // pred_region
      _
    $region5: #{cnn_forward.1} parent=1 // pred_fallthru
      _
    // Predicated region
    $region6: #{cnn_forward.1} parent=1 // pred_check
      _
    $region7: #{cnn_forward.1} parent=1 // pred_check_branch
      %20 = sbr.rel (0) target = $region9
    $region8: #{cnn_forward.1} parent=1 // pred_region
      _
    $region9: #{cnn_forward.1} parent=1 // pred_fallthru
      _
    // Predicated region
    $region10: #{cnn_forward.1} parent=1 // pred_check
      _
    $region11: #{cnn_forward.1} parent=1 // pred_check_branch
      %22 = sbr.rel (0) target = $region13
    $region12: #{cnn_forward.1} parent=1 // pred_region
      _
    $region13: #{cnn_forward.1} parent=1 // pred_fallthru
      _
    // Predicated region
    $region14: #{cnn_forward.1} parent=1 // pred_check
      _
    $region15: #{cnn_forward.1} parent=1 // pred_check_branch
      %24 = sbr.rel (0) target = $region17
    $region16: #{cnn_forward.1} parent=1 // pred_region
      _
    $region17: #{cnn_forward.1} parent=1 // pred_fallthru
      _
    // Predicated region
    $region18: #{cnn_forward.1} parent=1 // pred_check
      _
    $region19: #{cnn_forward.1} parent=1 // pred_check_branch
      %26 = sbr.rel (0) target = $region21
    $region20: #{cnn_forward.1} parent=1 // pred_region
      _
    $region21: #{cnn_forward.1} parent=1 // pred_fallthru
      _
    // Predicated region
    $region22: #{cnn_forward.1} parent=1 // pred_check
      _
    $region23: #{cnn_forward.1} parent=1 // pred_check_branch
      %28 = sbr.rel (0) target = $region25
    $region24: #{cnn_forward.1} parent=1 // pred_region
      _
    $region25: #{cnn_forward.1} parent=1 // pred_fallthru
      _
    // Predicated region
    $region26: #{cnn_forward.1} parent=1 // pred_check
      _
    $region27: #{cnn_forward.1} parent=1 // pred_check_branch
      %30 = sbr.rel (0) target = $region29
    $region28: #{cnn_forward.1} parent=1 // pred_region
      _
    $region29: #{cnn_forward.1} parent=1 // pred_fallthru
      _
    // Predicated region
    $region30: #{cnn_forward.1} parent=1 // pred_check
      _
    $region31: #{cnn_forward.1} parent=1 // pred_check_branch
      %32 = sbr.rel (0) target = $region33
    $region32: #{cnn_forward.1} parent=1 // pred_region
      _
    $region33: #{cnn_forward.1} parent=1 // pred_fallthru
      _
    // Predicated region
    $region34: #{cnn_forward.1} parent=1 // pred_check
      _
    $region35: #{cnn_forward.1} parent=1 // pred_check_branch
      %34 = sbr.rel (0) target = $region37
    $region36: #{cnn_forward.1} parent=1 // pred_region
      _
    $region37: #{cnn_forward.1} parent=1 // pred_fallthru
      _
    // Predicated region
    $region38: #{cnn_forward.1} parent=1 // pred_check
      _
    $region39: #{cnn_forward.1} parent=1 // pred_check_branch
      %36 = sbr.rel (0) target = $region41
    $region40: #{cnn_forward.1} parent=1 // pred_region
      _
    $region41: #{cnn_forward.1} parent=1 // pred_fallthru
      _
    // Predicated region
    $region42: #{cnn_forward.1} parent=1 // pred_check
      _
    $region43: #{cnn_forward.1} parent=1 // pred_check_branch
      %38 = sbr.rel (0) target = $region45
    $region44: #{cnn_forward.1} parent=1 // pred_region
      _
    $region45: #{cnn_forward.1} parent=1 // pred_fallthru
      _
    %v39 = vld [vmem:[%s0] sm:$0xff]
    %v40 = vld [vmem:[%s0 + $0x8] sm:$0xff]
    %v41 = vld [vmem:[%s0 + $0x10] sm:$0xf]
    %v42 = vld [vmem:[%s0 + $0x18] sm:$0xff]
    %v43 = vld [vmem:[%s0 + $0x20] sm:$0xff]
    %v44 = vld [vmem:[%s0 + $0x28] sm:$0xf]
    %v45 = vld [vmem:[%s0 + $0x30] sm:$0xff]
    %v46 = vld [vmem:[%s0 + $0x38] sm:$0xff]
    %v47 = vld [vmem:[%s0 + $0x40] sm:$0xf]
    %v48 = vld [vmem:[%s0 + $0x48] sm:$0xff]
    %v49 = vld [vmem:[%s0 + $0x50] sm:$0xff]
    %v50 = vld [vmem:[%s0 + $0x58] sm:$0xf]
    %v51 = vld [vmem:[%s0 + $0x60] sm:$0xff]
    %v52 = vld [vmem:[%s0 + $0x68] sm:$0xff]
    %v53 = vld [vmem:[%s0 + $0x70] sm:$0xf]
    %v54 = vld [vmem:[%s0 + $0x78] sm:$0xff]
    %v55 = vld [vmem:[%s0 + $0x80] sm:$0xff]
    %v56 = vld [vmem:[%s0 + $0x88] sm:$0xf]
    %v57 = vld [vmem:[%s0 + $0x90] sm:$0xff]
    %v58 = vld [vmem:[%s0 + $0x98] sm:$0xff]
    %v59 = vld [vmem:[%s0 + $0xa0] sm:$0xf]
    %v60 = vld [vmem:[%s0 + $0xa8] sm:$0xff]
    %v61 = vld [vmem:[%s0 + $0xb0] sm:$0xff]
    %v62 = vld [vmem:[%s0 + $0xb8] sm:$0xf]
    %v63 = vld [vmem:[%s0 + $0xc0] sm:$0xff]
    %v64 = vld [vmem:[%s0 + $0xc8] sm:$0xff]
    %v65 = vld [vmem:[%s0 + $0xd0] sm:$0xf]
    %v66 = vld [vmem:[%s0 + $0xd8] sm:$0xff]
    %v67 = vld [vmem:[%s0 + $0xe0] sm:$0xff]
    %v68 = vld [vmem:[%s0 + $0xe8] sm:$0xf]
    %v69 = vld [vmem:[%s0 + $0xf0] sm:$0xff]
    %v70 = vld [vmem:[%s0 + $0xf8] sm:$0xff]
    %v71 = vld [vmem:[%s0 + $0x100] sm:$0xf]
    %v72 = vld [vmem:[%s0 + $0x108] sm:$0xff]
    %v73 = vld [vmem:[%s0 + $0x110] sm:$0xff]
    %v74 = vld [vmem:[%s0 + $0x118] sm:$0xf]
    %v75 = vld [vmem:[%s0 + $0x120] sm:$0xff]
    %v76 = vld [vmem:[%s0 + $0x128] sm:$0xff]
    %v77 = vld [vmem:[%s0 + $0x130] sm:$0xf]
    %v78 = vld [vmem:[%s0 + $0x138] sm:$0xff]
    %v79 = vld [vmem:[%s0 + $0x140] sm:$0xff]
    %v80 = vld [vmem:[%s0 + $0x148] sm:$0xf]
    %v81 = vld [vmem:[%s0 + $0x150] sm:$0xff]
    %v82 = vld [vmem:[%s0 + $0x158] sm:$0xff]
    %v83 = vld [vmem:[%s0 + $0x160] sm:$0xf]
    %v84 = vld [vmem:[%s0 + $0x168] sm:$0xff]
    %v85 = vld [vmem:[%s0 + $0x170] sm:$0xff]
    %v86 = vld [vmem:[%s0 + $0x178] sm:$0xf]
    %v87 = vld [vmem:[%s0 + $0x180] sm:$0xff]
    %v88 = vld [vmem:[%s0 + $0x188] sm:$0xff]
    %v89 = vld [vmem:[%s0 + $0x190] sm:$0xf]
    %v90 = vld [vmem:[%s0 + $0x198] sm:$0xff]
    %v91 = vld [vmem:[%s0 + $0x1a0] sm:$0xff]
    %v92 = vld [vmem:[%s0 + $0x1a8] sm:$0xf]
    %v93 = vld [vmem:[%s0 + $0x1b0] sm:$0xff]
    %v94 = vld [vmem:[%s0 + $0x1b8] sm:$0xff]
    %v95 = vld [vmem:[%s0 + $0x1c0] sm:$0xf]
    %v96 = vld [vmem:[%s0 + $0x1c8] sm:$0xff]
    %v97 = vld [vmem:[%s0 + $0x1d0] sm:$0xff]
    %v98 = vld [vmem:[%s0 + $0x1d8] sm:$0xf]
    %v99 = vld [vmem:[%s0 + $0x1e0] sm:$0xff]
    %v100 = vld [vmem:[%s0 + $0x1e8] sm:$0xff]
    %v101 = vld [vmem:[%s0 + $0x1f0] sm:$0xf]
    %v102 = vld [vmem:[%s0 + $0x1f8] sm:$0xff]
    %v103 = vld [vmem:[%s0 + $0x200] sm:$0xff]
    %v104 = vld [vmem:[%s0 + $0x208] sm:$0xf]
    %v105 = vld [vmem:[%s0 + $0x210] sm:$0xff]
    %v106 = vld [vmem:[%s0 + $0x218] sm:$0xff]
    %v107 = vld [vmem:[%s0 + $0x220] sm:$0xf]
    %v108 = vld [vmem:[%s0 + $0x228] sm:$0xff]
    %v109 = vld [vmem:[%s0 + $0x230] sm:$0xff]
    %v110 = vld [vmem:[%s0 + $0x238] sm:$0xf]
    %v111 = vld [vmem:[%s0 + $0x240] sm:$0xff]
    %v112 = vld [vmem:[%s0 + $0x248] sm:$0xff]
    %v113 = vld [vmem:[%s0 + $0x250] sm:$0xf]
    %v114 = vld [vmem:[%s0 + $0x258] sm:$0xff]
    %v115 = vld [vmem:[%s0 + $0x260] sm:$0xff]
    %v116 = vld [vmem:[%s0 + $0x268] sm:$0xf]
    %v117 = vld [vmem:[%s0 + $0x270] sm:$0xff]
    %v118 = vld [vmem:[%s0 + $0x278] sm:$0xff]
    %v119 = vld [vmem:[%s0 + $0x280] sm:$0xf]
    %v120 = vld [vmem:[%s0 + $0x288] sm:$0xff]
    %v121 = vld [vmem:[%s0 + $0x290] sm:$0xff]
    %v122 = vld [vmem:[%s0 + $0x298] sm:$0xf]
    %v123 = vld [vmem:[%s0 + $0x2a0] sm:$0xff]
    %v124 = vld [vmem:[%s0 + $0x2a8] sm:$0xff]
    %v125 = vld [vmem:[%s0 + $0x2b0] sm:$0xf]
    %v126 = vld [vmem:[%s0 + $0x2b8] sm:$0xff]
    %v127 = vld [vmem:[%s0 + $0x2c0] sm:$0xff]
    %v128 = vld [vmem:[%s0 + $0x2c8] sm:$0xf]
    %v129 = vld [vmem:[%s0 + $0x2d0] sm:$0xff]
    %v130 = vld [vmem:[%s0 + $0x2d8] sm:$0xff]
    %v131 = vld [vmem:[%s0 + $0x2e0] sm:$0xf]
    %v132 = vld [vmem:[%s0 + $0x2e8] sm:$0xff]
    %v133 = vld [vmem:[%s0 + $0x2f0] sm:$0xff]
    %v134 = vld [vmem:[%s0 + $0x2f8] sm:$0xf]
    %v135 = vld [vmem:[%s0 + $0x300] sm:$0xff]
    %v136 = vld [vmem:[%s0 + $0x308] sm:$0xff]
    %v137 = vld [vmem:[%s0 + $0x310] sm:$0xf]
    %v138 = vld [vmem:[%s0 + $0x318] sm:$0xff]
    %v139 = vld [vmem:[%s0 + $0x320] sm:$0xff]
    %v140 = vld [vmem:[%s0 + $0x328] sm:$0xf]
    %v141 = vld [vmem:[%s0 + $0x330] sm:$0xff]
    %v142 = vld [vmem:[%s0 + $0x338] sm:$0xff]
    %v143 = vld [vmem:[%s0 + $0x340] sm:$0xf]
    %v144 = vld [vmem:[%s0 + $0x348] sm:$0xff]
    %v145 = vld [vmem:[%s0 + $0x350] sm:$0xff]
    %v146 = vld [vmem:[%s0 + $0x358] sm:$0xf]
    %v147 = vld [vmem:[%s0 + $0x360] sm:$0xff]
    %v148 = vld [vmem:[%s0 + $0x368] sm:$0xff]
    %v149 = vld [vmem:[%s0 + $0x370] sm:$0xf]
    %v150 = vld [vmem:[%s0 + $0x378] sm:$0xff]
    %v151 = vld [vmem:[%s0 + $0x380] sm:$0xff]
    %v152 = vld [vmem:[%s0 + $0x388] sm:$0xf]
    %v153 = vld [vmem:[%s0 + $0x390] sm:$0xff]
    %v154 = vld [vmem:[%s0 + $0x398] sm:$0xff]
    %v155 = vld [vmem:[%s0 + $0x3a0] sm:$0xf]
    %v156 = vld [vmem:[%s0 + $0x3a8] sm:$0xff]
    %v157 = vld [vmem:[%s0 + $0x3b0] sm:$0xff]
    %v158 = vld [vmem:[%s0 + $0x3b8] sm:$0xf]
    %v159 = vld [vmem:[%s1] sm:$0xff]
    %v160 = vld [vmem:[%s1 + $0x8] sm:$0xff]
    %v161 = vld [vmem:[%s1 + $0x10] sm:$0xff]
    %v162 = vld [vmem:[%s1 + $0x18] sm:$0xff]
    %v163 = vld [vmem:[%s1 + $0x20] sm:$0xff]
    %v164 = vld [vmem:[%s1 + $0x28] sm:$0xff]
    %v165 = vld [vmem:[%s1 + $0x30] sm:$0xff]
    %v166 = vld [vmem:[%s1 + $0x38] sm:$0xff]
    %v167 = vld [vmem:[%s1 + $0x40] sm:$0xff]
    %v168 = vld [vmem:[%s1 + $0x48] sm:$0x7]
    %v169 = vld [vmem:[%s2] sm:$0x1]
    %vm266 = vcmask 1046528
    %v267 = vrot.slane %v39, 1
    %v268 = vrot.slane %v40, 1
    %v269 = vsel %vm266, %v267, %v268
    %v270 = vrot.slane %v41, 1
    %v271 = vsel %vm266, %v268, %v270
    %v272 = vrot.slane %v42, 1
    %v273 = vrot.slane %v43, 1
    %v274 = vsel %vm266, %v272, %v273
    %v275 = vrot.slane %v44, 1
    %v276 = vsel %vm266, %v273, %v275
    %v277 = vrot.slane %v45, 1
    %v278 = vrot.slane %v46, 1
    %v279 = vsel %vm266, %v277, %v278
    %v280 = vrot.slane %v47, 1
    %v281 = vsel %vm266, %v278, %v280
    %v282 = vrot.slane %v48, 1
    %v283 = vrot.slane %v49, 1
    %v284 = vsel %vm266, %v282, %v283
    %v285 = vrot.slane %v50, 1
    %v286 = vsel %vm266, %v283, %v285
    %v287 = vrot.slane %v51, 1
    %v288 = vrot.slane %v52, 1
    %v289 = vsel %vm266, %v287, %v288
    %v290 = vrot.slane %v53, 1
    %v291 = vsel %vm266, %v288, %v290
    %v292 = vrot.slane %v54, 1
    %v293 = vrot.slane %v55, 1
    %v294 = vsel %vm266, %v292, %v293
    %v295 = vrot.slane %v56, 1
    %v296 = vsel %vm266, %v293, %v295
    %v297 = vrot.slane %v57, 1
    %v298 = vrot.slane %v58, 1
    %v299 = vsel %vm266, %v297, %v298
    %v300 = vrot.slane %v59, 1
    %v301 = vsel %vm266, %v298, %v300
    %v302 = vrot.slane %v60, 1
    %v303 = vrot.slane %v61, 1
    %v304 = vsel %vm266, %v302, %v303
    %v305 = vrot.slane %v62, 1
    %v306 = vsel %vm266, %v303, %v305
    %v307 = vrot.slane %v63, 1
    %v308 = vrot.slane %v64, 1
    %v309 = vsel %vm266, %v307, %v308
    %v310 = vrot.slane %v65, 1
    %v311 = vsel %vm266, %v308, %v310
    %v312 = vrot.slane %v66, 1
    %v313 = vrot.slane %v67, 1
    %v314 = vsel %vm266, %v312, %v313
    %v315 = vrot.slane %v68, 1
    %v316 = vsel %vm266, %v313, %v315
    %v317 = vrot.slane %v69, 1
    %v318 = vrot.slane %v70, 1
    %v319 = vsel %vm266, %v317, %v318
    %v320 = vrot.slane %v71, 1
    %v321 = vsel %vm266, %v318, %v320
    %v322 = vrot.slane %v72, 1
    %v323 = vrot.slane %v73, 1
    %v324 = vsel %vm266, %v322, %v323
    %v325 = vrot.slane %v74, 1
    %v326 = vsel %vm266, %v323, %v325
    %v327 = vrot.slane %v75, 1
    %v328 = vrot.slane %v76, 1
    %v329 = vsel %vm266, %v327, %v328
    %v330 = vrot.slane %v77, 1
    %v331 = vsel %vm266, %v328, %v330
    %v332 = vrot.slane %v78, 1
    %v333 = vrot.slane %v79, 1
    %v334 = vsel %vm266, %v332, %v333
    %v335 = vrot.slane %v80, 1
    %v336 = vsel %vm266, %v333, %v335
    %v337 = vrot.slane %v81, 1
    %v338 = vrot.slane %v82, 1
    %v339 = vsel %vm266, %v337, %v338
    %v340 = vrot.slane %v83, 1
    %v341 = vsel %vm266, %v338, %v340
    %v342 = vrot.slane %v84, 1
    %v343 = vrot.slane %v85, 1
    %v344 = vsel %vm266, %v342, %v343
    %v345 = vrot.slane %v86, 1
    %v346 = vsel %vm266, %v343, %v345
    %v347 = vrot.slane %v99, 1
    %v348 = vrot.slane %v100, 1
    %v349 = vsel %vm266, %v347, %v348
    %v350 = vrot.slane %v101, 1
    %v351 = vsel %vm266, %v348, %v350
    %v352 = vrot.slane %v102, 1
    %v353 = vrot.slane %v103, 1
    %v354 = vsel %vm266, %v352, %v353
    %v355 = vrot.slane %v104, 1
    %v356 = vsel %vm266, %v353, %v355
    %v357 = vrot.slane %v105, 1
    %v358 = vrot.slane %v106, 1
    %v359 = vsel %vm266, %v357, %v358
    %v360 = vrot.slane %v107, 1
    %v361 = vsel %vm266, %v358, %v360
    %v362 = vrot.slane %v108, 1
    %v363 = vrot.slane %v109, 1
    %v364 = vsel %vm266, %v362, %v363
    %v365 = vrot.slane %v110, 1
    %v366 = vsel %vm266, %v363, %v365
    %v367 = vrot.slane %v111, 1
    %v368 = vrot.slane %v112, 1
    %v369 = vsel %vm266, %v367, %v368
    %v370 = vrot.slane %v113, 1
    %v371 = vsel %vm266, %v368, %v370
    %v372 = vrot.slane %v114, 1
    %v373 = vrot.slane %v115, 1
    %v374 = vsel %vm266, %v372, %v373
    %v375 = vrot.slane %v116, 1
    %v376 = vsel %vm266, %v373, %v375
    %v377 = vrot.slane %v117, 1
    %v378 = vrot.slane %v118, 1
    %v379 = vsel %vm266, %v377, %v378
    %v380 = vrot.slane %v119, 1
    %v381 = vsel %vm266, %v378, %v380
    %v382 = vrot.slane %v120, 1
    %v383 = vrot.slane %v121, 1
    %v384 = vsel %vm266, %v382, %v383
    %v385 = vrot.slane %v122, 1
    %v386 = vsel %vm266, %v383, %v385
    %v387 = vrot.slane %v123, 1
    %v388 = vrot.slane %v124, 1
    %v389 = vsel %vm266, %v387, %v388
    %v390 = vrot.slane %v125, 1
    %v391 = vsel %vm266, %v388, %v390
    %v392 = vrot.slane %v126, 1
    %v393 = vrot.slane %v127, 1
    %v394 = vsel %vm266, %v392, %v393
    %v395 = vrot.slane %v128, 1
    %v396 = vsel %vm266, %v393, %v395
    %v397 = vrot.slane %v129, 1
    %v398 = vrot.slane %v130, 1
    %v399 = vsel %vm266, %v397, %v398
    %v400 = vrot.slane %v131, 1
    %v401 = vsel %vm266, %v398, %v400
    %v402 = vrot.slane %v132, 1
    %v403 = vrot.slane %v133, 1
    %v404 = vsel %vm266, %v402, %v403
    %v405 = vrot.slane %v134, 1
    %v406 = vsel %vm266, %v403, %v405
    %v407 = vrot.slane %v135, 1
    %v408 = vrot.slane %v136, 1
    %v409 = vsel %vm266, %v407, %v408
    %v410 = vrot.slane %v137, 1
    %v411 = vsel %vm266, %v408, %v410
    %v412 = vrot.slane %v138, 1
    %v413 = vrot.slane %v139, 1
    %v414 = vsel %vm266, %v412, %v413
    %v415 = vrot.slane %v140, 1
    %v416 = vsel %vm266, %v413, %v415
    %v417 = vrot.slane %v141, 1
    %v418 = vrot.slane %v142, 1
    %v419 = vsel %vm266, %v417, %v418
    %v420 = vrot.slane %v143, 1
    %v421 = vsel %vm266, %v418, %v420
    %v422 = vrot.slane %v144, 1
    %v423 = vrot.slane %v145, 1
    %v424 = vsel %vm266, %v422, %v423
    %v425 = vrot.slane %v146, 1
    %v426 = vsel %vm266, %v423, %v425
    %427 = vrot.lane.b32.xlu0 %v269, 3
    %v428 = vpop.permute.xlu0 %427
    %429 = vrot.lane.b32.xlu0 %v271, 3
    %v430 = vpop.permute.xlu0 %429
    %431 = vrot.lane.b32.xlu0 %v274, 3
    %v432 = vpop.permute.xlu0 %431
    %433 = vrot.lane.b32.xlu0 %v276, 3
    %v434 = vpop.permute.xlu0 %433
    %435 = vrot.lane.b32.xlu0 %v279, 3
    %v436 = vpop.permute.xlu0 %435
    %437 = vrot.lane.b32.xlu0 %v281, 3
    %v438 = vpop.permute.xlu0 %437
    %439 = vrot.lane.b32.xlu0 %v284, 3
    %v440 = vpop.permute.xlu0 %439
    %441 = vrot.lane.b32.xlu0 %v286, 3
    %v442 = vpop.permute.xlu0 %441
    %443 = vrot.lane.b32.xlu0 %v289, 3
    %v444 = vpop.permute.xlu0 %443
    %445 = vrot.lane.b32.xlu0 %v291, 3
    %v446 = vpop.permute.xlu0 %445
    %447 = vrot.lane.b32.xlu0 %v294, 3
    %v448 = vpop.permute.xlu0 %447
    %449 = vrot.lane.b32.xlu0 %v296, 3
    %v450 = vpop.permute.xlu0 %449
    %451 = vrot.lane.b32.xlu0 %v299, 3
    %v452 = vpop.permute.xlu0 %451
    %453 = vrot.lane.b32.xlu0 %v301, 3
    %v454 = vpop.permute.xlu0 %453
    %455 = vrot.lane.b32.xlu0 %v304, 3
    %v456 = vpop.permute.xlu0 %455
    %457 = vrot.lane.b32.xlu0 %v306, 3
    %v458 = vpop.permute.xlu0 %457
    %459 = vrot.lane.b32.xlu0 %v309, 3
    %v460 = vpop.permute.xlu0 %459
    %461 = vrot.lane.b32.xlu0 %v311, 3
    %v462 = vpop.permute.xlu0 %461
    %463 = vrot.lane.b32.xlu0 %v314, 3
    %v464 = vpop.permute.xlu0 %463
    %465 = vrot.lane.b32.xlu0 %v316, 3
    %v466 = vpop.permute.xlu0 %465
    %467 = vrot.lane.b32.xlu0 %v319, 3
    %v468 = vpop.permute.xlu0 %467
    %469 = vrot.lane.b32.xlu0 %v321, 3
    %v470 = vpop.permute.xlu0 %469
    %471 = vrot.lane.b32.xlu0 %v324, 3
    %v472 = vpop.permute.xlu0 %471
    %473 = vrot.lane.b32.xlu0 %v326, 3
    %v474 = vpop.permute.xlu0 %473
    %475 = vrot.lane.b32.xlu0 %v329, 3
    %v476 = vpop.permute.xlu0 %475
    %477 = vrot.lane.b32.xlu0 %v331, 3
    %v478 = vpop.permute.xlu0 %477
    %479 = vrot.lane.b32.xlu0 %v334, 3
    %v480 = vpop.permute.xlu0 %479
    %481 = vrot.lane.b32.xlu0 %v336, 3
    %v482 = vpop.permute.xlu0 %481
    %483 = vrot.lane.b32.xlu0 %v339, 3
    %v484 = vpop.permute.xlu0 %483
    %485 = vrot.lane.b32.xlu0 %v341, 3
    %v486 = vpop.permute.xlu0 %485
    %487 = vrot.lane.b32.xlu0 %v344, 3
    %v488 = vpop.permute.xlu0 %487
    %489 = vrot.lane.b32.xlu0 %v346, 3
    %v490 = vpop.permute.xlu0 %489
    %491 = vrot.lane.b32.xlu0 %v349, 3
    %v492 = vpop.permute.xlu0 %491
    %493 = vrot.lane.b32.xlu0 %v351, 3
    %v494 = vpop.permute.xlu0 %493
    %495 = vrot.lane.b32.xlu0 %v354, 3
    %v496 = vpop.permute.xlu0 %495
    %497 = vrot.lane.b32.xlu0 %v356, 3
    %v498 = vpop.permute.xlu0 %497
    %499 = vrot.lane.b32.xlu0 %v359, 3
    %v500 = vpop.permute.xlu0 %499
    %501 = vrot.lane.b32.xlu0 %v361, 3
    %v502 = vpop.permute.xlu0 %501
    %503 = vrot.lane.b32.xlu0 %v364, 3
    %v504 = vpop.permute.xlu0 %503
    %505 = vrot.lane.b32.xlu0 %v366, 3
    %v506 = vpop.permute.xlu0 %505
    %507 = vrot.lane.b32.xlu0 %v369, 3
    %v508 = vpop.permute.xlu0 %507
    %509 = vrot.lane.b32.xlu0 %v371, 3
    %v510 = vpop.permute.xlu0 %509
    %511 = vrot.lane.b32.xlu0 %v374, 3
    %v512 = vpop.permute.xlu0 %511
    %513 = vrot.lane.b32.xlu0 %v376, 3
    %v514 = vpop.permute.xlu0 %513
    %515 = vrot.lane.b32.xlu0 %v379, 3
    %v516 = vpop.permute.xlu0 %515
    %517 = vrot.lane.b32.xlu0 %v381, 3
    %v518 = vpop.permute.xlu0 %517
    %519 = vrot.lane.b32.xlu0 %v384, 3
    %v520 = vpop.permute.xlu0 %519
    %521 = vrot.lane.b32.xlu0 %v386, 3
    %v522 = vpop.permute.xlu0 %521
    %523 = vrot.lane.b32.xlu0 %v389, 3
    %v524 = vpop.permute.xlu0 %523
    %525 = vrot.lane.b32.xlu0 %v391, 3
    %v526 = vpop.permute.xlu0 %525
    %527 = vrot.lane.b32.xlu0 %v394, 3
    %v528 = vpop.permute.xlu0 %527
    %529 = vrot.lane.b32.xlu0 %v396, 3
    %v530 = vpop.permute.xlu0 %529
    %531 = vrot.lane.b32.xlu0 %v399, 3
    %v532 = vpop.permute.xlu0 %531
    %533 = vrot.lane.b32.xlu0 %v401, 3
    %v534 = vpop.permute.xlu0 %533
    %535 = vrot.lane.b32.xlu0 %v404, 3
    %v536 = vpop.permute.xlu0 %535
    %537 = vrot.lane.b32.xlu0 %v406, 3
    %v538 = vpop.permute.xlu0 %537
    %539 = vrot.lane.b32.xlu0 %v409, 3
    %v540 = vpop.permute.xlu0 %539
    %541 = vrot.lane.b32.xlu0 %v411, 3
    %v542 = vpop.permute.xlu0 %541
    %543 = vrot.lane.b32.xlu0 %v414, 3
    %v544 = vpop.permute.xlu0 %543
    %545 = vrot.lane.b32.xlu0 %v416, 3
    %v546 = vpop.permute.xlu0 %545
    %547 = vrot.lane.b32.xlu0 %v419, 3
    %v548 = vpop.permute.xlu0 %547
    %549 = vrot.lane.b32.xlu0 %v421, 3
    %v550 = vpop.permute.xlu0 %549
    %551 = vrot.lane.b32.xlu0 %v424, 3
    %v552 = vpop.permute.xlu0 %551
    %553 = vrot.lane.b32.xlu0 %v426, 3
    %v554 = vpop.permute.xlu0 %553
    %vm619 = vcmask 1045504
    %v620 = vrot.slane %v39, 2
    %v621 = vrot.slane %v40, 2
    %v622 = vsel %vm619, %v620, %v621
    %v623 = vrot.slane %v41, 2
    %v624 = vsel %vm619, %v621, %v623
    %v625 = vrot.slane %v42, 2
    %v626 = vrot.slane %v43, 2
    %v627 = vsel %vm619, %v625, %v626
    %v628 = vrot.slane %v44, 2
    %v629 = vsel %vm619, %v626, %v628
    %v630 = vrot.slane %v45, 2
    %v631 = vrot.slane %v46, 2
    %v632 = vsel %vm619, %v630, %v631
    %v633 = vrot.slane %v47, 2
    %v634 = vsel %vm619, %v631, %v633
    %v635 = vrot.slane %v48, 2
    %v636 = vrot.slane %v49, 2
    %v637 = vsel %vm619, %v635, %v636
    %v638 = vrot.slane %v50, 2
    %v639 = vsel %vm619, %v636, %v638
    %v640 = vrot.slane %v51, 2
    %v641 = vrot.slane %v52, 2
    %v642 = vsel %vm619, %v640, %v641
    %v643 = vrot.slane %v53, 2
    %v644 = vsel %vm619, %v641, %v643
    %v645 = vrot.slane %v54, 2
    %v646 = vrot.slane %v55, 2
    %v647 = vsel %vm619, %v645, %v646
    %v648 = vrot.slane %v56, 2
    %v649 = vsel %vm619, %v646, %v648
    %v650 = vrot.slane %v57, 2
    %v651 = vrot.slane %v58, 2
    %v652 = vsel %vm619, %v650, %v651
    %v653 = vrot.slane %v59, 2
    %v654 = vsel %vm619, %v651, %v653
    %v655 = vrot.slane %v60, 2
    %v656 = vrot.slane %v61, 2
    %v657 = vsel %vm619, %v655, %v656
    %v658 = vrot.slane %v62, 2
    %v659 = vsel %vm619, %v656, %v658
    %v660 = vrot.slane %v63, 2
    %v661 = vrot.slane %v64, 2
    %v662 = vsel %vm619, %v660, %v661
    %v663 = vrot.slane %v65, 2
    %v664 = vsel %vm619, %v661, %v663
    %v665 = vrot.slane %v66, 2
    %v666 = vrot.slane %v67, 2
    %v667 = vsel %vm619, %v665, %v666
    %v668 = vrot.slane %v68, 2
    %v669 = vsel %vm619, %v666, %v668
    %v670 = vrot.slane %v69, 2
    %v671 = vrot.slane %v70, 2
    %v672 = vsel %vm619, %v670, %v671
    %v673 = vrot.slane %v71, 2
    %v674 = vsel %vm619, %v671, %v673
    %v675 = vrot.slane %v72, 2
    %v676 = vrot.slane %v73, 2
    %v677 = vsel %vm619, %v675, %v676
    %v678 = vrot.slane %v74, 2
    %v679 = vsel %vm619, %v676, %v678
    %v680 = vrot.slane %v75, 2
    %v681 = vrot.slane %v76, 2
    %v682 = vsel %vm619, %v680, %v681
    %v683 = vrot.slane %v77, 2
    %v684 = vsel %vm619, %v681, %v683
    %v685 = vrot.slane %v78, 2
    %v686 = vrot.slane %v79, 2
    %v687 = vsel %vm619, %v685, %v686
    %v688 = vrot.slane %v80, 2
    %v689 = vsel %vm619, %v686, %v688
    %v690 = vrot.slane %v81, 2
    %v691 = vrot.slane %v82, 2
    %v692 = vsel %vm619, %v690, %v691
    %v693 = vrot.slane %v83, 2
    %v694 = vsel %vm619, %v691, %v693
    %v695 = vrot.slane %v84, 2
    %v696 = vrot.slane %v85, 2
    %v697 = vsel %vm619, %v695, %v696
    %v698 = vrot.slane %v86, 2
    %v699 = vsel %vm619, %v696, %v698
    %v700 = vrot.slane %v99, 2
    %v701 = vrot.slane %v100, 2
    %v702 = vsel %vm619, %v700, %v701
    %v703 = vrot.slane %v101, 2
    %v704 = vsel %vm619, %v701, %v703
    %v705 = vrot.slane %v102, 2
    %v706 = vrot.slane %v103, 2
    %v707 = vsel %vm619, %v705, %v706
    %v708 = vrot.slane %v104, 2
    %v709 = vsel %vm619, %v706, %v708
    %v710 = vrot.slane %v105, 2
    %v711 = vrot.slane %v106, 2
    %v712 = vsel %vm619, %v710, %v711
    %v713 = vrot.slane %v107, 2
    %v714 = vsel %vm619, %v711, %v713
    %v715 = vrot.slane %v108, 2
    %v716 = vrot.slane %v109, 2
    %v717 = vsel %vm619, %v715, %v716
    %v718 = vrot.slane %v110, 2
    %v719 = vsel %vm619, %v716, %v718
    %v720 = vrot.slane %v111, 2
    %v721 = vrot.slane %v112, 2
    %v722 = vsel %vm619, %v720, %v721
    %v723 = vrot.slane %v113, 2
    %v724 = vsel %vm619, %v721, %v723
    %v725 = vrot.slane %v114, 2
    %v726 = vrot.slane %v115, 2
    %v727 = vsel %vm619, %v725, %v726
    %v728 = vrot.slane %v116, 2
    %v729 = vsel %vm619, %v726, %v728
    %v730 = vrot.slane %v117, 2
    %v731 = vrot.slane %v118, 2
    %v732 = vsel %vm619, %v730, %v731
    %v733 = vrot.slane %v119, 2
    %v734 = vsel %vm619, %v731, %v733
    %v735 = vrot.slane %v120, 2
    %v736 = vrot.slane %v121, 2
    %v737 = vsel %vm619, %v735, %v736
    %v738 = vrot.slane %v122, 2
    %v739 = vsel %vm619, %v736, %v738
    %v740 = vrot.slane %v123, 2
    %v741 = vrot.slane %v124, 2
    %v742 = vsel %vm619, %v740, %v741
    %v743 = vrot.slane %v125, 2
    %v744 = vsel %vm619, %v741, %v743
    %v745 = vrot.slane %v126, 2
    %v746 = vrot.slane %v127, 2
    %v747 = vsel %vm619, %v745, %v746
    %v748 = vrot.slane %v128, 2
    %v749 = vsel %vm619, %v746, %v748
    %v750 = vrot.slane %v129, 2
    %v751 = vrot.slane %v130, 2
    %v752 = vsel %vm619, %v750, %v751
    %v753 = vrot.slane %v131, 2
    %v754 = vsel %vm619, %v751, %v753
    %v755 = vrot.slane %v132, 2
    %v756 = vrot.slane %v133, 2
    %v757 = vsel %vm619, %v755, %v756
    %v758 = vrot.slane %v134, 2
    %v759 = vsel %vm619, %v756, %v758
    %v760 = vrot.slane %v135, 2
    %v761 = vrot.slane %v136, 2
    %v762 = vsel %vm619, %v760, %v761
    %v763 = vrot.slane %v137, 2
    %v764 = vsel %vm619, %v761, %v763
    %v765 = vrot.slane %v138, 2
    %v766 = vrot.slane %v139, 2
    %v767 = vsel %vm619, %v765, %v766
    %v768 = vrot.slane %v140, 2
    %v769 = vsel %vm619, %v766, %v768
    %v770 = vrot.slane %v141, 2
    %v771 = vrot.slane %v142, 2
    %v772 = vsel %vm619, %v770, %v771
    %v773 = vrot.slane %v143, 2
    %v774 = vsel %vm619, %v771, %v773
    %v775 = vrot.slane %v144, 2
    %v776 = vrot.slane %v145, 2
    %v777 = vsel %vm619, %v775, %v776
    %v778 = vrot.slane %v146, 2
    %v779 = vsel %vm619, %v776, %v778
    %780 = vrot.lane.b32.xlu0 %v622, 6
    %v781 = vpop.permute.xlu0 %780
    %782 = vrot.lane.b32.xlu0 %v624, 6
    %v783 = vpop.permute.xlu0 %782
    %784 = vrot.lane.b32.xlu0 %v627, 6
    %v785 = vpop.permute.xlu0 %784
    %786 = vrot.lane.b32.xlu0 %v629, 6
    %v787 = vpop.permute.xlu0 %786
    %788 = vrot.lane.b32.xlu0 %v632, 6
    %v789 = vpop.permute.xlu0 %788
    %790 = vrot.lane.b32.xlu0 %v634, 6
    %v791 = vpop.permute.xlu0 %790
    %792 = vrot.lane.b32.xlu0 %v637, 6
    %v793 = vpop.permute.xlu0 %792
    %794 = vrot.lane.b32.xlu0 %v639, 6
    %v795 = vpop.permute.xlu0 %794
    %796 = vrot.lane.b32.xlu0 %v642, 6
    %v797 = vpop.permute.xlu0 %796
    %798 = vrot.lane.b32.xlu0 %v644, 6
    %v799 = vpop.permute.xlu0 %798
    %800 = vrot.lane.b32.xlu0 %v647, 6
    %v801 = vpop.permute.xlu0 %800
    %802 = vrot.lane.b32.xlu0 %v649, 6
    %v803 = vpop.permute.xlu0 %802
    %804 = vrot.lane.b32.xlu0 %v652, 6
    %v805 = vpop.permute.xlu0 %804
    %806 = vrot.lane.b32.xlu0 %v654, 6
    %v807 = vpop.permute.xlu0 %806
    %808 = vrot.lane.b32.xlu0 %v657, 6
    %v809 = vpop.permute.xlu0 %808
    %810 = vrot.lane.b32.xlu0 %v659, 6
    %v811 = vpop.permute.xlu0 %810
    %812 = vrot.lane.b32.xlu0 %v662, 6
    %v813 = vpop.permute.xlu0 %812
    %814 = vrot.lane.b32.xlu0 %v664, 6
    %v815 = vpop.permute.xlu0 %814
    %816 = vrot.lane.b32.xlu0 %v667, 6
    %v817 = vpop.permute.xlu0 %816
    %818 = vrot.lane.b32.xlu0 %v669, 6
    %v819 = vpop.permute.xlu0 %818
    %820 = vrot.lane.b32.xlu0 %v672, 6
    %v821 = vpop.permute.xlu0 %820
    %822 = vrot.lane.b32.xlu0 %v674, 6
    %v823 = vpop.permute.xlu0 %822
    %824 = vrot.lane.b32.xlu0 %v677, 6
    %v825 = vpop.permute.xlu0 %824
    %826 = vrot.lane.b32.xlu0 %v679, 6
    %v827 = vpop.permute.xlu0 %826
    %828 = vrot.lane.b32.xlu0 %v682, 6
    %v829 = vpop.permute.xlu0 %828
    %830 = vrot.lane.b32.xlu0 %v684, 6
    %v831 = vpop.permute.xlu0 %830
    %832 = vrot.lane.b32.xlu0 %v687, 6
    %v833 = vpop.permute.xlu0 %832
    %834 = vrot.lane.b32.xlu0 %v689, 6
    %v835 = vpop.permute.xlu0 %834
    %836 = vrot.lane.b32.xlu0 %v692, 6
    %v837 = vpop.permute.xlu0 %836
    %838 = vrot.lane.b32.xlu0 %v694, 6
    %v839 = vpop.permute.xlu0 %838
    %840 = vrot.lane.b32.xlu0 %v697, 6
    %v841 = vpop.permute.xlu0 %840
    %842 = vrot.lane.b32.xlu0 %v699, 6
    %v843 = vpop.permute.xlu0 %842
    %844 = vrot.lane.b32.xlu0 %v702, 6
    %v845 = vpop.permute.xlu0 %844
    %846 = vrot.lane.b32.xlu0 %v704, 6
    %v847 = vpop.permute.xlu0 %846
    %848 = vrot.lane.b32.xlu0 %v707, 6
    %v849 = vpop.permute.xlu0 %848
    %850 = vrot.lane.b32.xlu0 %v709, 6
    %v851 = vpop.permute.xlu0 %850
    %852 = vrot.lane.b32.xlu0 %v712, 6
    %v853 = vpop.permute.xlu0 %852
    %854 = vrot.lane.b32.xlu0 %v714, 6
    %v855 = vpop.permute.xlu0 %854
    %856 = vrot.lane.b32.xlu0 %v717, 6
    %v857 = vpop.permute.xlu0 %856
    %858 = vrot.lane.b32.xlu0 %v719, 6
    %v859 = vpop.permute.xlu0 %858
    %860 = vrot.lane.b32.xlu0 %v722, 6
    %v861 = vpop.permute.xlu0 %860
    %862 = vrot.lane.b32.xlu0 %v724, 6
    %v863 = vpop.permute.xlu0 %862
    %864 = vrot.lane.b32.xlu0 %v727, 6
    %v865 = vpop.permute.xlu0 %864
    %866 = vrot.lane.b32.xlu0 %v729, 6
    %v867 = vpop.permute.xlu0 %866
    %868 = vrot.lane.b32.xlu0 %v732, 6
    %v869 = vpop.permute.xlu0 %868
    %870 = vrot.lane.b32.xlu0 %v734, 6
    %v871 = vpop.permute.xlu0 %870
    %872 = vrot.lane.b32.xlu0 %v737, 6
    %v873 = vpop.permute.xlu0 %872
    %874 = vrot.lane.b32.xlu0 %v739, 6
    %v875 = vpop.permute.xlu0 %874
    %876 = vrot.lane.b32.xlu0 %v742, 6
    %v877 = vpop.permute.xlu0 %876
    %878 = vrot.lane.b32.xlu0 %v744, 6
    %v879 = vpop.permute.xlu0 %878
    %880 = vrot.lane.b32.xlu0 %v747, 6
    %v881 = vpop.permute.xlu0 %880
    %882 = vrot.lane.b32.xlu0 %v749, 6
    %v883 = vpop.permute.xlu0 %882
    %884 = vrot.lane.b32.xlu0 %v752, 6
    %v885 = vpop.permute.xlu0 %884
    %886 = vrot.lane.b32.xlu0 %v754, 6
    %v887 = vpop.permute.xlu0 %886
    %888 = vrot.lane.b32.xlu0 %v757, 6
    %v889 = vpop.permute.xlu0 %888
    %890 = vrot.lane.b32.xlu0 %v759, 6
    %v891 = vpop.permute.xlu0 %890
    %892 = vrot.lane.b32.xlu0 %v762, 6
    %v893 = vpop.permute.xlu0 %892
    %894 = vrot.lane.b32.xlu0 %v764, 6
    %v895 = vpop.permute.xlu0 %894
    %896 = vrot.lane.b32.xlu0 %v767, 6
    %v897 = vpop.permute.xlu0 %896
    %898 = vrot.lane.b32.xlu0 %v769, 6
    %v899 = vpop.permute.xlu0 %898
    %900 = vrot.lane.b32.xlu0 %v772, 6
    %v901 = vpop.permute.xlu0 %900
    %902 = vrot.lane.b32.xlu0 %v774, 6
    %v903 = vpop.permute.xlu0 %902
    %904 = vrot.lane.b32.xlu0 %v777, 6
    %v905 = vpop.permute.xlu0 %904
    %906 = vrot.lane.b32.xlu0 %v779, 6
    %v907 = vpop.permute.xlu0 %906
    %vm972 = vcmask 1044480
    %v973 = vrot.slane %v39, 3
    %v974 = vrot.slane %v40, 3
    %v975 = vsel %vm972, %v973, %v974
    %v976 = vrot.slane %v41, 3
    %v977 = vsel %vm972, %v974, %v976
    %v978 = vrot.slane %v42, 3
    %v979 = vrot.slane %v43, 3
    %v980 = vsel %vm972, %v978, %v979
    %v981 = vrot.slane %v44, 3
    %v982 = vsel %vm972, %v979, %v981
    %v983 = vrot.slane %v45, 3
    %v984 = vrot.slane %v46, 3
    %v985 = vsel %vm972, %v983, %v984
    %v986 = vrot.slane %v47, 3
    %v987 = vsel %vm972, %v984, %v986
    %v988 = vrot.slane %v48, 3
    %v989 = vrot.slane %v49, 3
    %v990 = vsel %vm972, %v988, %v989
    %v991 = vrot.slane %v50, 3
    %v992 = vsel %vm972, %v989, %v991
    %v993 = vrot.slane %v51, 3
    %v994 = vrot.slane %v52, 3
    %v995 = vsel %vm972, %v993, %v994
    %v996 = vrot.slane %v53, 3
    %v997 = vsel %vm972, %v994, %v996
    %v998 = vrot.slane %v54, 3
    %v999 = vrot.slane %v55, 3
    %v1000 = vsel %vm972, %v998, %v999
    %v1001 = vrot.slane %v56, 3
    %v1002 = vsel %vm972, %v999, %v1001
    %v1003 = vrot.slane %v57, 3
    %v1004 = vrot.slane %v58, 3
    %v1005 = vsel %vm972, %v1003, %v1004
    %v1006 = vrot.slane %v59, 3
    %v1007 = vsel %vm972, %v1004, %v1006
    %v1008 = vrot.slane %v60, 3
    %v1009 = vrot.slane %v61, 3
    %v1010 = vsel %vm972, %v1008, %v1009
    %v1011 = vrot.slane %v62, 3
    %v1012 = vsel %vm972, %v1009, %v1011
    %v1013 = vrot.slane %v63, 3
    %v1014 = vrot.slane %v64, 3
    %v1015 = vsel %vm972, %v1013, %v1014
    %v1016 = vrot.slane %v65, 3
    %v1017 = vsel %vm972, %v1014, %v1016
    %v1018 = vrot.slane %v66, 3
    %v1019 = vrot.slane %v67, 3
    %v1020 = vsel %vm972, %v1018, %v1019
    %v1021 = vrot.slane %v68, 3
    %v1022 = vsel %vm972, %v1019, %v1021
    %v1023 = vrot.slane %v69, 3
    %v1024 = vrot.slane %v70, 3
    %v1025 = vsel %vm972, %v1023, %v1024
    %v1026 = vrot.slane %v71, 3
    %v1027 = vsel %vm972, %v1024, %v1026
    %v1028 = vrot.slane %v72, 3
    %v1029 = vrot.slane %v73, 3
    %v1030 = vsel %vm972, %v1028, %v1029
    %v1031 = vrot.slane %v74, 3
    %v1032 = vsel %vm972, %v1029, %v1031
    %v1033 = vrot.slane %v75, 3
    %v1034 = vrot.slane %v76, 3
    %v1035 = vsel %vm972, %v1033, %v1034
    %v1036 = vrot.slane %v77, 3
    %v1037 = vsel %vm972, %v1034, %v1036
    %v1038 = vrot.slane %v78, 3
    %v1039 = vrot.slane %v79, 3
    %v1040 = vsel %vm972, %v1038, %v1039
    %v1041 = vrot.slane %v80, 3
    %v1042 = vsel %vm972, %v1039, %v1041
    %v1043 = vrot.slane %v81, 3
    %v1044 = vrot.slane %v82, 3
    %v1045 = vsel %vm972, %v1043, %v1044
    %v1046 = vrot.slane %v83, 3
    %v1047 = vsel %vm972, %v1044, %v1046
    %v1048 = vrot.slane %v84, 3
    %v1049 = vrot.slane %v85, 3
    %v1050 = vsel %vm972, %v1048, %v1049
    %v1051 = vrot.slane %v86, 3
    %v1052 = vsel %vm972, %v1049, %v1051
    %v1053 = vrot.slane %v99, 3
    %v1054 = vrot.slane %v100, 3
    %v1055 = vsel %vm972, %v1053, %v1054
    %v1056 = vrot.slane %v101, 3
    %v1057 = vsel %vm972, %v1054, %v1056
    %v1058 = vrot.slane %v102, 3
    %v1059 = vrot.slane %v103, 3
    %v1060 = vsel %vm972, %v1058, %v1059
    %v1061 = vrot.slane %v104, 3
    %v1062 = vsel %vm972, %v1059, %v1061
    %v1063 = vrot.slane %v105, 3
    %v1064 = vrot.slane %v106, 3
    %v1065 = vsel %vm972, %v1063, %v1064
    %v1066 = vrot.slane %v107, 3
    %v1067 = vsel %vm972, %v1064, %v1066
    %v1068 = vrot.slane %v108, 3
    %v1069 = vrot.slane %v109, 3
    %v1070 = vsel %vm972, %v1068, %v1069
    %v1071 = vrot.slane %v110, 3
    %v1072 = vsel %vm972, %v1069, %v1071
    %v1073 = vrot.slane %v111, 3
    %v1074 = vrot.slane %v112, 3
    %v1075 = vsel %vm972, %v1073, %v1074
    %v1076 = vrot.slane %v113, 3
    %v1077 = vsel %vm972, %v1074, %v1076
    %v1078 = vrot.slane %v114, 3
    %v1079 = vrot.slane %v115, 3
    %v1080 = vsel %vm972, %v1078, %v1079
    %v1081 = vrot.slane %v116, 3
    %v1082 = vsel %vm972, %v1079, %v1081
    %v1083 = vrot.slane %v117, 3
    %v1084 = vrot.slane %v118, 3
    %v1085 = vsel %vm972, %v1083, %v1084
    %v1086 = vrot.slane %v119, 3
    %v1087 = vsel %vm972, %v1084, %v1086
    %v1088 = vrot.slane %v120, 3
    %v1089 = vrot.slane %v121, 3
    %v1090 = vsel %vm972, %v1088, %v1089
    %v1091 = vrot.slane %v122, 3
    %v1092 = vsel %vm972, %v1089, %v1091
    %v1093 = vrot.slane %v123, 3
    %v1094 = vrot.slane %v124, 3
    %v1095 = vsel %vm972, %v1093, %v1094
    %v1096 = vrot.slane %v125, 3
    %v1097 = vsel %vm972, %v1094, %v1096
    %v1098 = vrot.slane %v126, 3
    %v1099 = vrot.slane %v127, 3
    %v1100 = vsel %vm972, %v1098, %v1099
    %v1101 = vrot.slane %v128, 3
    %v1102 = vsel %vm972, %v1099, %v1101
    %v1103 = vrot.slane %v129, 3
    %v1104 = vrot.slane %v130, 3
    %v1105 = vsel %vm972, %v1103, %v1104
    %v1106 = vrot.slane %v131, 3
    %v1107 = vsel %vm972, %v1104, %v1106
    %v1108 = vrot.slane %v132, 3
    %v1109 = vrot.slane %v133, 3
    %v1110 = vsel %vm972, %v1108, %v1109
    %v1111 = vrot.slane %v134, 3
    %v1112 = vsel %vm972, %v1109, %v1111
    %v1113 = vrot.slane %v135, 3
    %v1114 = vrot.slane %v136, 3
    %v1115 = vsel %vm972, %v1113, %v1114
    %v1116 = vrot.slane %v137, 3
    %v1117 = vsel %vm972, %v1114, %v1116
    %v1118 = vrot.slane %v138, 3
    %v1119 = vrot.slane %v139, 3
    %v1120 = vsel %vm972, %v1118, %v1119
    %v1121 = vrot.slane %v140, 3
    %v1122 = vsel %vm972, %v1119, %v1121
    %v1123 = vrot.slane %v141, 3
    %v1124 = vrot.slane %v142, 3
    %v1125 = vsel %vm972, %v1123, %v1124
    %v1126 = vrot.slane %v143, 3
    %v1127 = vsel %vm972, %v1124, %v1126
    %v1128 = vrot.slane %v144, 3
    %v1129 = vrot.slane %v145, 3
    %v1130 = vsel %vm972, %v1128, %v1129
    %v1131 = vrot.slane %v146, 3
    %v1132 = vsel %vm972, %v1129, %v1131
    %1133 = vrot.lane.b32.xlu0 %v975, 9
    %v1134 = vpop.permute.xlu0 %1133
    %1135 = vrot.lane.b32.xlu0 %v977, 9
    %v1136 = vpop.permute.xlu0 %1135
    %1137 = vrot.lane.b32.xlu0 %v980, 9
    %v1138 = vpop.permute.xlu0 %1137
    %1139 = vrot.lane.b32.xlu0 %v982, 9
    %v1140 = vpop.permute.xlu0 %1139
    %1141 = vrot.lane.b32.xlu0 %v985, 9
    %v1142 = vpop.permute.xlu0 %1141
    %1143 = vrot.lane.b32.xlu0 %v987, 9
    %v1144 = vpop.permute.xlu0 %1143
    %1145 = vrot.lane.b32.xlu0 %v990, 9
    %v1146 = vpop.permute.xlu0 %1145
    %1147 = vrot.lane.b32.xlu0 %v992, 9
    %v1148 = vpop.permute.xlu0 %1147
    %1149 = vrot.lane.b32.xlu0 %v995, 9
    %v1150 = vpop.permute.xlu0 %1149
    %1151 = vrot.lane.b32.xlu0 %v997, 9
    %v1152 = vpop.permute.xlu0 %1151
    %1153 = vrot.lane.b32.xlu0 %v1000, 9
    %v1154 = vpop.permute.xlu0 %1153
    %1155 = vrot.lane.b32.xlu0 %v1002, 9
    %v1156 = vpop.permute.xlu0 %1155
    %1157 = vrot.lane.b32.xlu0 %v1005, 9
    %v1158 = vpop.permute.xlu0 %1157
    %1159 = vrot.lane.b32.xlu0 %v1007, 9
    %v1160 = vpop.permute.xlu0 %1159
    %1161 = vrot.lane.b32.xlu0 %v1010, 9
    %v1162 = vpop.permute.xlu0 %1161
    %1163 = vrot.lane.b32.xlu0 %v1012, 9
    %v1164 = vpop.permute.xlu0 %1163
    %1165 = vrot.lane.b32.xlu0 %v1015, 9
    %v1166 = vpop.permute.xlu0 %1165
    %1167 = vrot.lane.b32.xlu0 %v1017, 9
    %v1168 = vpop.permute.xlu0 %1167
    %1169 = vrot.lane.b32.xlu0 %v1020, 9
    %v1170 = vpop.permute.xlu0 %1169
    %1171 = vrot.lane.b32.xlu0 %v1022, 9
    %v1172 = vpop.permute.xlu0 %1171
    %1173 = vrot.lane.b32.xlu0 %v1025, 9
    %v1174 = vpop.permute.xlu0 %1173
    %1175 = vrot.lane.b32.xlu0 %v1027, 9
    %v1176 = vpop.permute.xlu0 %1175
    %1177 = vrot.lane.b32.xlu0 %v1030, 9
    %v1178 = vpop.permute.xlu0 %1177
    %1179 = vrot.lane.b32.xlu0 %v1032, 9
    %v1180 = vpop.permute.xlu0 %1179
    %1181 = vrot.lane.b32.xlu0 %v1035, 9
    %v1182 = vpop.permute.xlu0 %1181
    %1183 = vrot.lane.b32.xlu0 %v1037, 9
    %v1184 = vpop.permute.xlu0 %1183
    %1185 = vrot.lane.b32.xlu0 %v1040, 9
    %v1186 = vpop.permute.xlu0 %1185
    %1187 = vrot.lane.b32.xlu0 %v1042, 9
    %v1188 = vpop.permute.xlu0 %1187
    %1189 = vrot.lane.b32.xlu0 %v1045, 9
    %v1190 = vpop.permute.xlu0 %1189
    %1191 = vrot.lane.b32.xlu0 %v1047, 9
    %v1192 = vpop.permute.xlu0 %1191
    %1193 = vrot.lane.b32.xlu0 %v1050, 9
    %v1194 = vpop.permute.xlu0 %1193
    %1195 = vrot.lane.b32.xlu0 %v1052, 9
    %v1196 = vpop.permute.xlu0 %1195
    %1197 = vrot.lane.b32.xlu0 %v1055, 9
    %v1198 = vpop.permute.xlu0 %1197
    %1199 = vrot.lane.b32.xlu0 %v1057, 9
    %v1200 = vpop.permute.xlu0 %1199
    %1201 = vrot.lane.b32.xlu0 %v1060, 9
    %v1202 = vpop.permute.xlu0 %1201
    %1203 = vrot.lane.b32.xlu0 %v1062, 9
    %v1204 = vpop.permute.xlu0 %1203
    %1205 = vrot.lane.b32.xlu0 %v1065, 9
    %v1206 = vpop.permute.xlu0 %1205
    %1207 = vrot.lane.b32.xlu0 %v1067, 9
    %v1208 = vpop.permute.xlu0 %1207
    %1209 = vrot.lane.b32.xlu0 %v1070, 9
    %v1210 = vpop.permute.xlu0 %1209
    %1211 = vrot.lane.b32.xlu0 %v1072, 9
    %v1212 = vpop.permute.xlu0 %1211
    %1213 = vrot.lane.b32.xlu0 %v1075, 9
    %v1214 = vpop.permute.xlu0 %1213
    %1215 = vrot.lane.b32.xlu0 %v1077, 9
    %v1216 = vpop.permute.xlu0 %1215
    %1217 = vrot.lane.b32.xlu0 %v1080, 9
    %v1218 = vpop.permute.xlu0 %1217
    %1219 = vrot.lane.b32.xlu0 %v1082, 9
    %v1220 = vpop.permute.xlu0 %1219
    %1221 = vrot.lane.b32.xlu0 %v1085, 9
    %v1222 = vpop.permute.xlu0 %1221
    %1223 = vrot.lane.b32.xlu0 %v1087, 9
    %v1224 = vpop.permute.xlu0 %1223
    %1225 = vrot.lane.b32.xlu0 %v1090, 9
    %v1226 = vpop.permute.xlu0 %1225
    %1227 = vrot.lane.b32.xlu0 %v1092, 9
    %v1228 = vpop.permute.xlu0 %1227
    %1229 = vrot.lane.b32.xlu0 %v1095, 9
    %v1230 = vpop.permute.xlu0 %1229
    %1231 = vrot.lane.b32.xlu0 %v1097, 9
    %v1232 = vpop.permute.xlu0 %1231
    %1233 = vrot.lane.b32.xlu0 %v1100, 9
    %v1234 = vpop.permute.xlu0 %1233
    %1235 = vrot.lane.b32.xlu0 %v1102, 9
    %v1236 = vpop.permute.xlu0 %1235
    %1237 = vrot.lane.b32.xlu0 %v1105, 9
    %v1238 = vpop.permute.xlu0 %1237
    %1239 = vrot.lane.b32.xlu0 %v1107, 9
    %v1240 = vpop.permute.xlu0 %1239
    %1241 = vrot.lane.b32.xlu0 %v1110, 9
    %v1242 = vpop.permute.xlu0 %1241
    %1243 = vrot.lane.b32.xlu0 %v1112, 9
    %v1244 = vpop.permute.xlu0 %1243
    %1245 = vrot.lane.b32.xlu0 %v1115, 9
    %v1246 = vpop.permute.xlu0 %1245
    %1247 = vrot.lane.b32.xlu0 %v1117, 9
    %v1248 = vpop.permute.xlu0 %1247
    %1249 = vrot.lane.b32.xlu0 %v1120, 9
    %v1250 = vpop.permute.xlu0 %1249
    %1251 = vrot.lane.b32.xlu0 %v1122, 9
    %v1252 = vpop.permute.xlu0 %1251
    %1253 = vrot.lane.b32.xlu0 %v1125, 9
    %v1254 = vpop.permute.xlu0 %1253
    %1255 = vrot.lane.b32.xlu0 %v1127, 9
    %v1256 = vpop.permute.xlu0 %1255
    %1257 = vrot.lane.b32.xlu0 %v1130, 9
    %v1258 = vpop.permute.xlu0 %1257
    %1259 = vrot.lane.b32.xlu0 %v1132, 9
    %v1260 = vpop.permute.xlu0 %1259
    %vm1325 = vcmask 1043456
    %v1326 = vrot.slane %v39, 4
    %v1327 = vrot.slane %v40, 4
    %v1328 = vsel %vm1325, %v1326, %v1327
    %v1329 = vrot.slane %v41, 4
    %v1330 = vsel %vm1325, %v1327, %v1329
    %v1331 = vrot.slane %v42, 4
    %v1332 = vrot.slane %v43, 4
    %v1333 = vsel %vm1325, %v1331, %v1332
    %v1334 = vrot.slane %v44, 4
    %v1335 = vsel %vm1325, %v1332, %v1334
    %v1336 = vrot.slane %v45, 4
    %v1337 = vrot.slane %v46, 4
    %v1338 = vsel %vm1325, %v1336, %v1337
    %v1339 = vrot.slane %v47, 4
    %v1340 = vsel %vm1325, %v1337, %v1339
    %v1341 = vrot.slane %v48, 4
    %v1342 = vrot.slane %v49, 4
    %v1343 = vsel %vm1325, %v1341, %v1342
    %v1344 = vrot.slane %v50, 4
    %v1345 = vsel %vm1325, %v1342, %v1344
    %v1346 = vrot.slane %v51, 4
    %v1347 = vrot.slane %v52, 4
    %v1348 = vsel %vm1325, %v1346, %v1347
    %v1349 = vrot.slane %v53, 4
    %v1350 = vsel %vm1325, %v1347, %v1349
    %v1351 = vrot.slane %v54, 4
    %v1352 = vrot.slane %v55, 4
    %v1353 = vsel %vm1325, %v1351, %v1352
    %v1354 = vrot.slane %v56, 4
    %v1355 = vsel %vm1325, %v1352, %v1354
    %v1356 = vrot.slane %v57, 4
    %v1357 = vrot.slane %v58, 4
    %v1358 = vsel %vm1325, %v1356, %v1357
    %v1359 = vrot.slane %v59, 4
    %v1360 = vsel %vm1325, %v1357, %v1359
    %v1361 = vrot.slane %v60, 4
    %v1362 = vrot.slane %v61, 4
    %v1363 = vsel %vm1325, %v1361, %v1362
    %v1364 = vrot.slane %v62, 4
    %v1365 = vsel %vm1325, %v1362, %v1364
    %v1366 = vrot.slane %v63, 4
    %v1367 = vrot.slane %v64, 4
    %v1368 = vsel %vm1325, %v1366, %v1367
    %v1369 = vrot.slane %v65, 4
    %v1370 = vsel %vm1325, %v1367, %v1369
    %v1371 = vrot.slane %v66, 4
    %v1372 = vrot.slane %v67, 4
    %v1373 = vsel %vm1325, %v1371, %v1372
    %v1374 = vrot.slane %v68, 4
    %v1375 = vsel %vm1325, %v1372, %v1374
    %v1376 = vrot.slane %v69, 4
    %v1377 = vrot.slane %v70, 4
    %v1378 = vsel %vm1325, %v1376, %v1377
    %v1379 = vrot.slane %v71, 4
    %v1380 = vsel %vm1325, %v1377, %v1379
    %v1381 = vrot.slane %v72, 4
    %v1382 = vrot.slane %v73, 4
    %v1383 = vsel %vm1325, %v1381, %v1382
    %v1384 = vrot.slane %v74, 4
    %v1385 = vsel %vm1325, %v1382, %v1384
    %v1386 = vrot.slane %v75, 4
    %v1387 = vrot.slane %v76, 4
    %v1388 = vsel %vm1325, %v1386, %v1387
    %v1389 = vrot.slane %v77, 4
    %v1390 = vsel %vm1325, %v1387, %v1389
    %v1391 = vrot.slane %v78, 4
    %v1392 = vrot.slane %v79, 4
    %v1393 = vsel %vm1325, %v1391, %v1392
    %v1394 = vrot.slane %v80, 4
    %v1395 = vsel %vm1325, %v1392, %v1394
    %v1396 = vrot.slane %v81, 4
    %v1397 = vrot.slane %v82, 4
    %v1398 = vsel %vm1325, %v1396, %v1397
    %v1399 = vrot.slane %v83, 4
    %v1400 = vsel %vm1325, %v1397, %v1399
    %v1401 = vrot.slane %v84, 4
    %v1402 = vrot.slane %v85, 4
    %v1403 = vsel %vm1325, %v1401, %v1402
    %v1404 = vrot.slane %v86, 4
    %v1405 = vsel %vm1325, %v1402, %v1404
    %v1406 = vrot.slane %v99, 4
    %v1407 = vrot.slane %v100, 4
    %v1408 = vsel %vm1325, %v1406, %v1407
    %v1409 = vrot.slane %v101, 4
    %v1410 = vsel %vm1325, %v1407, %v1409
    %v1411 = vrot.slane %v102, 4
    %v1412 = vrot.slane %v103, 4
    %v1413 = vsel %vm1325, %v1411, %v1412
    %v1414 = vrot.slane %v104, 4
    %v1415 = vsel %vm1325, %v1412, %v1414
    %v1416 = vrot.slane %v105, 4
    %v1417 = vrot.slane %v106, 4
    %v1418 = vsel %vm1325, %v1416, %v1417
    %v1419 = vrot.slane %v107, 4
    %v1420 = vsel %vm1325, %v1417, %v1419
    %v1421 = vrot.slane %v108, 4
    %v1422 = vrot.slane %v109, 4
    %v1423 = vsel %vm1325, %v1421, %v1422
    %v1424 = vrot.slane %v110, 4
    %v1425 = vsel %vm1325, %v1422, %v1424
    %v1426 = vrot.slane %v111, 4
    %v1427 = vrot.slane %v112, 4
    %v1428 = vsel %vm1325, %v1426, %v1427
    %v1429 = vrot.slane %v113, 4
    %v1430 = vsel %vm1325, %v1427, %v1429
    %v1431 = vrot.slane %v114, 4
    %v1432 = vrot.slane %v115, 4
    %v1433 = vsel %vm1325, %v1431, %v1432
    %v1434 = vrot.slane %v116, 4
    %v1435 = vsel %vm1325, %v1432, %v1434
    %v1436 = vrot.slane %v117, 4
    %v1437 = vrot.slane %v118, 4
    %v1438 = vsel %vm1325, %v1436, %v1437
    %v1439 = vrot.slane %v119, 4
    %v1440 = vsel %vm1325, %v1437, %v1439
    %v1441 = vrot.slane %v120, 4
    %v1442 = vrot.slane %v121, 4
    %v1443 = vsel %vm1325, %v1441, %v1442
    %v1444 = vrot.slane %v122, 4
    %v1445 = vsel %vm1325, %v1442, %v1444
    %v1446 = vrot.slane %v123, 4
    %v1447 = vrot.slane %v124, 4
    %v1448 = vsel %vm1325, %v1446, %v1447
    %v1449 = vrot.slane %v125, 4
    %v1450 = vsel %vm1325, %v1447, %v1449
    %v1451 = vrot.slane %v126, 4
    %v1452 = vrot.slane %v127, 4
    %v1453 = vsel %vm1325, %v1451, %v1452
    %v1454 = vrot.slane %v128, 4
    %v1455 = vsel %vm1325, %v1452, %v1454
    %v1456 = vrot.slane %v129, 4
    %v1457 = vrot.slane %v130, 4
    %v1458 = vsel %vm1325, %v1456, %v1457
    %v1459 = vrot.slane %v131, 4
    %v1460 = vsel %vm1325, %v1457, %v1459
    %v1461 = vrot.slane %v132, 4
    %v1462 = vrot.slane %v133, 4
    %v1463 = vsel %vm1325, %v1461, %v1462
    %v1464 = vrot.slane %v134, 4
    %v1465 = vsel %vm1325, %v1462, %v1464
    %v1466 = vrot.slane %v135, 4
    %v1467 = vrot.slane %v136, 4
    %v1468 = vsel %vm1325, %v1466, %v1467
    %v1469 = vrot.slane %v137, 4
    %v1470 = vsel %vm1325, %v1467, %v1469
    %v1471 = vrot.slane %v138, 4
    %v1472 = vrot.slane %v139, 4
    %v1473 = vsel %vm1325, %v1471, %v1472
    %v1474 = vrot.slane %v140, 4
    %v1475 = vsel %vm1325, %v1472, %v1474
    %v1476 = vrot.slane %v141, 4
    %v1477 = vrot.slane %v142, 4
    %v1478 = vsel %vm1325, %v1476, %v1477
    %v1479 = vrot.slane %v143, 4
    %v1480 = vsel %vm1325, %v1477, %v1479
    %v1481 = vrot.slane %v144, 4
    %v1482 = vrot.slane %v145, 4
    %v1483 = vsel %vm1325, %v1481, %v1482
    %v1484 = vrot.slane %v146, 4
    %v1485 = vsel %vm1325, %v1482, %v1484
    %1486 = vrot.lane.b32.xlu0 %v1328, 12
    %v1487 = vpop.permute.xlu0 %1486
    %1488 = vrot.lane.b32.xlu0 %v1330, 12
    %v1489 = vpop.permute.xlu0 %1488
    %1490 = vrot.lane.b32.xlu0 %v1333, 12
    %v1491 = vpop.permute.xlu0 %1490
    %1492 = vrot.lane.b32.xlu0 %v1335, 12
    %v1493 = vpop.permute.xlu0 %1492
    %1494 = vrot.lane.b32.xlu0 %v1338, 12
    %v1495 = vpop.permute.xlu0 %1494
    %1496 = vrot.lane.b32.xlu0 %v1340, 12
    %v1497 = vpop.permute.xlu0 %1496
    %1498 = vrot.lane.b32.xlu0 %v1343, 12
    %v1499 = vpop.permute.xlu0 %1498
    %1500 = vrot.lane.b32.xlu0 %v1345, 12
    %v1501 = vpop.permute.xlu0 %1500
    %1502 = vrot.lane.b32.xlu0 %v1348, 12
    %v1503 = vpop.permute.xlu0 %1502
    %1504 = vrot.lane.b32.xlu0 %v1350, 12
    %v1505 = vpop.permute.xlu0 %1504
    %1506 = vrot.lane.b32.xlu0 %v1353, 12
    %v1507 = vpop.permute.xlu0 %1506
    %1508 = vrot.lane.b32.xlu0 %v1355, 12
    %v1509 = vpop.permute.xlu0 %1508
    %1510 = vrot.lane.b32.xlu0 %v1358, 12
    %v1511 = vpop.permute.xlu0 %1510
    %1512 = vrot.lane.b32.xlu0 %v1360, 12
    %v1513 = vpop.permute.xlu0 %1512
    %1514 = vrot.lane.b32.xlu0 %v1363, 12
    %v1515 = vpop.permute.xlu0 %1514
    %1516 = vrot.lane.b32.xlu0 %v1365, 12
    %v1517 = vpop.permute.xlu0 %1516
    %1518 = vrot.lane.b32.xlu0 %v1368, 12
    %v1519 = vpop.permute.xlu0 %1518
    %1520 = vrot.lane.b32.xlu0 %v1370, 12
    %v1521 = vpop.permute.xlu0 %1520
    %1522 = vrot.lane.b32.xlu0 %v1373, 12
    %v1523 = vpop.permute.xlu0 %1522
    %1524 = vrot.lane.b32.xlu0 %v1375, 12
    %v1525 = vpop.permute.xlu0 %1524
    %1526 = vrot.lane.b32.xlu0 %v1378, 12
    %v1527 = vpop.permute.xlu0 %1526
    %1528 = vrot.lane.b32.xlu0 %v1380, 12
    %v1529 = vpop.permute.xlu0 %1528
    %1530 = vrot.lane.b32.xlu0 %v1383, 12
    %v1531 = vpop.permute.xlu0 %1530
    %1532 = vrot.lane.b32.xlu0 %v1385, 12
    %v1533 = vpop.permute.xlu0 %1532
    %1534 = vrot.lane.b32.xlu0 %v1388, 12
    %v1535 = vpop.permute.xlu0 %1534
    %1536 = vrot.lane.b32.xlu0 %v1390, 12
    %v1537 = vpop.permute.xlu0 %1536
    %1538 = vrot.lane.b32.xlu0 %v1393, 12
    %v1539 = vpop.permute.xlu0 %1538
    %1540 = vrot.lane.b32.xlu0 %v1395, 12
    %v1541 = vpop.permute.xlu0 %1540
    %1542 = vrot.lane.b32.xlu0 %v1398, 12
    %v1543 = vpop.permute.xlu0 %1542
    %1544 = vrot.lane.b32.xlu0 %v1400, 12
    %v1545 = vpop.permute.xlu0 %1544
    %1546 = vrot.lane.b32.xlu0 %v1403, 12
    %v1547 = vpop.permute.xlu0 %1546
    %1548 = vrot.lane.b32.xlu0 %v1405, 12
    %v1549 = vpop.permute.xlu0 %1548
    %1550 = vrot.lane.b32.xlu0 %v1408, 12
    %v1551 = vpop.permute.xlu0 %1550
    %1552 = vrot.lane.b32.xlu0 %v1410, 12
    %v1553 = vpop.permute.xlu0 %1552
    %1554 = vrot.lane.b32.xlu0 %v1413, 12
    %v1555 = vpop.permute.xlu0 %1554
    %1556 = vrot.lane.b32.xlu0 %v1415, 12
    %v1557 = vpop.permute.xlu0 %1556
    %1558 = vrot.lane.b32.xlu0 %v1418, 12
    %v1559 = vpop.permute.xlu0 %1558
    %1560 = vrot.lane.b32.xlu0 %v1420, 12
    %v1561 = vpop.permute.xlu0 %1560
    %1562 = vrot.lane.b32.xlu0 %v1423, 12
    %v1563 = vpop.permute.xlu0 %1562
    %1564 = vrot.lane.b32.xlu0 %v1425, 12
    %v1565 = vpop.permute.xlu0 %1564
    %1566 = vrot.lane.b32.xlu0 %v1428, 12
    %v1567 = vpop.permute.xlu0 %1566
    %1568 = vrot.lane.b32.xlu0 %v1430, 12
    %v1569 = vpop.permute.xlu0 %1568
    %1570 = vrot.lane.b32.xlu0 %v1433, 12
    %v1571 = vpop.permute.xlu0 %1570
    %1572 = vrot.lane.b32.xlu0 %v1435, 12
    %v1573 = vpop.permute.xlu0 %1572
    %1574 = vrot.lane.b32.xlu0 %v1438, 12
    %v1575 = vpop.permute.xlu0 %1574
    %1576 = vrot.lane.b32.xlu0 %v1440, 12
    %v1577 = vpop.permute.xlu0 %1576
    %1578 = vrot.lane.b32.xlu0 %v1443, 12
    %v1579 = vpop.permute.xlu0 %1578
    %1580 = vrot.lane.b32.xlu0 %v1445, 12
    %v1581 = vpop.permute.xlu0 %1580
    %1582 = vrot.lane.b32.xlu0 %v1448, 12
    %v1583 = vpop.permute.xlu0 %1582
    %1584 = vrot.lane.b32.xlu0 %v1450, 12
    %v1585 = vpop.permute.xlu0 %1584
    %1586 = vrot.lane.b32.xlu0 %v1453, 12
    %v1587 = vpop.permute.xlu0 %1586
    %1588 = vrot.lane.b32.xlu0 %v1455, 12
    %v1589 = vpop.permute.xlu0 %1588
    %1590 = vrot.lane.b32.xlu0 %v1458, 12
    %v1591 = vpop.permute.xlu0 %1590
    %1592 = vrot.lane.b32.xlu0 %v1460, 12
    %v1593 = vpop.permute.xlu0 %1592
    %1594 = vrot.lane.b32.xlu0 %v1463, 12
    %v1595 = vpop.permute.xlu0 %1594
    %1596 = vrot.lane.b32.xlu0 %v1465, 12
    %v1597 = vpop.permute.xlu0 %1596
    %1598 = vrot.lane.b32.xlu0 %v1468, 12
    %v1599 = vpop.permute.xlu0 %1598
    %1600 = vrot.lane.b32.xlu0 %v1470, 12
    %v1601 = vpop.permute.xlu0 %1600
    %1602 = vrot.lane.b32.xlu0 %v1473, 12
    %v1603 = vpop.permute.xlu0 %1602
    %1604 = vrot.lane.b32.xlu0 %v1475, 12
    %v1605 = vpop.permute.xlu0 %1604
    %1606 = vrot.lane.b32.xlu0 %v1478, 12
    %v1607 = vpop.permute.xlu0 %1606
    %1608 = vrot.lane.b32.xlu0 %v1480, 12
    %v1609 = vpop.permute.xlu0 %1608
    %1610 = vrot.lane.b32.xlu0 %v1483, 12
    %v1611 = vpop.permute.xlu0 %1610
    %1612 = vrot.lane.b32.xlu0 %v1485, 12
    %v1613 = vpop.permute.xlu0 %1612
    %1682 = vrot.lane.b32.xlu0 %v42, 15
    %v1683 = vpop.permute.xlu0 %1682
    %1684 = vrot.lane.b32.xlu0 %v43, 15
    %v1685 = vpop.permute.xlu0 %1684
    %1686 = vrot.lane.b32.xlu0 %v45, 15
    %v1687 = vpop.permute.xlu0 %1686
    %1688 = vrot.lane.b32.xlu0 %v46, 15
    %v1689 = vpop.permute.xlu0 %1688
    %1690 = vrot.lane.b32.xlu0 %v48, 15
    %v1691 = vpop.permute.xlu0 %1690
    %1692 = vrot.lane.b32.xlu0 %v49, 15
    %v1693 = vpop.permute.xlu0 %1692
    %1694 = vrot.lane.b32.xlu0 %v51, 15
    %v1695 = vpop.permute.xlu0 %1694
    %1696 = vrot.lane.b32.xlu0 %v52, 15
    %v1697 = vpop.permute.xlu0 %1696
    %1698 = vrot.lane.b32.xlu0 %v54, 15
    %v1699 = vpop.permute.xlu0 %1698
    %1700 = vrot.lane.b32.xlu0 %v55, 15
    %v1701 = vpop.permute.xlu0 %1700
    %1702 = vrot.lane.b32.xlu0 %v57, 15
    %v1703 = vpop.permute.xlu0 %1702
    %1704 = vrot.lane.b32.xlu0 %v58, 15
    %v1705 = vpop.permute.xlu0 %1704
    %1706 = vrot.lane.b32.xlu0 %v60, 15
    %v1707 = vpop.permute.xlu0 %1706
    %1708 = vrot.lane.b32.xlu0 %v61, 15
    %v1709 = vpop.permute.xlu0 %1708
    %1710 = vrot.lane.b32.xlu0 %v63, 15
    %v1711 = vpop.permute.xlu0 %1710
    %1712 = vrot.lane.b32.xlu0 %v64, 15
    %v1713 = vpop.permute.xlu0 %1712
    %1714 = vrot.lane.b32.xlu0 %v66, 15
    %v1715 = vpop.permute.xlu0 %1714
    %1716 = vrot.lane.b32.xlu0 %v67, 15
    %v1717 = vpop.permute.xlu0 %1716
    %1718 = vrot.lane.b32.xlu0 %v69, 15
    %v1719 = vpop.permute.xlu0 %1718
    %1720 = vrot.lane.b32.xlu0 %v70, 15
    %v1721 = vpop.permute.xlu0 %1720
    %1722 = vrot.lane.b32.xlu0 %v72, 15
    %v1723 = vpop.permute.xlu0 %1722
    %1724 = vrot.lane.b32.xlu0 %v73, 15
    %v1725 = vpop.permute.xlu0 %1724
    %1726 = vrot.lane.b32.xlu0 %v75, 15
    %v1727 = vpop.permute.xlu0 %1726
    %1728 = vrot.lane.b32.xlu0 %v76, 15
    %v1729 = vpop.permute.xlu0 %1728
    %1730 = vrot.lane.b32.xlu0 %v78, 15
    %v1731 = vpop.permute.xlu0 %1730
    %1732 = vrot.lane.b32.xlu0 %v79, 15
    %v1733 = vpop.permute.xlu0 %1732
    %1734 = vrot.lane.b32.xlu0 %v81, 15
    %v1735 = vpop.permute.xlu0 %1734
    %1736 = vrot.lane.b32.xlu0 %v82, 15
    %v1737 = vpop.permute.xlu0 %1736
    %1738 = vrot.lane.b32.xlu0 %v84, 15
    %v1739 = vpop.permute.xlu0 %1738
    %1740 = vrot.lane.b32.xlu0 %v85, 15
    %v1741 = vpop.permute.xlu0 %1740
    %1742 = vrot.lane.b32.xlu0 %v87, 15
    %v1743 = vpop.permute.xlu0 %1742
    %1744 = vrot.lane.b32.xlu0 %v88, 15
    %v1745 = vpop.permute.xlu0 %1744
    %1746 = vrot.lane.b32.xlu0 %v102, 15
    %v1747 = vpop.permute.xlu0 %1746
    %1748 = vrot.lane.b32.xlu0 %v103, 15
    %v1749 = vpop.permute.xlu0 %1748
    %1750 = vrot.lane.b32.xlu0 %v105, 15
    %v1751 = vpop.permute.xlu0 %1750
    %1752 = vrot.lane.b32.xlu0 %v106, 15
    %v1753 = vpop.permute.xlu0 %1752
    %1754 = vrot.lane.b32.xlu0 %v108, 15
    %v1755 = vpop.permute.xlu0 %1754
    %1756 = vrot.lane.b32.xlu0 %v109, 15
    %v1757 = vpop.permute.xlu0 %1756
    %1758 = vrot.lane.b32.xlu0 %v111, 15
    %v1759 = vpop.permute.xlu0 %1758
    %1760 = vrot.lane.b32.xlu0 %v112, 15
    %v1761 = vpop.permute.xlu0 %1760
    %1762 = vrot.lane.b32.xlu0 %v114, 15
    %v1763 = vpop.permute.xlu0 %1762
    %1764 = vrot.lane.b32.xlu0 %v115, 15
    %v1765 = vpop.permute.xlu0 %1764
    %1766 = vrot.lane.b32.xlu0 %v117, 15
    %v1767 = vpop.permute.xlu0 %1766
    %1768 = vrot.lane.b32.xlu0 %v118, 15
    %v1769 = vpop.permute.xlu0 %1768
    %1770 = vrot.lane.b32.xlu0 %v120, 15
    %v1771 = vpop.permute.xlu0 %1770
    %1772 = vrot.lane.b32.xlu0 %v121, 15
    %v1773 = vpop.permute.xlu0 %1772
    %1774 = vrot.lane.b32.xlu0 %v123, 15
    %v1775 = vpop.permute.xlu0 %1774
    %1776 = vrot.lane.b32.xlu0 %v124, 15
    %v1777 = vpop.permute.xlu0 %1776
    %1778 = vrot.lane.b32.xlu0 %v126, 15
    %v1779 = vpop.permute.xlu0 %1778
    %1780 = vrot.lane.b32.xlu0 %v127, 15
    %v1781 = vpop.permute.xlu0 %1780
    %1782 = vrot.lane.b32.xlu0 %v129, 15
    %v1783 = vpop.permute.xlu0 %1782
    %1784 = vrot.lane.b32.xlu0 %v130, 15
    %v1785 = vpop.permute.xlu0 %1784
    %1786 = vrot.lane.b32.xlu0 %v132, 15
    %v1787 = vpop.permute.xlu0 %1786
    %1788 = vrot.lane.b32.xlu0 %v133, 15
    %v1789 = vpop.permute.xlu0 %1788
    %1790 = vrot.lane.b32.xlu0 %v135, 15
    %v1791 = vpop.permute.xlu0 %1790
    %1792 = vrot.lane.b32.xlu0 %v136, 15
    %v1793 = vpop.permute.xlu0 %1792
    %1794 = vrot.lane.b32.xlu0 %v138, 15
    %v1795 = vpop.permute.xlu0 %1794
    %1796 = vrot.lane.b32.xlu0 %v139, 15
    %v1797 = vpop.permute.xlu0 %1796
    %1798 = vrot.lane.b32.xlu0 %v141, 15
    %v1799 = vpop.permute.xlu0 %1798
    %1800 = vrot.lane.b32.xlu0 %v142, 15
    %v1801 = vpop.permute.xlu0 %1800
    %1802 = vrot.lane.b32.xlu0 %v144, 15
    %v1803 = vpop.permute.xlu0 %1802
    %1804 = vrot.lane.b32.xlu0 %v145, 15
    %v1805 = vpop.permute.xlu0 %1804
    %1806 = vrot.lane.b32.xlu0 %v147, 15
    %v1807 = vpop.permute.xlu0 %1806
    %1808 = vrot.lane.b32.xlu0 %v148, 15
    %v1809 = vpop.permute.xlu0 %1808
    %v1876 = vrot.slane %v87, 1
    %v1877 = vrot.slane %v88, 1
    %v1878 = vsel %vm266, %v1876, %v1877
    %v1879 = vrot.slane %v89, 1
    %v1880 = vsel %vm266, %v1877, %v1879
    %v1881 = vrot.slane %v147, 1
    %v1882 = vrot.slane %v148, 1
    %v1883 = vsel %vm266, %v1881, %v1882
    %v1884 = vrot.slane %v149, 1
    %v1885 = vsel %vm266, %v1882, %v1884
    %1886 = vrot.lane.b32.xlu0 %v274, 18
    %v1887 = vpop.permute.xlu0 %1886
    %1888 = vrot.lane.b32.xlu0 %v276, 18
    %v1889 = vpop.permute.xlu0 %1888
    %1890 = vrot.lane.b32.xlu0 %v279, 18
    %v1891 = vpop.permute.xlu0 %1890
    %1892 = vrot.lane.b32.xlu0 %v281, 18
    %v1893 = vpop.permute.xlu0 %1892
    %1894 = vrot.lane.b32.xlu0 %v284, 18
    %v1895 = vpop.permute.xlu0 %1894
    %1896 = vrot.lane.b32.xlu0 %v286, 18
    %v1897 = vpop.permute.xlu0 %1896
    %1898 = vrot.lane.b32.xlu0 %v289, 18
    %v1899 = vpop.permute.xlu0 %1898
    %1900 = vrot.lane.b32.xlu0 %v291, 18
    %v1901 = vpop.permute.xlu0 %1900
    %1902 = vrot.lane.b32.xlu0 %v294, 18
    %v1903 = vpop.permute.xlu0 %1902
    %1904 = vrot.lane.b32.xlu0 %v296, 18
    %v1905 = vpop.permute.xlu0 %1904
    %1906 = vrot.lane.b32.xlu0 %v299, 18
    %v1907 = vpop.permute.xlu0 %1906
    %1908 = vrot.lane.b32.xlu0 %v301, 18
    %v1909 = vpop.permute.xlu0 %1908
    %1910 = vrot.lane.b32.xlu0 %v304, 18
    %v1911 = vpop.permute.xlu0 %1910
    %1912 = vrot.lane.b32.xlu0 %v306, 18
    %v1913 = vpop.permute.xlu0 %1912
    %1914 = vrot.lane.b32.xlu0 %v309, 18
    %v1915 = vpop.permute.xlu0 %1914
    %1916 = vrot.lane.b32.xlu0 %v311, 18
    %v1917 = vpop.permute.xlu0 %1916
    %1918 = vrot.lane.b32.xlu0 %v314, 18
    %v1919 = vpop.permute.xlu0 %1918
    %1920 = vrot.lane.b32.xlu0 %v316, 18
    %v1921 = vpop.permute.xlu0 %1920
    %1922 = vrot.lane.b32.xlu0 %v319, 18
    %v1923 = vpop.permute.xlu0 %1922
    %1924 = vrot.lane.b32.xlu0 %v321, 18
    %v1925 = vpop.permute.xlu0 %1924
    %1926 = vrot.lane.b32.xlu0 %v324, 18
    %v1927 = vpop.permute.xlu0 %1926
    %1928 = vrot.lane.b32.xlu0 %v326, 18
    %v1929 = vpop.permute.xlu0 %1928
    %1930 = vrot.lane.b32.xlu0 %v329, 18
    %v1931 = vpop.permute.xlu0 %1930
    %1932 = vrot.lane.b32.xlu0 %v331, 18
    %v1933 = vpop.permute.xlu0 %1932
    %1934 = vrot.lane.b32.xlu0 %v334, 18
    %v1935 = vpop.permute.xlu0 %1934
    %1936 = vrot.lane.b32.xlu0 %v336, 18
    %v1937 = vpop.permute.xlu0 %1936
    %1938 = vrot.lane.b32.xlu0 %v339, 18
    %v1939 = vpop.permute.xlu0 %1938
    %1940 = vrot.lane.b32.xlu0 %v341, 18
    %v1941 = vpop.permute.xlu0 %1940
    %1942 = vrot.lane.b32.xlu0 %v344, 18
    %v1943 = vpop.permute.xlu0 %1942
    %1944 = vrot.lane.b32.xlu0 %v346, 18
    %v1945 = vpop.permute.xlu0 %1944
    %1946 = vrot.lane.b32.xlu0 %v1878, 18
    %v1947 = vpop.permute.xlu0 %1946
    %1948 = vrot.lane.b32.xlu0 %v1880, 18
    %v1949 = vpop.permute.xlu0 %1948
    %1950 = vrot.lane.b32.xlu0 %v354, 18
    %v1951 = vpop.permute.xlu0 %1950
    %1952 = vrot.lane.b32.xlu0 %v356, 18
    %v1953 = vpop.permute.xlu0 %1952
    %1954 = vrot.lane.b32.xlu0 %v359, 18
    %v1955 = vpop.permute.xlu0 %1954
    %1956 = vrot.lane.b32.xlu0 %v361, 18
    %v1957 = vpop.permute.xlu0 %1956
    %1958 = vrot.lane.b32.xlu0 %v364, 18
    %v1959 = vpop.permute.xlu0 %1958
    %1960 = vrot.lane.b32.xlu0 %v366, 18
    %v1961 = vpop.permute.xlu0 %1960
    %1962 = vrot.lane.b32.xlu0 %v369, 18
    %v1963 = vpop.permute.xlu0 %1962
    %1964 = vrot.lane.b32.xlu0 %v371, 18
    %v1965 = vpop.permute.xlu0 %1964
    %1966 = vrot.lane.b32.xlu0 %v374, 18
    %v1967 = vpop.permute.xlu0 %1966
    %1968 = vrot.lane.b32.xlu0 %v376, 18
    %v1969 = vpop.permute.xlu0 %1968
    %1970 = vrot.lane.b32.xlu0 %v379, 18
    %v1971 = vpop.permute.xlu0 %1970
    %1972 = vrot.lane.b32.xlu0 %v381, 18
    %v1973 = vpop.permute.xlu0 %1972
    %1974 = vrot.lane.b32.xlu0 %v384, 18
    %v1975 = vpop.permute.xlu0 %1974
    %1976 = vrot.lane.b32.xlu0 %v386, 18
    %v1977 = vpop.permute.xlu0 %1976
    %1978 = vrot.lane.b32.xlu0 %v389, 18
    %v1979 = vpop.permute.xlu0 %1978
    %1980 = vrot.lane.b32.xlu0 %v391, 18
    %v1981 = vpop.permute.xlu0 %1980
    %1982 = vrot.lane.b32.xlu0 %v394, 18
    %v1983 = vpop.permute.xlu0 %1982
    %1984 = vrot.lane.b32.xlu0 %v396, 18
    %v1985 = vpop.permute.xlu0 %1984
    %1986 = vrot.lane.b32.xlu0 %v399, 18
    %v1987 = vpop.permute.xlu0 %1986
    %1988 = vrot.lane.b32.xlu0 %v401, 18
    %v1989 = vpop.permute.xlu0 %1988
    %1990 = vrot.lane.b32.xlu0 %v404, 18
    %v1991 = vpop.permute.xlu0 %1990
    %1992 = vrot.lane.b32.xlu0 %v406, 18
    %v1993 = vpop.permute.xlu0 %1992
    %1994 = vrot.lane.b32.xlu0 %v409, 18
    %v1995 = vpop.permute.xlu0 %1994
    %1996 = vrot.lane.b32.xlu0 %v411, 18
    %v1997 = vpop.permute.xlu0 %1996
    %1998 = vrot.lane.b32.xlu0 %v414, 18
    %v1999 = vpop.permute.xlu0 %1998
    %2000 = vrot.lane.b32.xlu0 %v416, 18
    %v2001 = vpop.permute.xlu0 %2000
    %2002 = vrot.lane.b32.xlu0 %v419, 18
    %v2003 = vpop.permute.xlu0 %2002
    %2004 = vrot.lane.b32.xlu0 %v421, 18
    %v2005 = vpop.permute.xlu0 %2004
    %2006 = vrot.lane.b32.xlu0 %v424, 18
    %v2007 = vpop.permute.xlu0 %2006
    %2008 = vrot.lane.b32.xlu0 %v426, 18
    %v2009 = vpop.permute.xlu0 %2008
    %2010 = vrot.lane.b32.xlu0 %v1883, 18
    %v2011 = vpop.permute.xlu0 %2010
    %2012 = vrot.lane.b32.xlu0 %v1885, 18
    %v2013 = vpop.permute.xlu0 %2012
    %v2078 = vrot.slane %v87, 2
    %v2079 = vrot.slane %v88, 2
    %v2080 = vsel %vm619, %v2078, %v2079
    %v2081 = vrot.slane %v89, 2
    %v2082 = vsel %vm619, %v2079, %v2081
    %v2083 = vrot.slane %v147, 2
    %v2084 = vrot.slane %v148, 2
    %v2085 = vsel %vm619, %v2083, %v2084
    %v2086 = vrot.slane %v149, 2
    %v2087 = vsel %vm619, %v2084, %v2086
    %2088 = vrot.lane.b32.xlu0 %v627, 21
    %v2089 = vpop.permute.xlu0 %2088
    %2090 = vrot.lane.b32.xlu0 %v629, 21
    %v2091 = vpop.permute.xlu0 %2090
    %2092 = vrot.lane.b32.xlu0 %v632, 21
    %v2093 = vpop.permute.xlu0 %2092
    %2094 = vrot.lane.b32.xlu0 %v634, 21
    %v2095 = vpop.permute.xlu0 %2094
    %2096 = vrot.lane.b32.xlu0 %v637, 21
    %v2097 = vpop.permute.xlu0 %2096
    %2098 = vrot.lane.b32.xlu0 %v639, 21
    %v2099 = vpop.permute.xlu0 %2098
    %2100 = vrot.lane.b32.xlu0 %v642, 21
    %v2101 = vpop.permute.xlu0 %2100
    %2102 = vrot.lane.b32.xlu0 %v644, 21
    %v2103 = vpop.permute.xlu0 %2102
    %2104 = vrot.lane.b32.xlu0 %v647, 21
    %v2105 = vpop.permute.xlu0 %2104
    %2106 = vrot.lane.b32.xlu0 %v649, 21
    %v2107 = vpop.permute.xlu0 %2106
    %2108 = vrot.lane.b32.xlu0 %v652, 21
    %v2109 = vpop.permute.xlu0 %2108
    %2110 = vrot.lane.b32.xlu0 %v654, 21
    %v2111 = vpop.permute.xlu0 %2110
    %2112 = vrot.lane.b32.xlu0 %v657, 21
    %v2113 = vpop.permute.xlu0 %2112
    %2114 = vrot.lane.b32.xlu0 %v659, 21
    %v2115 = vpop.permute.xlu0 %2114
    %2116 = vrot.lane.b32.xlu0 %v662, 21
    %v2117 = vpop.permute.xlu0 %2116
    %2118 = vrot.lane.b32.xlu0 %v664, 21
    %v2119 = vpop.permute.xlu0 %2118
    %2120 = vrot.lane.b32.xlu0 %v667, 21
    %v2121 = vpop.permute.xlu0 %2120
    %2122 = vrot.lane.b32.xlu0 %v669, 21
    %v2123 = vpop.permute.xlu0 %2122
    %2124 = vrot.lane.b32.xlu0 %v672, 21
    %v2125 = vpop.permute.xlu0 %2124
    %2126 = vrot.lane.b32.xlu0 %v674, 21
    %v2127 = vpop.permute.xlu0 %2126
    %2128 = vrot.lane.b32.xlu0 %v677, 21
    %v2129 = vpop.permute.xlu0 %2128
    %2130 = vrot.lane.b32.xlu0 %v679, 21
    %v2131 = vpop.permute.xlu0 %2130
    %2132 = vrot.lane.b32.xlu0 %v682, 21
    %v2133 = vpop.permute.xlu0 %2132
    %2134 = vrot.lane.b32.xlu0 %v684, 21
    %v2135 = vpop.permute.xlu0 %2134
    %2136 = vrot.lane.b32.xlu0 %v687, 21
    %v2137 = vpop.permute.xlu0 %2136
    %2138 = vrot.lane.b32.xlu0 %v689, 21
    %v2139 = vpop.permute.xlu0 %2138
    %2140 = vrot.lane.b32.xlu0 %v692, 21
    %v2141 = vpop.permute.xlu0 %2140
    %2142 = vrot.lane.b32.xlu0 %v694, 21
    %v2143 = vpop.permute.xlu0 %2142
    %2144 = vrot.lane.b32.xlu0 %v697, 21
    %v2145 = vpop.permute.xlu0 %2144
    %2146 = vrot.lane.b32.xlu0 %v699, 21
    %v2147 = vpop.permute.xlu0 %2146
    %2148 = vrot.lane.b32.xlu0 %v2080, 21
    %v2149 = vpop.permute.xlu0 %2148
    %2150 = vrot.lane.b32.xlu0 %v2082, 21
    %v2151 = vpop.permute.xlu0 %2150
    %2152 = vrot.lane.b32.xlu0 %v707, 21
    %v2153 = vpop.permute.xlu0 %2152
    %2154 = vrot.lane.b32.xlu0 %v709, 21
    %v2155 = vpop.permute.xlu0 %2154
    %2156 = vrot.lane.b32.xlu0 %v712, 21
    %v2157 = vpop.permute.xlu0 %2156
    %2158 = vrot.lane.b32.xlu0 %v714, 21
    %v2159 = vpop.permute.xlu0 %2158
    %2160 = vrot.lane.b32.xlu0 %v717, 21
    %v2161 = vpop.permute.xlu0 %2160
    %2162 = vrot.lane.b32.xlu0 %v719, 21
    %v2163 = vpop.permute.xlu0 %2162
    %2164 = vrot.lane.b32.xlu0 %v722, 21
    %v2165 = vpop.permute.xlu0 %2164
    %2166 = vrot.lane.b32.xlu0 %v724, 21
    %v2167 = vpop.permute.xlu0 %2166
    %2168 = vrot.lane.b32.xlu0 %v727, 21
    %v2169 = vpop.permute.xlu0 %2168
    %2170 = vrot.lane.b32.xlu0 %v729, 21
    %v2171 = vpop.permute.xlu0 %2170
    %2172 = vrot.lane.b32.xlu0 %v732, 21
    %v2173 = vpop.permute.xlu0 %2172
    %2174 = vrot.lane.b32.xlu0 %v734, 21
    %v2175 = vpop.permute.xlu0 %2174
    %2176 = vrot.lane.b32.xlu0 %v737, 21
    %v2177 = vpop.permute.xlu0 %2176
    %2178 = vrot.lane.b32.xlu0 %v739, 21
    %v2179 = vpop.permute.xlu0 %2178
    %2180 = vrot.lane.b32.xlu0 %v742, 21
    %v2181 = vpop.permute.xlu0 %2180
    %2182 = vrot.lane.b32.xlu0 %v744, 21
    %v2183 = vpop.permute.xlu0 %2182
    %2184 = vrot.lane.b32.xlu0 %v747, 21
    %v2185 = vpop.permute.xlu0 %2184
    %2186 = vrot.lane.b32.xlu0 %v749, 21
    %v2187 = vpop.permute.xlu0 %2186
    %2188 = vrot.lane.b32.xlu0 %v752, 21
    %v2189 = vpop.permute.xlu0 %2188
    %2190 = vrot.lane.b32.xlu0 %v754, 21
    %v2191 = vpop.permute.xlu0 %2190
    %2192 = vrot.lane.b32.xlu0 %v757, 21
    %v2193 = vpop.permute.xlu0 %2192
    %2194 = vrot.lane.b32.xlu0 %v759, 21
    %v2195 = vpop.permute.xlu0 %2194
    %2196 = vrot.lane.b32.xlu0 %v762, 21
    %v2197 = vpop.permute.xlu0 %2196
    %2198 = vrot.lane.b32.xlu0 %v764, 21
    %v2199 = vpop.permute.xlu0 %2198
    %2200 = vrot.lane.b32.xlu0 %v767, 21
    %v2201 = vpop.permute.xlu0 %2200
    %2202 = vrot.lane.b32.xlu0 %v769, 21
    %v2203 = vpop.permute.xlu0 %2202
    %2204 = vrot.lane.b32.xlu0 %v772, 21
    %v2205 = vpop.permute.xlu0 %2204
    %2206 = vrot.lane.b32.xlu0 %v774, 21
    %v2207 = vpop.permute.xlu0 %2206
    %2208 = vrot.lane.b32.xlu0 %v777, 21
    %v2209 = vpop.permute.xlu0 %2208
    %2210 = vrot.lane.b32.xlu0 %v779, 21
    %v2211 = vpop.permute.xlu0 %2210
    %2212 = vrot.lane.b32.xlu0 %v2085, 21
    %v2213 = vpop.permute.xlu0 %2212
    %2214 = vrot.lane.b32.xlu0 %v2087, 21
    %v2215 = vpop.permute.xlu0 %2214
    %v2280 = vrot.slane %v87, 3
    %v2281 = vrot.slane %v88, 3
    %v2282 = vsel %vm972, %v2280, %v2281
    %v2283 = vrot.slane %v89, 3
    %v2284 = vsel %vm972, %v2281, %v2283
    %v2285 = vrot.slane %v147, 3
    %v2286 = vrot.slane %v148, 3
    %v2287 = vsel %vm972, %v2285, %v2286
    %v2288 = vrot.slane %v149, 3
    %v2289 = vsel %vm972, %v2286, %v2288
    %2290 = vrot.lane.b32.xlu0 %v980, 24
    %v2291 = vpop.permute.xlu0 %2290
    %2292 = vrot.lane.b32.xlu0 %v982, 24
    %v2293 = vpop.permute.xlu0 %2292
    %2294 = vrot.lane.b32.xlu0 %v985, 24
    %v2295 = vpop.permute.xlu0 %2294
    %2296 = vrot.lane.b32.xlu0 %v987, 24
    %v2297 = vpop.permute.xlu0 %2296
    %2298 = vrot.lane.b32.xlu0 %v990, 24
    %v2299 = vpop.permute.xlu0 %2298
    %2300 = vrot.lane.b32.xlu0 %v992, 24
    %v2301 = vpop.permute.xlu0 %2300
    %2302 = vrot.lane.b32.xlu0 %v995, 24
    %v2303 = vpop.permute.xlu0 %2302
    %2304 = vrot.lane.b32.xlu0 %v997, 24
    %v2305 = vpop.permute.xlu0 %2304
    %2306 = vrot.lane.b32.xlu0 %v1000, 24
    %v2307 = vpop.permute.xlu0 %2306
    %2308 = vrot.lane.b32.xlu0 %v1002, 24
    %v2309 = vpop.permute.xlu0 %2308
    %2310 = vrot.lane.b32.xlu0 %v1005, 24
    %v2311 = vpop.permute.xlu0 %2310
    %2312 = vrot.lane.b32.xlu0 %v1007, 24
    %v2313 = vpop.permute.xlu0 %2312
    %2314 = vrot.lane.b32.xlu0 %v1010, 24
    %v2315 = vpop.permute.xlu0 %2314
    %2316 = vrot.lane.b32.xlu0 %v1012, 24
    %v2317 = vpop.permute.xlu0 %2316
    %2318 = vrot.lane.b32.xlu0 %v1015, 24
    %v2319 = vpop.permute.xlu0 %2318
    %2320 = vrot.lane.b32.xlu0 %v1017, 24
    %v2321 = vpop.permute.xlu0 %2320
    %2322 = vrot.lane.b32.xlu0 %v1020, 24
    %v2323 = vpop.permute.xlu0 %2322
    %2324 = vrot.lane.b32.xlu0 %v1022, 24
    %v2325 = vpop.permute.xlu0 %2324
    %2326 = vrot.lane.b32.xlu0 %v1025, 24
    %v2327 = vpop.permute.xlu0 %2326
    %2328 = vrot.lane.b32.xlu0 %v1027, 24
    %v2329 = vpop.permute.xlu0 %2328
    %2330 = vrot.lane.b32.xlu0 %v1030, 24
    %v2331 = vpop.permute.xlu0 %2330
    %2332 = vrot.lane.b32.xlu0 %v1032, 24
    %v2333 = vpop.permute.xlu0 %2332
    %2334 = vrot.lane.b32.xlu0 %v1035, 24
    %v2335 = vpop.permute.xlu0 %2334
    %2336 = vrot.lane.b32.xlu0 %v1037, 24
    %v2337 = vpop.permute.xlu0 %2336
    %2338 = vrot.lane.b32.xlu0 %v1040, 24
    %v2339 = vpop.permute.xlu0 %2338
    %2340 = vrot.lane.b32.xlu0 %v1042, 24
    %v2341 = vpop.permute.xlu0 %2340
    %2342 = vrot.lane.b32.xlu0 %v1045, 24
    %v2343 = vpop.permute.xlu0 %2342
    %2344 = vrot.lane.b32.xlu0 %v1047, 24
    %v2345 = vpop.permute.xlu0 %2344
    %2346 = vrot.lane.b32.xlu0 %v1050, 24
    %v2347 = vpop.permute.xlu0 %2346
    %2348 = vrot.lane.b32.xlu0 %v1052, 24
    %v2349 = vpop.permute.xlu0 %2348
    %2350 = vrot.lane.b32.xlu0 %v2282, 24
    %v2351 = vpop.permute.xlu0 %2350
    %2352 = vrot.lane.b32.xlu0 %v2284, 24
    %v2353 = vpop.permute.xlu0 %2352
    %2354 = vrot.lane.b32.xlu0 %v1060, 24
    %v2355 = vpop.permute.xlu0 %2354
    %2356 = vrot.lane.b32.xlu0 %v1062, 24
    %v2357 = vpop.permute.xlu0 %2356
    %2358 = vrot.lane.b32.xlu0 %v1065, 24
    %v2359 = vpop.permute.xlu0 %2358
    %2360 = vrot.lane.b32.xlu0 %v1067, 24
    %v2361 = vpop.permute.xlu0 %2360
    %2362 = vrot.lane.b32.xlu0 %v1070, 24
    %v2363 = vpop.permute.xlu0 %2362
    %2364 = vrot.lane.b32.xlu0 %v1072, 24
    %v2365 = vpop.permute.xlu0 %2364
    %2366 = vrot.lane.b32.xlu0 %v1075, 24
    %v2367 = vpop.permute.xlu0 %2366
    %2368 = vrot.lane.b32.xlu0 %v1077, 24
    %v2369 = vpop.permute.xlu0 %2368
    %2370 = vrot.lane.b32.xlu0 %v1080, 24
    %v2371 = vpop.permute.xlu0 %2370
    %2372 = vrot.lane.b32.xlu0 %v1082, 24
    %v2373 = vpop.permute.xlu0 %2372
    %2374 = vrot.lane.b32.xlu0 %v1085, 24
    %v2375 = vpop.permute.xlu0 %2374
    %2376 = vrot.lane.b32.xlu0 %v1087, 24
    %v2377 = vpop.permute.xlu0 %2376
    %2378 = vrot.lane.b32.xlu0 %v1090, 24
    %v2379 = vpop.permute.xlu0 %2378
    %2380 = vrot.lane.b32.xlu0 %v1092, 24
    %v2381 = vpop.permute.xlu0 %2380
    %2382 = vrot.lane.b32.xlu0 %v1095, 24
    %v2383 = vpop.permute.xlu0 %2382
    %2384 = vrot.lane.b32.xlu0 %v1097, 24
    %v2385 = vpop.permute.xlu0 %2384
    %2386 = vrot.lane.b32.xlu0 %v1100, 24
    %v2387 = vpop.permute.xlu0 %2386
    %2388 = vrot.lane.b32.xlu0 %v1102, 24
    %v2389 = vpop.permute.xlu0 %2388
    %2390 = vrot.lane.b32.xlu0 %v1105, 24
    %v2391 = vpop.permute.xlu0 %2390
    %2392 = vrot.lane.b32.xlu0 %v1107, 24
    %v2393 = vpop.permute.xlu0 %2392
    %2394 = vrot.lane.b32.xlu0 %v1110, 24
    %v2395 = vpop.permute.xlu0 %2394
    %2396 = vrot.lane.b32.xlu0 %v1112, 24
    %v2397 = vpop.permute.xlu0 %2396
    %2398 = vrot.lane.b32.xlu0 %v1115, 24
    %v2399 = vpop.permute.xlu0 %2398
    %2400 = vrot.lane.b32.xlu0 %v1117, 24
    %v2401 = vpop.permute.xlu0 %2400
    %2402 = vrot.lane.b32.xlu0 %v1120, 24
    %v2403 = vpop.permute.xlu0 %2402
    %2404 = vrot.lane.b32.xlu0 %v1122, 24
    %v2405 = vpop.permute.xlu0 %2404
    %2406 = vrot.lane.b32.xlu0 %v1125, 24
    %v2407 = vpop.permute.xlu0 %2406
    %2408 = vrot.lane.b32.xlu0 %v1127, 24
    %v2409 = vpop.permute.xlu0 %2408
    %2410 = vrot.lane.b32.xlu0 %v1130, 24
    %v2411 = vpop.permute.xlu0 %2410
    %2412 = vrot.lane.b32.xlu0 %v1132, 24
    %v2413 = vpop.permute.xlu0 %2412
    %2414 = vrot.lane.b32.xlu0 %v2287, 24
    %v2415 = vpop.permute.xlu0 %2414
    %2416 = vrot.lane.b32.xlu0 %v2289, 24
    %v2417 = vpop.permute.xlu0 %2416
    %v2482 = vrot.slane %v87, 4
    %v2483 = vrot.slane %v88, 4
    %v2484 = vsel %vm1325, %v2482, %v2483
    %v2485 = vrot.slane %v89, 4
    %v2486 = vsel %vm1325, %v2483, %v2485
    %v2487 = vrot.slane %v147, 4
    %v2488 = vrot.slane %v148, 4
    %v2489 = vsel %vm1325, %v2487, %v2488
    %v2490 = vrot.slane %v149, 4
    %v2491 = vsel %vm1325, %v2488, %v2490
    %2492 = vrot.lane.b32.xlu0 %v1333, 27
    %v2493 = vpop.permute.xlu0 %2492
    %2494 = vrot.lane.b32.xlu0 %v1335, 27
    %v2495 = vpop.permute.xlu0 %2494
    %2496 = vrot.lane.b32.xlu0 %v1338, 27
    %v2497 = vpop.permute.xlu0 %2496
    %2498 = vrot.lane.b32.xlu0 %v1340, 27
    %v2499 = vpop.permute.xlu0 %2498
    %2500 = vrot.lane.b32.xlu0 %v1343, 27
    %v2501 = vpop.permute.xlu0 %2500
    %2502 = vrot.lane.b32.xlu0 %v1345, 27
    %v2503 = vpop.permute.xlu0 %2502
    %2504 = vrot.lane.b32.xlu0 %v1348, 27
    %v2505 = vpop.permute.xlu0 %2504
    %2506 = vrot.lane.b32.xlu0 %v1350, 27
    %v2507 = vpop.permute.xlu0 %2506
    %2508 = vrot.lane.b32.xlu0 %v1353, 27
    %v2509 = vpop.permute.xlu0 %2508
    %2510 = vrot.lane.b32.xlu0 %v1355, 27
    %v2511 = vpop.permute.xlu0 %2510
    %2512 = vrot.lane.b32.xlu0 %v1358, 27
    %v2513 = vpop.permute.xlu0 %2512
    %2514 = vrot.lane.b32.xlu0 %v1360, 27
    %v2515 = vpop.permute.xlu0 %2514
    %2516 = vrot.lane.b32.xlu0 %v1363, 27
    %v2517 = vpop.permute.xlu0 %2516
    %2518 = vrot.lane.b32.xlu0 %v1365, 27
    %v2519 = vpop.permute.xlu0 %2518
    %2520 = vrot.lane.b32.xlu0 %v1368, 27
    %v2521 = vpop.permute.xlu0 %2520
    %2522 = vrot.lane.b32.xlu0 %v1370, 27
    %v2523 = vpop.permute.xlu0 %2522
    %2524 = vrot.lane.b32.xlu0 %v1373, 27
    %v2525 = vpop.permute.xlu0 %2524
    %2526 = vrot.lane.b32.xlu0 %v1375, 27
    %v2527 = vpop.permute.xlu0 %2526
    %2528 = vrot.lane.b32.xlu0 %v1378, 27
    %v2529 = vpop.permute.xlu0 %2528
    %2530 = vrot.lane.b32.xlu0 %v1380, 27
    %v2531 = vpop.permute.xlu0 %2530
    %2532 = vrot.lane.b32.xlu0 %v1383, 27
    %v2533 = vpop.permute.xlu0 %2532
    %2534 = vrot.lane.b32.xlu0 %v1385, 27
    %v2535 = vpop.permute.xlu0 %2534
    %2536 = vrot.lane.b32.xlu0 %v1388, 27
    %v2537 = vpop.permute.xlu0 %2536
    %2538 = vrot.lane.b32.xlu0 %v1390, 27
    %v2539 = vpop.permute.xlu0 %2538
    %2540 = vrot.lane.b32.xlu0 %v1393, 27
    %v2541 = vpop.permute.xlu0 %2540
    %2542 = vrot.lane.b32.xlu0 %v1395, 27
    %v2543 = vpop.permute.xlu0 %2542
    %2544 = vrot.lane.b32.xlu0 %v1398, 27
    %v2545 = vpop.permute.xlu0 %2544
    %2546 = vrot.lane.b32.xlu0 %v1400, 27
    %v2547 = vpop.permute.xlu0 %2546
    %2548 = vrot.lane.b32.xlu0 %v1403, 27
    %v2549 = vpop.permute.xlu0 %2548
    %2550 = vrot.lane.b32.xlu0 %v1405, 27
    %v2551 = vpop.permute.xlu0 %2550
    %2552 = vrot.lane.b32.xlu0 %v2484, 27
    %v2553 = vpop.permute.xlu0 %2552
    %2554 = vrot.lane.b32.xlu0 %v2486, 27
    %v2555 = vpop.permute.xlu0 %2554
    %2556 = vrot.lane.b32.xlu0 %v1413, 27
    %v2557 = vpop.permute.xlu0 %2556
    %2558 = vrot.lane.b32.xlu0 %v1415, 27
    %v2559 = vpop.permute.xlu0 %2558
    %2560 = vrot.lane.b32.xlu0 %v1418, 27
    %v2561 = vpop.permute.xlu0 %2560
    %2562 = vrot.lane.b32.xlu0 %v1420, 27
    %v2563 = vpop.permute.xlu0 %2562
    %2564 = vrot.lane.b32.xlu0 %v1423, 27
    %v2565 = vpop.permute.xlu0 %2564
    %2566 = vrot.lane.b32.xlu0 %v1425, 27
    %v2567 = vpop.permute.xlu0 %2566
    %2568 = vrot.lane.b32.xlu0 %v1428, 27
    %v2569 = vpop.permute.xlu0 %2568
    %2570 = vrot.lane.b32.xlu0 %v1430, 27
    %v2571 = vpop.permute.xlu0 %2570
    %2572 = vrot.lane.b32.xlu0 %v1433, 27
    %v2573 = vpop.permute.xlu0 %2572
    %2574 = vrot.lane.b32.xlu0 %v1435, 27
    %v2575 = vpop.permute.xlu0 %2574
    %2576 = vrot.lane.b32.xlu0 %v1438, 27
    %v2577 = vpop.permute.xlu0 %2576
    %2578 = vrot.lane.b32.xlu0 %v1440, 27
    %v2579 = vpop.permute.xlu0 %2578
    %2580 = vrot.lane.b32.xlu0 %v1443, 27
    %v2581 = vpop.permute.xlu0 %2580
    %2582 = vrot.lane.b32.xlu0 %v1445, 27
    %v2583 = vpop.permute.xlu0 %2582
    %2584 = vrot.lane.b32.xlu0 %v1448, 27
    %v2585 = vpop.permute.xlu0 %2584
    %2586 = vrot.lane.b32.xlu0 %v1450, 27
    %v2587 = vpop.permute.xlu0 %2586
    %2588 = vrot.lane.b32.xlu0 %v1453, 27
    %v2589 = vpop.permute.xlu0 %2588
    %2590 = vrot.lane.b32.xlu0 %v1455, 27
    %v2591 = vpop.permute.xlu0 %2590
    %2592 = vrot.lane.b32.xlu0 %v1458, 27
    %v2593 = vpop.permute.xlu0 %2592
    %2594 = vrot.lane.b32.xlu0 %v1460, 27
    %v2595 = vpop.permute.xlu0 %2594
    %2596 = vrot.lane.b32.xlu0 %v1463, 27
    %v2597 = vpop.permute.xlu0 %2596
    %2598 = vrot.lane.b32.xlu0 %v1465, 27
    %v2599 = vpop.permute.xlu0 %2598
    %2600 = vrot.lane.b32.xlu0 %v1468, 27
    %v2601 = vpop.permute.xlu0 %2600
    %2602 = vrot.lane.b32.xlu0 %v1470, 27
    %v2603 = vpop.permute.xlu0 %2602
    %2604 = vrot.lane.b32.xlu0 %v1473, 27
    %v2605 = vpop.permute.xlu0 %2604
    %2606 = vrot.lane.b32.xlu0 %v1475, 27
    %v2607 = vpop.permute.xlu0 %2606
    %2608 = vrot.lane.b32.xlu0 %v1478, 27
    %v2609 = vpop.permute.xlu0 %2608
    %2610 = vrot.lane.b32.xlu0 %v1480, 27
    %v2611 = vpop.permute.xlu0 %2610
    %2612 = vrot.lane.b32.xlu0 %v1483, 27
    %v2613 = vpop.permute.xlu0 %2612
    %2614 = vrot.lane.b32.xlu0 %v1485, 27
    %v2615 = vpop.permute.xlu0 %2614
    %2616 = vrot.lane.b32.xlu0 %v2489, 27
    %v2617 = vpop.permute.xlu0 %2616
    %2618 = vrot.lane.b32.xlu0 %v2491, 27
    %v2619 = vpop.permute.xlu0 %2618
    %2688 = vrot.lane.b32.xlu0 %v45, 30
    %v2689 = vpop.permute.xlu0 %2688
    %2690 = vrot.lane.b32.xlu0 %v46, 30
    %v2691 = vpop.permute.xlu0 %2690
    %2692 = vrot.lane.b32.xlu0 %v48, 30
    %v2693 = vpop.permute.xlu0 %2692
    %2694 = vrot.lane.b32.xlu0 %v49, 30
    %v2695 = vpop.permute.xlu0 %2694
    %2696 = vrot.lane.b32.xlu0 %v51, 30
    %v2697 = vpop.permute.xlu0 %2696
    %2698 = vrot.lane.b32.xlu0 %v52, 30
    %v2699 = vpop.permute.xlu0 %2698
    %2700 = vrot.lane.b32.xlu0 %v54, 30
    %v2701 = vpop.permute.xlu0 %2700
    %2702 = vrot.lane.b32.xlu0 %v55, 30
    %v2703 = vpop.permute.xlu0 %2702
    %2704 = vrot.lane.b32.xlu0 %v57, 30
    %v2705 = vpop.permute.xlu0 %2704
    %2706 = vrot.lane.b32.xlu0 %v58, 30
    %v2707 = vpop.permute.xlu0 %2706
    %2708 = vrot.lane.b32.xlu0 %v60, 30
    %v2709 = vpop.permute.xlu0 %2708
    %2710 = vrot.lane.b32.xlu0 %v61, 30
    %v2711 = vpop.permute.xlu0 %2710
    %2712 = vrot.lane.b32.xlu0 %v63, 30
    %v2713 = vpop.permute.xlu0 %2712
    %2714 = vrot.lane.b32.xlu0 %v64, 30
    %v2715 = vpop.permute.xlu0 %2714
    %2716 = vrot.lane.b32.xlu0 %v66, 30
    %v2717 = vpop.permute.xlu0 %2716
    %2718 = vrot.lane.b32.xlu0 %v67, 30
    %v2719 = vpop.permute.xlu0 %2718
    %2720 = vrot.lane.b32.xlu0 %v69, 30
    %v2721 = vpop.permute.xlu0 %2720
    %2722 = vrot.lane.b32.xlu0 %v70, 30
    %v2723 = vpop.permute.xlu0 %2722
    %2724 = vrot.lane.b32.xlu0 %v72, 30
    %v2725 = vpop.permute.xlu0 %2724
    %2726 = vrot.lane.b32.xlu0 %v73, 30
    %v2727 = vpop.permute.xlu0 %2726
    %2728 = vrot.lane.b32.xlu0 %v75, 30
    %v2729 = vpop.permute.xlu0 %2728
    %2730 = vrot.lane.b32.xlu0 %v76, 30
    %v2731 = vpop.permute.xlu0 %2730
    %2732 = vrot.lane.b32.xlu0 %v78, 30
    %v2733 = vpop.permute.xlu0 %2732
    %2734 = vrot.lane.b32.xlu0 %v79, 30
    %v2735 = vpop.permute.xlu0 %2734
    %2736 = vrot.lane.b32.xlu0 %v81, 30
    %v2737 = vpop.permute.xlu0 %2736
    %2738 = vrot.lane.b32.xlu0 %v82, 30
    %v2739 = vpop.permute.xlu0 %2738
    %2740 = vrot.lane.b32.xlu0 %v84, 30
    %v2741 = vpop.permute.xlu0 %2740
    %2742 = vrot.lane.b32.xlu0 %v85, 30
    %v2743 = vpop.permute.xlu0 %2742
    %2744 = vrot.lane.b32.xlu0 %v87, 30
    %v2745 = vpop.permute.xlu0 %2744
    %2746 = vrot.lane.b32.xlu0 %v88, 30
    %v2747 = vpop.permute.xlu0 %2746
    %2748 = vrot.lane.b32.xlu0 %v90, 30
    %v2749 = vpop.permute.xlu0 %2748
    %2750 = vrot.lane.b32.xlu0 %v91, 30
    %v2751 = vpop.permute.xlu0 %2750
    %2752 = vrot.lane.b32.xlu0 %v105, 30
    %v2753 = vpop.permute.xlu0 %2752
    %2754 = vrot.lane.b32.xlu0 %v106, 30
    %v2755 = vpop.permute.xlu0 %2754
    %2756 = vrot.lane.b32.xlu0 %v108, 30
    %v2757 = vpop.permute.xlu0 %2756
    %2758 = vrot.lane.b32.xlu0 %v109, 30
    %v2759 = vpop.permute.xlu0 %2758
    %2760 = vrot.lane.b32.xlu0 %v111, 30
    %v2761 = vpop.permute.xlu0 %2760
    %2762 = vrot.lane.b32.xlu0 %v112, 30
    %v2763 = vpop.permute.xlu0 %2762
    %2764 = vrot.lane.b32.xlu0 %v114, 30
    %v2765 = vpop.permute.xlu0 %2764
    %2766 = vrot.lane.b32.xlu0 %v115, 30
    %v2767 = vpop.permute.xlu0 %2766
    %2768 = vrot.lane.b32.xlu0 %v117, 30
    %v2769 = vpop.permute.xlu0 %2768
    %2770 = vrot.lane.b32.xlu0 %v118, 30
    %v2771 = vpop.permute.xlu0 %2770
    %2772 = vrot.lane.b32.xlu0 %v120, 30
    %v2773 = vpop.permute.xlu0 %2772
    %2774 = vrot.lane.b32.xlu0 %v121, 30
    %v2775 = vpop.permute.xlu0 %2774
    %2776 = vrot.lane.b32.xlu0 %v123, 30
    %v2777 = vpop.permute.xlu0 %2776
    %2778 = vrot.lane.b32.xlu0 %v124, 30
    %v2779 = vpop.permute.xlu0 %2778
    %2780 = vrot.lane.b32.xlu0 %v126, 30
    %v2781 = vpop.permute.xlu0 %2780
    %2782 = vrot.lane.b32.xlu0 %v127, 30
    %v2783 = vpop.permute.xlu0 %2782
    %2784 = vrot.lane.b32.xlu0 %v129, 30
    %v2785 = vpop.permute.xlu0 %2784
    %2786 = vrot.lane.b32.xlu0 %v130, 30
    %v2787 = vpop.permute.xlu0 %2786
    %2788 = vrot.lane.b32.xlu0 %v132, 30
    %v2789 = vpop.permute.xlu0 %2788
    %2790 = vrot.lane.b32.xlu0 %v133, 30
    %v2791 = vpop.permute.xlu0 %2790
    %2792 = vrot.lane.b32.xlu0 %v135, 30
    %v2793 = vpop.permute.xlu0 %2792
    %2794 = vrot.lane.b32.xlu0 %v136, 30
    %v2795 = vpop.permute.xlu0 %2794
    %2796 = vrot.lane.b32.xlu0 %v138, 30
    %v2797 = vpop.permute.xlu0 %2796
    %2798 = vrot.lane.b32.xlu0 %v139, 30
    %v2799 = vpop.permute.xlu0 %2798
    %2800 = vrot.lane.b32.xlu0 %v141, 30
    %v2801 = vpop.permute.xlu0 %2800
    %2802 = vrot.lane.b32.xlu0 %v142, 30
    %v2803 = vpop.permute.xlu0 %2802
    %2804 = vrot.lane.b32.xlu0 %v144, 30
    %v2805 = vpop.permute.xlu0 %2804
    %2806 = vrot.lane.b32.xlu0 %v145, 30
    %v2807 = vpop.permute.xlu0 %2806
    %2808 = vrot.lane.b32.xlu0 %v147, 30
    %v2809 = vpop.permute.xlu0 %2808
    %2810 = vrot.lane.b32.xlu0 %v148, 30
    %v2811 = vpop.permute.xlu0 %2810
    %2812 = vrot.lane.b32.xlu0 %v150, 30
    %v2813 = vpop.permute.xlu0 %2812
    %2814 = vrot.lane.b32.xlu0 %v151, 30
    %v2815 = vpop.permute.xlu0 %2814
    %v2882 = vrot.slane %v90, 1
    %v2883 = vrot.slane %v91, 1
    %v2884 = vsel %vm266, %v2882, %v2883
    %v2885 = vrot.slane %v92, 1
    %v2886 = vsel %vm266, %v2883, %v2885
    %v2887 = vrot.slane %v150, 1
    %v2888 = vrot.slane %v151, 1
    %v2889 = vsel %vm266, %v2887, %v2888
    %v2890 = vrot.slane %v152, 1
    %v2891 = vsel %vm266, %v2888, %v2890
    %2892 = vrot.lane.b32.xlu0 %v279, 33
    %v2893 = vpop.permute.xlu0 %2892
    %2894 = vrot.lane.b32.xlu0 %v281, 33
    %v2895 = vpop.permute.xlu0 %2894
    %2896 = vrot.lane.b32.xlu0 %v284, 33
    %v2897 = vpop.permute.xlu0 %2896
    %2898 = vrot.lane.b32.xlu0 %v286, 33
    %v2899 = vpop.permute.xlu0 %2898
    %2900 = vrot.lane.b32.xlu0 %v289, 33
    %v2901 = vpop.permute.xlu0 %2900
    %2902 = vrot.lane.b32.xlu0 %v291, 33
    %v2903 = vpop.permute.xlu0 %2902
    %2904 = vrot.lane.b32.xlu0 %v294, 33
    %v2905 = vpop.permute.xlu0 %2904
    %2906 = vrot.lane.b32.xlu0 %v296, 33
    %v2907 = vpop.permute.xlu0 %2906
    %2908 = vrot.lane.b32.xlu0 %v299, 33
    %v2909 = vpop.permute.xlu0 %2908
    %2910 = vrot.lane.b32.xlu0 %v301, 33
    %v2911 = vpop.permute.xlu0 %2910
    %2912 = vrot.lane.b32.xlu0 %v304, 33
    %v2913 = vpop.permute.xlu0 %2912
    %2914 = vrot.lane.b32.xlu0 %v306, 33
    %v2915 = vpop.permute.xlu0 %2914
    %2916 = vrot.lane.b32.xlu0 %v309, 33
    %v2917 = vpop.permute.xlu0 %2916
    %2918 = vrot.lane.b32.xlu0 %v311, 33
    %v2919 = vpop.permute.xlu0 %2918
    %2920 = vrot.lane.b32.xlu0 %v314, 33
    %v2921 = vpop.permute.xlu0 %2920
    %2922 = vrot.lane.b32.xlu0 %v316, 33
    %v2923 = vpop.permute.xlu0 %2922
    %2924 = vrot.lane.b32.xlu0 %v319, 33
    %v2925 = vpop.permute.xlu0 %2924
    %2926 = vrot.lane.b32.xlu0 %v321, 33
    %v2927 = vpop.permute.xlu0 %2926
    %2928 = vrot.lane.b32.xlu0 %v324, 33
    %v2929 = vpop.permute.xlu0 %2928
    %2930 = vrot.lane.b32.xlu0 %v326, 33
    %v2931 = vpop.permute.xlu0 %2930
    %2932 = vrot.lane.b32.xlu0 %v329, 33
    %v2933 = vpop.permute.xlu0 %2932
    %2934 = vrot.lane.b32.xlu0 %v331, 33
    %v2935 = vpop.permute.xlu0 %2934
    %2936 = vrot.lane.b32.xlu0 %v334, 33
    %v2937 = vpop.permute.xlu0 %2936
    %2938 = vrot.lane.b32.xlu0 %v336, 33
    %v2939 = vpop.permute.xlu0 %2938
    %2940 = vrot.lane.b32.xlu0 %v339, 33
    %v2941 = vpop.permute.xlu0 %2940
    %2942 = vrot.lane.b32.xlu0 %v341, 33
    %v2943 = vpop.permute.xlu0 %2942
    %2944 = vrot.lane.b32.xlu0 %v344, 33
    %v2945 = vpop.permute.xlu0 %2944
    %2946 = vrot.lane.b32.xlu0 %v346, 33
    %v2947 = vpop.permute.xlu0 %2946
    %2948 = vrot.lane.b32.xlu0 %v1878, 33
    %v2949 = vpop.permute.xlu0 %2948
    %2950 = vrot.lane.b32.xlu0 %v1880, 33
    %v2951 = vpop.permute.xlu0 %2950
    %2952 = vrot.lane.b32.xlu0 %v2884, 33
    %v2953 = vpop.permute.xlu0 %2952
    %2954 = vrot.lane.b32.xlu0 %v2886, 33
    %v2955 = vpop.permute.xlu0 %2954
    %2956 = vrot.lane.b32.xlu0 %v359, 33
    %v2957 = vpop.permute.xlu0 %2956
    %2958 = vrot.lane.b32.xlu0 %v361, 33
    %v2959 = vpop.permute.xlu0 %2958
    %2960 = vrot.lane.b32.xlu0 %v364, 33
    %v2961 = vpop.permute.xlu0 %2960
    %2962 = vrot.lane.b32.xlu0 %v366, 33
    %v2963 = vpop.permute.xlu0 %2962
    %2964 = vrot.lane.b32.xlu0 %v369, 33
    %v2965 = vpop.permute.xlu0 %2964
    %2966 = vrot.lane.b32.xlu0 %v371, 33
    %v2967 = vpop.permute.xlu0 %2966
    %2968 = vrot.lane.b32.xlu0 %v374, 33
    %v2969 = vpop.permute.xlu0 %2968
    %2970 = vrot.lane.b32.xlu0 %v376, 33
    %v2971 = vpop.permute.xlu0 %2970
    %2972 = vrot.lane.b32.xlu0 %v379, 33
    %v2973 = vpop.permute.xlu0 %2972
    %2974 = vrot.lane.b32.xlu0 %v381, 33
    %v2975 = vpop.permute.xlu0 %2974
    %2976 = vrot.lane.b32.xlu0 %v384, 33
    %v2977 = vpop.permute.xlu0 %2976
    %2978 = vrot.lane.b32.xlu0 %v386, 33
    %v2979 = vpop.permute.xlu0 %2978
    %2980 = vrot.lane.b32.xlu0 %v389, 33
    %v2981 = vpop.permute.xlu0 %2980
    %2982 = vrot.lane.b32.xlu0 %v391, 33
    %v2983 = vpop.permute.xlu0 %2982
    %2984 = vrot.lane.b32.xlu0 %v394, 33
    %v2985 = vpop.permute.xlu0 %2984
    %2986 = vrot.lane.b32.xlu0 %v396, 33
    %v2987 = vpop.permute.xlu0 %2986
    %2988 = vrot.lane.b32.xlu0 %v399, 33
    %v2989 = vpop.permute.xlu0 %2988
    %2990 = vrot.lane.b32.xlu0 %v401, 33
    %v2991 = vpop.permute.xlu0 %2990
    %2992 = vrot.lane.b32.xlu0 %v404, 33
    %v2993 = vpop.permute.xlu0 %2992
    %2994 = vrot.lane.b32.xlu0 %v406, 33
    %v2995 = vpop.permute.xlu0 %2994
    %2996 = vrot.lane.b32.xlu0 %v409, 33
    %v2997 = vpop.permute.xlu0 %2996
    %2998 = vrot.lane.b32.xlu0 %v411, 33
    %v2999 = vpop.permute.xlu0 %2998
    %3000 = vrot.lane.b32.xlu0 %v414, 33
    %v3001 = vpop.permute.xlu0 %3000
    %3002 = vrot.lane.b32.xlu0 %v416, 33
    %v3003 = vpop.permute.xlu0 %3002
    %3004 = vrot.lane.b32.xlu0 %v419, 33
    %v3005 = vpop.permute.xlu0 %3004
    %3006 = vrot.lane.b32.xlu0 %v421, 33
    %v3007 = vpop.permute.xlu0 %3006
    %3008 = vrot.lane.b32.xlu0 %v424, 33
    %v3009 = vpop.permute.xlu0 %3008
    %3010 = vrot.lane.b32.xlu0 %v426, 33
    %v3011 = vpop.permute.xlu0 %3010
    %3012 = vrot.lane.b32.xlu0 %v1883, 33
    %v3013 = vpop.permute.xlu0 %3012
    %3014 = vrot.lane.b32.xlu0 %v1885, 33
    %v3015 = vpop.permute.xlu0 %3014
    %3016 = vrot.lane.b32.xlu0 %v2889, 33
    %v3017 = vpop.permute.xlu0 %3016
    %3018 = vrot.lane.b32.xlu0 %v2891, 33
    %v3019 = vpop.permute.xlu0 %3018
    %v3084 = vrot.slane %v90, 2
    %v3085 = vrot.slane %v91, 2
    %v3086 = vsel %vm619, %v3084, %v3085
    %v3087 = vrot.slane %v92, 2
    %v3088 = vsel %vm619, %v3085, %v3087
    %v3089 = vrot.slane %v150, 2
    %v3090 = vrot.slane %v151, 2
    %v3091 = vsel %vm619, %v3089, %v3090
    %v3092 = vrot.slane %v152, 2
    %v3093 = vsel %vm619, %v3090, %v3092
    %3094 = vrot.lane.b32.xlu0 %v632, 36
    %v3095 = vpop.permute.xlu0 %3094
    %3096 = vrot.lane.b32.xlu0 %v634, 36
    %v3097 = vpop.permute.xlu0 %3096
    %3098 = vrot.lane.b32.xlu0 %v637, 36
    %v3099 = vpop.permute.xlu0 %3098
    %3100 = vrot.lane.b32.xlu0 %v639, 36
    %v3101 = vpop.permute.xlu0 %3100
    %3102 = vrot.lane.b32.xlu0 %v642, 36
    %v3103 = vpop.permute.xlu0 %3102
    %3104 = vrot.lane.b32.xlu0 %v644, 36
    %v3105 = vpop.permute.xlu0 %3104
    %3106 = vrot.lane.b32.xlu0 %v647, 36
    %v3107 = vpop.permute.xlu0 %3106
    %3108 = vrot.lane.b32.xlu0 %v649, 36
    %v3109 = vpop.permute.xlu0 %3108
    %3110 = vrot.lane.b32.xlu0 %v652, 36
    %v3111 = vpop.permute.xlu0 %3110
    %3112 = vrot.lane.b32.xlu0 %v654, 36
    %v3113 = vpop.permute.xlu0 %3112
    %3114 = vrot.lane.b32.xlu0 %v657, 36
    %v3115 = vpop.permute.xlu0 %3114
    %3116 = vrot.lane.b32.xlu0 %v659, 36
    %v3117 = vpop.permute.xlu0 %3116
    %3118 = vrot.lane.b32.xlu0 %v662, 36
    %v3119 = vpop.permute.xlu0 %3118
    %3120 = vrot.lane.b32.xlu0 %v664, 36
    %v3121 = vpop.permute.xlu0 %3120
    %3122 = vrot.lane.b32.xlu0 %v667, 36
    %v3123 = vpop.permute.xlu0 %3122
    %3124 = vrot.lane.b32.xlu0 %v669, 36
    %v3125 = vpop.permute.xlu0 %3124
    %3126 = vrot.lane.b32.xlu0 %v672, 36
    %v3127 = vpop.permute.xlu0 %3126
    %3128 = vrot.lane.b32.xlu0 %v674, 36
    %v3129 = vpop.permute.xlu0 %3128
    %3130 = vrot.lane.b32.xlu0 %v677, 36
    %v3131 = vpop.permute.xlu0 %3130
    %3132 = vrot.lane.b32.xlu0 %v679, 36
    %v3133 = vpop.permute.xlu0 %3132
    %3134 = vrot.lane.b32.xlu0 %v682, 36
    %v3135 = vpop.permute.xlu0 %3134
    %3136 = vrot.lane.b32.xlu0 %v684, 36
    %v3137 = vpop.permute.xlu0 %3136
    %3138 = vrot.lane.b32.xlu0 %v687, 36
    %v3139 = vpop.permute.xlu0 %3138
    %3140 = vrot.lane.b32.xlu0 %v689, 36
    %v3141 = vpop.permute.xlu0 %3140
    %3142 = vrot.lane.b32.xlu0 %v692, 36
    %v3143 = vpop.permute.xlu0 %3142
    %3144 = vrot.lane.b32.xlu0 %v694, 36
    %v3145 = vpop.permute.xlu0 %3144
    %3146 = vrot.lane.b32.xlu0 %v697, 36
    %v3147 = vpop.permute.xlu0 %3146
    %3148 = vrot.lane.b32.xlu0 %v699, 36
    %v3149 = vpop.permute.xlu0 %3148
    %3150 = vrot.lane.b32.xlu0 %v2080, 36
    %v3151 = vpop.permute.xlu0 %3150
    %3152 = vrot.lane.b32.xlu0 %v2082, 36
    %v3153 = vpop.permute.xlu0 %3152
    %3154 = vrot.lane.b32.xlu0 %v3086, 36
    %v3155 = vpop.permute.xlu0 %3154
    %3156 = vrot.lane.b32.xlu0 %v3088, 36
    %v3157 = vpop.permute.xlu0 %3156
    %3158 = vrot.lane.b32.xlu0 %v712, 36
    %v3159 = vpop.permute.xlu0 %3158
    %3160 = vrot.lane.b32.xlu0 %v714, 36
    %v3161 = vpop.permute.xlu0 %3160
    %3162 = vrot.lane.b32.xlu0 %v717, 36
    %v3163 = vpop.permute.xlu0 %3162
    %3164 = vrot.lane.b32.xlu0 %v719, 36
    %v3165 = vpop.permute.xlu0 %3164
    %3166 = vrot.lane.b32.xlu0 %v722, 36
    %v3167 = vpop.permute.xlu0 %3166
    %3168 = vrot.lane.b32.xlu0 %v724, 36
    %v3169 = vpop.permute.xlu0 %3168
    %3170 = vrot.lane.b32.xlu0 %v727, 36
    %v3171 = vpop.permute.xlu0 %3170
    %3172 = vrot.lane.b32.xlu0 %v729, 36
    %v3173 = vpop.permute.xlu0 %3172
    %3174 = vrot.lane.b32.xlu0 %v732, 36
    %v3175 = vpop.permute.xlu0 %3174
    %3176 = vrot.lane.b32.xlu0 %v734, 36
    %v3177 = vpop.permute.xlu0 %3176
    %3178 = vrot.lane.b32.xlu0 %v737, 36
    %v3179 = vpop.permute.xlu0 %3178
    %3180 = vrot.lane.b32.xlu0 %v739, 36
    %v3181 = vpop.permute.xlu0 %3180
    %3182 = vrot.lane.b32.xlu0 %v742, 36
    %v3183 = vpop.permute.xlu0 %3182
    %3184 = vrot.lane.b32.xlu0 %v744, 36
    %v3185 = vpop.permute.xlu0 %3184
    %3186 = vrot.lane.b32.xlu0 %v747, 36
    %v3187 = vpop.permute.xlu0 %3186
    %3188 = vrot.lane.b32.xlu0 %v749, 36
    %v3189 = vpop.permute.xlu0 %3188
    %3190 = vrot.lane.b32.xlu0 %v752, 36
    %v3191 = vpop.permute.xlu0 %3190
    %3192 = vrot.lane.b32.xlu0 %v754, 36
    %v3193 = vpop.permute.xlu0 %3192
    %3194 = vrot.lane.b32.xlu0 %v757, 36
    %v3195 = vpop.permute.xlu0 %3194
    %3196 = vrot.lane.b32.xlu0 %v759, 36
    %v3197 = vpop.permute.xlu0 %3196
    %3198 = vrot.lane.b32.xlu0 %v762, 36
    %v3199 = vpop.permute.xlu0 %3198
    %3200 = vrot.lane.b32.xlu0 %v764, 36
    %v3201 = vpop.permute.xlu0 %3200
    %3202 = vrot.lane.b32.xlu0 %v767, 36
    %v3203 = vpop.permute.xlu0 %3202
    %3204 = vrot.lane.b32.xlu0 %v769, 36
    %v3205 = vpop.permute.xlu0 %3204
    %3206 = vrot.lane.b32.xlu0 %v772, 36
    %v3207 = vpop.permute.xlu0 %3206
    %3208 = vrot.lane.b32.xlu0 %v774, 36
    %v3209 = vpop.permute.xlu0 %3208
    %3210 = vrot.lane.b32.xlu0 %v777, 36
    %v3211 = vpop.permute.xlu0 %3210
    %3212 = vrot.lane.b32.xlu0 %v779, 36
    %v3213 = vpop.permute.xlu0 %3212
    %3214 = vrot.lane.b32.xlu0 %v2085, 36
    %v3215 = vpop.permute.xlu0 %3214
    %3216 = vrot.lane.b32.xlu0 %v2087, 36
    %v3217 = vpop.permute.xlu0 %3216
    %3218 = vrot.lane.b32.xlu0 %v3091, 36
    %v3219 = vpop.permute.xlu0 %3218
    %3220 = vrot.lane.b32.xlu0 %v3093, 36
    %v3221 = vpop.permute.xlu0 %3220
    %v3286 = vrot.slane %v90, 3
    %v3287 = vrot.slane %v91, 3
    %v3288 = vsel %vm972, %v3286, %v3287
    %v3289 = vrot.slane %v92, 3
    %v3290 = vsel %vm972, %v3287, %v3289
    %v3291 = vrot.slane %v150, 3
    %v3292 = vrot.slane %v151, 3
    %v3293 = vsel %vm972, %v3291, %v3292
    %v3294 = vrot.slane %v152, 3
    %v3295 = vsel %vm972, %v3292, %v3294
    %3296 = vrot.lane.b32.xlu0 %v985, 39
    %v3297 = vpop.permute.xlu0 %3296
    %3298 = vrot.lane.b32.xlu0 %v987, 39
    %v3299 = vpop.permute.xlu0 %3298
    %3300 = vrot.lane.b32.xlu0 %v990, 39
    %v3301 = vpop.permute.xlu0 %3300
    %3302 = vrot.lane.b32.xlu0 %v992, 39
    %v3303 = vpop.permute.xlu0 %3302
    %3304 = vrot.lane.b32.xlu0 %v995, 39
    %v3305 = vpop.permute.xlu0 %3304
    %3306 = vrot.lane.b32.xlu0 %v997, 39
    %v3307 = vpop.permute.xlu0 %3306
    %3308 = vrot.lane.b32.xlu0 %v1000, 39
    %v3309 = vpop.permute.xlu0 %3308
    %3310 = vrot.lane.b32.xlu0 %v1002, 39
    %v3311 = vpop.permute.xlu0 %3310
    %3312 = vrot.lane.b32.xlu0 %v1005, 39
    %v3313 = vpop.permute.xlu0 %3312
    %3314 = vrot.lane.b32.xlu0 %v1007, 39
    %v3315 = vpop.permute.xlu0 %3314
    %3316 = vrot.lane.b32.xlu0 %v1010, 39
    %v3317 = vpop.permute.xlu0 %3316
    %3318 = vrot.lane.b32.xlu0 %v1012, 39
    %v3319 = vpop.permute.xlu0 %3318
    %3320 = vrot.lane.b32.xlu0 %v1015, 39
    %v3321 = vpop.permute.xlu0 %3320
    %3322 = vrot.lane.b32.xlu0 %v1017, 39
    %v3323 = vpop.permute.xlu0 %3322
    %3324 = vrot.lane.b32.xlu0 %v1020, 39
    %v3325 = vpop.permute.xlu0 %3324
    %3326 = vrot.lane.b32.xlu0 %v1022, 39
    %v3327 = vpop.permute.xlu0 %3326
    %3328 = vrot.lane.b32.xlu0 %v1025, 39
    %v3329 = vpop.permute.xlu0 %3328
    %3330 = vrot.lane.b32.xlu0 %v1027, 39
    %v3331 = vpop.permute.xlu0 %3330
    %3332 = vrot.lane.b32.xlu0 %v1030, 39
    %v3333 = vpop.permute.xlu0 %3332
    %3334 = vrot.lane.b32.xlu0 %v1032, 39
    %v3335 = vpop.permute.xlu0 %3334
    %3336 = vrot.lane.b32.xlu0 %v1035, 39
    %v3337 = vpop.permute.xlu0 %3336
    %3338 = vrot.lane.b32.xlu0 %v1037, 39
    %v3339 = vpop.permute.xlu0 %3338
    %3340 = vrot.lane.b32.xlu0 %v1040, 39
    %v3341 = vpop.permute.xlu0 %3340
    %3342 = vrot.lane.b32.xlu0 %v1042, 39
    %v3343 = vpop.permute.xlu0 %3342
    %3344 = vrot.lane.b32.xlu0 %v1045, 39
    %v3345 = vpop.permute.xlu0 %3344
    %3346 = vrot.lane.b32.xlu0 %v1047, 39
    %v3347 = vpop.permute.xlu0 %3346
    %3348 = vrot.lane.b32.xlu0 %v1050, 39
    %v3349 = vpop.permute.xlu0 %3348
    %3350 = vrot.lane.b32.xlu0 %v1052, 39
    %v3351 = vpop.permute.xlu0 %3350
    %3352 = vrot.lane.b32.xlu0 %v2282, 39
    %v3353 = vpop.permute.xlu0 %3352
    %3354 = vrot.lane.b32.xlu0 %v2284, 39
    %v3355 = vpop.permute.xlu0 %3354
    %3356 = vrot.lane.b32.xlu0 %v3288, 39
    %v3357 = vpop.permute.xlu0 %3356
    %3358 = vrot.lane.b32.xlu0 %v3290, 39
    %v3359 = vpop.permute.xlu0 %3358
    %3360 = vrot.lane.b32.xlu0 %v1065, 39
    %v3361 = vpop.permute.xlu0 %3360
    %3362 = vrot.lane.b32.xlu0 %v1067, 39
    %v3363 = vpop.permute.xlu0 %3362
    %3364 = vrot.lane.b32.xlu0 %v1070, 39
    %v3365 = vpop.permute.xlu0 %3364
    %3366 = vrot.lane.b32.xlu0 %v1072, 39
    %v3367 = vpop.permute.xlu0 %3366
    %3368 = vrot.lane.b32.xlu0 %v1075, 39
    %v3369 = vpop.permute.xlu0 %3368
    %3370 = vrot.lane.b32.xlu0 %v1077, 39
    %v3371 = vpop.permute.xlu0 %3370
    %3372 = vrot.lane.b32.xlu0 %v1080, 39
    %v3373 = vpop.permute.xlu0 %3372
    %3374 = vrot.lane.b32.xlu0 %v1082, 39
    %v3375 = vpop.permute.xlu0 %3374
    %3376 = vrot.lane.b32.xlu0 %v1085, 39
    %v3377 = vpop.permute.xlu0 %3376
    %3378 = vrot.lane.b32.xlu0 %v1087, 39
    %v3379 = vpop.permute.xlu0 %3378
    %3380 = vrot.lane.b32.xlu0 %v1090, 39
    %v3381 = vpop.permute.xlu0 %3380
    %3382 = vrot.lane.b32.xlu0 %v1092, 39
    %v3383 = vpop.permute.xlu0 %3382
    %3384 = vrot.lane.b32.xlu0 %v1095, 39
    %v3385 = vpop.permute.xlu0 %3384
    %3386 = vrot.lane.b32.xlu0 %v1097, 39
    %v3387 = vpop.permute.xlu0 %3386
    %3388 = vrot.lane.b32.xlu0 %v1100, 39
    %v3389 = vpop.permute.xlu0 %3388
    %3390 = vrot.lane.b32.xlu0 %v1102, 39
    %v3391 = vpop.permute.xlu0 %3390
    %3392 = vrot.lane.b32.xlu0 %v1105, 39
    %v3393 = vpop.permute.xlu0 %3392
    %3394 = vrot.lane.b32.xlu0 %v1107, 39
    %v3395 = vpop.permute.xlu0 %3394
    %3396 = vrot.lane.b32.xlu0 %v1110, 39
    %v3397 = vpop.permute.xlu0 %3396
    %3398 = vrot.lane.b32.xlu0 %v1112, 39
    %v3399 = vpop.permute.xlu0 %3398
    %3400 = vrot.lane.b32.xlu0 %v1115, 39
    %v3401 = vpop.permute.xlu0 %3400
    %3402 = vrot.lane.b32.xlu0 %v1117, 39
    %v3403 = vpop.permute.xlu0 %3402
    %3404 = vrot.lane.b32.xlu0 %v1120, 39
    %v3405 = vpop.permute.xlu0 %3404
    %3406 = vrot.lane.b32.xlu0 %v1122, 39
    %v3407 = vpop.permute.xlu0 %3406
    %3408 = vrot.lane.b32.xlu0 %v1125, 39
    %v3409 = vpop.permute.xlu0 %3408
    %3410 = vrot.lane.b32.xlu0 %v1127, 39
    %v3411 = vpop.permute.xlu0 %3410
    %3412 = vrot.lane.b32.xlu0 %v1130, 39
    %v3413 = vpop.permute.xlu0 %3412
    %3414 = vrot.lane.b32.xlu0 %v1132, 39
    %v3415 = vpop.permute.xlu0 %3414
    %3416 = vrot.lane.b32.xlu0 %v2287, 39
    %v3417 = vpop.permute.xlu0 %3416
    %3418 = vrot.lane.b32.xlu0 %v2289, 39
    %v3419 = vpop.permute.xlu0 %3418
    %3420 = vrot.lane.b32.xlu0 %v3293, 39
    %v3421 = vpop.permute.xlu0 %3420
    %3422 = vrot.lane.b32.xlu0 %v3295, 39
    %v3423 = vpop.permute.xlu0 %3422
    %v3488 = vrot.slane %v90, 4
    %v3489 = vrot.slane %v91, 4
    %v3490 = vsel %vm1325, %v3488, %v3489
    %v3491 = vrot.slane %v92, 4
    %v3492 = vsel %vm1325, %v3489, %v3491
    %v3493 = vrot.slane %v150, 4
    %v3494 = vrot.slane %v151, 4
    %v3495 = vsel %vm1325, %v3493, %v3494
    %v3496 = vrot.slane %v152, 4
    %v3497 = vsel %vm1325, %v3494, %v3496
    %3498 = vrot.lane.b32.xlu0 %v1338, 42
    %v3499 = vpop.permute.xlu0 %3498
    %3500 = vrot.lane.b32.xlu0 %v1340, 42
    %v3501 = vpop.permute.xlu0 %3500
    %3502 = vrot.lane.b32.xlu0 %v1343, 42
    %v3503 = vpop.permute.xlu0 %3502
    %3504 = vrot.lane.b32.xlu0 %v1345, 42
    %v3505 = vpop.permute.xlu0 %3504
    %3506 = vrot.lane.b32.xlu0 %v1348, 42
    %v3507 = vpop.permute.xlu0 %3506
    %3508 = vrot.lane.b32.xlu0 %v1350, 42
    %v3509 = vpop.permute.xlu0 %3508
    %3510 = vrot.lane.b32.xlu0 %v1353, 42
    %v3511 = vpop.permute.xlu0 %3510
    %3512 = vrot.lane.b32.xlu0 %v1355, 42
    %v3513 = vpop.permute.xlu0 %3512
    %3514 = vrot.lane.b32.xlu0 %v1358, 42
    %v3515 = vpop.permute.xlu0 %3514
    %3516 = vrot.lane.b32.xlu0 %v1360, 42
    %v3517 = vpop.permute.xlu0 %3516
    %3518 = vrot.lane.b32.xlu0 %v1363, 42
    %v3519 = vpop.permute.xlu0 %3518
    %3520 = vrot.lane.b32.xlu0 %v1365, 42
    %v3521 = vpop.permute.xlu0 %3520
    %3522 = vrot.lane.b32.xlu0 %v1368, 42
    %v3523 = vpop.permute.xlu0 %3522
    %3524 = vrot.lane.b32.xlu0 %v1370, 42
    %v3525 = vpop.permute.xlu0 %3524
    %3526 = vrot.lane.b32.xlu0 %v1373, 42
    %v3527 = vpop.permute.xlu0 %3526
    %3528 = vrot.lane.b32.xlu0 %v1375, 42
    %v3529 = vpop.permute.xlu0 %3528
    %3530 = vrot.lane.b32.xlu0 %v1378, 42
    %v3531 = vpop.permute.xlu0 %3530
    %3532 = vrot.lane.b32.xlu0 %v1380, 42
    %v3533 = vpop.permute.xlu0 %3532
    %3534 = vrot.lane.b32.xlu0 %v1383, 42
    %v3535 = vpop.permute.xlu0 %3534
    %3536 = vrot.lane.b32.xlu0 %v1385, 42
    %v3537 = vpop.permute.xlu0 %3536
    %3538 = vrot.lane.b32.xlu0 %v1388, 42
    %v3539 = vpop.permute.xlu0 %3538
    %3540 = vrot.lane.b32.xlu0 %v1390, 42
    %v3541 = vpop.permute.xlu0 %3540
    %3542 = vrot.lane.b32.xlu0 %v1393, 42
    %v3543 = vpop.permute.xlu0 %3542
    %3544 = vrot.lane.b32.xlu0 %v1395, 42
    %v3545 = vpop.permute.xlu0 %3544
    %3546 = vrot.lane.b32.xlu0 %v1398, 42
    %v3547 = vpop.permute.xlu0 %3546
    %3548 = vrot.lane.b32.xlu0 %v1400, 42
    %v3549 = vpop.permute.xlu0 %3548
    %3550 = vrot.lane.b32.xlu0 %v1403, 42
    %v3551 = vpop.permute.xlu0 %3550
    %3552 = vrot.lane.b32.xlu0 %v1405, 42
    %v3553 = vpop.permute.xlu0 %3552
    %3554 = vrot.lane.b32.xlu0 %v2484, 42
    %v3555 = vpop.permute.xlu0 %3554
    %3556 = vrot.lane.b32.xlu0 %v2486, 42
    %v3557 = vpop.permute.xlu0 %3556
    %3558 = vrot.lane.b32.xlu0 %v3490, 42
    %v3559 = vpop.permute.xlu0 %3558
    %3560 = vrot.lane.b32.xlu0 %v3492, 42
    %v3561 = vpop.permute.xlu0 %3560
    %3562 = vrot.lane.b32.xlu0 %v1418, 42
    %v3563 = vpop.permute.xlu0 %3562
    %3564 = vrot.lane.b32.xlu0 %v1420, 42
    %v3565 = vpop.permute.xlu0 %3564
    %3566 = vrot.lane.b32.xlu0 %v1423, 42
    %v3567 = vpop.permute.xlu0 %3566
    %3568 = vrot.lane.b32.xlu0 %v1425, 42
    %v3569 = vpop.permute.xlu0 %3568
    %3570 = vrot.lane.b32.xlu0 %v1428, 42
    %v3571 = vpop.permute.xlu0 %3570
    %3572 = vrot.lane.b32.xlu0 %v1430, 42
    %v3573 = vpop.permute.xlu0 %3572
    %3574 = vrot.lane.b32.xlu0 %v1433, 42
    %v3575 = vpop.permute.xlu0 %3574
    %3576 = vrot.lane.b32.xlu0 %v1435, 42
    %v3577 = vpop.permute.xlu0 %3576
    %3578 = vrot.lane.b32.xlu0 %v1438, 42
    %v3579 = vpop.permute.xlu0 %3578
    %3580 = vrot.lane.b32.xlu0 %v1440, 42
    %v3581 = vpop.permute.xlu0 %3580
    %3582 = vrot.lane.b32.xlu0 %v1443, 42
    %v3583 = vpop.permute.xlu0 %3582
    %3584 = vrot.lane.b32.xlu0 %v1445, 42
    %v3585 = vpop.permute.xlu0 %3584
    %3586 = vrot.lane.b32.xlu0 %v1448, 42
    %v3587 = vpop.permute.xlu0 %3586
    %3588 = vrot.lane.b32.xlu0 %v1450, 42
    %v3589 = vpop.permute.xlu0 %3588
    %3590 = vrot.lane.b32.xlu0 %v1453, 42
    %v3591 = vpop.permute.xlu0 %3590
    %3592 = vrot.lane.b32.xlu0 %v1455, 42
    %v3593 = vpop.permute.xlu0 %3592
    %3594 = vrot.lane.b32.xlu0 %v1458, 42
    %v3595 = vpop.permute.xlu0 %3594
    %3596 = vrot.lane.b32.xlu0 %v1460, 42
    %v3597 = vpop.permute.xlu0 %3596
    %3598 = vrot.lane.b32.xlu0 %v1463, 42
    %v3599 = vpop.permute.xlu0 %3598
    %3600 = vrot.lane.b32.xlu0 %v1465, 42
    %v3601 = vpop.permute.xlu0 %3600
    %3602 = vrot.lane.b32.xlu0 %v1468, 42
    %v3603 = vpop.permute.xlu0 %3602
    %3604 = vrot.lane.b32.xlu0 %v1470, 42
    %v3605 = vpop.permute.xlu0 %3604
    %3606 = vrot.lane.b32.xlu0 %v1473, 42
    %v3607 = vpop.permute.xlu0 %3606
    %3608 = vrot.lane.b32.xlu0 %v1475, 42
    %v3609 = vpop.permute.xlu0 %3608
    %3610 = vrot.lane.b32.xlu0 %v1478, 42
    %v3611 = vpop.permute.xlu0 %3610
    %3612 = vrot.lane.b32.xlu0 %v1480, 42
    %v3613 = vpop.permute.xlu0 %3612
    %3614 = vrot.lane.b32.xlu0 %v1483, 42
    %v3615 = vpop.permute.xlu0 %3614
    %3616 = vrot.lane.b32.xlu0 %v1485, 42
    %v3617 = vpop.permute.xlu0 %3616
    %3618 = vrot.lane.b32.xlu0 %v2489, 42
    %v3619 = vpop.permute.xlu0 %3618
    %3620 = vrot.lane.b32.xlu0 %v2491, 42
    %v3621 = vpop.permute.xlu0 %3620
    %3622 = vrot.lane.b32.xlu0 %v3495, 42
    %v3623 = vpop.permute.xlu0 %3622
    %3624 = vrot.lane.b32.xlu0 %v3497, 42
    %v3625 = vpop.permute.xlu0 %3624
    %3694 = vrot.lane.b32.xlu0 %v48, 45
    %v3695 = vpop.permute.xlu0 %3694
    %3696 = vrot.lane.b32.xlu0 %v49, 45
    %v3697 = vpop.permute.xlu0 %3696
    %3698 = vrot.lane.b32.xlu0 %v51, 45
    %v3699 = vpop.permute.xlu0 %3698
    %3700 = vrot.lane.b32.xlu0 %v52, 45
    %v3701 = vpop.permute.xlu0 %3700
    %3702 = vrot.lane.b32.xlu0 %v54, 45
    %v3703 = vpop.permute.xlu0 %3702
    %3704 = vrot.lane.b32.xlu0 %v55, 45
    %v3705 = vpop.permute.xlu0 %3704
    %3706 = vrot.lane.b32.xlu0 %v57, 45
    %v3707 = vpop.permute.xlu0 %3706
    %3708 = vrot.lane.b32.xlu0 %v58, 45
    %v3709 = vpop.permute.xlu0 %3708
    %3710 = vrot.lane.b32.xlu0 %v60, 45
    %v3711 = vpop.permute.xlu0 %3710
    %3712 = vrot.lane.b32.xlu0 %v61, 45
    %v3713 = vpop.permute.xlu0 %3712
    %3714 = vrot.lane.b32.xlu0 %v63, 45
    %v3715 = vpop.permute.xlu0 %3714
    %3716 = vrot.lane.b32.xlu0 %v64, 45
    %v3717 = vpop.permute.xlu0 %3716
    %3718 = vrot.lane.b32.xlu0 %v66, 45
    %v3719 = vpop.permute.xlu0 %3718
    %3720 = vrot.lane.b32.xlu0 %v67, 45
    %v3721 = vpop.permute.xlu0 %3720
    %3722 = vrot.lane.b32.xlu0 %v69, 45
    %v3723 = vpop.permute.xlu0 %3722
    %3724 = vrot.lane.b32.xlu0 %v70, 45
    %v3725 = vpop.permute.xlu0 %3724
    %3726 = vrot.lane.b32.xlu0 %v72, 45
    %v3727 = vpop.permute.xlu0 %3726
    %3728 = vrot.lane.b32.xlu0 %v73, 45
    %v3729 = vpop.permute.xlu0 %3728
    %3730 = vrot.lane.b32.xlu0 %v75, 45
    %v3731 = vpop.permute.xlu0 %3730
    %3732 = vrot.lane.b32.xlu0 %v76, 45
    %v3733 = vpop.permute.xlu0 %3732
    %3734 = vrot.lane.b32.xlu0 %v78, 45
    %v3735 = vpop.permute.xlu0 %3734
    %3736 = vrot.lane.b32.xlu0 %v79, 45
    %v3737 = vpop.permute.xlu0 %3736
    %3738 = vrot.lane.b32.xlu0 %v81, 45
    %v3739 = vpop.permute.xlu0 %3738
    %3740 = vrot.lane.b32.xlu0 %v82, 45
    %v3741 = vpop.permute.xlu0 %3740
    %3742 = vrot.lane.b32.xlu0 %v84, 45
    %v3743 = vpop.permute.xlu0 %3742
    %3744 = vrot.lane.b32.xlu0 %v85, 45
    %v3745 = vpop.permute.xlu0 %3744
    %3746 = vrot.lane.b32.xlu0 %v87, 45
    %v3747 = vpop.permute.xlu0 %3746
    %3748 = vrot.lane.b32.xlu0 %v88, 45
    %v3749 = vpop.permute.xlu0 %3748
    %3750 = vrot.lane.b32.xlu0 %v90, 45
    %v3751 = vpop.permute.xlu0 %3750
    %3752 = vrot.lane.b32.xlu0 %v91, 45
    %v3753 = vpop.permute.xlu0 %3752
    %3754 = vrot.lane.b32.xlu0 %v93, 45
    %v3755 = vpop.permute.xlu0 %3754
    %3756 = vrot.lane.b32.xlu0 %v94, 45
    %v3757 = vpop.permute.xlu0 %3756
    %3758 = vrot.lane.b32.xlu0 %v108, 45
    %v3759 = vpop.permute.xlu0 %3758
    %3760 = vrot.lane.b32.xlu0 %v109, 45
    %v3761 = vpop.permute.xlu0 %3760
    %3762 = vrot.lane.b32.xlu0 %v111, 45
    %v3763 = vpop.permute.xlu0 %3762
    %3764 = vrot.lane.b32.xlu0 %v112, 45
    %v3765 = vpop.permute.xlu0 %3764
    %3766 = vrot.lane.b32.xlu0 %v114, 45
    %v3767 = vpop.permute.xlu0 %3766
    %3768 = vrot.lane.b32.xlu0 %v115, 45
    %v3769 = vpop.permute.xlu0 %3768
    %3770 = vrot.lane.b32.xlu0 %v117, 45
    %v3771 = vpop.permute.xlu0 %3770
    %3772 = vrot.lane.b32.xlu0 %v118, 45
    %v3773 = vpop.permute.xlu0 %3772
    %3774 = vrot.lane.b32.xlu0 %v120, 45
    %v3775 = vpop.permute.xlu0 %3774
    %3776 = vrot.lane.b32.xlu0 %v121, 45
    %v3777 = vpop.permute.xlu0 %3776
    %3778 = vrot.lane.b32.xlu0 %v123, 45
    %v3779 = vpop.permute.xlu0 %3778
    %3780 = vrot.lane.b32.xlu0 %v124, 45
    %v3781 = vpop.permute.xlu0 %3780
    %3782 = vrot.lane.b32.xlu0 %v126, 45
    %v3783 = vpop.permute.xlu0 %3782
    %3784 = vrot.lane.b32.xlu0 %v127, 45
    %v3785 = vpop.permute.xlu0 %3784
    %3786 = vrot.lane.b32.xlu0 %v129, 45
    %v3787 = vpop.permute.xlu0 %3786
    %3788 = vrot.lane.b32.xlu0 %v130, 45
    %v3789 = vpop.permute.xlu0 %3788
    %3790 = vrot.lane.b32.xlu0 %v132, 45
    %v3791 = vpop.permute.xlu0 %3790
    %3792 = vrot.lane.b32.xlu0 %v133, 45
    %v3793 = vpop.permute.xlu0 %3792
    %3794 = vrot.lane.b32.xlu0 %v135, 45
    %v3795 = vpop.permute.xlu0 %3794
    %3796 = vrot.lane.b32.xlu0 %v136, 45
    %v3797 = vpop.permute.xlu0 %3796
    %3798 = vrot.lane.b32.xlu0 %v138, 45
    %v3799 = vpop.permute.xlu0 %3798
    %3800 = vrot.lane.b32.xlu0 %v139, 45
    %v3801 = vpop.permute.xlu0 %3800
    %3802 = vrot.lane.b32.xlu0 %v141, 45
    %v3803 = vpop.permute.xlu0 %3802
    %3804 = vrot.lane.b32.xlu0 %v142, 45
    %v3805 = vpop.permute.xlu0 %3804
    %3806 = vrot.lane.b32.xlu0 %v144, 45
    %v3807 = vpop.permute.xlu0 %3806
    %3808 = vrot.lane.b32.xlu0 %v145, 45
    %v3809 = vpop.permute.xlu0 %3808
    %3810 = vrot.lane.b32.xlu0 %v147, 45
    %v3811 = vpop.permute.xlu0 %3810
    %3812 = vrot.lane.b32.xlu0 %v148, 45
    %v3813 = vpop.permute.xlu0 %3812
    %3814 = vrot.lane.b32.xlu0 %v150, 45
    %v3815 = vpop.permute.xlu0 %3814
    %3816 = vrot.lane.b32.xlu0 %v151, 45
    %v3817 = vpop.permute.xlu0 %3816
    %3818 = vrot.lane.b32.xlu0 %v153, 45
    %v3819 = vpop.permute.xlu0 %3818
    %3820 = vrot.lane.b32.xlu0 %v154, 45
    %v3821 = vpop.permute.xlu0 %3820
    %vm3886 = vcmask 23552
    %v3887 = vsel %vm3886, %v39, %v428
    %v3888 = vsel %vm3886, %v40, %v430
    %v3889 = vsel %vm3886, %v42, %v432
    %v3890 = vsel %vm3886, %v43, %v434
    %v3891 = vsel %vm3886, %v45, %v436
    %v3892 = vsel %vm3886, %v46, %v438
    %v3893 = vsel %vm3886, %v48, %v440
    %v3894 = vsel %vm3886, %v49, %v442
    %v3895 = vsel %vm3886, %v51, %v444
    %v3896 = vsel %vm3886, %v52, %v446
    %v3897 = vsel %vm3886, %v54, %v448
    %v3898 = vsel %vm3886, %v55, %v450
    %v3899 = vsel %vm3886, %v57, %v452
    %v3900 = vsel %vm3886, %v58, %v454
    %v3901 = vsel %vm3886, %v60, %v456
    %v3902 = vsel %vm3886, %v61, %v458
    %v3903 = vsel %vm3886, %v63, %v460
    %v3904 = vsel %vm3886, %v64, %v462
    %v3905 = vsel %vm3886, %v66, %v464
    %v3906 = vsel %vm3886, %v67, %v466
    %v3907 = vsel %vm3886, %v69, %v468
    %v3908 = vsel %vm3886, %v70, %v470
    %v3909 = vsel %vm3886, %v72, %v472
    %v3910 = vsel %vm3886, %v73, %v474
    %v3911 = vsel %vm3886, %v75, %v476
    %v3912 = vsel %vm3886, %v76, %v478
    %v3913 = vsel %vm3886, %v78, %v480
    %v3914 = vsel %vm3886, %v79, %v482
    %v3915 = vsel %vm3886, %v81, %v484
    %v3916 = vsel %vm3886, %v82, %v486
    %v3917 = vsel %vm3886, %v84, %v488
    %v3918 = vsel %vm3886, %v85, %v490
    %v3919 = vsel %vm3886, %v99, %v492
    %v3920 = vsel %vm3886, %v100, %v494
    %v3921 = vsel %vm3886, %v102, %v496
    %v3922 = vsel %vm3886, %v103, %v498
    %v3923 = vsel %vm3886, %v105, %v500
    %v3924 = vsel %vm3886, %v106, %v502
    %v3925 = vsel %vm3886, %v108, %v504
    %v3926 = vsel %vm3886, %v109, %v506
    %v3927 = vsel %vm3886, %v111, %v508
    %v3928 = vsel %vm3886, %v112, %v510
    %v3929 = vsel %vm3886, %v114, %v512
    %v3930 = vsel %vm3886, %v115, %v514
    %v3931 = vsel %vm3886, %v117, %v516
    %v3932 = vsel %vm3886, %v118, %v518
    %v3933 = vsel %vm3886, %v120, %v520
    %v3934 = vsel %vm3886, %v121, %v522
    %v3935 = vsel %vm3886, %v123, %v524
    %v3936 = vsel %vm3886, %v124, %v526
    %v3937 = vsel %vm3886, %v126, %v528
    %v3938 = vsel %vm3886, %v127, %v530
    %v3939 = vsel %vm3886, %v129, %v532
    %v3940 = vsel %vm3886, %v130, %v534
    %v3941 = vsel %vm3886, %v132, %v536
    %v3942 = vsel %vm3886, %v133, %v538
    %v3943 = vsel %vm3886, %v135, %v540
    %v3944 = vsel %vm3886, %v136, %v542
    %v3945 = vsel %vm3886, %v138, %v544
    %v3946 = vsel %vm3886, %v139, %v546
    %v3947 = vsel %vm3886, %v141, %v548
    %v3948 = vsel %vm3886, %v142, %v550
    %v3949 = vsel %vm3886, %v144, %v552
    %v3950 = vsel %vm3886, %v145, %v554
    %vm3951 = vcmask 48128
    %v3952 = vsel %vm3951, %v3887, %v781
    %v3953 = vsel %vm3951, %v3888, %v783
    %v3954 = vsel %vm3951, %v3889, %v785
    %v3955 = vsel %vm3951, %v3890, %v787
    %v3956 = vsel %vm3951, %v3891, %v789
    %v3957 = vsel %vm3951, %v3892, %v791
    %v3958 = vsel %vm3951, %v3893, %v793
    %v3959 = vsel %vm3951, %v3894, %v795
    %v3960 = vsel %vm3951, %v3895, %v797
    %v3961 = vsel %vm3951, %v3896, %v799
    %v3962 = vsel %vm3951, %v3897, %v801
    %v3963 = vsel %vm3951, %v3898, %v803
    %v3964 = vsel %vm3951, %v3899, %v805
    %v3965 = vsel %vm3951, %v3900, %v807
    %v3966 = vsel %vm3951, %v3901, %v809
    %v3967 = vsel %vm3951, %v3902, %v811
    %v3968 = vsel %vm3951, %v3903, %v813
    %v3969 = vsel %vm3951, %v3904, %v815
    %v3970 = vsel %vm3951, %v3905, %v817
    %v3971 = vsel %vm3951, %v3906, %v819
    %v3972 = vsel %vm3951, %v3907, %v821
    %v3973 = vsel %vm3951, %v3908, %v823
    %v3974 = vsel %vm3951, %v3909, %v825
    %v3975 = vsel %vm3951, %v3910, %v827
    %v3976 = vsel %vm3951, %v3911, %v829
    %v3977 = vsel %vm3951, %v3912, %v831
    %v3978 = vsel %vm3951, %v3913, %v833
    %v3979 = vsel %vm3951, %v3914, %v835
    %v3980 = vsel %vm3951, %v3915, %v837
    %v3981 = vsel %vm3951, %v3916, %v839
    %v3982 = vsel %vm3951, %v3917, %v841
    %v3983 = vsel %vm3951, %v3918, %v843
    %v3984 = vsel %vm3951, %v3919, %v845
    %v3985 = vsel %vm3951, %v3920, %v847
    %v3986 = vsel %vm3951, %v3921, %v849
    %v3987 = vsel %vm3951, %v3922, %v851
    %v3988 = vsel %vm3951, %v3923, %v853
    %v3989 = vsel %vm3951, %v3924, %v855
    %v3990 = vsel %vm3951, %v3925, %v857
    %v3991 = vsel %vm3951, %v3926, %v859
    %v3992 = vsel %vm3951, %v3927, %v861
    %v3993 = vsel %vm3951, %v3928, %v863
    %v3994 = vsel %vm3951, %v3929, %v865
    %v3995 = vsel %vm3951, %v3930, %v867
    %v3996 = vsel %vm3951, %v3931, %v869
    %v3997 = vsel %vm3951, %v3932, %v871
    %v3998 = vsel %vm3951, %v3933, %v873
    %v3999 = vsel %vm3951, %v3934, %v875
    %v4000 = vsel %vm3951, %v3935, %v877
    %v4001 = vsel %vm3951, %v3936, %v879
    %v4002 = vsel %vm3951, %v3937, %v881
    %v4003 = vsel %vm3951, %v3938, %v883
    %v4004 = vsel %vm3951, %v3939, %v885
    %v4005 = vsel %vm3951, %v3940, %v887
    %v4006 = vsel %vm3951, %v3941, %v889
    %v4007 = vsel %vm3951, %v3942, %v891
    %v4008 = vsel %vm3951, %v3943, %v893
    %v4009 = vsel %vm3951, %v3944, %v895
    %v4010 = vsel %vm3951, %v3945, %v897
    %v4011 = vsel %vm3951, %v3946, %v899
    %v4012 = vsel %vm3951, %v3947, %v901
    %v4013 = vsel %vm3951, %v3948, %v903
    %v4014 = vsel %vm3951, %v3949, %v905
    %v4015 = vsel %vm3951, %v3950, %v907
    %vm4016 = vcmask 72704
    %v4017 = vsel %vm4016, %v3952, %v1134
    %v4018 = vsel %vm4016, %v3953, %v1136
    %v4019 = vsel %vm4016, %v3954, %v1138
    %v4020 = vsel %vm4016, %v3955, %v1140
    %v4021 = vsel %vm4016, %v3956, %v1142
    %v4022 = vsel %vm4016, %v3957, %v1144
    %v4023 = vsel %vm4016, %v3958, %v1146
    %v4024 = vsel %vm4016, %v3959, %v1148
    %v4025 = vsel %vm4016, %v3960, %v1150
    %v4026 = vsel %vm4016, %v3961, %v1152
    %v4027 = vsel %vm4016, %v3962, %v1154
    %v4028 = vsel %vm4016, %v3963, %v1156
    %v4029 = vsel %vm4016, %v3964, %v1158
    %v4030 = vsel %vm4016, %v3965, %v1160
    %v4031 = vsel %vm4016, %v3966, %v1162
    %v4032 = vsel %vm4016, %v3967, %v1164
    %v4033 = vsel %vm4016, %v3968, %v1166
    %v4034 = vsel %vm4016, %v3969, %v1168
    %v4035 = vsel %vm4016, %v3970, %v1170
    %v4036 = vsel %vm4016, %v3971, %v1172
    %v4037 = vsel %vm4016, %v3972, %v1174
    %v4038 = vsel %vm4016, %v3973, %v1176
    %v4039 = vsel %vm4016, %v3974, %v1178
    %v4040 = vsel %vm4016, %v3975, %v1180
    %v4041 = vsel %vm4016, %v3976, %v1182
    %v4042 = vsel %vm4016, %v3977, %v1184
    %v4043 = vsel %vm4016, %v3978, %v1186
    %v4044 = vsel %vm4016, %v3979, %v1188
    %v4045 = vsel %vm4016, %v3980, %v1190
    %v4046 = vsel %vm4016, %v3981, %v1192
    %v4047 = vsel %vm4016, %v3982, %v1194
    %v4048 = vsel %vm4016, %v3983, %v1196
    %v4049 = vsel %vm4016, %v3984, %v1198
    %v4050 = vsel %vm4016, %v3985, %v1200
    %v4051 = vsel %vm4016, %v3986, %v1202
    %v4052 = vsel %vm4016, %v3987, %v1204
    %v4053 = vsel %vm4016, %v3988, %v1206
    %v4054 = vsel %vm4016, %v3989, %v1208
    %v4055 = vsel %vm4016, %v3990, %v1210
    %v4056 = vsel %vm4016, %v3991, %v1212
    %v4057 = vsel %vm4016, %v3992, %v1214
    %v4058 = vsel %vm4016, %v3993, %v1216
    %v4059 = vsel %vm4016, %v3994, %v1218
    %v4060 = vsel %vm4016, %v3995, %v1220
    %v4061 = vsel %vm4016, %v3996, %v1222
    %v4062 = vsel %vm4016, %v3997, %v1224
    %v4063 = vsel %vm4016, %v3998, %v1226
    %v4064 = vsel %vm4016, %v3999, %v1228
    %v4065 = vsel %vm4016, %v4000, %v1230
    %v4066 = vsel %vm4016, %v4001, %v1232
    %v4067 = vsel %vm4016, %v4002, %v1234
    %v4068 = vsel %vm4016, %v4003, %v1236
    %v4069 = vsel %vm4016, %v4004, %v1238
    %v4070 = vsel %vm4016, %v4005, %v1240
    %v4071 = vsel %vm4016, %v4006, %v1242
    %v4072 = vsel %vm4016, %v4007, %v1244
    %v4073 = vsel %vm4016, %v4008, %v1246
    %v4074 = vsel %vm4016, %v4009, %v1248
    %v4075 = vsel %vm4016, %v4010, %v1250
    %v4076 = vsel %vm4016, %v4011, %v1252
    %v4077 = vsel %vm4016, %v4012, %v1254
    %v4078 = vsel %vm4016, %v4013, %v1256
    %v4079 = vsel %vm4016, %v4014, %v1258
    %v4080 = vsel %vm4016, %v4015, %v1260
    %vm4081 = vcmask 97280
    %v4082 = vsel %vm4081, %v4017, %v1487
    %v4083 = vsel %vm4081, %v4018, %v1489
    %v4084 = vsel %vm4081, %v4019, %v1491
    %v4085 = vsel %vm4081, %v4020, %v1493
    %v4086 = vsel %vm4081, %v4021, %v1495
    %v4087 = vsel %vm4081, %v4022, %v1497
    %v4088 = vsel %vm4081, %v4023, %v1499
    %v4089 = vsel %vm4081, %v4024, %v1501
    %v4090 = vsel %vm4081, %v4025, %v1503
    %v4091 = vsel %vm4081, %v4026, %v1505
    %v4092 = vsel %vm4081, %v4027, %v1507
    %v4093 = vsel %vm4081, %v4028, %v1509
    %v4094 = vsel %vm4081, %v4029, %v1511
    %v4095 = vsel %vm4081, %v4030, %v1513
    %v4096 = vsel %vm4081, %v4031, %v1515
    %v4097 = vsel %vm4081, %v4032, %v1517
    %v4098 = vsel %vm4081, %v4033, %v1519
    %v4099 = vsel %vm4081, %v4034, %v1521
    %v4100 = vsel %vm4081, %v4035, %v1523
    %v4101 = vsel %vm4081, %v4036, %v1525
    %v4102 = vsel %vm4081, %v4037, %v1527
    %v4103 = vsel %vm4081, %v4038, %v1529
    %v4104 = vsel %vm4081, %v4039, %v1531
    %v4105 = vsel %vm4081, %v4040, %v1533
    %v4106 = vsel %vm4081, %v4041, %v1535
    %v4107 = vsel %vm4081, %v4042, %v1537
    %v4108 = vsel %vm4081, %v4043, %v1539
    %v4109 = vsel %vm4081, %v4044, %v1541
    %v4110 = vsel %vm4081, %v4045, %v1543
    %v4111 = vsel %vm4081, %v4046, %v1545
    %v4112 = vsel %vm4081, %v4047, %v1547
    %v4113 = vsel %vm4081, %v4048, %v1549
    %v4114 = vsel %vm4081, %v4049, %v1551
    %v4115 = vsel %vm4081, %v4050, %v1553
    %v4116 = vsel %vm4081, %v4051, %v1555
    %v4117 = vsel %vm4081, %v4052, %v1557
    %v4118 = vsel %vm4081, %v4053, %v1559
    %v4119 = vsel %vm4081, %v4054, %v1561
    %v4120 = vsel %vm4081, %v4055, %v1563
    %v4121 = vsel %vm4081, %v4056, %v1565
    %v4122 = vsel %vm4081, %v4057, %v1567
    %v4123 = vsel %vm4081, %v4058, %v1569
    %v4124 = vsel %vm4081, %v4059, %v1571
    %v4125 = vsel %vm4081, %v4060, %v1573
    %v4126 = vsel %vm4081, %v4061, %v1575
    %v4127 = vsel %vm4081, %v4062, %v1577
    %v4128 = vsel %vm4081, %v4063, %v1579
    %v4129 = vsel %vm4081, %v4064, %v1581
    %v4130 = vsel %vm4081, %v4065, %v1583
    %v4131 = vsel %vm4081, %v4066, %v1585
    %v4132 = vsel %vm4081, %v4067, %v1587
    %v4133 = vsel %vm4081, %v4068, %v1589
    %v4134 = vsel %vm4081, %v4069, %v1591
    %v4135 = vsel %vm4081, %v4070, %v1593
    %v4136 = vsel %vm4081, %v4071, %v1595
    %v4137 = vsel %vm4081, %v4072, %v1597
    %v4138 = vsel %vm4081, %v4073, %v1599
    %v4139 = vsel %vm4081, %v4074, %v1601
    %v4140 = vsel %vm4081, %v4075, %v1603
    %v4141 = vsel %vm4081, %v4076, %v1605
    %v4142 = vsel %vm4081, %v4077, %v1607
    %v4143 = vsel %vm4081, %v4078, %v1609
    %v4144 = vsel %vm4081, %v4079, %v1611
    %v4145 = vsel %vm4081, %v4080, %v1613
    %vm4146 = vcmask 121856
    %v4147 = vsel %vm4146, %v4082, %v1683
    %v4148 = vsel %vm4146, %v4083, %v1685
    %v4149 = vsel %vm4146, %v4084, %v1687
    %v4150 = vsel %vm4146, %v4085, %v1689
    %v4151 = vsel %vm4146, %v4086, %v1691
    %v4152 = vsel %vm4146, %v4087, %v1693
    %v4153 = vsel %vm4146, %v4088, %v1695
    %v4154 = vsel %vm4146, %v4089, %v1697
    %v4155 = vsel %vm4146, %v4090, %v1699
    %v4156 = vsel %vm4146, %v4091, %v1701
    %v4157 = vsel %vm4146, %v4092, %v1703
    %v4158 = vsel %vm4146, %v4093, %v1705
    %v4159 = vsel %vm4146, %v4094, %v1707
    %v4160 = vsel %vm4146, %v4095, %v1709
    %v4161 = vsel %vm4146, %v4096, %v1711
    %v4162 = vsel %vm4146, %v4097, %v1713
    %v4163 = vsel %vm4146, %v4098, %v1715
    %v4164 = vsel %vm4146, %v4099, %v1717
    %v4165 = vsel %vm4146, %v4100, %v1719
    %v4166 = vsel %vm4146, %v4101, %v1721
    %v4167 = vsel %vm4146, %v4102, %v1723
    %v4168 = vsel %vm4146, %v4103, %v1725
    %v4169 = vsel %vm4146, %v4104, %v1727
    %v4170 = vsel %vm4146, %v4105, %v1729
    %v4171 = vsel %vm4146, %v4106, %v1731
    %v4172 = vsel %vm4146, %v4107, %v1733
    %v4173 = vsel %vm4146, %v4108, %v1735
    %v4174 = vsel %vm4146, %v4109, %v1737
    %v4175 = vsel %vm4146, %v4110, %v1739
    %v4176 = vsel %vm4146, %v4111, %v1741
    %v4177 = vsel %vm4146, %v4112, %v1743
    %v4178 = vsel %vm4146, %v4113, %v1745
    %v4179 = vsel %vm4146, %v4114, %v1747
    %v4180 = vsel %vm4146, %v4115, %v1749
    %v4181 = vsel %vm4146, %v4116, %v1751
    %v4182 = vsel %vm4146, %v4117, %v1753
    %v4183 = vsel %vm4146, %v4118, %v1755
    %v4184 = vsel %vm4146, %v4119, %v1757
    %v4185 = vsel %vm4146, %v4120, %v1759
    %v4186 = vsel %vm4146, %v4121, %v1761
    %v4187 = vsel %vm4146, %v4122, %v1763
    %v4188 = vsel %vm4146, %v4123, %v1765
    %v4189 = vsel %vm4146, %v4124, %v1767
    %v4190 = vsel %vm4146, %v4125, %v1769
    %v4191 = vsel %vm4146, %v4126, %v1771
    %v4192 = vsel %vm4146, %v4127, %v1773
    %v4193 = vsel %vm4146, %v4128, %v1775
    %v4194 = vsel %vm4146, %v4129, %v1777
    %v4195 = vsel %vm4146, %v4130, %v1779
    %v4196 = vsel %vm4146, %v4131, %v1781
    %v4197 = vsel %vm4146, %v4132, %v1783
    %v4198 = vsel %vm4146, %v4133, %v1785
    %v4199 = vsel %vm4146, %v4134, %v1787
    %v4200 = vsel %vm4146, %v4135, %v1789
    %v4201 = vsel %vm4146, %v4136, %v1791
    %v4202 = vsel %vm4146, %v4137, %v1793
    %v4203 = vsel %vm4146, %v4138, %v1795
    %v4204 = vsel %vm4146, %v4139, %v1797
    %v4205 = vsel %vm4146, %v4140, %v1799
    %v4206 = vsel %vm4146, %v4141, %v1801
    %v4207 = vsel %vm4146, %v4142, %v1803
    %v4208 = vsel %vm4146, %v4143, %v1805
    %v4209 = vsel %vm4146, %v4144, %v1807
    %v4210 = vsel %vm4146, %v4145, %v1809
    %vm4211 = vcmask 146432
    %v4212 = vsel %vm4211, %v4147, %v1887
    %v4213 = vsel %vm4211, %v4148, %v1889
    %v4214 = vsel %vm4211, %v4149, %v1891
    %v4215 = vsel %vm4211, %v4150, %v1893
    %v4216 = vsel %vm4211, %v4151, %v1895
    %v4217 = vsel %vm4211, %v4152, %v1897
    %v4218 = vsel %vm4211, %v4153, %v1899
    %v4219 = vsel %vm4211, %v4154, %v1901
    %v4220 = vsel %vm4211, %v4155, %v1903
    %v4221 = vsel %vm4211, %v4156, %v1905
    %v4222 = vsel %vm4211, %v4157, %v1907
    %v4223 = vsel %vm4211, %v4158, %v1909
    %v4224 = vsel %vm4211, %v4159, %v1911
    %v4225 = vsel %vm4211, %v4160, %v1913
    %v4226 = vsel %vm4211, %v4161, %v1915
    %v4227 = vsel %vm4211, %v4162, %v1917
    %v4228 = vsel %vm4211, %v4163, %v1919
    %v4229 = vsel %vm4211, %v4164, %v1921
    %v4230 = vsel %vm4211, %v4165, %v1923
    %v4231 = vsel %vm4211, %v4166, %v1925
    %v4232 = vsel %vm4211, %v4167, %v1927
    %v4233 = vsel %vm4211, %v4168, %v1929
    %v4234 = vsel %vm4211, %v4169, %v1931
    %v4235 = vsel %vm4211, %v4170, %v1933
    %v4236 = vsel %vm4211, %v4171, %v1935
    %v4237 = vsel %vm4211, %v4172, %v1937
    %v4238 = vsel %vm4211, %v4173, %v1939
    %v4239 = vsel %vm4211, %v4174, %v1941
    %v4240 = vsel %vm4211, %v4175, %v1943
    %v4241 = vsel %vm4211, %v4176, %v1945
    %v4242 = vsel %vm4211, %v4177, %v1947
    %v4243 = vsel %vm4211, %v4178, %v1949
    %v4244 = vsel %vm4211, %v4179, %v1951
    %v4245 = vsel %vm4211, %v4180, %v1953
    %v4246 = vsel %vm4211, %v4181, %v1955
    %v4247 = vsel %vm4211, %v4182, %v1957
    %v4248 = vsel %vm4211, %v4183, %v1959
    %v4249 = vsel %vm4211, %v4184, %v1961
    %v4250 = vsel %vm4211, %v4185, %v1963
    %v4251 = vsel %vm4211, %v4186, %v1965
    %v4252 = vsel %vm4211, %v4187, %v1967
    %v4253 = vsel %vm4211, %v4188, %v1969
    %v4254 = vsel %vm4211, %v4189, %v1971
    %v4255 = vsel %vm4211, %v4190, %v1973
    %v4256 = vsel %vm4211, %v4191, %v1975
    %v4257 = vsel %vm4211, %v4192, %v1977
    %v4258 = vsel %vm4211, %v4193, %v1979
    %v4259 = vsel %vm4211, %v4194, %v1981
    %v4260 = vsel %vm4211, %v4195, %v1983
    %v4261 = vsel %vm4211, %v4196, %v1985
    %v4262 = vsel %vm4211, %v4197, %v1987
    %v4263 = vsel %vm4211, %v4198, %v1989
    %v4264 = vsel %vm4211, %v4199, %v1991
    %v4265 = vsel %vm4211, %v4200, %v1993
    %v4266 = vsel %vm4211, %v4201, %v1995
    %v4267 = vsel %vm4211, %v4202, %v1997
    %v4268 = vsel %vm4211, %v4203, %v1999
    %v4269 = vsel %vm4211, %v4204, %v2001
    %v4270 = vsel %vm4211, %v4205, %v2003
    %v4271 = vsel %vm4211, %v4206, %v2005
    %v4272 = vsel %vm4211, %v4207, %v2007
    %v4273 = vsel %vm4211, %v4208, %v2009
    %v4274 = vsel %vm4211, %v4209, %v2011
    %v4275 = vsel %vm4211, %v4210, %v2013
    %vm4276 = vcmask 171008
    %v4277 = vsel %vm4276, %v4212, %v2089
    %v4278 = vsel %vm4276, %v4213, %v2091
    %v4279 = vsel %vm4276, %v4214, %v2093
    %v4280 = vsel %vm4276, %v4215, %v2095
    %v4281 = vsel %vm4276, %v4216, %v2097
    %v4282 = vsel %vm4276, %v4217, %v2099
    %v4283 = vsel %vm4276, %v4218, %v2101
    %v4284 = vsel %vm4276, %v4219, %v2103
    %v4285 = vsel %vm4276, %v4220, %v2105
    %v4286 = vsel %vm4276, %v4221, %v2107
    %v4287 = vsel %vm4276, %v4222, %v2109
    %v4288 = vsel %vm4276, %v4223, %v2111
    %v4289 = vsel %vm4276, %v4224, %v2113
    %v4290 = vsel %vm4276, %v4225, %v2115
    %v4291 = vsel %vm4276, %v4226, %v2117
    %v4292 = vsel %vm4276, %v4227, %v2119
    %v4293 = vsel %vm4276, %v4228, %v2121
    %v4294 = vsel %vm4276, %v4229, %v2123
    %v4295 = vsel %vm4276, %v4230, %v2125
    %v4296 = vsel %vm4276, %v4231, %v2127
    %v4297 = vsel %vm4276, %v4232, %v2129
    %v4298 = vsel %vm4276, %v4233, %v2131
    %v4299 = vsel %vm4276, %v4234, %v2133
    %v4300 = vsel %vm4276, %v4235, %v2135
    %v4301 = vsel %vm4276, %v4236, %v2137
    %v4302 = vsel %vm4276, %v4237, %v2139
    %v4303 = vsel %vm4276, %v4238, %v2141
    %v4304 = vsel %vm4276, %v4239, %v2143
    %v4305 = vsel %vm4276, %v4240, %v2145
    %v4306 = vsel %vm4276, %v4241, %v2147
    %v4307 = vsel %vm4276, %v4242, %v2149
    %v4308 = vsel %vm4276, %v4243, %v2151
    %v4309 = vsel %vm4276, %v4244, %v2153
    %v4310 = vsel %vm4276, %v4245, %v2155
    %v4311 = vsel %vm4276, %v4246, %v2157
    %v4312 = vsel %vm4276, %v4247, %v2159
    %v4313 = vsel %vm4276, %v4248, %v2161
    %v4314 = vsel %vm4276, %v4249, %v2163
    %v4315 = vsel %vm4276, %v4250, %v2165
    %v4316 = vsel %vm4276, %v4251, %v2167
    %v4317 = vsel %vm4276, %v4252, %v2169
    %v4318 = vsel %vm4276, %v4253, %v2171
    %v4319 = vsel %vm4276, %v4254, %v2173
    %v4320 = vsel %vm4276, %v4255, %v2175
    %v4321 = vsel %vm4276, %v4256, %v2177
    %v4322 = vsel %vm4276, %v4257, %v2179
    %v4323 = vsel %vm4276, %v4258, %v2181
    %v4324 = vsel %vm4276, %v4259, %v2183
    %v4325 = vsel %vm4276, %v4260, %v2185
    %v4326 = vsel %vm4276, %v4261, %v2187
    %v4327 = vsel %vm4276, %v4262, %v2189
    %v4328 = vsel %vm4276, %v4263, %v2191
    %v4329 = vsel %vm4276, %v4264, %v2193
    %v4330 = vsel %vm4276, %v4265, %v2195
    %v4331 = vsel %vm4276, %v4266, %v2197
    %v4332 = vsel %vm4276, %v4267, %v2199
    %v4333 = vsel %vm4276, %v4268, %v2201
    %v4334 = vsel %vm4276, %v4269, %v2203
    %v4335 = vsel %vm4276, %v4270, %v2205
    %v4336 = vsel %vm4276, %v4271, %v2207
    %v4337 = vsel %vm4276, %v4272, %v2209
    %v4338 = vsel %vm4276, %v4273, %v2211
    %v4339 = vsel %vm4276, %v4274, %v2213
    %v4340 = vsel %vm4276, %v4275, %v2215
    %vm4341 = vcmask 195584
    %v4342 = vsel %vm4341, %v4277, %v2291
    %v4343 = vsel %vm4341, %v4278, %v2293
    %v4344 = vsel %vm4341, %v4279, %v2295
    %v4345 = vsel %vm4341, %v4280, %v2297
    %v4346 = vsel %vm4341, %v4281, %v2299
    %v4347 = vsel %vm4341, %v4282, %v2301
    %v4348 = vsel %vm4341, %v4283, %v2303
    %v4349 = vsel %vm4341, %v4284, %v2305
    %v4350 = vsel %vm4341, %v4285, %v2307
    %v4351 = vsel %vm4341, %v4286, %v2309
    %v4352 = vsel %vm4341, %v4287, %v2311
    %v4353 = vsel %vm4341, %v4288, %v2313
    %v4354 = vsel %vm4341, %v4289, %v2315
    %v4355 = vsel %vm4341, %v4290, %v2317
    %v4356 = vsel %vm4341, %v4291, %v2319
    %v4357 = vsel %vm4341, %v4292, %v2321
    %v4358 = vsel %vm4341, %v4293, %v2323
    %v4359 = vsel %vm4341, %v4294, %v2325
    %v4360 = vsel %vm4341, %v4295, %v2327
    %v4361 = vsel %vm4341, %v4296, %v2329
    %v4362 = vsel %vm4341, %v4297, %v2331
    %v4363 = vsel %vm4341, %v4298, %v2333
    %v4364 = vsel %vm4341, %v4299, %v2335
    %v4365 = vsel %vm4341, %v4300, %v2337
    %v4366 = vsel %vm4341, %v4301, %v2339
    %v4367 = vsel %vm4341, %v4302, %v2341
    %v4368 = vsel %vm4341, %v4303, %v2343
    %v4369 = vsel %vm4341, %v4304, %v2345
    %v4370 = vsel %vm4341, %v4305, %v2347
    %v4371 = vsel %vm4341, %v4306, %v2349
    %v4372 = vsel %vm4341, %v4307, %v2351
    %v4373 = vsel %vm4341, %v4308, %v2353
    %v4374 = vsel %vm4341, %v4309, %v2355
    %v4375 = vsel %vm4341, %v4310, %v2357
    %v4376 = vsel %vm4341, %v4311, %v2359
    %v4377 = vsel %vm4341, %v4312, %v2361
    %v4378 = vsel %vm4341, %v4313, %v2363
    %v4379 = vsel %vm4341, %v4314, %v2365
    %v4380 = vsel %vm4341, %v4315, %v2367
    %v4381 = vsel %vm4341, %v4316, %v2369
    %v4382 = vsel %vm4341, %v4317, %v2371
    %v4383 = vsel %vm4341, %v4318, %v2373
    %v4384 = vsel %vm4341, %v4319, %v2375
    %v4385 = vsel %vm4341, %v4320, %v2377
    %v4386 = vsel %vm4341, %v4321, %v2379
    %v4387 = vsel %vm4341, %v4322, %v2381
    %v4388 = vsel %vm4341, %v4323, %v2383
    %v4389 = vsel %vm4341, %v4324, %v2385
    %v4390 = vsel %vm4341, %v4325, %v2387
    %v4391 = vsel %vm4341, %v4326, %v2389
    %v4392 = vsel %vm4341, %v4327, %v2391
    %v4393 = vsel %vm4341, %v4328, %v2393
    %v4394 = vsel %vm4341, %v4329, %v2395
    %v4395 = vsel %vm4341, %v4330, %v2397
    %v4396 = vsel %vm4341, %v4331, %v2399
    %v4397 = vsel %vm4341, %v4332, %v2401
    %v4398 = vsel %vm4341, %v4333, %v2403
    %v4399 = vsel %vm4341, %v4334, %v2405
    %v4400 = vsel %vm4341, %v4335, %v2407
    %v4401 = vsel %vm4341, %v4336, %v2409
    %v4402 = vsel %vm4341, %v4337, %v2411
    %v4403 = vsel %vm4341, %v4338, %v2413
    %v4404 = vsel %vm4341, %v4339, %v2415
    %v4405 = vsel %vm4341, %v4340, %v2417
    %vm4406 = vcmask 220160
    %v4407 = vsel %vm4406, %v4342, %v2493
    %v4408 = vsel %vm4406, %v4343, %v2495
    %v4409 = vsel %vm4406, %v4344, %v2497
    %v4410 = vsel %vm4406, %v4345, %v2499
    %v4411 = vsel %vm4406, %v4346, %v2501
    %v4412 = vsel %vm4406, %v4347, %v2503
    %v4413 = vsel %vm4406, %v4348, %v2505
    %v4414 = vsel %vm4406, %v4349, %v2507
    %v4415 = vsel %vm4406, %v4350, %v2509
    %v4416 = vsel %vm4406, %v4351, %v2511
    %v4417 = vsel %vm4406, %v4352, %v2513
    %v4418 = vsel %vm4406, %v4353, %v2515
    %v4419 = vsel %vm4406, %v4354, %v2517
    %v4420 = vsel %vm4406, %v4355, %v2519
    %v4421 = vsel %vm4406, %v4356, %v2521
    %v4422 = vsel %vm4406, %v4357, %v2523
    %v4423 = vsel %vm4406, %v4358, %v2525
    %v4424 = vsel %vm4406, %v4359, %v2527
    %v4425 = vsel %vm4406, %v4360, %v2529
    %v4426 = vsel %vm4406, %v4361, %v2531
    %v4427 = vsel %vm4406, %v4362, %v2533
    %v4428 = vsel %vm4406, %v4363, %v2535
    %v4429 = vsel %vm4406, %v4364, %v2537
    %v4430 = vsel %vm4406, %v4365, %v2539
    %v4431 = vsel %vm4406, %v4366, %v2541
    %v4432 = vsel %vm4406, %v4367, %v2543
    %v4433 = vsel %vm4406, %v4368, %v2545
    %v4434 = vsel %vm4406, %v4369, %v2547
    %v4435 = vsel %vm4406, %v4370, %v2549
    %v4436 = vsel %vm4406, %v4371, %v2551
    %v4437 = vsel %vm4406, %v4372, %v2553
    %v4438 = vsel %vm4406, %v4373, %v2555
    %v4439 = vsel %vm4406, %v4374, %v2557
    %v4440 = vsel %vm4406, %v4375, %v2559
    %v4441 = vsel %vm4406, %v4376, %v2561
    %v4442 = vsel %vm4406, %v4377, %v2563
    %v4443 = vsel %vm4406, %v4378, %v2565
    %v4444 = vsel %vm4406, %v4379, %v2567
    %v4445 = vsel %vm4406, %v4380, %v2569
    %v4446 = vsel %vm4406, %v4381, %v2571
    %v4447 = vsel %vm4406, %v4382, %v2573
    %v4448 = vsel %vm4406, %v4383, %v2575
    %v4449 = vsel %vm4406, %v4384, %v2577
    %v4450 = vsel %vm4406, %v4385, %v2579
    %v4451 = vsel %vm4406, %v4386, %v2581
    %v4452 = vsel %vm4406, %v4387, %v2583
    %v4453 = vsel %vm4406, %v4388, %v2585
    %v4454 = vsel %vm4406, %v4389, %v2587
    %v4455 = vsel %vm4406, %v4390, %v2589
    %v4456 = vsel %vm4406, %v4391, %v2591
    %v4457 = vsel %vm4406, %v4392, %v2593
    %v4458 = vsel %vm4406, %v4393, %v2595
    %v4459 = vsel %vm4406, %v4394, %v2597
    %v4460 = vsel %vm4406, %v4395, %v2599
    %v4461 = vsel %vm4406, %v4396, %v2601
    %v4462 = vsel %vm4406, %v4397, %v2603
    %v4463 = vsel %vm4406, %v4398, %v2605
    %v4464 = vsel %vm4406, %v4399, %v2607
    %v4465 = vsel %vm4406, %v4400, %v2609
    %v4466 = vsel %vm4406, %v4401, %v2611
    %v4467 = vsel %vm4406, %v4402, %v2613
    %v4468 = vsel %vm4406, %v4403, %v2615
    %v4469 = vsel %vm4406, %v4404, %v2617
    %v4470 = vsel %vm4406, %v4405, %v2619
    %vm4471 = vcmask 244736
    %v4472 = vsel %vm4471, %v4407, %v2689
    %v4473 = vsel %vm4471, %v4408, %v2691
    %v4474 = vsel %vm4471, %v4409, %v2693
    %v4475 = vsel %vm4471, %v4410, %v2695
    %v4476 = vsel %vm4471, %v4411, %v2697
    %v4477 = vsel %vm4471, %v4412, %v2699
    %v4478 = vsel %vm4471, %v4413, %v2701
    %v4479 = vsel %vm4471, %v4414, %v2703
    %v4480 = vsel %vm4471, %v4415, %v2705
    %v4481 = vsel %vm4471, %v4416, %v2707
    %v4482 = vsel %vm4471, %v4417, %v2709
    %v4483 = vsel %vm4471, %v4418, %v2711
    %v4484 = vsel %vm4471, %v4419, %v2713
    %v4485 = vsel %vm4471, %v4420, %v2715
    %v4486 = vsel %vm4471, %v4421, %v2717
    %v4487 = vsel %vm4471, %v4422, %v2719
    %v4488 = vsel %vm4471, %v4423, %v2721
    %v4489 = vsel %vm4471, %v4424, %v2723
    %v4490 = vsel %vm4471, %v4425, %v2725
    %v4491 = vsel %vm4471, %v4426, %v2727
    %v4492 = vsel %vm4471, %v4427, %v2729
    %v4493 = vsel %vm4471, %v4428, %v2731
    %v4494 = vsel %vm4471, %v4429, %v2733
    %v4495 = vsel %vm4471, %v4430, %v2735
    %v4496 = vsel %vm4471, %v4431, %v2737
    %v4497 = vsel %vm4471, %v4432, %v2739
    %v4498 = vsel %vm4471, %v4433, %v2741
    %v4499 = vsel %vm4471, %v4434, %v2743
    %v4500 = vsel %vm4471, %v4435, %v2745
    %v4501 = vsel %vm4471, %v4436, %v2747
    %v4502 = vsel %vm4471, %v4437, %v2749
    %v4503 = vsel %vm4471, %v4438, %v2751
    %v4504 = vsel %vm4471, %v4439, %v2753
    %v4505 = vsel %vm4471, %v4440, %v2755
    %v4506 = vsel %vm4471, %v4441, %v2757
    %v4507 = vsel %vm4471, %v4442, %v2759
    %v4508 = vsel %vm4471, %v4443, %v2761
    %v4509 = vsel %vm4471, %v4444, %v2763
    %v4510 = vsel %vm4471, %v4445, %v2765
    %v4511 = vsel %vm4471, %v4446, %v2767
    %v4512 = vsel %vm4471, %v4447, %v2769
    %v4513 = vsel %vm4471, %v4448, %v2771
    %v4514 = vsel %vm4471, %v4449, %v2773
    %v4515 = vsel %vm4471, %v4450, %v2775
    %v4516 = vsel %vm4471, %v4451, %v2777
    %v4517 = vsel %vm4471, %v4452, %v2779
    %v4518 = vsel %vm4471, %v4453, %v2781
    %v4519 = vsel %vm4471, %v4454, %v2783
    %v4520 = vsel %vm4471, %v4455, %v2785
    %v4521 = vsel %vm4471, %v4456, %v2787
    %v4522 = vsel %vm4471, %v4457, %v2789
    %v4523 = vsel %vm4471, %v4458, %v2791
    %v4524 = vsel %vm4471, %v4459, %v2793
    %v4525 = vsel %vm4471, %v4460, %v2795
    %v4526 = vsel %vm4471, %v4461, %v2797
    %v4527 = vsel %vm4471, %v4462, %v2799
    %v4528 = vsel %vm4471, %v4463, %v2801
    %v4529 = vsel %vm4471, %v4464, %v2803
    %v4530 = vsel %vm4471, %v4465, %v2805
    %v4531 = vsel %vm4471, %v4466, %v2807
    %v4532 = vsel %vm4471, %v4467, %v2809
    %v4533 = vsel %vm4471, %v4468, %v2811
    %v4534 = vsel %vm4471, %v4469, %v2813
    %v4535 = vsel %vm4471, %v4470, %v2815
    %vm4536 = vcmask 269312
    %v4537 = vsel %vm4536, %v4472, %v2893
    %v4538 = vsel %vm4536, %v4473, %v2895
    %v4539 = vsel %vm4536, %v4474, %v2897
    %v4540 = vsel %vm4536, %v4475, %v2899
    %v4541 = vsel %vm4536, %v4476, %v2901
    %v4542 = vsel %vm4536, %v4477, %v2903
    %v4543 = vsel %vm4536, %v4478, %v2905
    %v4544 = vsel %vm4536, %v4479, %v2907
    %v4545 = vsel %vm4536, %v4480, %v2909
    %v4546 = vsel %vm4536, %v4481, %v2911
    %v4547 = vsel %vm4536, %v4482, %v2913
    %v4548 = vsel %vm4536, %v4483, %v2915
    %v4549 = vsel %vm4536, %v4484, %v2917
    %v4550 = vsel %vm4536, %v4485, %v2919
    %v4551 = vsel %vm4536, %v4486, %v2921
    %v4552 = vsel %vm4536, %v4487, %v2923
    %v4553 = vsel %vm4536, %v4488, %v2925
    %v4554 = vsel %vm4536, %v4489, %v2927
    %v4555 = vsel %vm4536, %v4490, %v2929
    %v4556 = vsel %vm4536, %v4491, %v2931
    %v4557 = vsel %vm4536, %v4492, %v2933
    %v4558 = vsel %vm4536, %v4493, %v2935
    %v4559 = vsel %vm4536, %v4494, %v2937
    %v4560 = vsel %vm4536, %v4495, %v2939
    %v4561 = vsel %vm4536, %v4496, %v2941
    %v4562 = vsel %vm4536, %v4497, %v2943
    %v4563 = vsel %vm4536, %v4498, %v2945
    %v4564 = vsel %vm4536, %v4499, %v2947
    %v4565 = vsel %vm4536, %v4500, %v2949
    %v4566 = vsel %vm4536, %v4501, %v2951
    %v4567 = vsel %vm4536, %v4502, %v2953
    %v4568 = vsel %vm4536, %v4503, %v2955
    %v4569 = vsel %vm4536, %v4504, %v2957
    %v4570 = vsel %vm4536, %v4505, %v2959
    %v4571 = vsel %vm4536, %v4506, %v2961
    %v4572 = vsel %vm4536, %v4507, %v2963
    %v4573 = vsel %vm4536, %v4508, %v2965
    %v4574 = vsel %vm4536, %v4509, %v2967
    %v4575 = vsel %vm4536, %v4510, %v2969
    %v4576 = vsel %vm4536, %v4511, %v2971
    %v4577 = vsel %vm4536, %v4512, %v2973
    %v4578 = vsel %vm4536, %v4513, %v2975
    %v4579 = vsel %vm4536, %v4514, %v2977
    %v4580 = vsel %vm4536, %v4515, %v2979
    %v4581 = vsel %vm4536, %v4516, %v2981
    %v4582 = vsel %vm4536, %v4517, %v2983
    %v4583 = vsel %vm4536, %v4518, %v2985
    %v4584 = vsel %vm4536, %v4519, %v2987
    %v4585 = vsel %vm4536, %v4520, %v2989
    %v4586 = vsel %vm4536, %v4521, %v2991
    %v4587 = vsel %vm4536, %v4522, %v2993
    %v4588 = vsel %vm4536, %v4523, %v2995
    %v4589 = vsel %vm4536, %v4524, %v2997
    %v4590 = vsel %vm4536, %v4525, %v2999
    %v4591 = vsel %vm4536, %v4526, %v3001
    %v4592 = vsel %vm4536, %v4527, %v3003
    %v4593 = vsel %vm4536, %v4528, %v3005
    %v4594 = vsel %vm4536, %v4529, %v3007
    %v4595 = vsel %vm4536, %v4530, %v3009
    %v4596 = vsel %vm4536, %v4531, %v3011
    %v4597 = vsel %vm4536, %v4532, %v3013
    %v4598 = vsel %vm4536, %v4533, %v3015
    %v4599 = vsel %vm4536, %v4534, %v3017
    %v4600 = vsel %vm4536, %v4535, %v3019
    %vm4601 = vcmask 293888
    %v4602 = vsel %vm4601, %v4537, %v3095
    %v4603 = vsel %vm4601, %v4538, %v3097
    %v4604 = vsel %vm4601, %v4539, %v3099
    %v4605 = vsel %vm4601, %v4540, %v3101
    %v4606 = vsel %vm4601, %v4541, %v3103
    %v4607 = vsel %vm4601, %v4542, %v3105
    %v4608 = vsel %vm4601, %v4543, %v3107
    %v4609 = vsel %vm4601, %v4544, %v3109
    %v4610 = vsel %vm4601, %v4545, %v3111
    %v4611 = vsel %vm4601, %v4546, %v3113
    %v4612 = vsel %vm4601, %v4547, %v3115
    %v4613 = vsel %vm4601, %v4548, %v3117
    %v4614 = vsel %vm4601, %v4549, %v3119
    %v4615 = vsel %vm4601, %v4550, %v3121
    %v4616 = vsel %vm4601, %v4551, %v3123
    %v4617 = vsel %vm4601, %v4552, %v3125
    %v4618 = vsel %vm4601, %v4553, %v3127
    %v4619 = vsel %vm4601, %v4554, %v3129
    %v4620 = vsel %vm4601, %v4555, %v3131
    %v4621 = vsel %vm4601, %v4556, %v3133
    %v4622 = vsel %vm4601, %v4557, %v3135
    %v4623 = vsel %vm4601, %v4558, %v3137
    %v4624 = vsel %vm4601, %v4559, %v3139
    %v4625 = vsel %vm4601, %v4560, %v3141
    %v4626 = vsel %vm4601, %v4561, %v3143
    %v4627 = vsel %vm4601, %v4562, %v3145
    %v4628 = vsel %vm4601, %v4563, %v3147
    %v4629 = vsel %vm4601, %v4564, %v3149
    %v4630 = vsel %vm4601, %v4565, %v3151
    %v4631 = vsel %vm4601, %v4566, %v3153
    %v4632 = vsel %vm4601, %v4567, %v3155
    %v4633 = vsel %vm4601, %v4568, %v3157
    %v4634 = vsel %vm4601, %v4569, %v3159
    %v4635 = vsel %vm4601, %v4570, %v3161
    %v4636 = vsel %vm4601, %v4571, %v3163
    %v4637 = vsel %vm4601, %v4572, %v3165
    %v4638 = vsel %vm4601, %v4573, %v3167
    %v4639 = vsel %vm4601, %v4574, %v3169
    %v4640 = vsel %vm4601, %v4575, %v3171
    %v4641 = vsel %vm4601, %v4576, %v3173
    %v4642 = vsel %vm4601, %v4577, %v3175
    %v4643 = vsel %vm4601, %v4578, %v3177
    %v4644 = vsel %vm4601, %v4579, %v3179
    %v4645 = vsel %vm4601, %v4580, %v3181
    %v4646 = vsel %vm4601, %v4581, %v3183
    %v4647 = vsel %vm4601, %v4582, %v3185
    %v4648 = vsel %vm4601, %v4583, %v3187
    %v4649 = vsel %vm4601, %v4584, %v3189
    %v4650 = vsel %vm4601, %v4585, %v3191
    %v4651 = vsel %vm4601, %v4586, %v3193
    %v4652 = vsel %vm4601, %v4587, %v3195
    %v4653 = vsel %vm4601, %v4588, %v3197
    %v4654 = vsel %vm4601, %v4589, %v3199
    %v4655 = vsel %vm4601, %v4590, %v3201
    %v4656 = vsel %vm4601, %v4591, %v3203
    %v4657 = vsel %vm4601, %v4592, %v3205
    %v4658 = vsel %vm4601, %v4593, %v3207
    %v4659 = vsel %vm4601, %v4594, %v3209
    %v4660 = vsel %vm4601, %v4595, %v3211
    %v4661 = vsel %vm4601, %v4596, %v3213
    %v4662 = vsel %vm4601, %v4597, %v3215
    %v4663 = vsel %vm4601, %v4598, %v3217
    %v4664 = vsel %vm4601, %v4599, %v3219
    %v4665 = vsel %vm4601, %v4600, %v3221
    %vm4666 = vcmask 318464
    %v4667 = vsel %vm4666, %v4602, %v3297
    %v4668 = vsel %vm4666, %v4603, %v3299
    %v4669 = vsel %vm4666, %v4604, %v3301
    %v4670 = vsel %vm4666, %v4605, %v3303
    %v4671 = vsel %vm4666, %v4606, %v3305
    %v4672 = vsel %vm4666, %v4607, %v3307
    %v4673 = vsel %vm4666, %v4608, %v3309
    %v4674 = vsel %vm4666, %v4609, %v3311
    %v4675 = vsel %vm4666, %v4610, %v3313
    %v4676 = vsel %vm4666, %v4611, %v3315
    %v4677 = vsel %vm4666, %v4612, %v3317
    %v4678 = vsel %vm4666, %v4613, %v3319
    %v4679 = vsel %vm4666, %v4614, %v3321
    %v4680 = vsel %vm4666, %v4615, %v3323
    %v4681 = vsel %vm4666, %v4616, %v3325
    %v4682 = vsel %vm4666, %v4617, %v3327
    %v4683 = vsel %vm4666, %v4618, %v3329
    %v4684 = vsel %vm4666, %v4619, %v3331
    %v4685 = vsel %vm4666, %v4620, %v3333
    %v4686 = vsel %vm4666, %v4621, %v3335
    %v4687 = vsel %vm4666, %v4622, %v3337
    %v4688 = vsel %vm4666, %v4623, %v3339
    %v4689 = vsel %vm4666, %v4624, %v3341
    %v4690 = vsel %vm4666, %v4625, %v3343
    %v4691 = vsel %vm4666, %v4626, %v3345
    %v4692 = vsel %vm4666, %v4627, %v3347
    %v4693 = vsel %vm4666, %v4628, %v3349
    %v4694 = vsel %vm4666, %v4629, %v3351
    %v4695 = vsel %vm4666, %v4630, %v3353
    %v4696 = vsel %vm4666, %v4631, %v3355
    %v4697 = vsel %vm4666, %v4632, %v3357
    %v4698 = vsel %vm4666, %v4633, %v3359
    %v4699 = vsel %vm4666, %v4634, %v3361
    %v4700 = vsel %vm4666, %v4635, %v3363
    %v4701 = vsel %vm4666, %v4636, %v3365
    %v4702 = vsel %vm4666, %v4637, %v3367
    %v4703 = vsel %vm4666, %v4638, %v3369
    %v4704 = vsel %vm4666, %v4639, %v3371
    %v4705 = vsel %vm4666, %v4640, %v3373
    %v4706 = vsel %vm4666, %v4641, %v3375
    %v4707 = vsel %vm4666, %v4642, %v3377
    %v4708 = vsel %vm4666, %v4643, %v3379
    %v4709 = vsel %vm4666, %v4644, %v3381
    %v4710 = vsel %vm4666, %v4645, %v3383
    %v4711 = vsel %vm4666, %v4646, %v3385
    %v4712 = vsel %vm4666, %v4647, %v3387
    %v4713 = vsel %vm4666, %v4648, %v3389
    %v4714 = vsel %vm4666, %v4649, %v3391
    %v4715 = vsel %vm4666, %v4650, %v3393
    %v4716 = vsel %vm4666, %v4651, %v3395
    %v4717 = vsel %vm4666, %v4652, %v3397
    %v4718 = vsel %vm4666, %v4653, %v3399
    %v4719 = vsel %vm4666, %v4654, %v3401
    %v4720 = vsel %vm4666, %v4655, %v3403
    %v4721 = vsel %vm4666, %v4656, %v3405
    %v4722 = vsel %vm4666, %v4657, %v3407
    %v4723 = vsel %vm4666, %v4658, %v3409
    %v4724 = vsel %vm4666, %v4659, %v3411
    %v4725 = vsel %vm4666, %v4660, %v3413
    %v4726 = vsel %vm4666, %v4661, %v3415
    %v4727 = vsel %vm4666, %v4662, %v3417
    %v4728 = vsel %vm4666, %v4663, %v3419
    %v4729 = vsel %vm4666, %v4664, %v3421
    %v4730 = vsel %vm4666, %v4665, %v3423
    %vm4731 = vcmask 343040
    %v4732 = vsel %vm4731, %v4667, %v3499
    %v4733 = vsel %vm4731, %v4668, %v3501
    %v4734 = vsel %vm4731, %v4669, %v3503
    %v4735 = vsel %vm4731, %v4670, %v3505
    %v4736 = vsel %vm4731, %v4671, %v3507
    %v4737 = vsel %vm4731, %v4672, %v3509
    %v4738 = vsel %vm4731, %v4673, %v3511
    %v4739 = vsel %vm4731, %v4674, %v3513
    %v4740 = vsel %vm4731, %v4675, %v3515
    %v4741 = vsel %vm4731, %v4676, %v3517
    %v4742 = vsel %vm4731, %v4677, %v3519
    %v4743 = vsel %vm4731, %v4678, %v3521
    %v4744 = vsel %vm4731, %v4679, %v3523
    %v4745 = vsel %vm4731, %v4680, %v3525
    %v4746 = vsel %vm4731, %v4681, %v3527
    %v4747 = vsel %vm4731, %v4682, %v3529
    %v4748 = vsel %vm4731, %v4683, %v3531
    %v4749 = vsel %vm4731, %v4684, %v3533
    %v4750 = vsel %vm4731, %v4685, %v3535
    %v4751 = vsel %vm4731, %v4686, %v3537
    %v4752 = vsel %vm4731, %v4687, %v3539
    %v4753 = vsel %vm4731, %v4688, %v3541
    %v4754 = vsel %vm4731, %v4689, %v3543
    %v4755 = vsel %vm4731, %v4690, %v3545
    %v4756 = vsel %vm4731, %v4691, %v3547
    %v4757 = vsel %vm4731, %v4692, %v3549
    %v4758 = vsel %vm4731, %v4693, %v3551
    %v4759 = vsel %vm4731, %v4694, %v3553
    %v4760 = vsel %vm4731, %v4695, %v3555
    %v4761 = vsel %vm4731, %v4696, %v3557
    %v4762 = vsel %vm4731, %v4697, %v3559
    %v4763 = vsel %vm4731, %v4698, %v3561
    %v4764 = vsel %vm4731, %v4699, %v3563
    %v4765 = vsel %vm4731, %v4700, %v3565
    %v4766 = vsel %vm4731, %v4701, %v3567
    %v4767 = vsel %vm4731, %v4702, %v3569
    %v4768 = vsel %vm4731, %v4703, %v3571
    %v4769 = vsel %vm4731, %v4704, %v3573
    %v4770 = vsel %vm4731, %v4705, %v3575
    %v4771 = vsel %vm4731, %v4706, %v3577
    %v4772 = vsel %vm4731, %v4707, %v3579
    %v4773 = vsel %vm4731, %v4708, %v3581
    %v4774 = vsel %vm4731, %v4709, %v3583
    %v4775 = vsel %vm4731, %v4710, %v3585
    %v4776 = vsel %vm4731, %v4711, %v3587
    %v4777 = vsel %vm4731, %v4712, %v3589
    %v4778 = vsel %vm4731, %v4713, %v3591
    %v4779 = vsel %vm4731, %v4714, %v3593
    %v4780 = vsel %vm4731, %v4715, %v3595
    %v4781 = vsel %vm4731, %v4716, %v3597
    %v4782 = vsel %vm4731, %v4717, %v3599
    %v4783 = vsel %vm4731, %v4718, %v3601
    %v4784 = vsel %vm4731, %v4719, %v3603
    %v4785 = vsel %vm4731, %v4720, %v3605
    %v4786 = vsel %vm4731, %v4721, %v3607
    %v4787 = vsel %vm4731, %v4722, %v3609
    %v4788 = vsel %vm4731, %v4723, %v3611
    %v4789 = vsel %vm4731, %v4724, %v3613
    %v4790 = vsel %vm4731, %v4725, %v3615
    %v4791 = vsel %vm4731, %v4726, %v3617
    %v4792 = vsel %vm4731, %v4727, %v3619
    %v4793 = vsel %vm4731, %v4728, %v3621
    %v4794 = vsel %vm4731, %v4729, %v3623
    %v4795 = vsel %vm4731, %v4730, %v3625
    %vm4796 = vcmask 367616
    %v4797 = vsel %vm4796, %v4732, %v3695
    %v4798 = vsel %vm4796, %v4733, %v3697
    %v4799 = vsel %vm4796, %v4734, %v3699
    %v4800 = vsel %vm4796, %v4735, %v3701
    %v4801 = vsel %vm4796, %v4736, %v3703
    %v4802 = vsel %vm4796, %v4737, %v3705
    %v4803 = vsel %vm4796, %v4738, %v3707
    %v4804 = vsel %vm4796, %v4739, %v3709
    %v4805 = vsel %vm4796, %v4740, %v3711
    %v4806 = vsel %vm4796, %v4741, %v3713
    %v4807 = vsel %vm4796, %v4742, %v3715
    %v4808 = vsel %vm4796, %v4743, %v3717
    %v4809 = vsel %vm4796, %v4744, %v3719
    %v4810 = vsel %vm4796, %v4745, %v3721
    %v4811 = vsel %vm4796, %v4746, %v3723
    %v4812 = vsel %vm4796, %v4747, %v3725
    %v4813 = vsel %vm4796, %v4748, %v3727
    %v4814 = vsel %vm4796, %v4749, %v3729
    %v4815 = vsel %vm4796, %v4750, %v3731
    %v4816 = vsel %vm4796, %v4751, %v3733
    %v4817 = vsel %vm4796, %v4752, %v3735
    %v4818 = vsel %vm4796, %v4753, %v3737
    %v4819 = vsel %vm4796, %v4754, %v3739
    %v4820 = vsel %vm4796, %v4755, %v3741
    %v4821 = vsel %vm4796, %v4756, %v3743
    %v4822 = vsel %vm4796, %v4757, %v3745
    %v4823 = vsel %vm4796, %v4758, %v3747
    %v4824 = vsel %vm4796, %v4759, %v3749
    %v4825 = vsel %vm4796, %v4760, %v3751
    %v4826 = vsel %vm4796, %v4761, %v3753
    %v4827 = vsel %vm4796, %v4762, %v3755
    %v4828 = vsel %vm4796, %v4763, %v3757
    %v4829 = vsel %vm4796, %v4764, %v3759
    %v4830 = vsel %vm4796, %v4765, %v3761
    %v4831 = vsel %vm4796, %v4766, %v3763
    %v4832 = vsel %vm4796, %v4767, %v3765
    %v4833 = vsel %vm4796, %v4768, %v3767
    %v4834 = vsel %vm4796, %v4769, %v3769
    %v4835 = vsel %vm4796, %v4770, %v3771
    %v4836 = vsel %vm4796, %v4771, %v3773
    %v4837 = vsel %vm4796, %v4772, %v3775
    %v4838 = vsel %vm4796, %v4773, %v3777
    %v4839 = vsel %vm4796, %v4774, %v3779
    %v4840 = vsel %vm4796, %v4775, %v3781
    %v4841 = vsel %vm4796, %v4776, %v3783
    %v4842 = vsel %vm4796, %v4777, %v3785
    %v4843 = vsel %vm4796, %v4778, %v3787
    %v4844 = vsel %vm4796, %v4779, %v3789
    %v4845 = vsel %vm4796, %v4780, %v3791
    %v4846 = vsel %vm4796, %v4781, %v3793
    %v4847 = vsel %vm4796, %v4782, %v3795
    %v4848 = vsel %vm4796, %v4783, %v3797
    %v4849 = vsel %vm4796, %v4784, %v3799
    %v4850 = vsel %vm4796, %v4785, %v3801
    %v4851 = vsel %vm4796, %v4786, %v3803
    %v4852 = vsel %vm4796, %v4787, %v3805
    %v4853 = vsel %vm4796, %v4788, %v3807
    %v4854 = vsel %vm4796, %v4789, %v3809
    %v4855 = vsel %vm4796, %v4790, %v3811
    %v4856 = vsel %vm4796, %v4791, %v3813
    %v4857 = vsel %vm4796, %v4792, %v3815
    %v4858 = vsel %vm4796, %v4793, %v3817
    %v4859 = vsel %vm4796, %v4794, %v3819
    %v4860 = vsel %vm4796, %v4795, %v3821
    %v4863 = vrot.slane %v93, 1
    %v4864 = vrot.slane %v94, 1
    %v4865 = vsel %vm266, %v4863, %v4864
    %v4866 = vrot.slane %v95, 1
    %v4867 = vsel %vm266, %v4864, %v4866
    %v4868 = vrot.slane %v153, 1
    %v4869 = vrot.slane %v154, 1
    %v4870 = vsel %vm266, %v4868, %v4869
    %v4871 = vrot.slane %v155, 1
    %v4872 = vsel %vm266, %v4869, %v4871
    %4873 = vrot.lane.b32.xlu0 %v285, 3
    %v4874 = vpop.permute.xlu0 %4873
    %4875 = vrot.lane.b32.xlu0 %v290, 3
    %v4876 = vpop.permute.xlu0 %4875
    %4877 = vrot.lane.b32.xlu0 %v295, 3
    %v4878 = vpop.permute.xlu0 %4877
    %4879 = vrot.lane.b32.xlu0 %v300, 3
    %v4880 = vpop.permute.xlu0 %4879
    %4881 = vrot.lane.b32.xlu0 %v305, 3
    %v4882 = vpop.permute.xlu0 %4881
    %4883 = vrot.lane.b32.xlu0 %v310, 3
    %v4884 = vpop.permute.xlu0 %4883
    %4885 = vrot.lane.b32.xlu0 %v315, 3
    %v4886 = vpop.permute.xlu0 %4885
    %4887 = vrot.lane.b32.xlu0 %v320, 3
    %v4888 = vpop.permute.xlu0 %4887
    %4889 = vrot.lane.b32.xlu0 %v325, 3
    %v4890 = vpop.permute.xlu0 %4889
    %4891 = vrot.lane.b32.xlu0 %v330, 3
    %v4892 = vpop.permute.xlu0 %4891
    %4893 = vrot.lane.b32.xlu0 %v335, 3
    %v4894 = vpop.permute.xlu0 %4893
    %4895 = vrot.lane.b32.xlu0 %v340, 3
    %v4896 = vpop.permute.xlu0 %4895
    %4897 = vrot.lane.b32.xlu0 %v345, 3
    %v4898 = vpop.permute.xlu0 %4897
    %4899 = vrot.lane.b32.xlu0 %v1878, 3
    %v4900 = vpop.permute.xlu0 %4899
    %4901 = vrot.lane.b32.xlu0 %v1880, 3
    %v4902 = vpop.permute.xlu0 %4901
    %4903 = vrot.lane.b32.xlu0 %v1879, 3
    %v4904 = vpop.permute.xlu0 %4903
    %4905 = vrot.lane.b32.xlu0 %v2884, 3
    %v4906 = vpop.permute.xlu0 %4905
    %4907 = vrot.lane.b32.xlu0 %v2886, 3
    %v4908 = vpop.permute.xlu0 %4907
    %4909 = vrot.lane.b32.xlu0 %v2885, 3
    %v4910 = vpop.permute.xlu0 %4909
    %4911 = vrot.lane.b32.xlu0 %v4865, 3
    %v4912 = vpop.permute.xlu0 %4911
    %4913 = vrot.lane.b32.xlu0 %v4867, 3
    %v4914 = vpop.permute.xlu0 %4913
    %4915 = vrot.lane.b32.xlu0 %v4866, 3
    %v4916 = vpop.permute.xlu0 %4915
    %4917 = vrot.lane.b32.xlu0 %v365, 3
    %v4918 = vpop.permute.xlu0 %4917
    %4919 = vrot.lane.b32.xlu0 %v370, 3
    %v4920 = vpop.permute.xlu0 %4919
    %4921 = vrot.lane.b32.xlu0 %v375, 3
    %v4922 = vpop.permute.xlu0 %4921
    %4923 = vrot.lane.b32.xlu0 %v380, 3
    %v4924 = vpop.permute.xlu0 %4923
    %4925 = vrot.lane.b32.xlu0 %v385, 3
    %v4926 = vpop.permute.xlu0 %4925
    %4927 = vrot.lane.b32.xlu0 %v390, 3
    %v4928 = vpop.permute.xlu0 %4927
    %4929 = vrot.lane.b32.xlu0 %v395, 3
    %v4930 = vpop.permute.xlu0 %4929
    %4931 = vrot.lane.b32.xlu0 %v400, 3
    %v4932 = vpop.permute.xlu0 %4931
    %4933 = vrot.lane.b32.xlu0 %v405, 3
    %v4934 = vpop.permute.xlu0 %4933
    %4935 = vrot.lane.b32.xlu0 %v410, 3
    %v4936 = vpop.permute.xlu0 %4935
    %4937 = vrot.lane.b32.xlu0 %v415, 3
    %v4938 = vpop.permute.xlu0 %4937
    %4939 = vrot.lane.b32.xlu0 %v420, 3
    %v4940 = vpop.permute.xlu0 %4939
    %4941 = vrot.lane.b32.xlu0 %v425, 3
    %v4942 = vpop.permute.xlu0 %4941
    %4943 = vrot.lane.b32.xlu0 %v1883, 3
    %v4944 = vpop.permute.xlu0 %4943
    %4945 = vrot.lane.b32.xlu0 %v1885, 3
    %v4946 = vpop.permute.xlu0 %4945
    %4947 = vrot.lane.b32.xlu0 %v1884, 3
    %v4948 = vpop.permute.xlu0 %4947
    %4949 = vrot.lane.b32.xlu0 %v2889, 3
    %v4950 = vpop.permute.xlu0 %4949
    %4951 = vrot.lane.b32.xlu0 %v2891, 3
    %v4952 = vpop.permute.xlu0 %4951
    %4953 = vrot.lane.b32.xlu0 %v2890, 3
    %v4954 = vpop.permute.xlu0 %4953
    %4955 = vrot.lane.b32.xlu0 %v4870, 3
    %v4956 = vpop.permute.xlu0 %4955
    %4957 = vrot.lane.b32.xlu0 %v4872, 3
    %v4958 = vpop.permute.xlu0 %4957
    %4959 = vrot.lane.b32.xlu0 %v4871, 3
    %v4960 = vpop.permute.xlu0 %4959
    %v5005 = vrot.slane %v93, 2
    %v5006 = vrot.slane %v94, 2
    %v5007 = vsel %vm619, %v5005, %v5006
    %v5008 = vrot.slane %v95, 2
    %v5009 = vsel %vm619, %v5006, %v5008
    %v5010 = vrot.slane %v153, 2
    %v5011 = vrot.slane %v154, 2
    %v5012 = vsel %vm619, %v5010, %v5011
    %v5013 = vrot.slane %v155, 2
    %v5014 = vsel %vm619, %v5011, %v5013
    %5015 = vrot.lane.b32.xlu0 %v638, 6
    %v5016 = vpop.permute.xlu0 %5015
    %5017 = vrot.lane.b32.xlu0 %v643, 6
    %v5018 = vpop.permute.xlu0 %5017
    %5019 = vrot.lane.b32.xlu0 %v648, 6
    %v5020 = vpop.permute.xlu0 %5019
    %5021 = vrot.lane.b32.xlu0 %v653, 6
    %v5022 = vpop.permute.xlu0 %5021
    %5023 = vrot.lane.b32.xlu0 %v658, 6
    %v5024 = vpop.permute.xlu0 %5023
    %5025 = vrot.lane.b32.xlu0 %v663, 6
    %v5026 = vpop.permute.xlu0 %5025
    %5027 = vrot.lane.b32.xlu0 %v668, 6
    %v5028 = vpop.permute.xlu0 %5027
    %5029 = vrot.lane.b32.xlu0 %v673, 6
    %v5030 = vpop.permute.xlu0 %5029
    %5031 = vrot.lane.b32.xlu0 %v678, 6
    %v5032 = vpop.permute.xlu0 %5031
    %5033 = vrot.lane.b32.xlu0 %v683, 6
    %v5034 = vpop.permute.xlu0 %5033
    %5035 = vrot.lane.b32.xlu0 %v688, 6
    %v5036 = vpop.permute.xlu0 %5035
    %5037 = vrot.lane.b32.xlu0 %v693, 6
    %v5038 = vpop.permute.xlu0 %5037
    %5039 = vrot.lane.b32.xlu0 %v698, 6
    %v5040 = vpop.permute.xlu0 %5039
    %5041 = vrot.lane.b32.xlu0 %v2080, 6
    %v5042 = vpop.permute.xlu0 %5041
    %5043 = vrot.lane.b32.xlu0 %v2082, 6
    %v5044 = vpop.permute.xlu0 %5043
    %5045 = vrot.lane.b32.xlu0 %v2081, 6
    %v5046 = vpop.permute.xlu0 %5045
    %5047 = vrot.lane.b32.xlu0 %v3086, 6
    %v5048 = vpop.permute.xlu0 %5047
    %5049 = vrot.lane.b32.xlu0 %v3088, 6
    %v5050 = vpop.permute.xlu0 %5049
    %5051 = vrot.lane.b32.xlu0 %v3087, 6
    %v5052 = vpop.permute.xlu0 %5051
    %5053 = vrot.lane.b32.xlu0 %v5007, 6
    %v5054 = vpop.permute.xlu0 %5053
    %5055 = vrot.lane.b32.xlu0 %v5009, 6
    %v5056 = vpop.permute.xlu0 %5055
    %5057 = vrot.lane.b32.xlu0 %v5008, 6
    %v5058 = vpop.permute.xlu0 %5057
    %5059 = vrot.lane.b32.xlu0 %v718, 6
    %v5060 = vpop.permute.xlu0 %5059
    %5061 = vrot.lane.b32.xlu0 %v723, 6
    %v5062 = vpop.permute.xlu0 %5061
    %5063 = vrot.lane.b32.xlu0 %v728, 6
    %v5064 = vpop.permute.xlu0 %5063
    %5065 = vrot.lane.b32.xlu0 %v733, 6
    %v5066 = vpop.permute.xlu0 %5065
    %5067 = vrot.lane.b32.xlu0 %v738, 6
    %v5068 = vpop.permute.xlu0 %5067
    %5069 = vrot.lane.b32.xlu0 %v743, 6
    %v5070 = vpop.permute.xlu0 %5069
    %5071 = vrot.lane.b32.xlu0 %v748, 6
    %v5072 = vpop.permute.xlu0 %5071
    %5073 = vrot.lane.b32.xlu0 %v753, 6
    %v5074 = vpop.permute.xlu0 %5073
    %5075 = vrot.lane.b32.xlu0 %v758, 6
    %v5076 = vpop.permute.xlu0 %5075
    %5077 = vrot.lane.b32.xlu0 %v763, 6
    %v5078 = vpop.permute.xlu0 %5077
    %5079 = vrot.lane.b32.xlu0 %v768, 6
    %v5080 = vpop.permute.xlu0 %5079
    %5081 = vrot.lane.b32.xlu0 %v773, 6
    %v5082 = vpop.permute.xlu0 %5081
    %5083 = vrot.lane.b32.xlu0 %v778, 6
    %v5084 = vpop.permute.xlu0 %5083
    %5085 = vrot.lane.b32.xlu0 %v2085, 6
    %v5086 = vpop.permute.xlu0 %5085
    %5087 = vrot.lane.b32.xlu0 %v2087, 6
    %v5088 = vpop.permute.xlu0 %5087
    %5089 = vrot.lane.b32.xlu0 %v2086, 6
    %v5090 = vpop.permute.xlu0 %5089
    %5091 = vrot.lane.b32.xlu0 %v3091, 6
    %v5092 = vpop.permute.xlu0 %5091
    %5093 = vrot.lane.b32.xlu0 %v3093, 6
    %v5094 = vpop.permute.xlu0 %5093
    %5095 = vrot.lane.b32.xlu0 %v3092, 6
    %v5096 = vpop.permute.xlu0 %5095
    %5097 = vrot.lane.b32.xlu0 %v5012, 6
    %v5098 = vpop.permute.xlu0 %5097
    %5099 = vrot.lane.b32.xlu0 %v5014, 6
    %v5100 = vpop.permute.xlu0 %5099
    %5101 = vrot.lane.b32.xlu0 %v5013, 6
    %v5102 = vpop.permute.xlu0 %5101
    %v5147 = vrot.slane %v93, 3
    %v5148 = vrot.slane %v94, 3
    %v5149 = vsel %vm972, %v5147, %v5148
    %v5150 = vrot.slane %v95, 3
    %v5151 = vsel %vm972, %v5148, %v5150
    %v5152 = vrot.slane %v153, 3
    %v5153 = vrot.slane %v154, 3
    %v5154 = vsel %vm972, %v5152, %v5153
    %v5155 = vrot.slane %v155, 3
    %v5156 = vsel %vm972, %v5153, %v5155
    %5157 = vrot.lane.b32.xlu0 %v991, 9
    %v5158 = vpop.permute.xlu0 %5157
    %5159 = vrot.lane.b32.xlu0 %v996, 9
    %v5160 = vpop.permute.xlu0 %5159
    %5161 = vrot.lane.b32.xlu0 %v1001, 9
    %v5162 = vpop.permute.xlu0 %5161
    %5163 = vrot.lane.b32.xlu0 %v1006, 9
    %v5164 = vpop.permute.xlu0 %5163
    %5165 = vrot.lane.b32.xlu0 %v1011, 9
    %v5166 = vpop.permute.xlu0 %5165
    %5167 = vrot.lane.b32.xlu0 %v1016, 9
    %v5168 = vpop.permute.xlu0 %5167
    %5169 = vrot.lane.b32.xlu0 %v1021, 9
    %v5170 = vpop.permute.xlu0 %5169
    %5171 = vrot.lane.b32.xlu0 %v1026, 9
    %v5172 = vpop.permute.xlu0 %5171
    %5173 = vrot.lane.b32.xlu0 %v1031, 9
    %v5174 = vpop.permute.xlu0 %5173
    %5175 = vrot.lane.b32.xlu0 %v1036, 9
    %v5176 = vpop.permute.xlu0 %5175
    %5177 = vrot.lane.b32.xlu0 %v1041, 9
    %v5178 = vpop.permute.xlu0 %5177
    %5179 = vrot.lane.b32.xlu0 %v1046, 9
    %v5180 = vpop.permute.xlu0 %5179
    %5181 = vrot.lane.b32.xlu0 %v1051, 9
    %v5182 = vpop.permute.xlu0 %5181
    %5183 = vrot.lane.b32.xlu0 %v2282, 9
    %v5184 = vpop.permute.xlu0 %5183
    %5185 = vrot.lane.b32.xlu0 %v2284, 9
    %v5186 = vpop.permute.xlu0 %5185
    %5187 = vrot.lane.b32.xlu0 %v2283, 9
    %v5188 = vpop.permute.xlu0 %5187
    %5189 = vrot.lane.b32.xlu0 %v3288, 9
    %v5190 = vpop.permute.xlu0 %5189
    %5191 = vrot.lane.b32.xlu0 %v3290, 9
    %v5192 = vpop.permute.xlu0 %5191
    %5193 = vrot.lane.b32.xlu0 %v3289, 9
    %v5194 = vpop.permute.xlu0 %5193
    %5195 = vrot.lane.b32.xlu0 %v5149, 9
    %v5196 = vpop.permute.xlu0 %5195
    %5197 = vrot.lane.b32.xlu0 %v5151, 9
    %v5198 = vpop.permute.xlu0 %5197
    %5199 = vrot.lane.b32.xlu0 %v5150, 9
    %v5200 = vpop.permute.xlu0 %5199
    %5201 = vrot.lane.b32.xlu0 %v1071, 9
    %v5202 = vpop.permute.xlu0 %5201
    %5203 = vrot.lane.b32.xlu0 %v1076, 9
    %v5204 = vpop.permute.xlu0 %5203
    %5205 = vrot.lane.b32.xlu0 %v1081, 9
    %v5206 = vpop.permute.xlu0 %5205
    %5207 = vrot.lane.b32.xlu0 %v1086, 9
    %v5208 = vpop.permute.xlu0 %5207
    %5209 = vrot.lane.b32.xlu0 %v1091, 9
    %v5210 = vpop.permute.xlu0 %5209
    %5211 = vrot.lane.b32.xlu0 %v1096, 9
    %v5212 = vpop.permute.xlu0 %5211
    %5213 = vrot.lane.b32.xlu0 %v1101, 9
    %v5214 = vpop.permute.xlu0 %5213
    %5215 = vrot.lane.b32.xlu0 %v1106, 9
    %v5216 = vpop.permute.xlu0 %5215
    %5217 = vrot.lane.b32.xlu0 %v1111, 9
    %v5218 = vpop.permute.xlu0 %5217
    %5219 = vrot.lane.b32.xlu0 %v1116, 9
    %v5220 = vpop.permute.xlu0 %5219
    %5221 = vrot.lane.b32.xlu0 %v1121, 9
    %v5222 = vpop.permute.xlu0 %5221
    %5223 = vrot.lane.b32.xlu0 %v1126, 9
    %v5224 = vpop.permute.xlu0 %5223
    %5225 = vrot.lane.b32.xlu0 %v1131, 9
    %v5226 = vpop.permute.xlu0 %5225
    %5227 = vrot.lane.b32.xlu0 %v2287, 9
    %v5228 = vpop.permute.xlu0 %5227
    %5229 = vrot.lane.b32.xlu0 %v2289, 9
    %v5230 = vpop.permute.xlu0 %5229
    %5231 = vrot.lane.b32.xlu0 %v2288, 9
    %v5232 = vpop.permute.xlu0 %5231
    %5233 = vrot.lane.b32.xlu0 %v3293, 9
    %v5234 = vpop.permute.xlu0 %5233
    %5235 = vrot.lane.b32.xlu0 %v3295, 9
    %v5236 = vpop.permute.xlu0 %5235
    %5237 = vrot.lane.b32.xlu0 %v3294, 9
    %v5238 = vpop.permute.xlu0 %5237
    %5239 = vrot.lane.b32.xlu0 %v5154, 9
    %v5240 = vpop.permute.xlu0 %5239
    %5241 = vrot.lane.b32.xlu0 %v5156, 9
    %v5242 = vpop.permute.xlu0 %5241
    %5243 = vrot.lane.b32.xlu0 %v5155, 9
    %v5244 = vpop.permute.xlu0 %5243
    %vm5293 = vcmask 1040384
    %v5294 = vrot.slane %v51, 7
    %v5295 = vrot.slane %v52, 7
    %v5296 = vsel %vm5293, %v5294, %v5295
    %v5297 = vrot.slane %v54, 7
    %v5298 = vrot.slane %v55, 7
    %v5299 = vsel %vm5293, %v5297, %v5298
    %v5300 = vrot.slane %v57, 7
    %v5301 = vrot.slane %v58, 7
    %v5302 = vsel %vm5293, %v5300, %v5301
    %v5303 = vrot.slane %v60, 7
    %v5304 = vrot.slane %v61, 7
    %v5305 = vsel %vm5293, %v5303, %v5304
    %v5306 = vrot.slane %v63, 7
    %v5307 = vrot.slane %v64, 7
    %v5308 = vsel %vm5293, %v5306, %v5307
    %v5309 = vrot.slane %v66, 7
    %v5310 = vrot.slane %v67, 7
    %v5311 = vsel %vm5293, %v5309, %v5310
    %v5312 = vrot.slane %v69, 7
    %v5313 = vrot.slane %v70, 7
    %v5314 = vsel %vm5293, %v5312, %v5313
    %v5315 = vrot.slane %v72, 7
    %v5316 = vrot.slane %v73, 7
    %v5317 = vsel %vm5293, %v5315, %v5316
    %v5318 = vrot.slane %v75, 7
    %v5319 = vrot.slane %v76, 7
    %v5320 = vsel %vm5293, %v5318, %v5319
    %v5321 = vrot.slane %v78, 7
    %v5322 = vrot.slane %v79, 7
    %v5323 = vsel %vm5293, %v5321, %v5322
    %v5324 = vrot.slane %v81, 7
    %v5325 = vrot.slane %v82, 7
    %v5326 = vsel %vm5293, %v5324, %v5325
    %v5327 = vrot.slane %v84, 7
    %v5328 = vrot.slane %v85, 7
    %v5329 = vsel %vm5293, %v5327, %v5328
    %v5330 = vrot.slane %v87, 7
    %v5331 = vrot.slane %v88, 7
    %v5332 = vsel %vm5293, %v5330, %v5331
    %v5333 = vrot.slane %v90, 7
    %v5334 = vrot.slane %v91, 7
    %v5335 = vsel %vm5293, %v5333, %v5334
    %v5336 = vrot.slane %v93, 7
    %v5337 = vrot.slane %v94, 7
    %v5338 = vsel %vm5293, %v5336, %v5337
    %v5339 = vrot.slane %v96, 7
    %v5340 = vrot.slane %v97, 7
    %v5341 = vsel %vm5293, %v5339, %v5340
    %v5342 = vrot.slane %v111, 7
    %v5343 = vrot.slane %v112, 7
    %v5344 = vsel %vm5293, %v5342, %v5343
    %v5345 = vrot.slane %v114, 7
    %v5346 = vrot.slane %v115, 7
    %v5347 = vsel %vm5293, %v5345, %v5346
    %v5348 = vrot.slane %v117, 7
    %v5349 = vrot.slane %v118, 7
    %v5350 = vsel %vm5293, %v5348, %v5349
    %v5351 = vrot.slane %v120, 7
    %v5352 = vrot.slane %v121, 7
    %v5353 = vsel %vm5293, %v5351, %v5352
    %v5354 = vrot.slane %v123, 7
    %v5355 = vrot.slane %v124, 7
    %v5356 = vsel %vm5293, %v5354, %v5355
    %v5357 = vrot.slane %v126, 7
    %v5358 = vrot.slane %v127, 7
    %v5359 = vsel %vm5293, %v5357, %v5358
    %v5360 = vrot.slane %v129, 7
    %v5361 = vrot.slane %v130, 7
    %v5362 = vsel %vm5293, %v5360, %v5361
    %v5363 = vrot.slane %v132, 7
    %v5364 = vrot.slane %v133, 7
    %v5365 = vsel %vm5293, %v5363, %v5364
    %v5366 = vrot.slane %v135, 7
    %v5367 = vrot.slane %v136, 7
    %v5368 = vsel %vm5293, %v5366, %v5367
    %v5369 = vrot.slane %v138, 7
    %v5370 = vrot.slane %v139, 7
    %v5371 = vsel %vm5293, %v5369, %v5370
    %v5372 = vrot.slane %v141, 7
    %v5373 = vrot.slane %v142, 7
    %v5374 = vsel %vm5293, %v5372, %v5373
    %v5375 = vrot.slane %v144, 7
    %v5376 = vrot.slane %v145, 7
    %v5377 = vsel %vm5293, %v5375, %v5376
    %v5378 = vrot.slane %v147, 7
    %v5379 = vrot.slane %v148, 7
    %v5380 = vsel %vm5293, %v5378, %v5379
    %v5381 = vrot.slane %v150, 7
    %v5382 = vrot.slane %v151, 7
    %v5383 = vsel %vm5293, %v5381, %v5382
    %v5384 = vrot.slane %v153, 7
    %v5385 = vrot.slane %v154, 7
    %v5386 = vsel %vm5293, %v5384, %v5385
    %v5387 = vrot.slane %v156, 7
    %v5388 = vrot.slane %v157, 7
    %v5389 = vsel %vm5293, %v5387, %v5388
    %5390 = vrot.lane.b32.xlu0 %v5294, 12
    %v5391 = vpop.permute.xlu0 %5390
    %5392 = vrot.lane.b32.xlu0 %v5296, 12
    %v5393 = vpop.permute.xlu0 %5392
    %5394 = vrot.lane.b32.xlu0 %v5295, 12
    %v5395 = vpop.permute.xlu0 %5394
    %5396 = vrot.lane.b32.xlu0 %v5297, 12
    %v5397 = vpop.permute.xlu0 %5396
    %5398 = vrot.lane.b32.xlu0 %v5299, 12
    %v5399 = vpop.permute.xlu0 %5398
    %5400 = vrot.lane.b32.xlu0 %v5298, 12
    %v5401 = vpop.permute.xlu0 %5400
    %5402 = vrot.lane.b32.xlu0 %v5300, 12
    %v5403 = vpop.permute.xlu0 %5402
    %5404 = vrot.lane.b32.xlu0 %v5302, 12
    %v5405 = vpop.permute.xlu0 %5404
    %5406 = vrot.lane.b32.xlu0 %v5301, 12
    %v5407 = vpop.permute.xlu0 %5406
    %5408 = vrot.lane.b32.xlu0 %v5303, 12
    %v5409 = vpop.permute.xlu0 %5408
    %5410 = vrot.lane.b32.xlu0 %v5305, 12
    %v5411 = vpop.permute.xlu0 %5410
    %5412 = vrot.lane.b32.xlu0 %v5304, 12
    %v5413 = vpop.permute.xlu0 %5412
    %5414 = vrot.lane.b32.xlu0 %v5306, 12
    %v5415 = vpop.permute.xlu0 %5414
    %5416 = vrot.lane.b32.xlu0 %v5308, 12
    %v5417 = vpop.permute.xlu0 %5416
    %5418 = vrot.lane.b32.xlu0 %v5307, 12
    %v5419 = vpop.permute.xlu0 %5418
    %5420 = vrot.lane.b32.xlu0 %v5309, 12
    %v5421 = vpop.permute.xlu0 %5420
    %5422 = vrot.lane.b32.xlu0 %v5311, 12
    %v5423 = vpop.permute.xlu0 %5422
    %5424 = vrot.lane.b32.xlu0 %v5310, 12
    %v5425 = vpop.permute.xlu0 %5424
    %5426 = vrot.lane.b32.xlu0 %v5312, 12
    %v5427 = vpop.permute.xlu0 %5426
    %5428 = vrot.lane.b32.xlu0 %v5314, 12
    %v5429 = vpop.permute.xlu0 %5428
    %5430 = vrot.lane.b32.xlu0 %v5313, 12
    %v5431 = vpop.permute.xlu0 %5430
    %5432 = vrot.lane.b32.xlu0 %v5315, 12
    %v5433 = vpop.permute.xlu0 %5432
    %5434 = vrot.lane.b32.xlu0 %v5317, 12
    %v5435 = vpop.permute.xlu0 %5434
    %5436 = vrot.lane.b32.xlu0 %v5316, 12
    %v5437 = vpop.permute.xlu0 %5436
    %5438 = vrot.lane.b32.xlu0 %v5318, 12
    %v5439 = vpop.permute.xlu0 %5438
    %5440 = vrot.lane.b32.xlu0 %v5320, 12
    %v5441 = vpop.permute.xlu0 %5440
    %5442 = vrot.lane.b32.xlu0 %v5319, 12
    %v5443 = vpop.permute.xlu0 %5442
    %5444 = vrot.lane.b32.xlu0 %v5321, 12
    %v5445 = vpop.permute.xlu0 %5444
    %5446 = vrot.lane.b32.xlu0 %v5323, 12
    %v5447 = vpop.permute.xlu0 %5446
    %5448 = vrot.lane.b32.xlu0 %v5322, 12
    %v5449 = vpop.permute.xlu0 %5448
    %5450 = vrot.lane.b32.xlu0 %v5324, 12
    %v5451 = vpop.permute.xlu0 %5450
    %5452 = vrot.lane.b32.xlu0 %v5326, 12
    %v5453 = vpop.permute.xlu0 %5452
    %5454 = vrot.lane.b32.xlu0 %v5325, 12
    %v5455 = vpop.permute.xlu0 %5454
    %5456 = vrot.lane.b32.xlu0 %v5327, 12
    %v5457 = vpop.permute.xlu0 %5456
    %5458 = vrot.lane.b32.xlu0 %v5329, 12
    %v5459 = vpop.permute.xlu0 %5458
    %5460 = vrot.lane.b32.xlu0 %v5328, 12
    %v5461 = vpop.permute.xlu0 %5460
    %5462 = vrot.lane.b32.xlu0 %v5330, 12
    %v5463 = vpop.permute.xlu0 %5462
    %5464 = vrot.lane.b32.xlu0 %v5332, 12
    %v5465 = vpop.permute.xlu0 %5464
    %5466 = vrot.lane.b32.xlu0 %v5331, 12
    %v5467 = vpop.permute.xlu0 %5466
    %5468 = vrot.lane.b32.xlu0 %v5333, 12
    %v5469 = vpop.permute.xlu0 %5468
    %5470 = vrot.lane.b32.xlu0 %v5335, 12
    %v5471 = vpop.permute.xlu0 %5470
    %5472 = vrot.lane.b32.xlu0 %v5334, 12
    %v5473 = vpop.permute.xlu0 %5472
    %5474 = vrot.lane.b32.xlu0 %v5336, 12
    %v5475 = vpop.permute.xlu0 %5474
    %5476 = vrot.lane.b32.xlu0 %v5338, 12
    %v5477 = vpop.permute.xlu0 %5476
    %5478 = vrot.lane.b32.xlu0 %v5337, 12
    %v5479 = vpop.permute.xlu0 %5478
    %5480 = vrot.lane.b32.xlu0 %v5339, 12
    %v5481 = vpop.permute.xlu0 %5480
    %5482 = vrot.lane.b32.xlu0 %v5341, 12
    %v5483 = vpop.permute.xlu0 %5482
    %5484 = vrot.lane.b32.xlu0 %v5340, 12
    %v5485 = vpop.permute.xlu0 %5484
    %5486 = vrot.lane.b32.xlu0 %v5342, 12
    %v5487 = vpop.permute.xlu0 %5486
    %5488 = vrot.lane.b32.xlu0 %v5344, 12
    %v5489 = vpop.permute.xlu0 %5488
    %5490 = vrot.lane.b32.xlu0 %v5343, 12
    %v5491 = vpop.permute.xlu0 %5490
    %5492 = vrot.lane.b32.xlu0 %v5345, 12
    %v5493 = vpop.permute.xlu0 %5492
    %5494 = vrot.lane.b32.xlu0 %v5347, 12
    %v5495 = vpop.permute.xlu0 %5494
    %5496 = vrot.lane.b32.xlu0 %v5346, 12
    %v5497 = vpop.permute.xlu0 %5496
    %5498 = vrot.lane.b32.xlu0 %v5348, 12
    %v5499 = vpop.permute.xlu0 %5498
    %5500 = vrot.lane.b32.xlu0 %v5350, 12
    %v5501 = vpop.permute.xlu0 %5500
    %5502 = vrot.lane.b32.xlu0 %v5349, 12
    %v5503 = vpop.permute.xlu0 %5502
    %5504 = vrot.lane.b32.xlu0 %v5351, 12
    %v5505 = vpop.permute.xlu0 %5504
    %5506 = vrot.lane.b32.xlu0 %v5353, 12
    %v5507 = vpop.permute.xlu0 %5506
    %5508 = vrot.lane.b32.xlu0 %v5352, 12
    %v5509 = vpop.permute.xlu0 %5508
    %5510 = vrot.lane.b32.xlu0 %v5354, 12
    %v5511 = vpop.permute.xlu0 %5510
    %5512 = vrot.lane.b32.xlu0 %v5356, 12
    %v5513 = vpop.permute.xlu0 %5512
    %5514 = vrot.lane.b32.xlu0 %v5355, 12
    %v5515 = vpop.permute.xlu0 %5514
    %5516 = vrot.lane.b32.xlu0 %v5357, 12
    %v5517 = vpop.permute.xlu0 %5516
    %5518 = vrot.lane.b32.xlu0 %v5359, 12
    %v5519 = vpop.permute.xlu0 %5518
    %5520 = vrot.lane.b32.xlu0 %v5358, 12
    %v5521 = vpop.permute.xlu0 %5520
    %5522 = vrot.lane.b32.xlu0 %v5360, 12
    %v5523 = vpop.permute.xlu0 %5522
    %5524 = vrot.lane.b32.xlu0 %v5362, 12
    %v5525 = vpop.permute.xlu0 %5524
    %5526 = vrot.lane.b32.xlu0 %v5361, 12
    %v5527 = vpop.permute.xlu0 %5526
    %5528 = vrot.lane.b32.xlu0 %v5363, 12
    %v5529 = vpop.permute.xlu0 %5528
    %5530 = vrot.lane.b32.xlu0 %v5365, 12
    %v5531 = vpop.permute.xlu0 %5530
    %5532 = vrot.lane.b32.xlu0 %v5364, 12
    %v5533 = vpop.permute.xlu0 %5532
    %5534 = vrot.lane.b32.xlu0 %v5366, 12
    %v5535 = vpop.permute.xlu0 %5534
    %5536 = vrot.lane.b32.xlu0 %v5368, 12
    %v5537 = vpop.permute.xlu0 %5536
    %5538 = vrot.lane.b32.xlu0 %v5367, 12
    %v5539 = vpop.permute.xlu0 %5538
    %5540 = vrot.lane.b32.xlu0 %v5369, 12
    %v5541 = vpop.permute.xlu0 %5540
    %5542 = vrot.lane.b32.xlu0 %v5371, 12
    %v5543 = vpop.permute.xlu0 %5542
    %5544 = vrot.lane.b32.xlu0 %v5370, 12
    %v5545 = vpop.permute.xlu0 %5544
    %5546 = vrot.lane.b32.xlu0 %v5372, 12
    %v5547 = vpop.permute.xlu0 %5546
    %5548 = vrot.lane.b32.xlu0 %v5374, 12
    %v5549 = vpop.permute.xlu0 %5548
    %5550 = vrot.lane.b32.xlu0 %v5373, 12
    %v5551 = vpop.permute.xlu0 %5550
    %5552 = vrot.lane.b32.xlu0 %v5375, 12
    %v5553 = vpop.permute.xlu0 %5552
    %5554 = vrot.lane.b32.xlu0 %v5377, 12
    %v5555 = vpop.permute.xlu0 %5554
    %5556 = vrot.lane.b32.xlu0 %v5376, 12
    %v5557 = vpop.permute.xlu0 %5556
    %5558 = vrot.lane.b32.xlu0 %v5378, 12
    %v5559 = vpop.permute.xlu0 %5558
    %5560 = vrot.lane.b32.xlu0 %v5380, 12
    %v5561 = vpop.permute.xlu0 %5560
    %5562 = vrot.lane.b32.xlu0 %v5379, 12
    %v5563 = vpop.permute.xlu0 %5562
    %5564 = vrot.lane.b32.xlu0 %v5381, 12
    %v5565 = vpop.permute.xlu0 %5564
    %5566 = vrot.lane.b32.xlu0 %v5383, 12
    %v5567 = vpop.permute.xlu0 %5566
    %5568 = vrot.lane.b32.xlu0 %v5382, 12
    %v5569 = vpop.permute.xlu0 %5568
    %5570 = vrot.lane.b32.xlu0 %v5384, 12
    %v5571 = vpop.permute.xlu0 %5570
    %5572 = vrot.lane.b32.xlu0 %v5386, 12
    %v5573 = vpop.permute.xlu0 %5572
    %5574 = vrot.lane.b32.xlu0 %v5385, 12
    %v5575 = vpop.permute.xlu0 %5574
    %5576 = vrot.lane.b32.xlu0 %v5387, 12
    %v5577 = vpop.permute.xlu0 %5576
    %5578 = vrot.lane.b32.xlu0 %v5389, 12
    %v5579 = vpop.permute.xlu0 %5578
    %5580 = vrot.lane.b32.xlu0 %v5388, 12
    %v5581 = vpop.permute.xlu0 %5580
    %5680 = vrot.lane.b32.xlu0 %v53, 15
    %v5681 = vpop.permute.xlu0 %5680
    %5682 = vrot.lane.b32.xlu0 %v56, 15
    %v5683 = vpop.permute.xlu0 %5682
    %5684 = vrot.lane.b32.xlu0 %v59, 15
    %v5685 = vpop.permute.xlu0 %5684
    %5686 = vrot.lane.b32.xlu0 %v62, 15
    %v5687 = vpop.permute.xlu0 %5686
    %5688 = vrot.lane.b32.xlu0 %v65, 15
    %v5689 = vpop.permute.xlu0 %5688
    %5690 = vrot.lane.b32.xlu0 %v68, 15
    %v5691 = vpop.permute.xlu0 %5690
    %5692 = vrot.lane.b32.xlu0 %v71, 15
    %v5693 = vpop.permute.xlu0 %5692
    %5694 = vrot.lane.b32.xlu0 %v74, 15
    %v5695 = vpop.permute.xlu0 %5694
    %5696 = vrot.lane.b32.xlu0 %v77, 15
    %v5697 = vpop.permute.xlu0 %5696
    %5698 = vrot.lane.b32.xlu0 %v80, 15
    %v5699 = vpop.permute.xlu0 %5698
    %5700 = vrot.lane.b32.xlu0 %v83, 15
    %v5701 = vpop.permute.xlu0 %5700
    %5702 = vrot.lane.b32.xlu0 %v86, 15
    %v5703 = vpop.permute.xlu0 %5702
    %5704 = vrot.lane.b32.xlu0 %v89, 15
    %v5705 = vpop.permute.xlu0 %5704
    %5706 = vrot.lane.b32.xlu0 %v90, 15
    %v5707 = vpop.permute.xlu0 %5706
    %5708 = vrot.lane.b32.xlu0 %v91, 15
    %v5709 = vpop.permute.xlu0 %5708
    %5710 = vrot.lane.b32.xlu0 %v92, 15
    %v5711 = vpop.permute.xlu0 %5710
    %5712 = vrot.lane.b32.xlu0 %v93, 15
    %v5713 = vpop.permute.xlu0 %5712
    %5714 = vrot.lane.b32.xlu0 %v94, 15
    %v5715 = vpop.permute.xlu0 %5714
    %5716 = vrot.lane.b32.xlu0 %v95, 15
    %v5717 = vpop.permute.xlu0 %5716
    %5718 = vrot.lane.b32.xlu0 %v96, 15
    %v5719 = vpop.permute.xlu0 %5718
    %5720 = vrot.lane.b32.xlu0 %v97, 15
    %v5721 = vpop.permute.xlu0 %5720
    %5722 = vrot.lane.b32.xlu0 %v98, 15
    %v5723 = vpop.permute.xlu0 %5722
    %5724 = vrot.lane.b32.xlu0 %v113, 15
    %v5725 = vpop.permute.xlu0 %5724
    %5726 = vrot.lane.b32.xlu0 %v116, 15
    %v5727 = vpop.permute.xlu0 %5726
    %5728 = vrot.lane.b32.xlu0 %v119, 15
    %v5729 = vpop.permute.xlu0 %5728
    %5730 = vrot.lane.b32.xlu0 %v122, 15
    %v5731 = vpop.permute.xlu0 %5730
    %5732 = vrot.lane.b32.xlu0 %v125, 15
    %v5733 = vpop.permute.xlu0 %5732
    %5734 = vrot.lane.b32.xlu0 %v128, 15
    %v5735 = vpop.permute.xlu0 %5734
    %5736 = vrot.lane.b32.xlu0 %v131, 15
    %v5737 = vpop.permute.xlu0 %5736
    %5738 = vrot.lane.b32.xlu0 %v134, 15
    %v5739 = vpop.permute.xlu0 %5738
    %5740 = vrot.lane.b32.xlu0 %v137, 15
    %v5741 = vpop.permute.xlu0 %5740
    %5742 = vrot.lane.b32.xlu0 %v140, 15
    %v5743 = vpop.permute.xlu0 %5742
    %5744 = vrot.lane.b32.xlu0 %v143, 15
    %v5745 = vpop.permute.xlu0 %5744
    %5746 = vrot.lane.b32.xlu0 %v146, 15
    %v5747 = vpop.permute.xlu0 %5746
    %5748 = vrot.lane.b32.xlu0 %v149, 15
    %v5749 = vpop.permute.xlu0 %5748
    %5750 = vrot.lane.b32.xlu0 %v150, 15
    %v5751 = vpop.permute.xlu0 %5750
    %5752 = vrot.lane.b32.xlu0 %v151, 15
    %v5753 = vpop.permute.xlu0 %5752
    %5754 = vrot.lane.b32.xlu0 %v152, 15
    %v5755 = vpop.permute.xlu0 %5754
    %5756 = vrot.lane.b32.xlu0 %v153, 15
    %v5757 = vpop.permute.xlu0 %5756
    %5758 = vrot.lane.b32.xlu0 %v154, 15
    %v5759 = vpop.permute.xlu0 %5758
    %5760 = vrot.lane.b32.xlu0 %v155, 15
    %v5761 = vpop.permute.xlu0 %5760
    %5762 = vrot.lane.b32.xlu0 %v156, 15
    %v5763 = vpop.permute.xlu0 %5762
    %5764 = vrot.lane.b32.xlu0 %v157, 15
    %v5765 = vpop.permute.xlu0 %5764
    %5766 = vrot.lane.b32.xlu0 %v158, 15
    %v5767 = vpop.permute.xlu0 %5766
    %v5812 = vrot.slane %v96, 1
    %v5813 = vrot.slane %v97, 1
    %v5814 = vsel %vm266, %v5812, %v5813
    %v5815 = vrot.slane %v98, 1
    %v5816 = vsel %vm266, %v5813, %v5815
    %v5817 = vrot.slane %v156, 1
    %v5818 = vrot.slane %v157, 1
    %v5819 = vsel %vm266, %v5817, %v5818
    %v5820 = vrot.slane %v158, 1
    %v5821 = vsel %vm266, %v5818, %v5820
    %5822 = vrot.lane.b32.xlu0 %v290, 18
    %v5823 = vpop.permute.xlu0 %5822
    %5824 = vrot.lane.b32.xlu0 %v295, 18
    %v5825 = vpop.permute.xlu0 %5824
    %5826 = vrot.lane.b32.xlu0 %v300, 18
    %v5827 = vpop.permute.xlu0 %5826
    %5828 = vrot.lane.b32.xlu0 %v305, 18
    %v5829 = vpop.permute.xlu0 %5828
    %5830 = vrot.lane.b32.xlu0 %v310, 18
    %v5831 = vpop.permute.xlu0 %5830
    %5832 = vrot.lane.b32.xlu0 %v315, 18
    %v5833 = vpop.permute.xlu0 %5832
    %5834 = vrot.lane.b32.xlu0 %v320, 18
    %v5835 = vpop.permute.xlu0 %5834
    %5836 = vrot.lane.b32.xlu0 %v325, 18
    %v5837 = vpop.permute.xlu0 %5836
    %5838 = vrot.lane.b32.xlu0 %v330, 18
    %v5839 = vpop.permute.xlu0 %5838
    %5840 = vrot.lane.b32.xlu0 %v335, 18
    %v5841 = vpop.permute.xlu0 %5840
    %5842 = vrot.lane.b32.xlu0 %v340, 18
    %v5843 = vpop.permute.xlu0 %5842
    %5844 = vrot.lane.b32.xlu0 %v345, 18
    %v5845 = vpop.permute.xlu0 %5844
    %5846 = vrot.lane.b32.xlu0 %v1879, 18
    %v5847 = vpop.permute.xlu0 %5846
    %5848 = vrot.lane.b32.xlu0 %v2884, 18
    %v5849 = vpop.permute.xlu0 %5848
    %5850 = vrot.lane.b32.xlu0 %v2886, 18
    %v5851 = vpop.permute.xlu0 %5850
    %5852 = vrot.lane.b32.xlu0 %v2885, 18
    %v5853 = vpop.permute.xlu0 %5852
    %5854 = vrot.lane.b32.xlu0 %v4865, 18
    %v5855 = vpop.permute.xlu0 %5854
    %5856 = vrot.lane.b32.xlu0 %v4867, 18
    %v5857 = vpop.permute.xlu0 %5856
    %5858 = vrot.lane.b32.xlu0 %v4866, 18
    %v5859 = vpop.permute.xlu0 %5858
    %5860 = vrot.lane.b32.xlu0 %v5814, 18
    %v5861 = vpop.permute.xlu0 %5860
    %5862 = vrot.lane.b32.xlu0 %v5816, 18
    %v5863 = vpop.permute.xlu0 %5862
    %5864 = vrot.lane.b32.xlu0 %v5815, 18
    %v5865 = vpop.permute.xlu0 %5864
    %5866 = vrot.lane.b32.xlu0 %v370, 18
    %v5867 = vpop.permute.xlu0 %5866
    %5868 = vrot.lane.b32.xlu0 %v375, 18
    %v5869 = vpop.permute.xlu0 %5868
    %5870 = vrot.lane.b32.xlu0 %v380, 18
    %v5871 = vpop.permute.xlu0 %5870
    %5872 = vrot.lane.b32.xlu0 %v385, 18
    %v5873 = vpop.permute.xlu0 %5872
    %5874 = vrot.lane.b32.xlu0 %v390, 18
    %v5875 = vpop.permute.xlu0 %5874
    %5876 = vrot.lane.b32.xlu0 %v395, 18
    %v5877 = vpop.permute.xlu0 %5876
    %5878 = vrot.lane.b32.xlu0 %v400, 18
    %v5879 = vpop.permute.xlu0 %5878
    %5880 = vrot.lane.b32.xlu0 %v405, 18
    %v5881 = vpop.permute.xlu0 %5880
    %5882 = vrot.lane.b32.xlu0 %v410, 18
    %v5883 = vpop.permute.xlu0 %5882
    %5884 = vrot.lane.b32.xlu0 %v415, 18
    %v5885 = vpop.permute.xlu0 %5884
    %5886 = vrot.lane.b32.xlu0 %v420, 18
    %v5887 = vpop.permute.xlu0 %5886
    %5888 = vrot.lane.b32.xlu0 %v425, 18
    %v5889 = vpop.permute.xlu0 %5888
    %5890 = vrot.lane.b32.xlu0 %v1884, 18
    %v5891 = vpop.permute.xlu0 %5890
    %5892 = vrot.lane.b32.xlu0 %v2889, 18
    %v5893 = vpop.permute.xlu0 %5892
    %5894 = vrot.lane.b32.xlu0 %v2891, 18
    %v5895 = vpop.permute.xlu0 %5894
    %5896 = vrot.lane.b32.xlu0 %v2890, 18
    %v5897 = vpop.permute.xlu0 %5896
    %5898 = vrot.lane.b32.xlu0 %v4870, 18
    %v5899 = vpop.permute.xlu0 %5898
    %5900 = vrot.lane.b32.xlu0 %v4872, 18
    %v5901 = vpop.permute.xlu0 %5900
    %5902 = vrot.lane.b32.xlu0 %v4871, 18
    %v5903 = vpop.permute.xlu0 %5902
    %5904 = vrot.lane.b32.xlu0 %v5819, 18
    %v5905 = vpop.permute.xlu0 %5904
    %5906 = vrot.lane.b32.xlu0 %v5821, 18
    %v5907 = vpop.permute.xlu0 %5906
    %5908 = vrot.lane.b32.xlu0 %v5820, 18
    %v5909 = vpop.permute.xlu0 %5908
    %v5954 = vrot.slane %v96, 2
    %v5955 = vrot.slane %v97, 2
    %v5956 = vsel %vm619, %v5954, %v5955
    %v5957 = vrot.slane %v98, 2
    %v5958 = vsel %vm619, %v5955, %v5957
    %v5959 = vrot.slane %v156, 2
    %v5960 = vrot.slane %v157, 2
    %v5961 = vsel %vm619, %v5959, %v5960
    %v5962 = vrot.slane %v158, 2
    %v5963 = vsel %vm619, %v5960, %v5962
    %5964 = vrot.lane.b32.xlu0 %v643, 21
    %v5965 = vpop.permute.xlu0 %5964
    %5966 = vrot.lane.b32.xlu0 %v648, 21
    %v5967 = vpop.permute.xlu0 %5966
    %5968 = vrot.lane.b32.xlu0 %v653, 21
    %v5969 = vpop.permute.xlu0 %5968
    %5970 = vrot.lane.b32.xlu0 %v658, 21
    %v5971 = vpop.permute.xlu0 %5970
    %5972 = vrot.lane.b32.xlu0 %v663, 21
    %v5973 = vpop.permute.xlu0 %5972
    %5974 = vrot.lane.b32.xlu0 %v668, 21
    %v5975 = vpop.permute.xlu0 %5974
    %5976 = vrot.lane.b32.xlu0 %v673, 21
    %v5977 = vpop.permute.xlu0 %5976
    %5978 = vrot.lane.b32.xlu0 %v678, 21
    %v5979 = vpop.permute.xlu0 %5978
    %5980 = vrot.lane.b32.xlu0 %v683, 21
    %v5981 = vpop.permute.xlu0 %5980
    %5982 = vrot.lane.b32.xlu0 %v688, 21
    %v5983 = vpop.permute.xlu0 %5982
    %5984 = vrot.lane.b32.xlu0 %v693, 21
    %v5985 = vpop.permute.xlu0 %5984
    %5986 = vrot.lane.b32.xlu0 %v698, 21
    %v5987 = vpop.permute.xlu0 %5986
    %5988 = vrot.lane.b32.xlu0 %v2081, 21
    %v5989 = vpop.permute.xlu0 %5988
    %5990 = vrot.lane.b32.xlu0 %v3086, 21
    %v5991 = vpop.permute.xlu0 %5990
    %5992 = vrot.lane.b32.xlu0 %v3088, 21
    %v5993 = vpop.permute.xlu0 %5992
    %5994 = vrot.lane.b32.xlu0 %v3087, 21
    %v5995 = vpop.permute.xlu0 %5994
    %5996 = vrot.lane.b32.xlu0 %v5007, 21
    %v5997 = vpop.permute.xlu0 %5996
    %5998 = vrot.lane.b32.xlu0 %v5009, 21
    %v5999 = vpop.permute.xlu0 %5998
    %6000 = vrot.lane.b32.xlu0 %v5008, 21
    %v6001 = vpop.permute.xlu0 %6000
    %6002 = vrot.lane.b32.xlu0 %v5956, 21
    %v6003 = vpop.permute.xlu0 %6002
    %6004 = vrot.lane.b32.xlu0 %v5958, 21
    %v6005 = vpop.permute.xlu0 %6004
    %6006 = vrot.lane.b32.xlu0 %v5957, 21
    %v6007 = vpop.permute.xlu0 %6006
    %6008 = vrot.lane.b32.xlu0 %v723, 21
    %v6009 = vpop.permute.xlu0 %6008
    %6010 = vrot.lane.b32.xlu0 %v728, 21
    %v6011 = vpop.permute.xlu0 %6010
    %6012 = vrot.lane.b32.xlu0 %v733, 21
    %v6013 = vpop.permute.xlu0 %6012
    %6014 = vrot.lane.b32.xlu0 %v738, 21
    %v6015 = vpop.permute.xlu0 %6014
    %6016 = vrot.lane.b32.xlu0 %v743, 21
    %v6017 = vpop.permute.xlu0 %6016
    %6018 = vrot.lane.b32.xlu0 %v748, 21
    %v6019 = vpop.permute.xlu0 %6018
    %6020 = vrot.lane.b32.xlu0 %v753, 21
    %v6021 = vpop.permute.xlu0 %6020
    %6022 = vrot.lane.b32.xlu0 %v758, 21
    %v6023 = vpop.permute.xlu0 %6022
    %6024 = vrot.lane.b32.xlu0 %v763, 21
    %v6025 = vpop.permute.xlu0 %6024
    %6026 = vrot.lane.b32.xlu0 %v768, 21
    %v6027 = vpop.permute.xlu0 %6026
    %6028 = vrot.lane.b32.xlu0 %v773, 21
    %v6029 = vpop.permute.xlu0 %6028
    %6030 = vrot.lane.b32.xlu0 %v778, 21
    %v6031 = vpop.permute.xlu0 %6030
    %6032 = vrot.lane.b32.xlu0 %v2086, 21
    %v6033 = vpop.permute.xlu0 %6032
    %6034 = vrot.lane.b32.xlu0 %v3091, 21
    %v6035 = vpop.permute.xlu0 %6034
    %6036 = vrot.lane.b32.xlu0 %v3093, 21
    %v6037 = vpop.permute.xlu0 %6036
    %6038 = vrot.lane.b32.xlu0 %v3092, 21
    %v6039 = vpop.permute.xlu0 %6038
    %6040 = vrot.lane.b32.xlu0 %v5012, 21
    %v6041 = vpop.permute.xlu0 %6040
    %6042 = vrot.lane.b32.xlu0 %v5014, 21
    %v6043 = vpop.permute.xlu0 %6042
    %6044 = vrot.lane.b32.xlu0 %v5013, 21
    %v6045 = vpop.permute.xlu0 %6044
    %6046 = vrot.lane.b32.xlu0 %v5961, 21
    %v6047 = vpop.permute.xlu0 %6046
    %6048 = vrot.lane.b32.xlu0 %v5963, 21
    %v6049 = vpop.permute.xlu0 %6048
    %6050 = vrot.lane.b32.xlu0 %v5962, 21
    %v6051 = vpop.permute.xlu0 %6050
    %v6096 = vrot.slane %v96, 3
    %v6097 = vrot.slane %v97, 3
    %v6098 = vsel %vm972, %v6096, %v6097
    %v6099 = vrot.slane %v98, 3
    %v6100 = vsel %vm972, %v6097, %v6099
    %v6101 = vrot.slane %v156, 3
    %v6102 = vrot.slane %v157, 3
    %v6103 = vsel %vm972, %v6101, %v6102
    %v6104 = vrot.slane %v158, 3
    %v6105 = vsel %vm972, %v6102, %v6104
    %6106 = vrot.lane.b32.xlu0 %v996, 24
    %v6107 = vpop.permute.xlu0 %6106
    %6108 = vrot.lane.b32.xlu0 %v1001, 24
    %v6109 = vpop.permute.xlu0 %6108
    %6110 = vrot.lane.b32.xlu0 %v1006, 24
    %v6111 = vpop.permute.xlu0 %6110
    %6112 = vrot.lane.b32.xlu0 %v1011, 24
    %v6113 = vpop.permute.xlu0 %6112
    %6114 = vrot.lane.b32.xlu0 %v1016, 24
    %v6115 = vpop.permute.xlu0 %6114
    %6116 = vrot.lane.b32.xlu0 %v1021, 24
    %v6117 = vpop.permute.xlu0 %6116
    %6118 = vrot.lane.b32.xlu0 %v1026, 24
    %v6119 = vpop.permute.xlu0 %6118
    %6120 = vrot.lane.b32.xlu0 %v1031, 24
    %v6121 = vpop.permute.xlu0 %6120
    %6122 = vrot.lane.b32.xlu0 %v1036, 24
    %v6123 = vpop.permute.xlu0 %6122
    %6124 = vrot.lane.b32.xlu0 %v1041, 24
    %v6125 = vpop.permute.xlu0 %6124
    %6126 = vrot.lane.b32.xlu0 %v1046, 24
    %v6127 = vpop.permute.xlu0 %6126
    %6128 = vrot.lane.b32.xlu0 %v1051, 24
    %v6129 = vpop.permute.xlu0 %6128
    %6130 = vrot.lane.b32.xlu0 %v2283, 24
    %v6131 = vpop.permute.xlu0 %6130
    %6132 = vrot.lane.b32.xlu0 %v3288, 24
    %v6133 = vpop.permute.xlu0 %6132
    %6134 = vrot.lane.b32.xlu0 %v3290, 24
    %v6135 = vpop.permute.xlu0 %6134
    %6136 = vrot.lane.b32.xlu0 %v3289, 24
    %v6137 = vpop.permute.xlu0 %6136
    %6138 = vrot.lane.b32.xlu0 %v5149, 24
    %v6139 = vpop.permute.xlu0 %6138
    %6140 = vrot.lane.b32.xlu0 %v5151, 24
    %v6141 = vpop.permute.xlu0 %6140
    %6142 = vrot.lane.b32.xlu0 %v5150, 24
    %v6143 = vpop.permute.xlu0 %6142
    %6144 = vrot.lane.b32.xlu0 %v6098, 24
    %v6145 = vpop.permute.xlu0 %6144
    %6146 = vrot.lane.b32.xlu0 %v6100, 24
    %v6147 = vpop.permute.xlu0 %6146
    %6148 = vrot.lane.b32.xlu0 %v6099, 24
    %v6149 = vpop.permute.xlu0 %6148
    %6150 = vrot.lane.b32.xlu0 %v1076, 24
    %v6151 = vpop.permute.xlu0 %6150
    %6152 = vrot.lane.b32.xlu0 %v1081, 24
    %v6153 = vpop.permute.xlu0 %6152
    %6154 = vrot.lane.b32.xlu0 %v1086, 24
    %v6155 = vpop.permute.xlu0 %6154
    %6156 = vrot.lane.b32.xlu0 %v1091, 24
    %v6157 = vpop.permute.xlu0 %6156
    %6158 = vrot.lane.b32.xlu0 %v1096, 24
    %v6159 = vpop.permute.xlu0 %6158
    %6160 = vrot.lane.b32.xlu0 %v1101, 24
    %v6161 = vpop.permute.xlu0 %6160
    %6162 = vrot.lane.b32.xlu0 %v1106, 24
    %v6163 = vpop.permute.xlu0 %6162
    %6164 = vrot.lane.b32.xlu0 %v1111, 24
    %v6165 = vpop.permute.xlu0 %6164
    %6166 = vrot.lane.b32.xlu0 %v1116, 24
    %v6167 = vpop.permute.xlu0 %6166
    %6168 = vrot.lane.b32.xlu0 %v1121, 24
    %v6169 = vpop.permute.xlu0 %6168
    %6170 = vrot.lane.b32.xlu0 %v1126, 24
    %v6171 = vpop.permute.xlu0 %6170
    %6172 = vrot.lane.b32.xlu0 %v1131, 24
    %v6173 = vpop.permute.xlu0 %6172
    %6174 = vrot.lane.b32.xlu0 %v2288, 24
    %v6175 = vpop.permute.xlu0 %6174
    %6176 = vrot.lane.b32.xlu0 %v3293, 24
    %v6177 = vpop.permute.xlu0 %6176
    %6178 = vrot.lane.b32.xlu0 %v3295, 24
    %v6179 = vpop.permute.xlu0 %6178
    %6180 = vrot.lane.b32.xlu0 %v3294, 24
    %v6181 = vpop.permute.xlu0 %6180
    %6182 = vrot.lane.b32.xlu0 %v5154, 24
    %v6183 = vpop.permute.xlu0 %6182
    %6184 = vrot.lane.b32.xlu0 %v5156, 24
    %v6185 = vpop.permute.xlu0 %6184
    %6186 = vrot.lane.b32.xlu0 %v5155, 24
    %v6187 = vpop.permute.xlu0 %6186
    %6188 = vrot.lane.b32.xlu0 %v6103, 24
    %v6189 = vpop.permute.xlu0 %6188
    %6190 = vrot.lane.b32.xlu0 %v6105, 24
    %v6191 = vpop.permute.xlu0 %6190
    %6192 = vrot.lane.b32.xlu0 %v6104, 24
    %v6193 = vpop.permute.xlu0 %6192
    %v6238 = vsel %vm3886, %v50, %v4874
    %v6239 = vsel %vm3886, %v53, %v4876
    %v6240 = vsel %vm3886, %v56, %v4878
    %v6241 = vsel %vm3886, %v59, %v4880
    %v6242 = vsel %vm3886, %v62, %v4882
    %v6243 = vsel %vm3886, %v65, %v4884
    %v6244 = vsel %vm3886, %v68, %v4886
    %v6245 = vsel %vm3886, %v71, %v4888
    %v6246 = vsel %vm3886, %v74, %v4890
    %v6247 = vsel %vm3886, %v77, %v4892
    %v6248 = vsel %vm3886, %v80, %v4894
    %v6249 = vsel %vm3886, %v83, %v4896
    %v6250 = vsel %vm3886, %v86, %v4898
    %v6251 = vsel %vm3886, %v87, %v4900
    %v6252 = vsel %vm3886, %v88, %v4902
    %v6253 = vsel %vm3886, %v89, %v4904
    %v6254 = vsel %vm3886, %v90, %v4906
    %v6255 = vsel %vm3886, %v91, %v4908
    %v6256 = vsel %vm3886, %v92, %v4910
    %v6257 = vsel %vm3886, %v93, %v4912
    %v6258 = vsel %vm3886, %v94, %v4914
    %v6259 = vsel %vm3886, %v95, %v4916
    %v6260 = vsel %vm3886, %v110, %v4918
    %v6261 = vsel %vm3886, %v113, %v4920
    %v6262 = vsel %vm3886, %v116, %v4922
    %v6263 = vsel %vm3886, %v119, %v4924
    %v6264 = vsel %vm3886, %v122, %v4926
    %v6265 = vsel %vm3886, %v125, %v4928
    %v6266 = vsel %vm3886, %v128, %v4930
    %v6267 = vsel %vm3886, %v131, %v4932
    %v6268 = vsel %vm3886, %v134, %v4934
    %v6269 = vsel %vm3886, %v137, %v4936
    %v6270 = vsel %vm3886, %v140, %v4938
    %v6271 = vsel %vm3886, %v143, %v4940
    %v6272 = vsel %vm3886, %v146, %v4942
    %v6273 = vsel %vm3886, %v147, %v4944
    %v6274 = vsel %vm3886, %v148, %v4946
    %v6275 = vsel %vm3886, %v149, %v4948
    %v6276 = vsel %vm3886, %v150, %v4950
    %v6277 = vsel %vm3886, %v151, %v4952
    %v6278 = vsel %vm3886, %v152, %v4954
    %v6279 = vsel %vm3886, %v153, %v4956
    %v6280 = vsel %vm3886, %v154, %v4958
    %v6281 = vsel %vm3886, %v155, %v4960
    %v6282 = vsel %vm3951, %v6238, %v5016
    %v6283 = vsel %vm3951, %v6239, %v5018
    %v6284 = vsel %vm3951, %v6240, %v5020
    %v6285 = vsel %vm3951, %v6241, %v5022
    %v6286 = vsel %vm3951, %v6242, %v5024
    %v6287 = vsel %vm3951, %v6243, %v5026
    %v6288 = vsel %vm3951, %v6244, %v5028
    %v6289 = vsel %vm3951, %v6245, %v5030
    %v6290 = vsel %vm3951, %v6246, %v5032
    %v6291 = vsel %vm3951, %v6247, %v5034
    %v6292 = vsel %vm3951, %v6248, %v5036
    %v6293 = vsel %vm3951, %v6249, %v5038
    %v6294 = vsel %vm3951, %v6250, %v5040
    %v6295 = vsel %vm3951, %v6251, %v5042
    %v6296 = vsel %vm3951, %v6252, %v5044
    %v6297 = vsel %vm3951, %v6253, %v5046
    %v6298 = vsel %vm3951, %v6254, %v5048
    %v6299 = vsel %vm3951, %v6255, %v5050
    %v6300 = vsel %vm3951, %v6256, %v5052
    %v6301 = vsel %vm3951, %v6257, %v5054
    %v6302 = vsel %vm3951, %v6258, %v5056
    %v6303 = vsel %vm3951, %v6259, %v5058
    %v6304 = vsel %vm3951, %v6260, %v5060
    %v6305 = vsel %vm3951, %v6261, %v5062
    %v6306 = vsel %vm3951, %v6262, %v5064
    %v6307 = vsel %vm3951, %v6263, %v5066
    %v6308 = vsel %vm3951, %v6264, %v5068
    %v6309 = vsel %vm3951, %v6265, %v5070
    %v6310 = vsel %vm3951, %v6266, %v5072
    %v6311 = vsel %vm3951, %v6267, %v5074
    %v6312 = vsel %vm3951, %v6268, %v5076
    %v6313 = vsel %vm3951, %v6269, %v5078
    %v6314 = vsel %vm3951, %v6270, %v5080
    %v6315 = vsel %vm3951, %v6271, %v5082
    %v6316 = vsel %vm3951, %v6272, %v5084
    %v6317 = vsel %vm3951, %v6273, %v5086
    %v6318 = vsel %vm3951, %v6274, %v5088
    %v6319 = vsel %vm3951, %v6275, %v5090
    %v6320 = vsel %vm3951, %v6276, %v5092
    %v6321 = vsel %vm3951, %v6277, %v5094
    %v6322 = vsel %vm3951, %v6278, %v5096
    %v6323 = vsel %vm3951, %v6279, %v5098
    %v6324 = vsel %vm3951, %v6280, %v5100
    %v6325 = vsel %vm3951, %v6281, %v5102
    %v6326 = vsel %vm4016, %v6282, %v5158
    %v6327 = vsel %vm4016, %v6283, %v5160
    %v6328 = vsel %vm4016, %v6284, %v5162
    %v6329 = vsel %vm4016, %v6285, %v5164
    %v6330 = vsel %vm4016, %v6286, %v5166
    %v6331 = vsel %vm4016, %v6287, %v5168
    %v6332 = vsel %vm4016, %v6288, %v5170
    %v6333 = vsel %vm4016, %v6289, %v5172
    %v6334 = vsel %vm4016, %v6290, %v5174
    %v6335 = vsel %vm4016, %v6291, %v5176
    %v6336 = vsel %vm4016, %v6292, %v5178
    %v6337 = vsel %vm4016, %v6293, %v5180
    %v6338 = vsel %vm4016, %v6294, %v5182
    %v6339 = vsel %vm4016, %v6295, %v5184
    %v6340 = vsel %vm4016, %v6296, %v5186
    %v6341 = vsel %vm4016, %v6297, %v5188
    %v6342 = vsel %vm4016, %v6298, %v5190
    %v6343 = vsel %vm4016, %v6299, %v5192
    %v6344 = vsel %vm4016, %v6300, %v5194
    %v6345 = vsel %vm4016, %v6301, %v5196
    %v6346 = vsel %vm4016, %v6302, %v5198
    %v6347 = vsel %vm4016, %v6303, %v5200
    %v6348 = vsel %vm4016, %v6304, %v5202
    %v6349 = vsel %vm4016, %v6305, %v5204
    %v6350 = vsel %vm4016, %v6306, %v5206
    %v6351 = vsel %vm4016, %v6307, %v5208
    %v6352 = vsel %vm4016, %v6308, %v5210
    %v6353 = vsel %vm4016, %v6309, %v5212
    %v6354 = vsel %vm4016, %v6310, %v5214
    %v6355 = vsel %vm4016, %v6311, %v5216
    %v6356 = vsel %vm4016, %v6312, %v5218
    %v6357 = vsel %vm4016, %v6313, %v5220
    %v6358 = vsel %vm4016, %v6314, %v5222
    %v6359 = vsel %vm4016, %v6315, %v5224
    %v6360 = vsel %vm4016, %v6316, %v5226
    %v6361 = vsel %vm4016, %v6317, %v5228
    %v6362 = vsel %vm4016, %v6318, %v5230
    %v6363 = vsel %vm4016, %v6319, %v5232
    %v6364 = vsel %vm4016, %v6320, %v5234
    %v6365 = vsel %vm4016, %v6321, %v5236
    %v6366 = vsel %vm4016, %v6322, %v5238
    %v6367 = vsel %vm4016, %v6323, %v5240
    %v6368 = vsel %vm4016, %v6324, %v5242
    %v6369 = vsel %vm4016, %v6325, %v5244
    %v6370 = vsel %vm4081, %v4023, %v5391
    %v6371 = vsel %vm4081, %v4024, %v5393
    %v6372 = vsel %vm4081, %v6326, %v5395
    %v6373 = vsel %vm4081, %v4025, %v5397
    %v6374 = vsel %vm4081, %v4026, %v5399
    %v6375 = vsel %vm4081, %v6327, %v5401
    %v6376 = vsel %vm4081, %v4027, %v5403
    %v6377 = vsel %vm4081, %v4028, %v5405
    %v6378 = vsel %vm4081, %v6328, %v5407
    %v6379 = vsel %vm4081, %v4029, %v5409
    %v6380 = vsel %vm4081, %v4030, %v5411
    %v6381 = vsel %vm4081, %v6329, %v5413
    %v6382 = vsel %vm4081, %v4031, %v5415
    %v6383 = vsel %vm4081, %v4032, %v5417
    %v6384 = vsel %vm4081, %v6330, %v5419
    %v6385 = vsel %vm4081, %v4033, %v5421
    %v6386 = vsel %vm4081, %v4034, %v5423
    %v6387 = vsel %vm4081, %v6331, %v5425
    %v6388 = vsel %vm4081, %v4035, %v5427
    %v6389 = vsel %vm4081, %v4036, %v5429
    %v6390 = vsel %vm4081, %v6332, %v5431
    %v6391 = vsel %vm4081, %v4037, %v5433
    %v6392 = vsel %vm4081, %v4038, %v5435
    %v6393 = vsel %vm4081, %v6333, %v5437
    %v6394 = vsel %vm4081, %v4039, %v5439
    %v6395 = vsel %vm4081, %v4040, %v5441
    %v6396 = vsel %vm4081, %v6334, %v5443
    %v6397 = vsel %vm4081, %v4041, %v5445
    %v6398 = vsel %vm4081, %v4042, %v5447
    %v6399 = vsel %vm4081, %v6335, %v5449
    %v6400 = vsel %vm4081, %v4043, %v5451
    %v6401 = vsel %vm4081, %v4044, %v5453
    %v6402 = vsel %vm4081, %v6336, %v5455
    %v6403 = vsel %vm4081, %v4045, %v5457
    %v6404 = vsel %vm4081, %v4046, %v5459
    %v6405 = vsel %vm4081, %v6337, %v5461
    %v6406 = vsel %vm4081, %v4047, %v5463
    %v6407 = vsel %vm4081, %v4048, %v5465
    %v6408 = vsel %vm4081, %v6338, %v5467
    %v6409 = vsel %vm4081, %v6339, %v5469
    %v6410 = vsel %vm4081, %v6340, %v5471
    %v6411 = vsel %vm4081, %v6341, %v5473
    %v6412 = vsel %vm4081, %v6342, %v5475
    %v6413 = vsel %vm4081, %v6343, %v5477
    %v6414 = vsel %vm4081, %v6344, %v5479
    %v6415 = vsel %vm4081, %v6345, %v5481
    %v6416 = vsel %vm4081, %v6346, %v5483
    %v6417 = vsel %vm4081, %v6347, %v5485
    %v6418 = vsel %vm4081, %v4055, %v5487
    %v6419 = vsel %vm4081, %v4056, %v5489
    %v6420 = vsel %vm4081, %v6348, %v5491
    %v6421 = vsel %vm4081, %v4057, %v5493
    %v6422 = vsel %vm4081, %v4058, %v5495
    %v6423 = vsel %vm4081, %v6349, %v5497
    %v6424 = vsel %vm4081, %v4059, %v5499
    %v6425 = vsel %vm4081, %v4060, %v5501
    %v6426 = vsel %vm4081, %v6350, %v5503
    %v6427 = vsel %vm4081, %v4061, %v5505
    %v6428 = vsel %vm4081, %v4062, %v5507
    %v6429 = vsel %vm4081, %v6351, %v5509
    %v6430 = vsel %vm4081, %v4063, %v5511
    %v6431 = vsel %vm4081, %v4064, %v5513
    %v6432 = vsel %vm4081, %v6352, %v5515
    %v6433 = vsel %vm4081, %v4065, %v5517
    %v6434 = vsel %vm4081, %v4066, %v5519
    %v6435 = vsel %vm4081, %v6353, %v5521
    %v6436 = vsel %vm4081, %v4067, %v5523
    %v6437 = vsel %vm4081, %v4068, %v5525
    %v6438 = vsel %vm4081, %v6354, %v5527
    %v6439 = vsel %vm4081, %v4069, %v5529
    %v6440 = vsel %vm4081, %v4070, %v5531
    %v6441 = vsel %vm4081, %v6355, %v5533
    %v6442 = vsel %vm4081, %v4071, %v5535
    %v6443 = vsel %vm4081, %v4072, %v5537
    %v6444 = vsel %vm4081, %v6356, %v5539
    %v6445 = vsel %vm4081, %v4073, %v5541
    %v6446 = vsel %vm4081, %v4074, %v5543
    %v6447 = vsel %vm4081, %v6357, %v5545
    %v6448 = vsel %vm4081, %v4075, %v5547
    %v6449 = vsel %vm4081, %v4076, %v5549
    %v6450 = vsel %vm4081, %v6358, %v5551
    %v6451 = vsel %vm4081, %v4077, %v5553
    %v6452 = vsel %vm4081, %v4078, %v5555
    %v6453 = vsel %vm4081, %v6359, %v5557
    %v6454 = vsel %vm4081, %v4079, %v5559
    %v6455 = vsel %vm4081, %v4080, %v5561
    %v6456 = vsel %vm4081, %v6360, %v5563
    %v6457 = vsel %vm4081, %v6361, %v5565
    %v6458 = vsel %vm4081, %v6362, %v5567
    %v6459 = vsel %vm4081, %v6363, %v5569
    %v6460 = vsel %vm4081, %v6364, %v5571
    %v6461 = vsel %vm4081, %v6365, %v5573
    %v6462 = vsel %vm4081, %v6366, %v5575
    %v6463 = vsel %vm4081, %v6367, %v5577
    %v6464 = vsel %vm4081, %v6368, %v5579
    %v6465 = vsel %vm4081, %v6369, %v5581
    %v6466 = vsel %vm4146, %v6370, %v1695
    %v6467 = vsel %vm4146, %v6371, %v1697
    %v6468 = vsel %vm4146, %v6372, %v5681
    %v6469 = vsel %vm4146, %v6373, %v1699
    %v6470 = vsel %vm4146, %v6374, %v1701
    %v6471 = vsel %vm4146, %v6375, %v5683
    %v6472 = vsel %vm4146, %v6376, %v1703
    %v6473 = vsel %vm4146, %v6377, %v1705
    %v6474 = vsel %vm4146, %v6378, %v5685
    %v6475 = vsel %vm4146, %v6379, %v1707
    %v6476 = vsel %vm4146, %v6380, %v1709
    %v6477 = vsel %vm4146, %v6381, %v5687
    %v6478 = vsel %vm4146, %v6382, %v1711
    %v6479 = vsel %vm4146, %v6383, %v1713
    %v6480 = vsel %vm4146, %v6384, %v5689
    %v6481 = vsel %vm4146, %v6385, %v1715
    %v6482 = vsel %vm4146, %v6386, %v1717
    %v6483 = vsel %vm4146, %v6387, %v5691
    %v6484 = vsel %vm4146, %v6388, %v1719
    %v6485 = vsel %vm4146, %v6389, %v1721
    %v6486 = vsel %vm4146, %v6390, %v5693
    %v6487 = vsel %vm4146, %v6391, %v1723
    %v6488 = vsel %vm4146, %v6392, %v1725
    %v6489 = vsel %vm4146, %v6393, %v5695
    %v6490 = vsel %vm4146, %v6394, %v1727
    %v6491 = vsel %vm4146, %v6395, %v1729
    %v6492 = vsel %vm4146, %v6396, %v5697
    %v6493 = vsel %vm4146, %v6397, %v1731
    %v6494 = vsel %vm4146, %v6398, %v1733
    %v6495 = vsel %vm4146, %v6399, %v5699
    %v6496 = vsel %vm4146, %v6400, %v1735
    %v6497 = vsel %vm4146, %v6401, %v1737
    %v6498 = vsel %vm4146, %v6402, %v5701
    %v6499 = vsel %vm4146, %v6403, %v1739
    %v6500 = vsel %vm4146, %v6404, %v1741
    %v6501 = vsel %vm4146, %v6405, %v5703
    %v6502 = vsel %vm4146, %v6406, %v1743
    %v6503 = vsel %vm4146, %v6407, %v1745
    %v6504 = vsel %vm4146, %v6408, %v5705
    %v6505 = vsel %vm4146, %v6409, %v5707
    %v6506 = vsel %vm4146, %v6410, %v5709
    %v6507 = vsel %vm4146, %v6411, %v5711
    %v6508 = vsel %vm4146, %v6412, %v5713
    %v6509 = vsel %vm4146, %v6413, %v5715
    %v6510 = vsel %vm4146, %v6414, %v5717
    %v6511 = vsel %vm4146, %v6415, %v5719
    %v6512 = vsel %vm4146, %v6416, %v5721
    %v6513 = vsel %vm4146, %v6417, %v5723
    %v6514 = vsel %vm4146, %v6418, %v1759
    %v6515 = vsel %vm4146, %v6419, %v1761
    %v6516 = vsel %vm4146, %v6420, %v5725
    %v6517 = vsel %vm4146, %v6421, %v1763
    %v6518 = vsel %vm4146, %v6422, %v1765
    %v6519 = vsel %vm4146, %v6423, %v5727
    %v6520 = vsel %vm4146, %v6424, %v1767
    %v6521 = vsel %vm4146, %v6425, %v1769
    %v6522 = vsel %vm4146, %v6426, %v5729
    %v6523 = vsel %vm4146, %v6427, %v1771
    %v6524 = vsel %vm4146, %v6428, %v1773
    %v6525 = vsel %vm4146, %v6429, %v5731
    %v6526 = vsel %vm4146, %v6430, %v1775
    %v6527 = vsel %vm4146, %v6431, %v1777
    %v6528 = vsel %vm4146, %v6432, %v5733
    %v6529 = vsel %vm4146, %v6433, %v1779
    %v6530 = vsel %vm4146, %v6434, %v1781
    %v6531 = vsel %vm4146, %v6435, %v5735
    %v6532 = vsel %vm4146, %v6436, %v1783
    %v6533 = vsel %vm4146, %v6437, %v1785
    %v6534 = vsel %vm4146, %v6438, %v5737
    %v6535 = vsel %vm4146, %v6439, %v1787
    %v6536 = vsel %vm4146, %v6440, %v1789
    %v6537 = vsel %vm4146, %v6441, %v5739
    %v6538 = vsel %vm4146, %v6442, %v1791
    %v6539 = vsel %vm4146, %v6443, %v1793
    %v6540 = vsel %vm4146, %v6444, %v5741
    %v6541 = vsel %vm4146, %v6445, %v1795
    %v6542 = vsel %vm4146, %v6446, %v1797
    %v6543 = vsel %vm4146, %v6447, %v5743
    %v6544 = vsel %vm4146, %v6448, %v1799
    %v6545 = vsel %vm4146, %v6449, %v1801
    %v6546 = vsel %vm4146, %v6450, %v5745
    %v6547 = vsel %vm4146, %v6451, %v1803
    %v6548 = vsel %vm4146, %v6452, %v1805
    %v6549 = vsel %vm4146, %v6453, %v5747
    %v6550 = vsel %vm4146, %v6454, %v1807
    %v6551 = vsel %vm4146, %v6455, %v1809
    %v6552 = vsel %vm4146, %v6456, %v5749
    %v6553 = vsel %vm4146, %v6457, %v5751
    %v6554 = vsel %vm4146, %v6458, %v5753
    %v6555 = vsel %vm4146, %v6459, %v5755
    %v6556 = vsel %vm4146, %v6460, %v5757
    %v6557 = vsel %vm4146, %v6461, %v5759
    %v6558 = vsel %vm4146, %v6462, %v5761
    %v6559 = vsel %vm4146, %v6463, %v5763
    %v6560 = vsel %vm4146, %v6464, %v5765
    %v6561 = vsel %vm4146, %v6465, %v5767
    %v6562 = vsel %vm4211, %v6466, %v1899
    %v6563 = vsel %vm4211, %v6467, %v1901
    %v6564 = vsel %vm4211, %v6468, %v5823
    %v6565 = vsel %vm4211, %v6469, %v1903
    %v6566 = vsel %vm4211, %v6470, %v1905
    %v6567 = vsel %vm4211, %v6471, %v5825
    %v6568 = vsel %vm4211, %v6472, %v1907
    %v6569 = vsel %vm4211, %v6473, %v1909
    %v6570 = vsel %vm4211, %v6474, %v5827
    %v6571 = vsel %vm4211, %v6475, %v1911
    %v6572 = vsel %vm4211, %v6476, %v1913
    %v6573 = vsel %vm4211, %v6477, %v5829
    %v6574 = vsel %vm4211, %v6478, %v1915
    %v6575 = vsel %vm4211, %v6479, %v1917
    %v6576 = vsel %vm4211, %v6480, %v5831
    %v6577 = vsel %vm4211, %v6481, %v1919
    %v6578 = vsel %vm4211, %v6482, %v1921
    %v6579 = vsel %vm4211, %v6483, %v5833
    %v6580 = vsel %vm4211, %v6484, %v1923
    %v6581 = vsel %vm4211, %v6485, %v1925
    %v6582 = vsel %vm4211, %v6486, %v5835
    %v6583 = vsel %vm4211, %v6487, %v1927
    %v6584 = vsel %vm4211, %v6488, %v1929
    %v6585 = vsel %vm4211, %v6489, %v5837
    %v6586 = vsel %vm4211, %v6490, %v1931
    %v6587 = vsel %vm4211, %v6491, %v1933
    %v6588 = vsel %vm4211, %v6492, %v5839
    %v6589 = vsel %vm4211, %v6493, %v1935
    %v6590 = vsel %vm4211, %v6494, %v1937
    %v6591 = vsel %vm4211, %v6495, %v5841
    %v6592 = vsel %vm4211, %v6496, %v1939
    %v6593 = vsel %vm4211, %v6497, %v1941
    %v6594 = vsel %vm4211, %v6498, %v5843
    %v6595 = vsel %vm4211, %v6499, %v1943
    %v6596 = vsel %vm4211, %v6500, %v1945
    %v6597 = vsel %vm4211, %v6501, %v5845
    %v6598 = vsel %vm4211, %v6502, %v1947
    %v6599 = vsel %vm4211, %v6503, %v1949
    %v6600 = vsel %vm4211, %v6504, %v5847
    %v6601 = vsel %vm4211, %v6505, %v5849
    %v6602 = vsel %vm4211, %v6506, %v5851
    %v6603 = vsel %vm4211, %v6507, %v5853
    %v6604 = vsel %vm4211, %v6508, %v5855
    %v6605 = vsel %vm4211, %v6509, %v5857
    %v6606 = vsel %vm4211, %v6510, %v5859
    %v6607 = vsel %vm4211, %v6511, %v5861
    %v6608 = vsel %vm4211, %v6512, %v5863
    %v6609 = vsel %vm4211, %v6513, %v5865
    %v6610 = vsel %vm4211, %v6514, %v1963
    %v6611 = vsel %vm4211, %v6515, %v1965
    %v6612 = vsel %vm4211, %v6516, %v5867
    %v6613 = vsel %vm4211, %v6517, %v1967
    %v6614 = vsel %vm4211, %v6518, %v1969
    %v6615 = vsel %vm4211, %v6519, %v5869
    %v6616 = vsel %vm4211, %v6520, %v1971
    %v6617 = vsel %vm4211, %v6521, %v1973
    %v6618 = vsel %vm4211, %v6522, %v5871
    %v6619 = vsel %vm4211, %v6523, %v1975
    %v6620 = vsel %vm4211, %v6524, %v1977
    %v6621 = vsel %vm4211, %v6525, %v5873
    %v6622 = vsel %vm4211, %v6526, %v1979
    %v6623 = vsel %vm4211, %v6527, %v1981
    %v6624 = vsel %vm4211, %v6528, %v5875
    %v6625 = vsel %vm4211, %v6529, %v1983
    %v6626 = vsel %vm4211, %v6530, %v1985
    %v6627 = vsel %vm4211, %v6531, %v5877
    %v6628 = vsel %vm4211, %v6532, %v1987
    %v6629 = vsel %vm4211, %v6533, %v1989
    %v6630 = vsel %vm4211, %v6534, %v5879
    %v6631 = vsel %vm4211, %v6535, %v1991
    %v6632 = vsel %vm4211, %v6536, %v1993
    %v6633 = vsel %vm4211, %v6537, %v5881
    %v6634 = vsel %vm4211, %v6538, %v1995
    %v6635 = vsel %vm4211, %v6539, %v1997
    %v6636 = vsel %vm4211, %v6540, %v5883
    %v6637 = vsel %vm4211, %v6541, %v1999
    %v6638 = vsel %vm4211, %v6542, %v2001
    %v6639 = vsel %vm4211, %v6543, %v5885
    %v6640 = vsel %vm4211, %v6544, %v2003
    %v6641 = vsel %vm4211, %v6545, %v2005
    %v6642 = vsel %vm4211, %v6546, %v5887
    %v6643 = vsel %vm4211, %v6547, %v2007
    %v6644 = vsel %vm4211, %v6548, %v2009
    %v6645 = vsel %vm4211, %v6549, %v5889
    %v6646 = vsel %vm4211, %v6550, %v2011
    %v6647 = vsel %vm4211, %v6551, %v2013
    %v6648 = vsel %vm4211, %v6552, %v5891
    %v6649 = vsel %vm4211, %v6553, %v5893
    %v6650 = vsel %vm4211, %v6554, %v5895
    %v6651 = vsel %vm4211, %v6555, %v5897
    %v6652 = vsel %vm4211, %v6556, %v5899
    %v6653 = vsel %vm4211, %v6557, %v5901
    %v6654 = vsel %vm4211, %v6558, %v5903
    %v6655 = vsel %vm4211, %v6559, %v5905
    %v6656 = vsel %vm4211, %v6560, %v5907
    %v6657 = vsel %vm4211, %v6561, %v5909
    %v6658 = vsel %vm4276, %v6562, %v2101
    %v6659 = vsel %vm4276, %v6563, %v2103
    %v6660 = vsel %vm4276, %v6564, %v5965
    %v6661 = vsel %vm4276, %v6565, %v2105
    %v6662 = vsel %vm4276, %v6566, %v2107
    %v6663 = vsel %vm4276, %v6567, %v5967
    %v6664 = vsel %vm4276, %v6568, %v2109
    %v6665 = vsel %vm4276, %v6569, %v2111
    %v6666 = vsel %vm4276, %v6570, %v5969
    %v6667 = vsel %vm4276, %v6571, %v2113
    %v6668 = vsel %vm4276, %v6572, %v2115
    %v6669 = vsel %vm4276, %v6573, %v5971
    %v6670 = vsel %vm4276, %v6574, %v2117
    %v6671 = vsel %vm4276, %v6575, %v2119
    %v6672 = vsel %vm4276, %v6576, %v5973
    %v6673 = vsel %vm4276, %v6577, %v2121
    %v6674 = vsel %vm4276, %v6578, %v2123
    %v6675 = vsel %vm4276, %v6579, %v5975
    %v6676 = vsel %vm4276, %v6580, %v2125
    %v6677 = vsel %vm4276, %v6581, %v2127
    %v6678 = vsel %vm4276, %v6582, %v5977
    %v6679 = vsel %vm4276, %v6583, %v2129
    %v6680 = vsel %vm4276, %v6584, %v2131
    %v6681 = vsel %vm4276, %v6585, %v5979
    %v6682 = vsel %vm4276, %v6586, %v2133
    %v6683 = vsel %vm4276, %v6587, %v2135
    %v6684 = vsel %vm4276, %v6588, %v5981
    %v6685 = vsel %vm4276, %v6589, %v2137
    %v6686 = vsel %vm4276, %v6590, %v2139
    %v6687 = vsel %vm4276, %v6591, %v5983
    %v6688 = vsel %vm4276, %v6592, %v2141
    %v6689 = vsel %vm4276, %v6593, %v2143
    %v6690 = vsel %vm4276, %v6594, %v5985
    %v6691 = vsel %vm4276, %v6595, %v2145
    %v6692 = vsel %vm4276, %v6596, %v2147
    %v6693 = vsel %vm4276, %v6597, %v5987
    %v6694 = vsel %vm4276, %v6598, %v2149
    %v6695 = vsel %vm4276, %v6599, %v2151
    %v6696 = vsel %vm4276, %v6600, %v5989
    %v6697 = vsel %vm4276, %v6601, %v5991
    %v6698 = vsel %vm4276, %v6602, %v5993
    %v6699 = vsel %vm4276, %v6603, %v5995
    %v6700 = vsel %vm4276, %v6604, %v5997
    %v6701 = vsel %vm4276, %v6605, %v5999
    %v6702 = vsel %vm4276, %v6606, %v6001
    %v6703 = vsel %vm4276, %v6607, %v6003
    %v6704 = vsel %vm4276, %v6608, %v6005
    %v6705 = vsel %vm4276, %v6609, %v6007
    %v6706 = vsel %vm4276, %v6610, %v2165
    %v6707 = vsel %vm4276, %v6611, %v2167
    %v6708 = vsel %vm4276, %v6612, %v6009
    %v6709 = vsel %vm4276, %v6613, %v2169
    %v6710 = vsel %vm4276, %v6614, %v2171
    %v6711 = vsel %vm4276, %v6615, %v6011
    %v6712 = vsel %vm4276, %v6616, %v2173
    %v6713 = vsel %vm4276, %v6617, %v2175
    %v6714 = vsel %vm4276, %v6618, %v6013
    %v6715 = vsel %vm4276, %v6619, %v2177
    %v6716 = vsel %vm4276, %v6620, %v2179
    %v6717 = vsel %vm4276, %v6621, %v6015
    %v6718 = vsel %vm4276, %v6622, %v2181
    %v6719 = vsel %vm4276, %v6623, %v2183
    %v6720 = vsel %vm4276, %v6624, %v6017
    %v6721 = vsel %vm4276, %v6625, %v2185
    %v6722 = vsel %vm4276, %v6626, %v2187
    %v6723 = vsel %vm4276, %v6627, %v6019
    %v6724 = vsel %vm4276, %v6628, %v2189
    %v6725 = vsel %vm4276, %v6629, %v2191
    %v6726 = vsel %vm4276, %v6630, %v6021
    %v6727 = vsel %vm4276, %v6631, %v2193
    %v6728 = vsel %vm4276, %v6632, %v2195
    %v6729 = vsel %vm4276, %v6633, %v6023
    %v6730 = vsel %vm4276, %v6634, %v2197
    %v6731 = vsel %vm4276, %v6635, %v2199
    %v6732 = vsel %vm4276, %v6636, %v6025
    %v6733 = vsel %vm4276, %v6637, %v2201
    %v6734 = vsel %vm4276, %v6638, %v2203
    %v6735 = vsel %vm4276, %v6639, %v6027
    %v6736 = vsel %vm4276, %v6640, %v2205
    %v6737 = vsel %vm4276, %v6641, %v2207
    %v6738 = vsel %vm4276, %v6642, %v6029
    %v6739 = vsel %vm4276, %v6643, %v2209
    %v6740 = vsel %vm4276, %v6644, %v2211
    %v6741 = vsel %vm4276, %v6645, %v6031
    %v6742 = vsel %vm4276, %v6646, %v2213
    %v6743 = vsel %vm4276, %v6647, %v2215
    %v6744 = vsel %vm4276, %v6648, %v6033
    %v6745 = vsel %vm4276, %v6649, %v6035
    %v6746 = vsel %vm4276, %v6650, %v6037
    %v6747 = vsel %vm4276, %v6651, %v6039
    %v6748 = vsel %vm4276, %v6652, %v6041
    %v6749 = vsel %vm4276, %v6653, %v6043
    %v6750 = vsel %vm4276, %v6654, %v6045
    %v6751 = vsel %vm4276, %v6655, %v6047
    %v6752 = vsel %vm4276, %v6656, %v6049
    %v6753 = vsel %vm4276, %v6657, %v6051
    %v6754 = vsel %vm4341, %v6658, %v2303
    %v6755 = vsel %vm4341, %v6659, %v2305
    %v6756 = vsel %vm4341, %v6660, %v6107
    %v6757 = vsel %vm4341, %v6661, %v2307
    %v6758 = vsel %vm4341, %v6662, %v2309
    %v6759 = vsel %vm4341, %v6663, %v6109
    %v6760 = vsel %vm4341, %v6664, %v2311
    %v6761 = vsel %vm4341, %v6665, %v2313
    %v6762 = vsel %vm4341, %v6666, %v6111
    %v6763 = vsel %vm4341, %v6667, %v2315
    %v6764 = vsel %vm4341, %v6668, %v2317
    %v6765 = vsel %vm4341, %v6669, %v6113
    %v6766 = vsel %vm4341, %v6670, %v2319
    %v6767 = vsel %vm4341, %v6671, %v2321
    %v6768 = vsel %vm4341, %v6672, %v6115
    %v6769 = vsel %vm4341, %v6673, %v2323
    %v6770 = vsel %vm4341, %v6674, %v2325
    %v6771 = vsel %vm4341, %v6675, %v6117
    %v6772 = vsel %vm4341, %v6676, %v2327
    %v6773 = vsel %vm4341, %v6677, %v2329
    %v6774 = vsel %vm4341, %v6678, %v6119
    %v6775 = vsel %vm4341, %v6679, %v2331
    %v6776 = vsel %vm4341, %v6680, %v2333
    %v6777 = vsel %vm4341, %v6681, %v6121
    %v6778 = vsel %vm4341, %v6682, %v2335
    %v6779 = vsel %vm4341, %v6683, %v2337
    %v6780 = vsel %vm4341, %v6684, %v6123
    %v6781 = vsel %vm4341, %v6685, %v2339
    %v6782 = vsel %vm4341, %v6686, %v2341
    %v6783 = vsel %vm4341, %v6687, %v6125
    %v6784 = vsel %vm4341, %v6688, %v2343
    %v6785 = vsel %vm4341, %v6689, %v2345
    %v6786 = vsel %vm4341, %v6690, %v6127
    %v6787 = vsel %vm4341, %v6691, %v2347
    %v6788 = vsel %vm4341, %v6692, %v2349
    %v6789 = vsel %vm4341, %v6693, %v6129
    %v6790 = vsel %vm4341, %v6694, %v2351
    %v6791 = vsel %vm4341, %v6695, %v2353
    %v6792 = vsel %vm4341, %v6696, %v6131
    %v6793 = vsel %vm4341, %v6697, %v6133
    %v6794 = vsel %vm4341, %v6698, %v6135
    %v6795 = vsel %vm4341, %v6699, %v6137
    %v6796 = vsel %vm4341, %v6700, %v6139
    %v6797 = vsel %vm4341, %v6701, %v6141
    %v6798 = vsel %vm4341, %v6702, %v6143
    %v6799 = vsel %vm4341, %v6703, %v6145
    %v6800 = vsel %vm4341, %v6704, %v6147
    %v6801 = vsel %vm4341, %v6705, %v6149
    %v6802 = vsel %vm4341, %v6706, %v2367
    %v6803 = vsel %vm4341, %v6707, %v2369
    %v6804 = vsel %vm4341, %v6708, %v6151
    %v6805 = vsel %vm4341, %v6709, %v2371
    %v6806 = vsel %vm4341, %v6710, %v2373
    %v6807 = vsel %vm4341, %v6711, %v6153
    %v6808 = vsel %vm4341, %v6712, %v2375
    %v6809 = vsel %vm4341, %v6713, %v2377
    %v6810 = vsel %vm4341, %v6714, %v6155
    %v6811 = vsel %vm4341, %v6715, %v2379
    %v6812 = vsel %vm4341, %v6716, %v2381
    %v6813 = vsel %vm4341, %v6717, %v6157
    %v6814 = vsel %vm4341, %v6718, %v2383
    %v6815 = vsel %vm4341, %v6719, %v2385
    %v6816 = vsel %vm4341, %v6720, %v6159
    %v6817 = vsel %vm4341, %v6721, %v2387
    %v6818 = vsel %vm4341, %v6722, %v2389
    %v6819 = vsel %vm4341, %v6723, %v6161
    %v6820 = vsel %vm4341, %v6724, %v2391
    %v6821 = vsel %vm4341, %v6725, %v2393
    %v6822 = vsel %vm4341, %v6726, %v6163
    %v6823 = vsel %vm4341, %v6727, %v2395
    %v6824 = vsel %vm4341, %v6728, %v2397
    %v6825 = vsel %vm4341, %v6729, %v6165
    %v6826 = vsel %vm4341, %v6730, %v2399
    %v6827 = vsel %vm4341, %v6731, %v2401
    %v6828 = vsel %vm4341, %v6732, %v6167
    %v6829 = vsel %vm4341, %v6733, %v2403
    %v6830 = vsel %vm4341, %v6734, %v2405
    %v6831 = vsel %vm4341, %v6735, %v6169
    %v6832 = vsel %vm4341, %v6736, %v2407
    %v6833 = vsel %vm4341, %v6737, %v2409
    %v6834 = vsel %vm4341, %v6738, %v6171
    %v6835 = vsel %vm4341, %v6739, %v2411
    %v6836 = vsel %vm4341, %v6740, %v2413
    %v6837 = vsel %vm4341, %v6741, %v6173
    %v6838 = vsel %vm4341, %v6742, %v2415
    %v6839 = vsel %vm4341, %v6743, %v2417
    %v6840 = vsel %vm4341, %v6744, %v6175
    %v6841 = vsel %vm4341, %v6745, %v6177
    %v6842 = vsel %vm4341, %v6746, %v6179
    %v6843 = vsel %vm4341, %v6747, %v6181
    %v6844 = vsel %vm4341, %v6748, %v6183
    %v6845 = vsel %vm4341, %v6749, %v6185
    %v6846 = vsel %vm4341, %v6750, %v6187
    %v6847 = vsel %vm4341, %v6751, %v6189
    %v6848 = vsel %vm4341, %v6752, %v6191
    %v6849 = vsel %vm4341, %v6753, %v6193
    %v6946 = vrot.slane %v6754, 1
    %v6947 = vrot.slane %v6755, 1
    %v6948 = vsel %vm266, %v6946, %v6947
    %v6949 = vrot.slane %v6756, 1
    %v6950 = vsel %vm266, %v6947, %v6949
    %v6951 = vrot.slane %v6757, 1
    %v6952 = vrot.slane %v6758, 1
    %v6953 = vsel %vm266, %v6951, %v6952
    %v6954 = vrot.slane %v6759, 1
    %v6955 = vsel %vm266, %v6952, %v6954
    %v6956 = vrot.slane %v6760, 1
    %v6957 = vrot.slane %v6761, 1
    %v6958 = vsel %vm266, %v6956, %v6957
    %v6959 = vrot.slane %v6762, 1
    %v6960 = vsel %vm266, %v6957, %v6959
    %v6961 = vrot.slane %v6763, 1
    %v6962 = vrot.slane %v6764, 1
    %v6963 = vsel %vm266, %v6961, %v6962
    %v6964 = vrot.slane %v6765, 1
    %v6965 = vsel %vm266, %v6962, %v6964
    %v6966 = vrot.slane %v6766, 1
    %v6967 = vrot.slane %v6767, 1
    %v6968 = vsel %vm266, %v6966, %v6967
    %v6969 = vrot.slane %v6768, 1
    %v6970 = vsel %vm266, %v6967, %v6969
    %v6971 = vrot.slane %v6769, 1
    %v6972 = vrot.slane %v6770, 1
    %v6973 = vsel %vm266, %v6971, %v6972
    %v6974 = vrot.slane %v6771, 1
    %v6975 = vsel %vm266, %v6972, %v6974
    %v6976 = vrot.slane %v6772, 1
    %v6977 = vrot.slane %v6773, 1
    %v6978 = vsel %vm266, %v6976, %v6977
    %v6979 = vrot.slane %v6774, 1
    %v6980 = vsel %vm266, %v6977, %v6979
    %v6981 = vrot.slane %v6775, 1
    %v6982 = vrot.slane %v6776, 1
    %v6983 = vsel %vm266, %v6981, %v6982
    %v6984 = vrot.slane %v6777, 1
    %v6985 = vsel %vm266, %v6982, %v6984
    %v6986 = vrot.slane %v6778, 1
    %v6987 = vrot.slane %v6779, 1
    %v6988 = vsel %vm266, %v6986, %v6987
    %v6989 = vrot.slane %v6780, 1
    %v6990 = vsel %vm266, %v6987, %v6989
    %v6991 = vrot.slane %v6781, 1
    %v6992 = vrot.slane %v6782, 1
    %v6993 = vsel %vm266, %v6991, %v6992
    %v6994 = vrot.slane %v6783, 1
    %v6995 = vsel %vm266, %v6992, %v6994
    %v6996 = vrot.slane %v6784, 1
    %v6997 = vrot.slane %v6785, 1
    %v6998 = vsel %vm266, %v6996, %v6997
    %v6999 = vrot.slane %v6786, 1
    %v7000 = vsel %vm266, %v6997, %v6999
    %v7001 = vrot.slane %v6787, 1
    %v7002 = vrot.slane %v6788, 1
    %v7003 = vsel %vm266, %v7001, %v7002
    %v7004 = vrot.slane %v6789, 1
    %v7005 = vsel %vm266, %v7002, %v7004
    %v7006 = vrot.slane %v6790, 1
    %v7007 = vrot.slane %v6791, 1
    %v7008 = vsel %vm266, %v7006, %v7007
    %v7009 = vrot.slane %v6792, 1
    %v7010 = vsel %vm266, %v7007, %v7009
    %v7011 = vrot.slane %v6793, 1
    %v7012 = vrot.slane %v6794, 1
    %v7013 = vsel %vm266, %v7011, %v7012
    %v7014 = vrot.slane %v6795, 1
    %v7015 = vsel %vm266, %v7012, %v7014
    %v7016 = vrot.slane %v6796, 1
    %v7017 = vrot.slane %v6797, 1
    %v7018 = vsel %vm266, %v7016, %v7017
    %v7019 = vrot.slane %v6798, 1
    %v7020 = vsel %vm266, %v7017, %v7019
    %v7021 = vrot.slane %v6799, 1
    %v7022 = vrot.slane %v6800, 1
    %v7023 = vsel %vm266, %v7021, %v7022
    %v7024 = vrot.slane %v6801, 1
    %v7025 = vsel %vm266, %v7022, %v7024
    %v7026 = vrot.slane %v6802, 1
    %v7027 = vrot.slane %v6803, 1
    %v7028 = vsel %vm266, %v7026, %v7027
    %v7029 = vrot.slane %v6804, 1
    %v7030 = vsel %vm266, %v7027, %v7029
    %v7031 = vrot.slane %v6805, 1
    %v7032 = vrot.slane %v6806, 1
    %v7033 = vsel %vm266, %v7031, %v7032
    %v7034 = vrot.slane %v6807, 1
    %v7035 = vsel %vm266, %v7032, %v7034
    %v7036 = vrot.slane %v6808, 1
    %v7037 = vrot.slane %v6809, 1
    %v7038 = vsel %vm266, %v7036, %v7037
    %v7039 = vrot.slane %v6810, 1
    %v7040 = vsel %vm266, %v7037, %v7039
    %v7041 = vrot.slane %v6811, 1
    %v7042 = vrot.slane %v6812, 1
    %v7043 = vsel %vm266, %v7041, %v7042
    %v7044 = vrot.slane %v6813, 1
    %v7045 = vsel %vm266, %v7042, %v7044
    %v7046 = vrot.slane %v6814, 1
    %v7047 = vrot.slane %v6815, 1
    %v7048 = vsel %vm266, %v7046, %v7047
    %v7049 = vrot.slane %v6816, 1
    %v7050 = vsel %vm266, %v7047, %v7049
    %v7051 = vrot.slane %v6817, 1
    %v7052 = vrot.slane %v6818, 1
    %v7053 = vsel %vm266, %v7051, %v7052
    %v7054 = vrot.slane %v6819, 1
    %v7055 = vsel %vm266, %v7052, %v7054
    %v7056 = vrot.slane %v6820, 1
    %v7057 = vrot.slane %v6821, 1
    %v7058 = vsel %vm266, %v7056, %v7057
    %v7059 = vrot.slane %v6822, 1
    %v7060 = vsel %vm266, %v7057, %v7059
    %v7061 = vrot.slane %v6823, 1
    %v7062 = vrot.slane %v6824, 1
    %v7063 = vsel %vm266, %v7061, %v7062
    %v7064 = vrot.slane %v6825, 1
    %v7065 = vsel %vm266, %v7062, %v7064
    %v7066 = vrot.slane %v6826, 1
    %v7067 = vrot.slane %v6827, 1
    %v7068 = vsel %vm266, %v7066, %v7067
    %v7069 = vrot.slane %v6828, 1
    %v7070 = vsel %vm266, %v7067, %v7069
    %v7071 = vrot.slane %v6829, 1
    %v7072 = vrot.slane %v6830, 1
    %v7073 = vsel %vm266, %v7071, %v7072
    %v7074 = vrot.slane %v6831, 1
    %v7075 = vsel %vm266, %v7072, %v7074
    %v7076 = vrot.slane %v6832, 1
    %v7077 = vrot.slane %v6833, 1
    %v7078 = vsel %vm266, %v7076, %v7077
    %v7079 = vrot.slane %v6834, 1
    %v7080 = vsel %vm266, %v7077, %v7079
    %v7081 = vrot.slane %v6835, 1
    %v7082 = vrot.slane %v6836, 1
    %v7083 = vsel %vm266, %v7081, %v7082
    %v7084 = vrot.slane %v6837, 1
    %v7085 = vsel %vm266, %v7082, %v7084
    %v7086 = vrot.slane %v6838, 1
    %v7087 = vrot.slane %v6839, 1
    %v7088 = vsel %vm266, %v7086, %v7087
    %v7089 = vrot.slane %v6840, 1
    %v7090 = vsel %vm266, %v7087, %v7089
    %v7091 = vrot.slane %v6841, 1
    %v7092 = vrot.slane %v6842, 1
    %v7093 = vsel %vm266, %v7091, %v7092
    %v7094 = vrot.slane %v6843, 1
    %v7095 = vsel %vm266, %v7092, %v7094
    %v7096 = vrot.slane %v6844, 1
    %v7097 = vrot.slane %v6845, 1
    %v7098 = vsel %vm266, %v7096, %v7097
    %v7099 = vrot.slane %v6846, 1
    %v7100 = vsel %vm266, %v7097, %v7099
    %v7101 = vrot.slane %v6847, 1
    %v7102 = vrot.slane %v6848, 1
    %v7103 = vsel %vm266, %v7101, %v7102
    %v7104 = vrot.slane %v6849, 1
    %v7105 = vsel %vm266, %v7102, %v7104
    %7106 = vrot.lane.b32.xlu0 %v6948, 48
    %v7107 = vpop.permute.xlu0 %7106
    %7108 = vrot.lane.b32.xlu0 %v6950, 48
    %v7109 = vpop.permute.xlu0 %7108
    %7110 = vrot.lane.b32.xlu0 %v6953, 48
    %v7111 = vpop.permute.xlu0 %7110
    %7112 = vrot.lane.b32.xlu0 %v6955, 48
    %v7113 = vpop.permute.xlu0 %7112
    %7114 = vrot.lane.b32.xlu0 %v6958, 48
    %v7115 = vpop.permute.xlu0 %7114
    %7116 = vrot.lane.b32.xlu0 %v6960, 48
    %v7117 = vpop.permute.xlu0 %7116
    %7118 = vrot.lane.b32.xlu0 %v6963, 48
    %v7119 = vpop.permute.xlu0 %7118
    %7120 = vrot.lane.b32.xlu0 %v6965, 48
    %v7121 = vpop.permute.xlu0 %7120
    %7122 = vrot.lane.b32.xlu0 %v6968, 48
    %v7123 = vpop.permute.xlu0 %7122
    %7124 = vrot.lane.b32.xlu0 %v6970, 48
    %v7125 = vpop.permute.xlu0 %7124
    %7126 = vrot.lane.b32.xlu0 %v6973, 48
    %v7127 = vpop.permute.xlu0 %7126
    %7128 = vrot.lane.b32.xlu0 %v6975, 48
    %v7129 = vpop.permute.xlu0 %7128
    %7130 = vrot.lane.b32.xlu0 %v6978, 48
    %v7131 = vpop.permute.xlu0 %7130
    %7132 = vrot.lane.b32.xlu0 %v6980, 48
    %v7133 = vpop.permute.xlu0 %7132
    %7134 = vrot.lane.b32.xlu0 %v6983, 48
    %v7135 = vpop.permute.xlu0 %7134
    %7136 = vrot.lane.b32.xlu0 %v6985, 48
    %v7137 = vpop.permute.xlu0 %7136
    %7138 = vrot.lane.b32.xlu0 %v6988, 48
    %v7139 = vpop.permute.xlu0 %7138
    %7140 = vrot.lane.b32.xlu0 %v6990, 48
    %v7141 = vpop.permute.xlu0 %7140
    %7142 = vrot.lane.b32.xlu0 %v6993, 48
    %v7143 = vpop.permute.xlu0 %7142
    %7144 = vrot.lane.b32.xlu0 %v6995, 48
    %v7145 = vpop.permute.xlu0 %7144
    %7146 = vrot.lane.b32.xlu0 %v6998, 48
    %v7147 = vpop.permute.xlu0 %7146
    %7148 = vrot.lane.b32.xlu0 %v7000, 48
    %v7149 = vpop.permute.xlu0 %7148
    %7150 = vrot.lane.b32.xlu0 %v7003, 48
    %v7151 = vpop.permute.xlu0 %7150
    %7152 = vrot.lane.b32.xlu0 %v7005, 48
    %v7153 = vpop.permute.xlu0 %7152
    %7154 = vrot.lane.b32.xlu0 %v7008, 48
    %v7155 = vpop.permute.xlu0 %7154
    %7156 = vrot.lane.b32.xlu0 %v7010, 48
    %v7157 = vpop.permute.xlu0 %7156
    %7158 = vrot.lane.b32.xlu0 %v7013, 48
    %v7159 = vpop.permute.xlu0 %7158
    %7160 = vrot.lane.b32.xlu0 %v7015, 48
    %v7161 = vpop.permute.xlu0 %7160
    %7162 = vrot.lane.b32.xlu0 %v7018, 48
    %v7163 = vpop.permute.xlu0 %7162
    %7164 = vrot.lane.b32.xlu0 %v7020, 48
    %v7165 = vpop.permute.xlu0 %7164
    %7166 = vrot.lane.b32.xlu0 %v7023, 48
    %v7167 = vpop.permute.xlu0 %7166
    %7168 = vrot.lane.b32.xlu0 %v7025, 48
    %v7169 = vpop.permute.xlu0 %7168
    %7170 = vrot.lane.b32.xlu0 %v7028, 48
    %v7171 = vpop.permute.xlu0 %7170
    %7172 = vrot.lane.b32.xlu0 %v7030, 48
    %v7173 = vpop.permute.xlu0 %7172
    %7174 = vrot.lane.b32.xlu0 %v7033, 48
    %v7175 = vpop.permute.xlu0 %7174
    %7176 = vrot.lane.b32.xlu0 %v7035, 48
    %v7177 = vpop.permute.xlu0 %7176
    %7178 = vrot.lane.b32.xlu0 %v7038, 48
    %v7179 = vpop.permute.xlu0 %7178
    %7180 = vrot.lane.b32.xlu0 %v7040, 48
    %v7181 = vpop.permute.xlu0 %7180
    %7182 = vrot.lane.b32.xlu0 %v7043, 48
    %v7183 = vpop.permute.xlu0 %7182
    %7184 = vrot.lane.b32.xlu0 %v7045, 48
    %v7185 = vpop.permute.xlu0 %7184
    %7186 = vrot.lane.b32.xlu0 %v7048, 48
    %v7187 = vpop.permute.xlu0 %7186
    %7188 = vrot.lane.b32.xlu0 %v7050, 48
    %v7189 = vpop.permute.xlu0 %7188
    %7190 = vrot.lane.b32.xlu0 %v7053, 48
    %v7191 = vpop.permute.xlu0 %7190
    %7192 = vrot.lane.b32.xlu0 %v7055, 48
    %v7193 = vpop.permute.xlu0 %7192
    %7194 = vrot.lane.b32.xlu0 %v7058, 48
    %v7195 = vpop.permute.xlu0 %7194
    %7196 = vrot.lane.b32.xlu0 %v7060, 48
    %v7197 = vpop.permute.xlu0 %7196
    %7198 = vrot.lane.b32.xlu0 %v7063, 48
    %v7199 = vpop.permute.xlu0 %7198
    %7200 = vrot.lane.b32.xlu0 %v7065, 48
    %v7201 = vpop.permute.xlu0 %7200
    %7202 = vrot.lane.b32.xlu0 %v7068, 48
    %v7203 = vpop.permute.xlu0 %7202
    %7204 = vrot.lane.b32.xlu0 %v7070, 48
    %v7205 = vpop.permute.xlu0 %7204
    %7206 = vrot.lane.b32.xlu0 %v7073, 48
    %v7207 = vpop.permute.xlu0 %7206
    %7208 = vrot.lane.b32.xlu0 %v7075, 48
    %v7209 = vpop.permute.xlu0 %7208
    %7210 = vrot.lane.b32.xlu0 %v7078, 48
    %v7211 = vpop.permute.xlu0 %7210
    %7212 = vrot.lane.b32.xlu0 %v7080, 48
    %v7213 = vpop.permute.xlu0 %7212
    %7214 = vrot.lane.b32.xlu0 %v7083, 48
    %v7215 = vpop.permute.xlu0 %7214
    %7216 = vrot.lane.b32.xlu0 %v7085, 48
    %v7217 = vpop.permute.xlu0 %7216
    %7218 = vrot.lane.b32.xlu0 %v7088, 48
    %v7219 = vpop.permute.xlu0 %7218
    %7220 = vrot.lane.b32.xlu0 %v7090, 48
    %v7221 = vpop.permute.xlu0 %7220
    %7222 = vrot.lane.b32.xlu0 %v7093, 48
    %v7223 = vpop.permute.xlu0 %7222
    %7224 = vrot.lane.b32.xlu0 %v7095, 48
    %v7225 = vpop.permute.xlu0 %7224
    %7226 = vrot.lane.b32.xlu0 %v7098, 48
    %v7227 = vpop.permute.xlu0 %7226
    %7228 = vrot.lane.b32.xlu0 %v7100, 48
    %v7229 = vpop.permute.xlu0 %7228
    %7230 = vrot.lane.b32.xlu0 %v7103, 48
    %v7231 = vpop.permute.xlu0 %7230
    %7232 = vrot.lane.b32.xlu0 %v7105, 48
    %v7233 = vpop.permute.xlu0 %7232
    %vm7298 = vcmask 392192
    %v7299 = vsel %vm7298, %v4797, %v7107
    %v7300 = vsel %vm7298, %v4798, %v7109
    %v7301 = vsel %vm7298, %v4799, %v7111
    %v7302 = vsel %vm7298, %v4800, %v7113
    %v7303 = vsel %vm7298, %v4801, %v7115
    %v7304 = vsel %vm7298, %v4802, %v7117
    %v7305 = vsel %vm7298, %v4803, %v7119
    %v7306 = vsel %vm7298, %v4804, %v7121
    %v7307 = vsel %vm7298, %v4805, %v7123
    %v7308 = vsel %vm7298, %v4806, %v7125
    %v7309 = vsel %vm7298, %v4807, %v7127
    %v7310 = vsel %vm7298, %v4808, %v7129
    %v7311 = vsel %vm7298, %v4809, %v7131
    %v7312 = vsel %vm7298, %v4810, %v7133
    %v7313 = vsel %vm7298, %v4811, %v7135
    %v7314 = vsel %vm7298, %v4812, %v7137
    %v7315 = vsel %vm7298, %v4813, %v7139
    %v7316 = vsel %vm7298, %v4814, %v7141
    %v7317 = vsel %vm7298, %v4815, %v7143
    %v7318 = vsel %vm7298, %v4816, %v7145
    %v7319 = vsel %vm7298, %v4817, %v7147
    %v7320 = vsel %vm7298, %v4818, %v7149
    %v7321 = vsel %vm7298, %v4819, %v7151
    %v7322 = vsel %vm7298, %v4820, %v7153
    %v7323 = vsel %vm7298, %v4821, %v7155
    %v7324 = vsel %vm7298, %v4822, %v7157
    %v7325 = vsel %vm7298, %v4823, %v7159
    %v7326 = vsel %vm7298, %v4824, %v7161
    %v7327 = vsel %vm7298, %v4825, %v7163
    %v7328 = vsel %vm7298, %v4826, %v7165
    %v7329 = vsel %vm7298, %v4827, %v7167
    %v7330 = vsel %vm7298, %v4828, %v7169
    %v7331 = vsel %vm7298, %v4829, %v7171
    %v7332 = vsel %vm7298, %v4830, %v7173
    %v7333 = vsel %vm7298, %v4831, %v7175
    %v7334 = vsel %vm7298, %v4832, %v7177
    %v7335 = vsel %vm7298, %v4833, %v7179
    %v7336 = vsel %vm7298, %v4834, %v7181
    %v7337 = vsel %vm7298, %v4835, %v7183
    %v7338 = vsel %vm7298, %v4836, %v7185
    %v7339 = vsel %vm7298, %v4837, %v7187
    %v7340 = vsel %vm7298, %v4838, %v7189
    %v7341 = vsel %vm7298, %v4839, %v7191
    %v7342 = vsel %vm7298, %v4840, %v7193
    %v7343 = vsel %vm7298, %v4841, %v7195
    %v7344 = vsel %vm7298, %v4842, %v7197
    %v7345 = vsel %vm7298, %v4843, %v7199
    %v7346 = vsel %vm7298, %v4844, %v7201
    %v7347 = vsel %vm7298, %v4845, %v7203
    %v7348 = vsel %vm7298, %v4846, %v7205
    %v7349 = vsel %vm7298, %v4847, %v7207
    %v7350 = vsel %vm7298, %v4848, %v7209
    %v7351 = vsel %vm7298, %v4849, %v7211
    %v7352 = vsel %vm7298, %v4850, %v7213
    %v7353 = vsel %vm7298, %v4851, %v7215
    %v7354 = vsel %vm7298, %v4852, %v7217
    %v7355 = vsel %vm7298, %v4853, %v7219
    %v7356 = vsel %vm7298, %v4854, %v7221
    %v7357 = vsel %vm7298, %v4855, %v7223
    %v7358 = vsel %vm7298, %v4856, %v7225
    %v7359 = vsel %vm7298, %v4857, %v7227
    %v7360 = vsel %vm7298, %v4858, %v7229
    %v7361 = vsel %vm7298, %v4859, %v7231
    %v7362 = vsel %vm7298, %v4860, %v7233
    %v7364 = vlaneseq
    %v7365 = vshrl.u32 %v7364, 7
    %v7366 = vsub.s32 0, %v7365
    %v7367 = vrot.slane %v169, %v7366
    %vm7369 = vcmask 613376
    %v7371 = vsel %vm7369, %v7299, 0
    %v7374 = vsel %vm7369, %v7300, 0
    %v7377 = vsel %vm7369, %v7301, 0
    %v7380 = vsel %vm7369, %v7302, 0
    %v7383 = vsel %vm7369, %v7303, 0
    %v7386 = vsel %vm7369, %v7304, 0
    %v7389 = vsel %vm7369, %v7305, 0
    %v7392 = vsel %vm7369, %v7306, 0
    %v7395 = vsel %vm7369, %v7307, 0
    %v7398 = vsel %vm7369, %v7308, 0
    %v7401 = vsel %vm7369, %v7309, 0
    %v7404 = vsel %vm7369, %v7310, 0
    %v7407 = vsel %vm7369, %v7311, 0
    %v7410 = vsel %vm7369, %v7312, 0
    %v7413 = vsel %vm7369, %v7313, 0
    %v7416 = vsel %vm7369, %v7314, 0
    %v7419 = vsel %vm7369, %v7315, 0
    %v7422 = vsel %vm7369, %v7316, 0
    %v7425 = vsel %vm7369, %v7317, 0
    %v7428 = vsel %vm7369, %v7318, 0
    %v7431 = vsel %vm7369, %v7319, 0
    %v7434 = vsel %vm7369, %v7320, 0
    %v7437 = vsel %vm7369, %v7321, 0
    %v7440 = vsel %vm7369, %v7322, 0
    %v7443 = vsel %vm7369, %v7323, 0
    %v7446 = vsel %vm7369, %v7324, 0
    %v7449 = vsel %vm7369, %v7325, 0
    %v7452 = vsel %vm7369, %v7326, 0
    %v7455 = vsel %vm7369, %v7327, 0
    %v7458 = vsel %vm7369, %v7328, 0
    %v7461 = vsel %vm7369, %v7329, 0
    %v7464 = vsel %vm7369, %v7330, 0
    %v7467 = vsel %vm7369, %v7331, 0
    %v7470 = vsel %vm7369, %v7332, 0
    %v7473 = vsel %vm7369, %v7333, 0
    %v7476 = vsel %vm7369, %v7334, 0
    %v7479 = vsel %vm7369, %v7335, 0
    %v7482 = vsel %vm7369, %v7336, 0
    %v7485 = vsel %vm7369, %v7337, 0
    %v7488 = vsel %vm7369, %v7338, 0
    %v7491 = vsel %vm7369, %v7339, 0
    %v7494 = vsel %vm7369, %v7340, 0
    %v7497 = vsel %vm7369, %v7341, 0
    %v7500 = vsel %vm7369, %v7342, 0
    %v7503 = vsel %vm7369, %v7343, 0
    %v7506 = vsel %vm7369, %v7344, 0
    %v7509 = vsel %vm7369, %v7345, 0
    %v7512 = vsel %vm7369, %v7346, 0
    %v7515 = vsel %vm7369, %v7347, 0
    %v7518 = vsel %vm7369, %v7348, 0
    %v7521 = vsel %vm7369, %v7349, 0
    %v7524 = vsel %vm7369, %v7350, 0
    %v7527 = vsel %vm7369, %v7351, 0
    %v7530 = vsel %vm7369, %v7352, 0
    %v7533 = vsel %vm7369, %v7353, 0
    %v7536 = vsel %vm7369, %v7354, 0
    %v7539 = vsel %vm7369, %v7355, 0
    %v7542 = vsel %vm7369, %v7356, 0
    %v7545 = vsel %vm7369, %v7357, 0
    %v7548 = vsel %vm7369, %v7358, 0
    %v7551 = vsel %vm7369, %v7359, 0
    %v7554 = vsel %vm7369, %v7360, 0
    %v7557 = vsel %vm7369, %v7361, 0
    %v7560 = vsel %vm7369, %v7362, 0
    %vm7562 = vcmask 1042432
    %v7564 = vsel %vm7562, %v168, 0
    %7566 = vmatprep.subr.mxu0 0.0
    %7567 = vmatpush1.msra.mxu0 %v159
    %7568 = vmatprep.subr.mxu0 0.0
    %7569 = vmatpush1.msra.mxu0 %v160
    %7570 = vmatprep.subr.mxu0 0.0
    %7571 = vmatpush1.msra.mxu0 %v161
    %7572 = vmatprep.subr.mxu0 0.0
    %7573 = vmatpush1.msra.mxu0 %v162
    %7574 = vmatprep.subr.mxu0 0.0
    %7575 = vmatpush1.msra.mxu0 %v163
    %7576 = vmatprep.subr.mxu0 0.0
    %7577 = vmatpush1.msra.mxu0 %v164
    %7578 = vmatprep.subr.mxu0 0.0
    %7579 = vmatpush1.msra.mxu0 %v165
    %7580 = vmatprep.subr.mxu0 0.0
    %7581 = vmatpush1.msra.mxu0 %v166
    %7582 = vmatprep.subr.mxu0 0.0
    %7583 = vmatpush1.msra.mxu0 %v167
    %7584 = vmatprep.subr.mxu0 0.0
    %7585 = vmatpush1.msra.mxu0 %v7564
    %7586 = vmatprep.subr.mxu0 0.0
    %7587 = vmatpush1.msra.mxu0 0.0
    %7588 = vmatprep.subr.mxu0 0.0
    %7589 = vmatpush1.msra.mxu0 0.0
    %7590 = vmatprep.subr.mxu0 0.0
    %7591 = vmatpush1.msra.mxu0 0.0
    %7592 = vmatprep.subr.mxu0 0.0
    %7593 = vmatpush1.msra.mxu0 0.0
    %7594 = vmatprep.subr.mxu0 0.0
    %7595 = vmatpush1.msra.mxu0 0.0
    %7596 = vmatprep.subr.mxu0 0.0
    %7597 = vmatpush1.msra.mxu0 0.0
    %7598 = vmatprep.subr.mxu0 0.0
    %7599 = vmatpush1.msra.mxu0 0.0
    %7600 = vmatprep.subr.mxu0 0.0
    %7601 = vmatpush1.msra.mxu0 0.0
    %7602 = vmatprep.subr.mxu0 0.0
    %7603 = vmatpush1.msra.mxu0 0.0
    %7604 = vmatprep.subr.mxu0 0.0
    %7605 = vmatpush1.msra.mxu0 0.0
    %7606 = vmatprep.subr.mxu0 0.0
    %7607 = vmatpush1.msra.mxu0 0.0
    %7608 = vmatprep.subr.mxu0 0.0
    %7609 = vmatpush1.msra.mxu0 0.0
    %7610 = vmatprep.subr.mxu0 0.0
    %7611 = vmatpush1.msra.mxu0 0.0
    %7612 = vmatprep.subr.mxu0 0.0
    %7613 = vmatpush1.msra.mxu0 0.0
    %7614 = vmatprep.subr.mxu0 0.0
    %7615 = vmatpush1.msra.mxu0 0.0
    %7616 = vmatprep.subr.mxu0 0.0
    %7617 = vmatpush1.msra.mxu0 0.0
    %7618 = vmatprep.subr.mxu0 0.0
    %7619 = vmatpush1.msra.mxu0 0.0
    %7620 = vmatprep.subr.mxu0 0.0
    %7621 = vmatpush1.msra.mxu0 0.0
    %7622 = vmatprep.subr.mxu0 0.0
    %7623 = vmatpush1.msra.mxu0 0.0
    %7624 = vmatprep.subr.mxu0 0.0
    %7625 = vmatpush1.msra.mxu0 0.0
    %7626 = vmatprep.subr.mxu0 0.0
    %7627 = vmatpush1.msra.mxu0 0.0
    %7628 = vmatprep.subr.mxu0 0.0
    %7629 = vmatpush1.msra.mxu0 0.0
    %7630 = vmatprep.mubr.f32.mxu0 0.0
    %7631 = vmatmul.mubr.f32.gmra.mrb[0].mxu0 %v7371
    %v7632 = vpop.f32.mrb[0].mxu0
    %v7633 = vadd.f32 %v7367, %v7632
    %v7634 = vpop.f32.mrb[0].mxu0
    %7635 = vmatprep.mubr.f32.mxu0 0.0
    %7636 = vmatmul.mubr.f32.gmra.mrb[0].mxu0 %v7374
    %v7637 = vpop.f32.mrb[0].mxu0
    %v7638 = vadd.f32 %v7367, %v7637
    %v7639 = vpop.f32.mrb[0].mxu0
    %7640 = vmatprep.mubr.f32.mxu0 0.0
    %7641 = vmatmul.mubr.f32.gmra.mrb[0].mxu0 %v7377
    %v7642 = vpop.f32.mrb[0].mxu0
    %v7643 = vadd.f32 %v7367, %v7642
    %v7644 = vpop.f32.mrb[0].mxu0
    %7645 = vmatprep.mubr.f32.mxu0 0.0
    %7646 = vmatmul.mubr.f32.gmra.mrb[0].mxu0 %v7380
    %v7647 = vpop.f32.mrb[0].mxu0
    %v7648 = vadd.f32 %v7367, %v7647
    %v7649 = vpop.f32.mrb[0].mxu0
    %7650 = vmatprep.mubr.f32.mxu0 0.0
    %7651 = vmatmul.mubr.f32.gmra.mrb[0].mxu0 %v7383
    %v7652 = vpop.f32.mrb[0].mxu0
    %v7653 = vadd.f32 %v7367, %v7652
    %v7654 = vpop.f32.mrb[0].mxu0
    %7655 = vmatprep.mubr.f32.mxu0 0.0
    %7656 = vmatmul.mubr.f32.gmra.mrb[0].mxu0 %v7386
    %v7657 = vpop.f32.mrb[0].mxu0
    %v7658 = vadd.f32 %v7367, %v7657
    %v7659 = vpop.f32.mrb[0].mxu0
    %7660 = vmatprep.mubr.f32.mxu0 0.0
    %7661 = vmatmul.mubr.f32.gmra.mrb[0].mxu0 %v7389
    %v7662 = vpop.f32.mrb[0].mxu0
    %v7663 = vadd.f32 %v7367, %v7662
    %v7664 = vpop.f32.mrb[0].mxu0
    %7665 = vmatprep.mubr.f32.mxu0 0.0
    %7666 = vmatmul.mubr.f32.gmra.mrb[0].mxu0 %v7392
    %v7667 = vpop.f32.mrb[0].mxu0
    %v7668 = vadd.f32 %v7367, %v7667
    %v7669 = vpop.f32.mrb[0].mxu0
    %7670 = vmatprep.mubr.f32.mxu0 0.0
    %7671 = vmatmul.mubr.f32.gmra.mrb[0].mxu0 %v7395
    %v7672 = vpop.f32.mrb[0].mxu0
    %v7673 = vadd.f32 %v7367, %v7672
    %v7674 = vpop.f32.mrb[0].mxu0
    %7675 = vmatprep.mubr.f32.mxu0 0.0
    %7676 = vmatmul.mubr.f32.gmra.mrb[0].mxu0 %v7398
    %v7677 = vpop.f32.mrb[0].mxu0
    %v7678 = vadd.f32 %v7367, %v7677
    %v7679 = vpop.f32.mrb[0].mxu0
    %7680 = vmatprep.mubr.f32.mxu0 0.0
    %7681 = vmatmul.mubr.f32.gmra.mrb[0].mxu0 %v7401
    %v7682 = vpop.f32.mrb[0].mxu0
    %v7683 = vadd.f32 %v7367, %v7682
    %v7684 = vpop.f32.mrb[0].mxu0
    %7685 = vmatprep.mubr.f32.mxu0 0.0
    %7686 = vmatmul.mubr.f32.gmra.mrb[0].mxu0 %v7404
    %v7687 = vpop.f32.mrb[0].mxu0
    %v7688 = vadd.f32 %v7367, %v7687
    %v7689 = vpop.f32.mrb[0].mxu0
    %7690 = vmatprep.mubr.f32.mxu0 0.0
    %7691 = vmatmul.mubr.f32.gmra.mrb[0].mxu0 %v7407
    %v7692 = vpop.f32.mrb[0].mxu0
    %v7693 = vadd.f32 %v7367, %v7692
    %v7694 = vpop.f32.mrb[0].mxu0
    %7695 = vmatprep.mubr.f32.mxu0 0.0
    %7696 = vmatmul.mubr.f32.gmra.mrb[0].mxu0 %v7410
    %v7697 = vpop.f32.mrb[0].mxu0
    %v7698 = vadd.f32 %v7367, %v7697
    %v7699 = vpop.f32.mrb[0].mxu0
    %7700 = vmatprep.mubr.f32.mxu0 0.0
    %7701 = vmatmul.mubr.f32.gmra.mrb[0].mxu0 %v7413
    %v7702 = vpop.f32.mrb[0].mxu0
    %v7703 = vadd.f32 %v7367, %v7702
    %v7704 = vpop.f32.mrb[0].mxu0
    %7705 = vmatprep.mubr.f32.mxu0 0.0
    %7706 = vmatmul.mubr.f32.gmra.mrb[0].mxu0 %v7416
    %v7707 = vpop.f32.mrb[0].mxu0
    %v7708 = vadd.f32 %v7367, %v7707
    %v7709 = vpop.f32.mrb[0].mxu0
    %7710 = vmatprep.mubr.f32.mxu0 0.0
    %7711 = vmatmul.mubr.f32.gmra.mrb[0].mxu0 %v7419
    %v7712 = vpop.f32.mrb[0].mxu0
    %v7713 = vadd.f32 %v7367, %v7712
    %v7714 = vpop.f32.mrb[0].mxu0
    %7715 = vmatprep.mubr.f32.mxu0 0.0
    %7716 = vmatmul.mubr.f32.gmra.mrb[0].mxu0 %v7422
    %v7717 = vpop.f32.mrb[0].mxu0
    %v7718 = vadd.f32 %v7367, %v7717
    %v7719 = vpop.f32.mrb[0].mxu0
    %7720 = vmatprep.mubr.f32.mxu0 0.0
    %7721 = vmatmul.mubr.f32.gmra.mrb[0].mxu0 %v7425
    %v7722 = vpop.f32.mrb[0].mxu0
    %v7723 = vadd.f32 %v7367, %v7722
    %v7724 = vpop.f32.mrb[0].mxu0
    %7725 = vmatprep.mubr.f32.mxu0 0.0
    %7726 = vmatmul.mubr.f32.gmra.mrb[0].mxu0 %v7428
    %v7727 = vpop.f32.mrb[0].mxu0
    %v7728 = vadd.f32 %v7367, %v7727
    %v7729 = vpop.f32.mrb[0].mxu0
    %7730 = vmatprep.mubr.f32.mxu0 0.0
    %7731 = vmatmul.mubr.f32.gmra.mrb[0].mxu0 %v7431
    %v7732 = vpop.f32.mrb[0].mxu0
    %v7733 = vadd.f32 %v7367, %v7732
    %v7734 = vpop.f32.mrb[0].mxu0
    %7735 = vmatprep.mubr.f32.mxu0 0.0
    %7736 = vmatmul.mubr.f32.gmra.mrb[0].mxu0 %v7434
    %v7737 = vpop.f32.mrb[0].mxu0
    %v7738 = vadd.f32 %v7367, %v7737
    %v7739 = vpop.f32.mrb[0].mxu0
    %7740 = vmatprep.mubr.f32.mxu0 0.0
    %7741 = vmatmul.mubr.f32.gmra.mrb[0].mxu0 %v7437
    %v7742 = vpop.f32.mrb[0].mxu0
    %v7743 = vadd.f32 %v7367, %v7742
    %v7744 = vpop.f32.mrb[0].mxu0
    %7745 = vmatprep.mubr.f32.mxu0 0.0
    %7746 = vmatmul.mubr.f32.gmra.mrb[0].mxu0 %v7440
    %v7747 = vpop.f32.mrb[0].mxu0
    %v7748 = vadd.f32 %v7367, %v7747
    %v7749 = vpop.f32.mrb[0].mxu0
    %7750 = vmatprep.mubr.f32.mxu0 0.0
    %7751 = vmatmul.mubr.f32.gmra.mrb[0].mxu0 %v7443
    %v7752 = vpop.f32.mrb[0].mxu0
    %v7753 = vadd.f32 %v7367, %v7752
    %v7754 = vpop.f32.mrb[0].mxu0
    %7755 = vmatprep.mubr.f32.mxu0 0.0
    %7756 = vmatmul.mubr.f32.gmra.mrb[0].mxu0 %v7446
    %v7757 = vpop.f32.mrb[0].mxu0
    %v7758 = vadd.f32 %v7367, %v7757
    %v7759 = vpop.f32.mrb[0].mxu0
    %7760 = vmatprep.mubr.f32.mxu0 0.0
    %7761 = vmatmul.mubr.f32.gmra.mrb[0].mxu0 %v7449
    %v7762 = vpop.f32.mrb[0].mxu0
    %v7763 = vadd.f32 %v7367, %v7762
    %v7764 = vpop.f32.mrb[0].mxu0
    %7765 = vmatprep.mubr.f32.mxu0 0.0
    %7766 = vmatmul.mubr.f32.gmra.mrb[0].mxu0 %v7452
    %v7767 = vpop.f32.mrb[0].mxu0
    %v7768 = vadd.f32 %v7367, %v7767
    %v7769 = vpop.f32.mrb[0].mxu0
    %7770 = vmatprep.mubr.f32.mxu0 0.0
    %7771 = vmatmul.mubr.f32.gmra.mrb[0].mxu0 %v7455
    %v7772 = vpop.f32.mrb[0].mxu0
    %v7773 = vadd.f32 %v7367, %v7772
    %v7774 = vpop.f32.mrb[0].mxu0
    %7775 = vmatprep.mubr.f32.mxu0 0.0
    %7776 = vmatmul.mubr.f32.gmra.mrb[0].mxu0 %v7458
    %v7777 = vpop.f32.mrb[0].mxu0
    %v7778 = vadd.f32 %v7367, %v7777
    %v7779 = vpop.f32.mrb[0].mxu0
    %7780 = vmatprep.mubr.f32.mxu0 0.0
    %7781 = vmatmul.mubr.f32.gmra.mrb[0].mxu0 %v7461
    %v7782 = vpop.f32.mrb[0].mxu0
    %v7783 = vadd.f32 %v7367, %v7782
    %v7784 = vpop.f32.mrb[0].mxu0
    %7785 = vmatprep.mubr.f32.mxu0 0.0
    %7786 = vmatmul.mubr.f32.gmra.mrb[0].mxu0 %v7464
    %v7787 = vpop.f32.mrb[0].mxu0
    %v7788 = vadd.f32 %v7367, %v7787
    %v7789 = vpop.f32.mrb[0].mxu0
    %7790 = vmatprep.mubr.f32.mxu0 0.0
    %7791 = vmatmul.mubr.f32.gmra.mrb[0].mxu0 %v7467
    %v7792 = vpop.f32.mrb[0].mxu0
    %v7793 = vadd.f32 %v7367, %v7792
    %v7794 = vpop.f32.mrb[0].mxu0
    %7795 = vmatprep.mubr.f32.mxu0 0.0
    %7796 = vmatmul.mubr.f32.gmra.mrb[0].mxu0 %v7470
    %v7797 = vpop.f32.mrb[0].mxu0
    %v7798 = vadd.f32 %v7367, %v7797
    %v7799 = vpop.f32.mrb[0].mxu0
    %7800 = vmatprep.mubr.f32.mxu0 0.0
    %7801 = vmatmul.mubr.f32.gmra.mrb[0].mxu0 %v7473
    %v7802 = vpop.f32.mrb[0].mxu0
    %v7803 = vadd.f32 %v7367, %v7802
    %v7804 = vpop.f32.mrb[0].mxu0
    %7805 = vmatprep.mubr.f32.mxu0 0.0
    %7806 = vmatmul.mubr.f32.gmra.mrb[0].mxu0 %v7476
    %v7807 = vpop.f32.mrb[0].mxu0
    %v7808 = vadd.f32 %v7367, %v7807
    %v7809 = vpop.f32.mrb[0].mxu0
    %7810 = vmatprep.mubr.f32.mxu0 0.0
    %7811 = vmatmul.mubr.f32.gmra.mrb[0].mxu0 %v7479
    %v7812 = vpop.f32.mrb[0].mxu0
    %v7813 = vadd.f32 %v7367, %v7812
    %v7814 = vpop.f32.mrb[0].mxu0
    %7815 = vmatprep.mubr.f32.mxu0 0.0
    %7816 = vmatmul.mubr.f32.gmra.mrb[0].mxu0 %v7482
    %v7817 = vpop.f32.mrb[0].mxu0
    %v7818 = vadd.f32 %v7367, %v7817
    %v7819 = vpop.f32.mrb[0].mxu0
    %7820 = vmatprep.mubr.f32.mxu0 0.0
    %7821 = vmatmul.mubr.f32.gmra.mrb[0].mxu0 %v7485
    %v7822 = vpop.f32.mrb[0].mxu0
    %v7823 = vadd.f32 %v7367, %v7822
    %v7824 = vpop.f32.mrb[0].mxu0
    %7825 = vmatprep.mubr.f32.mxu0 0.0
    %7826 = vmatmul.mubr.f32.gmra.mrb[0].mxu0 %v7488
    %v7827 = vpop.f32.mrb[0].mxu0
    %v7828 = vadd.f32 %v7367, %v7827
    %v7829 = vpop.f32.mrb[0].mxu0
    %7830 = vmatprep.mubr.f32.mxu0 0.0
    %7831 = vmatmul.mubr.f32.gmra.mrb[0].mxu0 %v7491
    %v7832 = vpop.f32.mrb[0].mxu0
    %v7833 = vadd.f32 %v7367, %v7832
    %v7834 = vpop.f32.mrb[0].mxu0
    %7835 = vmatprep.mubr.f32.mxu0 0.0
    %7836 = vmatmul.mubr.f32.gmra.mrb[0].mxu0 %v7494
    %v7837 = vpop.f32.mrb[0].mxu0
    %v7838 = vadd.f32 %v7367, %v7837
    %v7839 = vpop.f32.mrb[0].mxu0
    %7840 = vmatprep.mubr.f32.mxu0 0.0
    %7841 = vmatmul.mubr.f32.gmra.mrb[0].mxu0 %v7497
    %v7842 = vpop.f32.mrb[0].mxu0
    %v7843 = vadd.f32 %v7367, %v7842
    %v7844 = vpop.f32.mrb[0].mxu0
    %7845 = vmatprep.mubr.f32.mxu0 0.0
    %7846 = vmatmul.mubr.f32.gmra.mrb[0].mxu0 %v7500
    %v7847 = vpop.f32.mrb[0].mxu0
    %v7848 = vadd.f32 %v7367, %v7847
    %v7849 = vpop.f32.mrb[0].mxu0
    %7850 = vmatprep.mubr.f32.mxu0 0.0
    %7851 = vmatmul.mubr.f32.gmra.mrb[0].mxu0 %v7503
    %v7852 = vpop.f32.mrb[0].mxu0
    %v7853 = vadd.f32 %v7367, %v7852
    %v7854 = vpop.f32.mrb[0].mxu0
    %7855 = vmatprep.mubr.f32.mxu0 0.0
    %7856 = vmatmul.mubr.f32.gmra.mrb[0].mxu0 %v7506
    %v7857 = vpop.f32.mrb[0].mxu0
    %v7858 = vadd.f32 %v7367, %v7857
    %v7859 = vpop.f32.mrb[0].mxu0
    %7860 = vmatprep.mubr.f32.mxu0 0.0
    %7861 = vmatmul.mubr.f32.gmra.mrb[0].mxu0 %v7509
    %v7862 = vpop.f32.mrb[0].mxu0
    %v7863 = vadd.f32 %v7367, %v7862
    %v7864 = vpop.f32.mrb[0].mxu0
    %7865 = vmatprep.mubr.f32.mxu0 0.0
    %7866 = vmatmul.mubr.f32.gmra.mrb[0].mxu0 %v7512
    %v7867 = vpop.f32.mrb[0].mxu0
    %v7868 = vadd.f32 %v7367, %v7867
    %v7869 = vpop.f32.mrb[0].mxu0
    %7870 = vmatprep.mubr.f32.mxu0 0.0
    %7871 = vmatmul.mubr.f32.gmra.mrb[0].mxu0 %v7515
    %v7872 = vpop.f32.mrb[0].mxu0
    %v7873 = vadd.f32 %v7367, %v7872
    %v7874 = vpop.f32.mrb[0].mxu0
    %7875 = vmatprep.mubr.f32.mxu0 0.0
    %7876 = vmatmul.mubr.f32.gmra.mrb[0].mxu0 %v7518
    %v7877 = vpop.f32.mrb[0].mxu0
    %v7878 = vadd.f32 %v7367, %v7877
    %v7879 = vpop.f32.mrb[0].mxu0
    %7880 = vmatprep.mubr.f32.mxu0 0.0
    %7881 = vmatmul.mubr.f32.gmra.mrb[0].mxu0 %v7521
    %v7882 = vpop.f32.mrb[0].mxu0
    %v7883 = vadd.f32 %v7367, %v7882
    %v7884 = vpop.f32.mrb[0].mxu0
    %7885 = vmatprep.mubr.f32.mxu0 0.0
    %7886 = vmatmul.mubr.f32.gmra.mrb[0].mxu0 %v7524
    %v7887 = vpop.f32.mrb[0].mxu0
    %v7888 = vadd.f32 %v7367, %v7887
    %v7889 = vpop.f32.mrb[0].mxu0
    %7890 = vmatprep.mubr.f32.mxu0 0.0
    %7891 = vmatmul.mubr.f32.gmra.mrb[0].mxu0 %v7527
    %v7892 = vpop.f32.mrb[0].mxu0
    %v7893 = vadd.f32 %v7367, %v7892
    %v7894 = vpop.f32.mrb[0].mxu0
    %7895 = vmatprep.mubr.f32.mxu0 0.0
    %7896 = vmatmul.mubr.f32.gmra.mrb[0].mxu0 %v7530
    %v7897 = vpop.f32.mrb[0].mxu0
    %v7898 = vadd.f32 %v7367, %v7897
    %v7899 = vpop.f32.mrb[0].mxu0
    %7900 = vmatprep.mubr.f32.mxu0 0.0
    %7901 = vmatmul.mubr.f32.gmra.mrb[0].mxu0 %v7533
    %v7902 = vpop.f32.mrb[0].mxu0
    %v7903 = vadd.f32 %v7367, %v7902
    %v7904 = vpop.f32.mrb[0].mxu0
    %7905 = vmatprep.mubr.f32.mxu0 0.0
    %7906 = vmatmul.mubr.f32.gmra.mrb[0].mxu0 %v7536
    %v7907 = vpop.f32.mrb[0].mxu0
    %v7908 = vadd.f32 %v7367, %v7907
    %v7909 = vpop.f32.mrb[0].mxu0
    %7910 = vmatprep.mubr.f32.mxu0 0.0
    %7911 = vmatmul.mubr.f32.gmra.mrb[0].mxu0 %v7539
    %v7912 = vpop.f32.mrb[0].mxu0
    %v7913 = vadd.f32 %v7367, %v7912
    %v7914 = vpop.f32.mrb[0].mxu0
    %7915 = vmatprep.mubr.f32.mxu0 0.0
    %7916 = vmatmul.mubr.f32.gmra.mrb[0].mxu0 %v7542
    %v7917 = vpop.f32.mrb[0].mxu0
    %v7918 = vadd.f32 %v7367, %v7917
    %v7919 = vpop.f32.mrb[0].mxu0
    %7920 = vmatprep.mubr.f32.mxu0 0.0
    %7921 = vmatmul.mubr.f32.gmra.mrb[0].mxu0 %v7545
    %v7922 = vpop.f32.mrb[0].mxu0
    %v7923 = vadd.f32 %v7367, %v7922
    %v7924 = vpop.f32.mrb[0].mxu0
    %7925 = vmatprep.mubr.f32.mxu0 0.0
    %7926 = vmatmul.mubr.f32.gmra.mrb[0].mxu0 %v7548
    %v7927 = vpop.f32.mrb[0].mxu0
    %v7928 = vadd.f32 %v7367, %v7927
    %v7929 = vpop.f32.mrb[0].mxu0
    %7930 = vmatprep.mubr.f32.mxu0 0.0
    %7931 = vmatmul.mubr.f32.gmra.mrb[0].mxu0 %v7551
    %v7932 = vpop.f32.mrb[0].mxu0
    %v7933 = vadd.f32 %v7367, %v7932
    %v7934 = vpop.f32.mrb[0].mxu0
    %7935 = vmatprep.mubr.f32.mxu0 0.0
    %7936 = vmatmul.mubr.f32.gmra.mrb[0].mxu0 %v7554
    %v7937 = vpop.f32.mrb[0].mxu0
    %v7938 = vadd.f32 %v7367, %v7937
    %v7939 = vpop.f32.mrb[0].mxu0
    %7940 = vmatprep.mubr.f32.mxu0 0.0
    %7941 = vmatmul.mubr.f32.gmra.mrb[0].mxu0 %v7557
    %v7942 = vpop.f32.mrb[0].mxu0
    %v7943 = vadd.f32 %v7367, %v7942
    %v7944 = vpop.f32.mrb[0].mxu0
    %7945 = vmatprep.mubr.f32.mxu0 0.0
    %7946 = vmatmul.mubr.f32.gmra.mrb[0].mxu0 %v7560
    %v7947 = vpop.f32.mrb[0].mxu0
    %v7948 = vadd.f32 %v7367, %v7947
    %v7949 = vpop.f32.mrb[0].mxu0
    %7950 = vdwg.mxu0
    %v7951 = vld [vmem:[%s3] sm:$0x1]
    %v7952 = vld [vmem:[%s4] sm:$0x1]
    %vm7953 = vcmask 130048
    %v7954 = vsel %vm7953, %v7633, 0.0
    %v7955 = vsel %vm7953, %v7638, 0.0
    %v7956 = vadd.f32 %v7954, %v7955
    %v7957 = vsel %vm7953, %v7643, 0.0
    %v7958 = vadd.f32 %v7956, %v7957
    %v7959 = vsel %vm7953, %v7648, 0.0
    %v7960 = vadd.f32 %v7958, %v7959
    %v7961 = vsel %vm7953, %v7653, 0.0
    %v7962 = vadd.f32 %v7960, %v7961
    %v7963 = vsel %vm7953, %v7658, 0.0
    %v7964 = vadd.f32 %v7962, %v7963
    %v7965 = vsel %vm7953, %v7663, 0.0
    %v7966 = vadd.f32 %v7964, %v7965
    %v7967 = vsel %vm7953, %v7668, 0.0
    %v7968 = vadd.f32 %v7966, %v7967
    %v7969 = vsel %vm7953, %v7673, 0.0
    %v7970 = vadd.f32 %v7968, %v7969
    %v7971 = vsel %vm7953, %v7678, 0.0
    %v7972 = vadd.f32 %v7970, %v7971
    %v7973 = vsel %vm7953, %v7683, 0.0
    %v7974 = vadd.f32 %v7972, %v7973
    %v7975 = vsel %vm7953, %v7688, 0.0
    %v7976 = vadd.f32 %v7974, %v7975
    %v7977 = vsel %vm7953, %v7693, 0.0
    %v7978 = vadd.f32 %v7976, %v7977
    %v7979 = vsel %vm7953, %v7698, 0.0
    %v7980 = vadd.f32 %v7978, %v7979
    %v7981 = vsel %vm7953, %v7703, 0.0
    %v7982 = vadd.f32 %v7980, %v7981
    %v7983 = vsel %vm7953, %v7708, 0.0
    %v7984 = vadd.f32 %v7982, %v7983
    %v7985 = vsel %vm7953, %v7713, 0.0
    %v7986 = vadd.f32 %v7984, %v7985
    %v7987 = vsel %vm7953, %v7718, 0.0
    %v7988 = vadd.f32 %v7986, %v7987
    %v7989 = vsel %vm7953, %v7723, 0.0
    %v7990 = vadd.f32 %v7988, %v7989
    %v7991 = vsel %vm7953, %v7728, 0.0
    %v7992 = vadd.f32 %v7990, %v7991
    %v7993 = vsel %vm7953, %v7733, 0.0
    %v7994 = vadd.f32 %v7992, %v7993
    %v7995 = vsel %vm7953, %v7738, 0.0
    %v7996 = vadd.f32 %v7994, %v7995
    %v7997 = vsel %vm7953, %v7743, 0.0
    %v7998 = vadd.f32 %v7996, %v7997
    %v7999 = vsel %vm7953, %v7748, 0.0
    %v8000 = vadd.f32 %v7998, %v7999
    %v8001 = vsel %vm7953, %v7753, 0.0
    %v8002 = vadd.f32 %v8000, %v8001
    %v8003 = vsel %vm7953, %v7758, 0.0
    %v8004 = vadd.f32 %v8002, %v8003
    %v8005 = vsel %vm7953, %v7763, 0.0
    %v8006 = vadd.f32 %v8004, %v8005
    %v8007 = vsel %vm7953, %v7768, 0.0
    %v8008 = vadd.f32 %v8006, %v8007
    %v8009 = vsel %vm7953, %v7773, 0.0
    %v8010 = vadd.f32 %v8008, %v8009
    %v8011 = vsel %vm7953, %v7778, 0.0
    %v8012 = vadd.f32 %v8010, %v8011
    %v8013 = vsel %vm7953, %v7783, 0.0
    %v8014 = vadd.f32 %v8012, %v8013
    %v8015 = vsel %vm7953, %v7788, 0.0
    %v8016 = vadd.f32 %v8014, %v8015
    %v8017 = vsel %vm7953, %v7793, 0.0
    %v8018 = vadd.f32 %v8016, %v8017
    %v8019 = vsel %vm7953, %v7798, 0.0
    %v8020 = vadd.f32 %v8018, %v8019
    %v8021 = vsel %vm7953, %v7803, 0.0
    %v8022 = vadd.f32 %v8020, %v8021
    %v8023 = vsel %vm7953, %v7808, 0.0
    %v8024 = vadd.f32 %v8022, %v8023
    %v8025 = vsel %vm7953, %v7813, 0.0
    %v8026 = vadd.f32 %v8024, %v8025
    %v8027 = vsel %vm7953, %v7818, 0.0
    %v8028 = vadd.f32 %v8026, %v8027
    %v8029 = vsel %vm7953, %v7823, 0.0
    %v8030 = vadd.f32 %v8028, %v8029
    %v8031 = vsel %vm7953, %v7828, 0.0
    %v8032 = vadd.f32 %v8030, %v8031
    %v8033 = vsel %vm7953, %v7833, 0.0
    %v8034 = vadd.f32 %v8032, %v8033
    %v8035 = vsel %vm7953, %v7838, 0.0
    %v8036 = vadd.f32 %v8034, %v8035
    %v8037 = vsel %vm7953, %v7843, 0.0
    %v8038 = vadd.f32 %v8036, %v8037
    %v8039 = vsel %vm7953, %v7848, 0.0
    %v8040 = vadd.f32 %v8038, %v8039
    %v8041 = vsel %vm7953, %v7853, 0.0
    %v8042 = vadd.f32 %v8040, %v8041
    %v8043 = vsel %vm7953, %v7858, 0.0
    %v8044 = vadd.f32 %v8042, %v8043
    %v8045 = vsel %vm7953, %v7863, 0.0
    %v8046 = vadd.f32 %v8044, %v8045
    %v8047 = vsel %vm7953, %v7868, 0.0
    %v8048 = vadd.f32 %v8046, %v8047
    %v8049 = vsel %vm7953, %v7873, 0.0
    %v8050 = vadd.f32 %v8048, %v8049
    %v8051 = vsel %vm7953, %v7878, 0.0
    %v8052 = vadd.f32 %v8050, %v8051
    %v8053 = vsel %vm7953, %v7883, 0.0
    %v8054 = vadd.f32 %v8052, %v8053
    %v8055 = vsel %vm7953, %v7888, 0.0
    %v8056 = vadd.f32 %v8054, %v8055
    %v8057 = vsel %vm7953, %v7893, 0.0
    %v8058 = vadd.f32 %v8056, %v8057
    %v8059 = vsel %vm7953, %v7898, 0.0
    %v8060 = vadd.f32 %v8058, %v8059
    %v8061 = vsel %vm7953, %v7903, 0.0
    %v8062 = vadd.f32 %v8060, %v8061
    %v8063 = vsel %vm7953, %v7908, 0.0
    %v8064 = vadd.f32 %v8062, %v8063
    %v8065 = vsel %vm7953, %v7913, 0.0
    %v8066 = vadd.f32 %v8064, %v8065
    %v8067 = vsel %vm7953, %v7918, 0.0
    %v8068 = vadd.f32 %v8066, %v8067
    %v8069 = vsel %vm7953, %v7923, 0.0
    %v8070 = vadd.f32 %v8068, %v8069
    %v8071 = vsel %vm7953, %v7928, 0.0
    %v8072 = vadd.f32 %v8070, %v8071
    %v8073 = vsel %vm7953, %v7933, 0.0
    %v8074 = vadd.f32 %v8072, %v8073
    %v8075 = vsel %vm7953, %v7938, 0.0
    %v8076 = vadd.f32 %v8074, %v8075
    %v8077 = vsel %vm7953, %v7943, 0.0
    %v8078 = vadd.f32 %v8076, %v8077
    %v8079 = vsel %vm7953, %v7948, 0.0
    %v8080 = vadd.f32 %v8078, %v8079
    %v8081 = vrot.slane %v8080, 4
    %v8082 = vadd.f32 %v8080, %v8081
    %v8083 = vrot.slane %v8082, 2
    %v8084 = vadd.f32 %v8082, %v8083
    %v8085 = vrot.slane %v8084, 1
    %v8086 = vadd.f32 %v8084, %v8085
    %v8087 = vrcp.pop 512.0
    %v8088 = vmul.f32 %v8086, %v8087
    %v8089 = vsub.f32 %v7633, %v8088
    %v8090 = vsub.f32 %v7638, %v8088
    %v8091 = vsub.f32 %v7643, %v8088
    %v8092 = vsub.f32 %v7648, %v8088
    %v8093 = vsub.f32 %v7653, %v8088
    %v8094 = vsub.f32 %v7658, %v8088
    %v8095 = vsub.f32 %v7663, %v8088
    %v8096 = vsub.f32 %v7668, %v8088
    %v8097 = vsub.f32 %v7673, %v8088
    %v8098 = vsub.f32 %v7678, %v8088
    %v8099 = vsub.f32 %v7683, %v8088
    %v8100 = vsub.f32 %v7688, %v8088
    %v8101 = vsub.f32 %v7693, %v8088
    %v8102 = vsub.f32 %v7698, %v8088
    %v8103 = vsub.f32 %v7703, %v8088
    %v8104 = vsub.f32 %v7708, %v8088
    %v8105 = vsub.f32 %v7713, %v8088
    %v8106 = vsub.f32 %v7718, %v8088
    %v8107 = vsub.f32 %v7723, %v8088
    %v8108 = vsub.f32 %v7728, %v8088
    %v8109 = vsub.f32 %v7733, %v8088
    %v8110 = vsub.f32 %v7738, %v8088
    %v8111 = vsub.f32 %v7743, %v8088
    %v8112 = vsub.f32 %v7748, %v8088
    %v8113 = vsub.f32 %v7753, %v8088
    %v8114 = vsub.f32 %v7758, %v8088
    %v8115 = vsub.f32 %v7763, %v8088
    %v8116 = vsub.f32 %v7768, %v8088
    %v8117 = vsub.f32 %v7773, %v8088
    %v8118 = vsub.f32 %v7778, %v8088
    %v8119 = vsub.f32 %v7783, %v8088
    %v8120 = vsub.f32 %v7788, %v8088
    %v8121 = vsub.f32 %v7793, %v8088
    %v8122 = vsub.f32 %v7798, %v8088
    %v8123 = vsub.f32 %v7803, %v8088
    %v8124 = vsub.f32 %v7808, %v8088
    %v8125 = vsub.f32 %v7813, %v8088
    %v8126 = vsub.f32 %v7818, %v8088
    %v8127 = vsub.f32 %v7823, %v8088
    %v8128 = vsub.f32 %v7828, %v8088
    %v8129 = vsub.f32 %v7833, %v8088
    %v8130 = vsub.f32 %v7838, %v8088
    %v8131 = vsub.f32 %v7843, %v8088
    %v8132 = vsub.f32 %v7848, %v8088
    %v8133 = vsub.f32 %v7853, %v8088
    %v8134 = vsub.f32 %v7858, %v8088
    %v8135 = vsub.f32 %v7863, %v8088
    %v8136 = vsub.f32 %v7868, %v8088
    %v8137 = vsub.f32 %v7873, %v8088
    %v8138 = vsub.f32 %v7878, %v8088
    %v8139 = vsub.f32 %v7883, %v8088
    %v8140 = vsub.f32 %v7888, %v8088
    %v8141 = vsub.f32 %v7893, %v8088
    %v8142 = vsub.f32 %v7898, %v8088
    %v8143 = vsub.f32 %v7903, %v8088
    %v8144 = vsub.f32 %v7908, %v8088
    %v8145 = vsub.f32 %v7913, %v8088
    %v8146 = vsub.f32 %v7918, %v8088
    %v8147 = vsub.f32 %v7923, %v8088
    %v8148 = vsub.f32 %v7928, %v8088
    %v8149 = vsub.f32 %v7933, %v8088
    %v8150 = vsub.f32 %v7938, %v8088
    %v8151 = vsub.f32 %v7943, %v8088
    %v8152 = vsub.f32 %v7948, %v8088
    %v8153 = vmul.f32 %v8089, %v8089
    %v8154 = vmul.f32 %v8090, %v8090
    %v8155 = vmul.f32 %v8091, %v8091
    %v8156 = vmul.f32 %v8092, %v8092
    %v8157 = vmul.f32 %v8093, %v8093
    %v8158 = vmul.f32 %v8094, %v8094
    %v8159 = vmul.f32 %v8095, %v8095
    %v8160 = vmul.f32 %v8096, %v8096
    %v8161 = vmul.f32 %v8097, %v8097
    %v8162 = vmul.f32 %v8098, %v8098
    %v8163 = vmul.f32 %v8099, %v8099
    %v8164 = vmul.f32 %v8100, %v8100
    %v8165 = vmul.f32 %v8101, %v8101
    %v8166 = vmul.f32 %v8102, %v8102
    %v8167 = vmul.f32 %v8103, %v8103
    %v8168 = vmul.f32 %v8104, %v8104
    %v8169 = vmul.f32 %v8105, %v8105
    %v8170 = vmul.f32 %v8106, %v8106
    %v8171 = vmul.f32 %v8107, %v8107
    %v8172 = vmul.f32 %v8108, %v8108
    %v8173 = vmul.f32 %v8109, %v8109
    %v8174 = vmul.f32 %v8110, %v8110
    %v8175 = vmul.f32 %v8111, %v8111
    %v8176 = vmul.f32 %v8112, %v8112
    %v8177 = vmul.f32 %v8113, %v8113
    %v8178 = vmul.f32 %v8114, %v8114
    %v8179 = vmul.f32 %v8115, %v8115
    %v8180 = vmul.f32 %v8116, %v8116
    %v8181 = vmul.f32 %v8117, %v8117
    %v8182 = vmul.f32 %v8118, %v8118
    %v8183 = vmul.f32 %v8119, %v8119
    %v8184 = vmul.f32 %v8120, %v8120
    %v8185 = vmul.f32 %v8121, %v8121
    %v8186 = vmul.f32 %v8122, %v8122
    %v8187 = vmul.f32 %v8123, %v8123
    %v8188 = vmul.f32 %v8124, %v8124
    %v8189 = vmul.f32 %v8125, %v8125
    %v8190 = vmul.f32 %v8126, %v8126
    %v8191 = vmul.f32 %v8127, %v8127
    %v8192 = vmul.f32 %v8128, %v8128
    %v8193 = vmul.f32 %v8129, %v8129
    %v8194 = vmul.f32 %v8130, %v8130
    %v8195 = vmul.f32 %v8131, %v8131
    %v8196 = vmul.f32 %v8132, %v8132
    %v8197 = vmul.f32 %v8133, %v8133
    %v8198 = vmul.f32 %v8134, %v8134
    %v8199 = vmul.f32 %v8135, %v8135
    %v8200 = vmul.f32 %v8136, %v8136
    %v8201 = vmul.f32 %v8137, %v8137
    %v8202 = vmul.f32 %v8138, %v8138
    %v8203 = vmul.f32 %v8139, %v8139
    %v8204 = vmul.f32 %v8140, %v8140
    %v8205 = vmul.f32 %v8141, %v8141
    %v8206 = vmul.f32 %v8142, %v8142
    %v8207 = vmul.f32 %v8143, %v8143
    %v8208 = vmul.f32 %v8144, %v8144
    %v8209 = vmul.f32 %v8145, %v8145
    %v8210 = vmul.f32 %v8146, %v8146
    %v8211 = vmul.f32 %v8147, %v8147
    %v8212 = vmul.f32 %v8148, %v8148
    %v8213 = vmul.f32 %v8149, %v8149
    %v8214 = vmul.f32 %v8150, %v8150
    %v8215 = vmul.f32 %v8151, %v8151
    %v8216 = vmul.f32 %v8152, %v8152
    %v8217 = vsel %vm7953, %v8153, 0.0
    %v8218 = vsel %vm7953, %v8154, 0.0
    %v8219 = vadd.f32 %v8217, %v8218
    %v8220 = vsel %vm7953, %v8155, 0.0
    %v8221 = vadd.f32 %v8219, %v8220
    %v8222 = vsel %vm7953, %v8156, 0.0
    %v8223 = vadd.f32 %v8221, %v8222
    %v8224 = vsel %vm7953, %v8157, 0.0
    %v8225 = vadd.f32 %v8223, %v8224
    %v8226 = vsel %vm7953, %v8158, 0.0
    %v8227 = vadd.f32 %v8225, %v8226
    %v8228 = vsel %vm7953, %v8159, 0.0
    %v8229 = vadd.f32 %v8227, %v8228
    %v8230 = vsel %vm7953, %v8160, 0.0
    %v8231 = vadd.f32 %v8229, %v8230
    %v8232 = vsel %vm7953, %v8161, 0.0
    %v8233 = vadd.f32 %v8231, %v8232
    %v8234 = vsel %vm7953, %v8162, 0.0
    %v8235 = vadd.f32 %v8233, %v8234
    %v8236 = vsel %vm7953, %v8163, 0.0
    %v8237 = vadd.f32 %v8235, %v8236
    %v8238 = vsel %vm7953, %v8164, 0.0
    %v8239 = vadd.f32 %v8237, %v8238
    %v8240 = vsel %vm7953, %v8165, 0.0
    %v8241 = vadd.f32 %v8239, %v8240
    %v8242 = vsel %vm7953, %v8166, 0.0
    %v8243 = vadd.f32 %v8241, %v8242
    %v8244 = vsel %vm7953, %v8167, 0.0
    %v8245 = vadd.f32 %v8243, %v8244
    %v8246 = vsel %vm7953, %v8168, 0.0
    %v8247 = vadd.f32 %v8245, %v8246
    %v8248 = vsel %vm7953, %v8169, 0.0
    %v8249 = vadd.f32 %v8247, %v8248
    %v8250 = vsel %vm7953, %v8170, 0.0
    %v8251 = vadd.f32 %v8249, %v8250
    %v8252 = vsel %vm7953, %v8171, 0.0
    %v8253 = vadd.f32 %v8251, %v8252
    %v8254 = vsel %vm7953, %v8172, 0.0
    %v8255 = vadd.f32 %v8253, %v8254
    %v8256 = vsel %vm7953, %v8173, 0.0
    %v8257 = vadd.f32 %v8255, %v8256
    %v8258 = vsel %vm7953, %v8174, 0.0
    %v8259 = vadd.f32 %v8257, %v8258
    %v8260 = vsel %vm7953, %v8175, 0.0
    %v8261 = vadd.f32 %v8259, %v8260
    %v8262 = vsel %vm7953, %v8176, 0.0
    %v8263 = vadd.f32 %v8261, %v8262
    %v8264 = vsel %vm7953, %v8177, 0.0
    %v8265 = vadd.f32 %v8263, %v8264
    %v8266 = vsel %vm7953, %v8178, 0.0
    %v8267 = vadd.f32 %v8265, %v8266
    %v8268 = vsel %vm7953, %v8179, 0.0
    %v8269 = vadd.f32 %v8267, %v8268
    %v8270 = vsel %vm7953, %v8180, 0.0
    %v8271 = vadd.f32 %v8269, %v8270
    %v8272 = vsel %vm7953, %v8181, 0.0
    %v8273 = vadd.f32 %v8271, %v8272
    %v8274 = vsel %vm7953, %v8182, 0.0
    %v8275 = vadd.f32 %v8273, %v8274
    %v8276 = vsel %vm7953, %v8183, 0.0
    %v8277 = vadd.f32 %v8275, %v8276
    %v8278 = vsel %vm7953, %v8184, 0.0
    %v8279 = vadd.f32 %v8277, %v8278
    %v8280 = vsel %vm7953, %v8185, 0.0
    %v8281 = vadd.f32 %v8279, %v8280
    %v8282 = vsel %vm7953, %v8186, 0.0
    %v8283 = vadd.f32 %v8281, %v8282
    %v8284 = vsel %vm7953, %v8187, 0.0
    %v8285 = vadd.f32 %v8283, %v8284
    %v8286 = vsel %vm7953, %v8188, 0.0
    %v8287 = vadd.f32 %v8285, %v8286
    %v8288 = vsel %vm7953, %v8189, 0.0
    %v8289 = vadd.f32 %v8287, %v8288
    %v8290 = vsel %vm7953, %v8190, 0.0
    %v8291 = vadd.f32 %v8289, %v8290
    %v8292 = vsel %vm7953, %v8191, 0.0
    %v8293 = vadd.f32 %v8291, %v8292
    %v8294 = vsel %vm7953, %v8192, 0.0
    %v8295 = vadd.f32 %v8293, %v8294
    %v8296 = vsel %vm7953, %v8193, 0.0
    %v8297 = vadd.f32 %v8295, %v8296
    %v8298 = vsel %vm7953, %v8194, 0.0
    %v8299 = vadd.f32 %v8297, %v8298
    %v8300 = vsel %vm7953, %v8195, 0.0
    %v8301 = vadd.f32 %v8299, %v8300
    %v8302 = vsel %vm7953, %v8196, 0.0
    %v8303 = vadd.f32 %v8301, %v8302
    %v8304 = vsel %vm7953, %v8197, 0.0
    %v8305 = vadd.f32 %v8303, %v8304
    %v8306 = vsel %vm7953, %v8198, 0.0
    %v8307 = vadd.f32 %v8305, %v8306
    %v8308 = vsel %vm7953, %v8199, 0.0
    %v8309 = vadd.f32 %v8307, %v8308
    %v8310 = vsel %vm7953, %v8200, 0.0
    %v8311 = vadd.f32 %v8309, %v8310
    %v8312 = vsel %vm7953, %v8201, 0.0
    %v8313 = vadd.f32 %v8311, %v8312
    %v8314 = vsel %vm7953, %v8202, 0.0
    %v8315 = vadd.f32 %v8313, %v8314
    %v8316 = vsel %vm7953, %v8203, 0.0
    %v8317 = vadd.f32 %v8315, %v8316
    %v8318 = vsel %vm7953, %v8204, 0.0
    %v8319 = vadd.f32 %v8317, %v8318
    %v8320 = vsel %vm7953, %v8205, 0.0
    %v8321 = vadd.f32 %v8319, %v8320
    %v8322 = vsel %vm7953, %v8206, 0.0
    %v8323 = vadd.f32 %v8321, %v8322
    %v8324 = vsel %vm7953, %v8207, 0.0
    %v8325 = vadd.f32 %v8323, %v8324
    %v8326 = vsel %vm7953, %v8208, 0.0
    %v8327 = vadd.f32 %v8325, %v8326
    %v8328 = vsel %vm7953, %v8209, 0.0
    %v8329 = vadd.f32 %v8327, %v8328
    %v8330 = vsel %vm7953, %v8210, 0.0
    %v8331 = vadd.f32 %v8329, %v8330
    %v8332 = vsel %vm7953, %v8211, 0.0
    %v8333 = vadd.f32 %v8331, %v8332
    %v8334 = vsel %vm7953, %v8212, 0.0
    %v8335 = vadd.f32 %v8333, %v8334
    %v8336 = vsel %vm7953, %v8213, 0.0
    %v8337 = vadd.f32 %v8335, %v8336
    %v8338 = vsel %vm7953, %v8214, 0.0
    %v8339 = vadd.f32 %v8337, %v8338
    %v8340 = vsel %vm7953, %v8215, 0.0
    %v8341 = vadd.f32 %v8339, %v8340
    %v8342 = vsel %vm7953, %v8216, 0.0
    %v8343 = vadd.f32 %v8341, %v8342
    %v8344 = vrot.slane %v8343, 4
    %v8345 = vadd.f32 %v8343, %v8344
    %v8346 = vrot.slane %v8345, 2
    %v8347 = vadd.f32 %v8345, %v8346
    %v8348 = vrot.slane %v8347, 1
    %v8349 = vadd.f32 %v8347, %v8348
    %v8350 = vmul.f32 %v8349, %v8087
    %v8351 = vadd.f32 %v8350, 1e-05
    %v8352 = vrsqrt.pop %v8351
    %v8353 = vmul.f32 %v7951, %v8352
    %v8354 = vmul.f32 %v8088, %v8353
    %v8355 = vsub.f32 %v7952, %v8354
    %v8357 = vlaneseq
    %v8358 = vshrl.u32 %v8357, 7
    %v8359 = vsub.s32 0, %v8358
    %v8360 = vrot.slane %v8353, %v8359
    %v8362 = vmul.f32 %v7633, %v8360
    %v8363 = vmul.f32 %v7638, %v8360
    %v8364 = vmul.f32 %v7643, %v8360
    %v8365 = vmul.f32 %v7648, %v8360
    %v8366 = vmul.f32 %v7653, %v8360
    %v8367 = vmul.f32 %v7658, %v8360
    %v8368 = vmul.f32 %v7663, %v8360
    %v8369 = vmul.f32 %v7668, %v8360
    %v8370 = vmul.f32 %v7673, %v8360
    %v8371 = vmul.f32 %v7678, %v8360
    %v8372 = vmul.f32 %v7683, %v8360
    %v8373 = vmul.f32 %v7688, %v8360
    %v8374 = vmul.f32 %v7693, %v8360
    %v8375 = vmul.f32 %v7698, %v8360
    %v8376 = vmul.f32 %v7703, %v8360
    %v8377 = vmul.f32 %v7708, %v8360
    %v8378 = vmul.f32 %v7713, %v8360
    %v8379 = vmul.f32 %v7718, %v8360
    %v8380 = vmul.f32 %v7723, %v8360
    %v8381 = vmul.f32 %v7728, %v8360
    %v8382 = vmul.f32 %v7733, %v8360
    %v8383 = vmul.f32 %v7738, %v8360
    %v8384 = vmul.f32 %v7743, %v8360
    %v8385 = vmul.f32 %v7748, %v8360
    %v8386 = vmul.f32 %v7753, %v8360
    %v8387 = vmul.f32 %v7758, %v8360
    %v8388 = vmul.f32 %v7763, %v8360
    %v8389 = vmul.f32 %v7768, %v8360
    %v8390 = vmul.f32 %v7773, %v8360
    %v8391 = vmul.f32 %v7778, %v8360
    %v8392 = vmul.f32 %v7783, %v8360
    %v8393 = vmul.f32 %v7788, %v8360
    %v8394 = vmul.f32 %v7793, %v8360
    %v8395 = vmul.f32 %v7798, %v8360
    %v8396 = vmul.f32 %v7803, %v8360
    %v8397 = vmul.f32 %v7808, %v8360
    %v8398 = vmul.f32 %v7813, %v8360
    %v8399 = vmul.f32 %v7818, %v8360
    %v8400 = vmul.f32 %v7823, %v8360
    %v8401 = vmul.f32 %v7828, %v8360
    %v8402 = vmul.f32 %v7833, %v8360
    %v8403 = vmul.f32 %v7838, %v8360
    %v8404 = vmul.f32 %v7843, %v8360
    %v8405 = vmul.f32 %v7848, %v8360
    %v8406 = vmul.f32 %v7853, %v8360
    %v8407 = vmul.f32 %v7858, %v8360
    %v8408 = vmul.f32 %v7863, %v8360
    %v8409 = vmul.f32 %v7868, %v8360
    %v8410 = vmul.f32 %v7873, %v8360
    %v8411 = vmul.f32 %v7878, %v8360
    %v8412 = vmul.f32 %v7883, %v8360
    %v8413 = vmul.f32 %v7888, %v8360
    %v8414 = vmul.f32 %v7893, %v8360
    %v8415 = vmul.f32 %v7898, %v8360
    %v8416 = vmul.f32 %v7903, %v8360
    %v8417 = vmul.f32 %v7908, %v8360
    %v8418 = vmul.f32 %v7913, %v8360
    %v8419 = vmul.f32 %v7918, %v8360
    %v8420 = vmul.f32 %v7923, %v8360
    %v8421 = vmul.f32 %v7928, %v8360
    %v8422 = vmul.f32 %v7933, %v8360
    %v8423 = vmul.f32 %v7938, %v8360
    %v8424 = vmul.f32 %v7943, %v8360
    %v8425 = vmul.f32 %v7948, %v8360
    %v8427 = vlaneseq
    %v8428 = vshrl.u32 %v8427, 7
    %v8429 = vsub.s32 0, %v8428
    %v8430 = vrot.slane %v8355, %v8429
    %v8432 = vadd.f32 %v8362, %v8430
    %v8433 = vadd.f32 %v8363, %v8430
    %v8434 = vadd.f32 %v8364, %v8430
    %v8435 = vadd.f32 %v8365, %v8430
    %v8436 = vadd.f32 %v8366, %v8430
    %v8437 = vadd.f32 %v8367, %v8430
    %v8438 = vadd.f32 %v8368, %v8430
    %v8439 = vadd.f32 %v8369, %v8430
    %v8440 = vadd.f32 %v8370, %v8430
    %v8441 = vadd.f32 %v8371, %v8430
    %v8442 = vadd.f32 %v8372, %v8430
    %v8443 = vadd.f32 %v8373, %v8430
    %v8444 = vadd.f32 %v8374, %v8430
    %v8445 = vadd.f32 %v8375, %v8430
    %v8446 = vadd.f32 %v8376, %v8430
    %v8447 = vadd.f32 %v8377, %v8430
    %v8448 = vadd.f32 %v8378, %v8430
    %v8449 = vadd.f32 %v8379, %v8430
    %v8450 = vadd.f32 %v8380, %v8430
    %v8451 = vadd.f32 %v8381, %v8430
    %v8452 = vadd.f32 %v8382, %v8430
    %v8453 = vadd.f32 %v8383, %v8430
    %v8454 = vadd.f32 %v8384, %v8430
    %v8455 = vadd.f32 %v8385, %v8430
    %v8456 = vadd.f32 %v8386, %v8430
    %v8457 = vadd.f32 %v8387, %v8430
    %v8458 = vadd.f32 %v8388, %v8430
    %v8459 = vadd.f32 %v8389, %v8430
    %v8460 = vadd.f32 %v8390, %v8430
    %v8461 = vadd.f32 %v8391, %v8430
    %v8462 = vadd.f32 %v8392, %v8430
    %v8463 = vadd.f32 %v8393, %v8430
    %v8464 = vadd.f32 %v8394, %v8430
    %v8465 = vadd.f32 %v8395, %v8430
    %v8466 = vadd.f32 %v8396, %v8430
    %v8467 = vadd.f32 %v8397, %v8430
    %v8468 = vadd.f32 %v8398, %v8430
    %v8469 = vadd.f32 %v8399, %v8430
    %v8470 = vadd.f32 %v8400, %v8430
    %v8471 = vadd.f32 %v8401, %v8430
    %v8472 = vadd.f32 %v8402, %v8430
    %v8473 = vadd.f32 %v8403, %v8430
    %v8474 = vadd.f32 %v8404, %v8430
    %v8475 = vadd.f32 %v8405, %v8430
    %v8476 = vadd.f32 %v8406, %v8430
    %v8477 = vadd.f32 %v8407, %v8430
    %v8478 = vadd.f32 %v8408, %v8430
    %v8479 = vadd.f32 %v8409, %v8430
    %v8480 = vadd.f32 %v8410, %v8430
    %v8481 = vadd.f32 %v8411, %v8430
    %v8482 = vadd.f32 %v8412, %v8430
    %v8483 = vadd.f32 %v8413, %v8430
    %v8484 = vadd.f32 %v8414, %v8430
    %v8485 = vadd.f32 %v8415, %v8430
    %v8486 = vadd.f32 %v8416, %v8430
    %v8487 = vadd.f32 %v8417, %v8430
    %v8488 = vadd.f32 %v8418, %v8430
    %v8489 = vadd.f32 %v8419, %v8430
    %v8490 = vadd.f32 %v8420, %v8430
    %v8491 = vadd.f32 %v8421, %v8430
    %v8492 = vadd.f32 %v8422, %v8430
    %v8493 = vadd.f32 %v8423, %v8430
    %v8494 = vadd.f32 %v8424, %v8430
    %v8495 = vadd.f32 %v8425, %v8430
    %v8496 = vmax.f32 %v8432, 0.0
    %v8497 = vmax.f32 %v8433, 0.0
    %v8498 = vmax.f32 %v8434, 0.0
    %v8499 = vmax.f32 %v8435, 0.0
    %v8500 = vmax.f32 %v8436, 0.0
    %v8501 = vmax.f32 %v8437, 0.0
    %v8502 = vmax.f32 %v8438, 0.0
    %v8503 = vmax.f32 %v8439, 0.0
    %v8504 = vmax.f32 %v8440, 0.0
    %v8505 = vmax.f32 %v8441, 0.0
    %v8506 = vmax.f32 %v8442, 0.0
    %v8507 = vmax.f32 %v8443, 0.0
    %v8508 = vmax.f32 %v8444, 0.0
    %v8509 = vmax.f32 %v8445, 0.0
    %v8510 = vmax.f32 %v8446, 0.0
    %v8511 = vmax.f32 %v8447, 0.0
    %v8512 = vmax.f32 %v8448, 0.0
    %v8513 = vmax.f32 %v8449, 0.0
    %v8514 = vmax.f32 %v8450, 0.0
    %v8515 = vmax.f32 %v8451, 0.0
    %v8516 = vmax.f32 %v8452, 0.0
    %v8517 = vmax.f32 %v8453, 0.0
    %v8518 = vmax.f32 %v8454, 0.0
    %v8519 = vmax.f32 %v8455, 0.0
    %v8520 = vmax.f32 %v8456, 0.0
    %v8521 = vmax.f32 %v8457, 0.0
    %v8522 = vmax.f32 %v8458, 0.0
    %v8523 = vmax.f32 %v8459, 0.0
    %v8524 = vmax.f32 %v8460, 0.0
    %v8525 = vmax.f32 %v8461, 0.0
    %v8526 = vmax.f32 %v8462, 0.0
    %v8527 = vmax.f32 %v8463, 0.0
    %v8528 = vmax.f32 %v8464, 0.0
    %v8529 = vmax.f32 %v8465, 0.0
    %v8530 = vmax.f32 %v8466, 0.0
    %v8531 = vmax.f32 %v8467, 0.0
    %v8532 = vmax.f32 %v8468, 0.0
    %v8533 = vmax.f32 %v8469, 0.0
    %v8534 = vmax.f32 %v8470, 0.0
    %v8535 = vmax.f32 %v8471, 0.0
    %v8536 = vmax.f32 %v8472, 0.0
    %v8537 = vmax.f32 %v8473, 0.0
    %v8538 = vmax.f32 %v8474, 0.0
    %v8539 = vmax.f32 %v8475, 0.0
    %v8540 = vmax.f32 %v8476, 0.0
    %v8541 = vmax.f32 %v8477, 0.0
    %v8542 = vmax.f32 %v8478, 0.0
    %v8543 = vmax.f32 %v8479, 0.0
    %v8544 = vmax.f32 %v8480, 0.0
    %v8545 = vmax.f32 %v8481, 0.0
    %v8546 = vmax.f32 %v8482, 0.0
    %v8547 = vmax.f32 %v8483, 0.0
    %v8548 = vmax.f32 %v8484, 0.0
    %v8549 = vmax.f32 %v8485, 0.0
    %v8550 = vmax.f32 %v8486, 0.0
    %v8551 = vmax.f32 %v8487, 0.0
    %v8552 = vmax.f32 %v8488, 0.0
    %v8553 = vmax.f32 %v8489, 0.0
    %v8554 = vmax.f32 %v8490, 0.0
    %v8555 = vmax.f32 %v8491, 0.0
    %v8556 = vmax.f32 %v8492, 0.0
    %v8557 = vmax.f32 %v8493, 0.0
    %v8558 = vmax.f32 %v8494, 0.0
    %v8559 = vmax.f32 %v8495, 0.0
    %v8560 = vmax.f32 %v8496, %v8498
    %v8561 = vmax.f32 %v8497, %v8499
    %v8562 = vmax.f32 %v8528, %v8530
    %v8563 = vmax.f32 %v8529, %v8531
    %v8564 = vmax.f32 %v8500, %v8502
    %v8565 = vmax.f32 %v8501, %v8503
    %v8566 = vmax.f32 %v8532, %v8534
    %v8567 = vmax.f32 %v8533, %v8535
    %v8568 = vmax.f32 %v8504, %v8506
    %v8569 = vmax.f32 %v8505, %v8507
    %v8570 = vmax.f32 %v8536, %v8538
    %v8571 = vmax.f32 %v8537, %v8539
    %v8572 = vmax.f32 %v8508, %v8510
    %v8573 = vmax.f32 %v8509, %v8511
    %v8574 = vmax.f32 %v8540, %v8542
    %v8575 = vmax.f32 %v8541, %v8543
    %v8576 = vmax.f32 %v8512, %v8514
    %v8577 = vmax.f32 %v8513, %v8515
    %v8578 = vmax.f32 %v8544, %v8546
    %v8579 = vmax.f32 %v8545, %v8547
    %v8580 = vmax.f32 %v8516, %v8518
    %v8581 = vmax.f32 %v8517, %v8519
    %v8582 = vmax.f32 %v8548, %v8550
    %v8583 = vmax.f32 %v8549, %v8551
    %v8584 = vmax.f32 %v8520, %v8522
    %v8585 = vmax.f32 %v8521, %v8523
    %v8586 = vmax.f32 %v8552, %v8554
    %v8587 = vmax.f32 %v8553, %v8555
    %v8588 = vmax.f32 %v8524, %v8526
    %v8589 = vmax.f32 %v8525, %v8527
    %v8590 = vmax.f32 %v8556, %v8558
    %v8591 = vmax.f32 %v8557, %v8559
    %v8608 = vrot.slane %v8560, 1
    %v8609 = vrot.slane %v8564, 1
    %v8610 = vrot.slane %v8568, 1
    %v8611 = vrot.slane %v8572, 1
    %v8612 = vrot.slane %v8576, 1
    %v8613 = vrot.slane %v8580, 1
    %v8614 = vrot.slane %v8584, 1
    %v8615 = vrot.slane %v8588, 1
    %v8616 = vrot.slane %v8562, 1
    %v8617 = vrot.slane %v8566, 1
    %v8618 = vrot.slane %v8570, 1
    %v8619 = vrot.slane %v8574, 1
    %v8620 = vrot.slane %v8578, 1
    %v8621 = vrot.slane %v8582, 1
    %v8622 = vrot.slane %v8586, 1
    %v8623 = vrot.slane %v8590, 1
    %v8640 = vmax.f32 %v8560, %v8608
    %v8641 = vmax.f32 %v8564, %v8609
    %v8642 = vmax.f32 %v8568, %v8610
    %v8643 = vmax.f32 %v8572, %v8611
    %v8644 = vmax.f32 %v8576, %v8612
    %v8645 = vmax.f32 %v8580, %v8613
    %v8646 = vmax.f32 %v8584, %v8614
    %v8647 = vmax.f32 %v8588, %v8615
    %v8648 = vmax.f32 %v8562, %v8616
    %v8649 = vmax.f32 %v8566, %v8617
    %v8650 = vmax.f32 %v8570, %v8618
    %v8651 = vmax.f32 %v8574, %v8619
    %v8652 = vmax.f32 %v8578, %v8620
    %v8653 = vmax.f32 %v8582, %v8621
    %v8654 = vmax.f32 %v8586, %v8622
    %v8655 = vmax.f32 %v8590, %v8623
    %v8672 = vrot.slane %v8561, 1
    %v8673 = vrot.slane %v8565, 1
    %v8674 = vrot.slane %v8569, 1
    %v8675 = vrot.slane %v8573, 1
    %v8676 = vrot.slane %v8577, 1
    %v8677 = vrot.slane %v8581, 1
    %v8678 = vrot.slane %v8585, 1
    %v8679 = vrot.slane %v8589, 1
    %v8680 = vrot.slane %v8563, 1
    %v8681 = vrot.slane %v8567, 1
    %v8682 = vrot.slane %v8571, 1
    %v8683 = vrot.slane %v8575, 1
    %v8684 = vrot.slane %v8579, 1
    %v8685 = vrot.slane %v8583, 1
    %v8686 = vrot.slane %v8587, 1
    %v8687 = vrot.slane %v8591, 1
    %v8704 = vmax.f32 %v8561, %v8672
    %v8705 = vmax.f32 %v8565, %v8673
    %v8706 = vmax.f32 %v8569, %v8674
    %v8707 = vmax.f32 %v8573, %v8675
    %v8708 = vmax.f32 %v8577, %v8676
    %v8709 = vmax.f32 %v8581, %v8677
    %v8710 = vmax.f32 %v8585, %v8678
    %v8711 = vmax.f32 %v8589, %v8679
    %v8712 = vmax.f32 %v8563, %v8680
    %v8713 = vmax.f32 %v8567, %v8681
    %v8714 = vmax.f32 %v8571, %v8682
    %v8715 = vmax.f32 %v8575, %v8683
    %v8716 = vmax.f32 %v8579, %v8684
    %v8717 = vmax.f32 %v8583, %v8685
    %v8718 = vmax.f32 %v8587, %v8686
    %v8719 = vmax.f32 %v8591, %v8687
    %v8736 = vrot.slane %v8640, 1
    %v8737 = vrot.slane %v8641, 1
    %v8738 = vrot.slane %v8642, 1
    %v8739 = vrot.slane %v8643, 1
    %v8740 = vrot.slane %v8644, 1
    %v8741 = vrot.slane %v8645, 1
    %v8742 = vrot.slane %v8646, 1
    %v8743 = vrot.slane %v8647, 1
    %v8744 = vrot.slane %v8648, 1
    %v8745 = vrot.slane %v8649, 1
    %v8746 = vrot.slane %v8650, 1
    %v8747 = vrot.slane %v8651, 1
    %v8748 = vrot.slane %v8652, 1
    %v8749 = vrot.slane %v8653, 1
    %v8750 = vrot.slane %v8654, 1
    %v8751 = vrot.slane %v8655, 1
    %v8768 = vrot.slane %v8640, 2
    %v8769 = vrot.slane %v8641, 2
    %v8770 = vrot.slane %v8642, 2
    %v8771 = vrot.slane %v8643, 2
    %v8772 = vrot.slane %v8644, 2
    %v8773 = vrot.slane %v8645, 2
    %v8774 = vrot.slane %v8646, 2
    %v8775 = vrot.slane %v8647, 2
    %v8776 = vrot.slane %v8648, 2
    %v8777 = vrot.slane %v8649, 2
    %v8778 = vrot.slane %v8650, 2
    %v8779 = vrot.slane %v8651, 2
    %v8780 = vrot.slane %v8652, 2
    %v8781 = vrot.slane %v8653, 2
    %v8782 = vrot.slane %v8654, 2
    %v8783 = vrot.slane %v8655, 2
    %v8800 = vrot.slane %v8640, 3
    %v8801 = vrot.slane %v8641, 3
    %v8802 = vrot.slane %v8642, 3
    %v8803 = vrot.slane %v8643, 3
    %v8804 = vrot.slane %v8644, 3
    %v8805 = vrot.slane %v8645, 3
    %v8806 = vrot.slane %v8646, 3
    %v8807 = vrot.slane %v8647, 3
    %v8808 = vrot.slane %v8648, 3
    %v8809 = vrot.slane %v8649, 3
    %v8810 = vrot.slane %v8650, 3
    %v8811 = vrot.slane %v8651, 3
    %v8812 = vrot.slane %v8652, 3
    %v8813 = vrot.slane %v8653, 3
    %v8814 = vrot.slane %v8654, 3
    %v8815 = vrot.slane %v8655, 3
    %v8848 = vrot.slane %v8704, 4
    %v8849 = vrot.slane %v8705, 4
    %v8850 = vrot.slane %v8706, 4
    %v8851 = vrot.slane %v8707, 4
    %v8852 = vrot.slane %v8708, 4
    %v8853 = vrot.slane %v8709, 4
    %v8854 = vrot.slane %v8710, 4
    %v8855 = vrot.slane %v8711, 4
    %v8856 = vrot.slane %v8712, 4
    %v8857 = vrot.slane %v8713, 4
    %v8858 = vrot.slane %v8714, 4
    %v8859 = vrot.slane %v8715, 4
    %v8860 = vrot.slane %v8716, 4
    %v8861 = vrot.slane %v8717, 4
    %v8862 = vrot.slane %v8718, 4
    %v8863 = vrot.slane %v8719, 4
    %v8880 = vrot.slane %v8704, 5
    %v8881 = vrot.slane %v8705, 5
    %v8882 = vrot.slane %v8706, 5
    %v8883 = vrot.slane %v8707, 5
    %v8884 = vrot.slane %v8708, 5
    %v8885 = vrot.slane %v8709, 5
    %v8886 = vrot.slane %v8710, 5
    %v8887 = vrot.slane %v8711, 5
    %v8888 = vrot.slane %v8712, 5
    %v8889 = vrot.slane %v8713, 5
    %v8890 = vrot.slane %v8714, 5
    %v8891 = vrot.slane %v8715, 5
    %v8892 = vrot.slane %v8716, 5
    %v8893 = vrot.slane %v8717, 5
    %v8894 = vrot.slane %v8718, 5
    %v8895 = vrot.slane %v8719, 5
    %v8912 = vrot.slane %v8704, 6
    %v8913 = vrot.slane %v8705, 6
    %v8914 = vrot.slane %v8706, 6
    %v8915 = vrot.slane %v8707, 6
    %v8916 = vrot.slane %v8708, 6
    %v8917 = vrot.slane %v8709, 6
    %v8918 = vrot.slane %v8710, 6
    %v8919 = vrot.slane %v8711, 6
    %v8920 = vrot.slane %v8712, 6
    %v8921 = vrot.slane %v8713, 6
    %v8922 = vrot.slane %v8714, 6
    %v8923 = vrot.slane %v8715, 6
    %v8924 = vrot.slane %v8716, 6
    %v8925 = vrot.slane %v8717, 6
    %v8926 = vrot.slane %v8718, 6
    %v8927 = vrot.slane %v8719, 6
    %v8944 = vrot.slane %v8704, 7
    %v8945 = vrot.slane %v8705, 7
    %v8946 = vrot.slane %v8706, 7
    %v8947 = vrot.slane %v8707, 7
    %v8948 = vrot.slane %v8708, 7
    %v8949 = vrot.slane %v8709, 7
    %v8950 = vrot.slane %v8710, 7
    %v8951 = vrot.slane %v8711, 7
    %v8952 = vrot.slane %v8712, 7
    %v8953 = vrot.slane %v8713, 7
    %v8954 = vrot.slane %v8714, 7
    %v8955 = vrot.slane %v8715, 7
    %v8956 = vrot.slane %v8716, 7
    %v8957 = vrot.slane %v8717, 7
    %v8958 = vrot.slane %v8718, 7
    %v8959 = vrot.slane %v8719, 7
    %v8976 = vsel %vm5293, %v8640, %v8736
    %v8977 = vsel %vm5293, %v8641, %v8737
    %v8978 = vsel %vm5293, %v8642, %v8738
    %v8979 = vsel %vm5293, %v8643, %v8739
    %v8980 = vsel %vm5293, %v8644, %v8740
    %v8981 = vsel %vm5293, %v8645, %v8741
    %v8982 = vsel %vm5293, %v8646, %v8742
    %v8983 = vsel %vm5293, %v8647, %v8743
    %v8984 = vsel %vm5293, %v8648, %v8744
    %v8985 = vsel %vm5293, %v8649, %v8745
    %v8986 = vsel %vm5293, %v8650, %v8746
    %v8987 = vsel %vm5293, %v8651, %v8747
    %v8988 = vsel %vm5293, %v8652, %v8748
    %v8989 = vsel %vm5293, %v8653, %v8749
    %v8990 = vsel %vm5293, %v8654, %v8750
    %v8991 = vsel %vm5293, %v8655, %v8751
    %vm8992 = vcmask 1041408
    %v8993 = vsel %vm8992, %v8976, %v8768
    %v8994 = vsel %vm8992, %v8977, %v8769
    %v8995 = vsel %vm8992, %v8978, %v8770
    %v8996 = vsel %vm8992, %v8979, %v8771
    %v8997 = vsel %vm8992, %v8980, %v8772
    %v8998 = vsel %vm8992, %v8981, %v8773
    %v8999 = vsel %vm8992, %v8982, %v8774
    %v9000 = vsel %vm8992, %v8983, %v8775
    %v9001 = vsel %vm8992, %v8984, %v8776
    %v9002 = vsel %vm8992, %v8985, %v8777
    %v9003 = vsel %vm8992, %v8986, %v8778
    %v9004 = vsel %vm8992, %v8987, %v8779
    %v9005 = vsel %vm8992, %v8988, %v8780
    %v9006 = vsel %vm8992, %v8989, %v8781
    %v9007 = vsel %vm8992, %v8990, %v8782
    %v9008 = vsel %vm8992, %v8991, %v8783
    %v9009 = vsel %vm7562, %v8993, %v8800
    %v9010 = vsel %vm7562, %v8994, %v8801
    %v9011 = vsel %vm7562, %v8995, %v8802
    %v9012 = vsel %vm7562, %v8996, %v8803
    %v9013 = vsel %vm7562, %v8997, %v8804
    %v9014 = vsel %vm7562, %v8998, %v8805
    %v9015 = vsel %vm7562, %v8999, %v8806
    %v9016 = vsel %vm7562, %v9000, %v8807
    %v9017 = vsel %vm7562, %v9001, %v8808
    %v9018 = vsel %vm7562, %v9002, %v8809
    %v9019 = vsel %vm7562, %v9003, %v8810
    %v9020 = vsel %vm7562, %v9004, %v8811
    %v9021 = vsel %vm7562, %v9005, %v8812
    %v9022 = vsel %vm7562, %v9006, %v8813
    %v9023 = vsel %vm7562, %v9007, %v8814
    %v9024 = vsel %vm7562, %v9008, %v8815
    %v9025 = vsel %vm1325, %v9009, %v8848
    %v9026 = vsel %vm1325, %v9010, %v8849
    %v9027 = vsel %vm1325, %v9011, %v8850
    %v9028 = vsel %vm1325, %v9012, %v8851
    %v9029 = vsel %vm1325, %v9013, %v8852
    %v9030 = vsel %vm1325, %v9014, %v8853
    %v9031 = vsel %vm1325, %v9015, %v8854
    %v9032 = vsel %vm1325, %v9016, %v8855
    %v9033 = vsel %vm1325, %v9017, %v8856
    %v9034 = vsel %vm1325, %v9018, %v8857
    %v9035 = vsel %vm1325, %v9019, %v8858
    %v9036 = vsel %vm1325, %v9020, %v8859
    %v9037 = vsel %vm1325, %v9021, %v8860
    %v9038 = vsel %vm1325, %v9022, %v8861
    %v9039 = vsel %vm1325, %v9023, %v8862
    %v9040 = vsel %vm1325, %v9024, %v8863
    %v9041 = vsel %vm972, %v9025, %v8880
    %v9042 = vsel %vm972, %v9026, %v8881
    %v9043 = vsel %vm972, %v9027, %v8882
    %v9044 = vsel %vm972, %v9028, %v8883
    %v9045 = vsel %vm972, %v9029, %v8884
    %v9046 = vsel %vm972, %v9030, %v8885
    %v9047 = vsel %vm972, %v9031, %v8886
    %v9048 = vsel %vm972, %v9032, %v8887
    %v9049 = vsel %vm972, %v9033, %v8888
    %v9050 = vsel %vm972, %v9034, %v8889
    %v9051 = vsel %vm972, %v9035, %v8890
    %v9052 = vsel %vm972, %v9036, %v8891
    %v9053 = vsel %vm972, %v9037, %v8892
    %v9054 = vsel %vm972, %v9038, %v8893
    %v9055 = vsel %vm972, %v9039, %v8894
    %v9056 = vsel %vm972, %v9040, %v8895
    %v9057 = vsel %vm619, %v9041, %v8912
    %v9058 = vsel %vm619, %v9042, %v8913
    %v9059 = vsel %vm619, %v9043, %v8914
    %v9060 = vsel %vm619, %v9044, %v8915
    %v9061 = vsel %vm619, %v9045, %v8916
    %v9062 = vsel %vm619, %v9046, %v8917
    %v9063 = vsel %vm619, %v9047, %v8918
    %v9064 = vsel %vm619, %v9048, %v8919
    %v9065 = vsel %vm619, %v9049, %v8920
    %v9066 = vsel %vm619, %v9050, %v8921
    %v9067 = vsel %vm619, %v9051, %v8922
    %v9068 = vsel %vm619, %v9052, %v8923
    %v9069 = vsel %vm619, %v9053, %v8924
    %v9070 = vsel %vm619, %v9054, %v8925
    %v9071 = vsel %vm619, %v9055, %v8926
    %v9072 = vsel %vm619, %v9056, %v8927
    %v9073 = vsel %vm266, %v9057, %v8944
    %v9074 = vsel %vm266, %v9058, %v8945
    %v9075 = vsel %vm266, %v9059, %v8946
    %v9076 = vsel %vm266, %v9060, %v8947
    %v9077 = vsel %vm266, %v9061, %v8948
    %v9078 = vsel %vm266, %v9062, %v8949
    %v9079 = vsel %vm266, %v9063, %v8950
    %v9080 = vsel %vm266, %v9064, %v8951
    %v9081 = vsel %vm266, %v9065, %v8952
    %v9082 = vsel %vm266, %v9066, %v8953
    %v9083 = vsel %vm266, %v9067, %v8954
    %v9084 = vsel %vm266, %v9068, %v8955
    %v9085 = vsel %vm266, %v9069, %v8956
    %v9086 = vsel %vm266, %v9070, %v8957
    %v9087 = vsel %vm266, %v9071, %v8958
    %v9088 = vsel %vm266, %v9072, %v8959
    %v9106 = vrot.slane 0.0, 6
    %v9107 = vrot.slane %v9073, 6
    %v9108 = vrot.slane %v9074, 6
    %v9109 = vrot.slane %v9075, 6
    %v9110 = vrot.slane %v9076, 6
    %v9111 = vrot.slane %v9077, 6
    %v9112 = vrot.slane %v9078, 6
    %v9113 = vrot.slane %v9079, 6
    %v9114 = vrot.slane %v9080, 6
    %v9115 = vrot.slane %v9081, 6
    %v9116 = vrot.slane %v9082, 6
    %v9117 = vrot.slane %v9083, 6
    %v9118 = vrot.slane %v9084, 6
    %v9119 = vrot.slane %v9085, 6
    %v9120 = vrot.slane %v9086, 6
    %v9121 = vrot.slane %v9087, 6
    %v9122 = vrot.slane %v9088, 6
    %v9140 = vsel %vm8992, 0.0, %v9106
    %v9141 = vsel %vm8992, 0.0, %v9107
    %v9142 = vsel %vm8992, 0.0, %v9108
    %v9143 = vsel %vm8992, 0.0, %v9109
    %v9144 = vsel %vm8992, 0.0, %v9110
    %v9145 = vsel %vm8992, 0.0, %v9111
    %v9146 = vsel %vm8992, 0.0, %v9112
    %v9147 = vsel %vm8992, 0.0, %v9113
    %v9148 = vsel %vm8992, 0.0, %v9114
    %v9149 = vsel %vm8992, 0.0, %v9115
    %v9150 = vsel %vm8992, 0.0, %v9116
    %v9151 = vsel %vm8992, 0.0, %v9117
    %v9152 = vsel %vm8992, 0.0, %v9118
    %v9153 = vsel %vm8992, 0.0, %v9119
    %v9154 = vsel %vm8992, 0.0, %v9120
    %v9155 = vsel %vm8992, 0.0, %v9121
    %v9156 = vsel %vm8992, 0.0, %v9122
    %v9157 = vsel %vm8992, %v9106, 0.0
    %v9158 = vsel %vm8992, %v9107, 0.0
    %v9159 = vsel %vm8992, %v9108, 0.0
    %v9160 = vsel %vm8992, %v9109, 0.0
    %v9161 = vsel %vm8992, %v9110, 0.0
    %v9162 = vsel %vm8992, %v9111, 0.0
    %v9163 = vsel %vm8992, %v9112, 0.0
    %v9164 = vsel %vm8992, %v9113, 0.0
    %v9165 = vsel %vm8992, %v9114, 0.0
    %v9166 = vsel %vm8992, %v9115, 0.0
    %v9167 = vsel %vm8992, %v9116, 0.0
    %v9168 = vsel %vm8992, %v9117, 0.0
    %v9169 = vsel %vm8992, %v9118, 0.0
    %v9170 = vsel %vm8992, %v9119, 0.0
    %v9171 = vsel %vm8992, %v9120, 0.0
    %v9172 = vsel %vm8992, %v9121, 0.0
    %v9173 = vsel %vm8992, %v9122, 0.0
    %v9174 = vld [vmem:[%s5] sm:$0xff]
    %v9175 = vld [vmem:[%s5 + $0x8] sm:$0xff]
    %v9176 = vld [vmem:[%s5 + $0x10] sm:$0xff]
    %v9177 = vld [vmem:[%s5 + $0x18] sm:$0xff]
    %v9178 = vld [vmem:[%s5 + $0x20] sm:$0xff]
    %v9179 = vld [vmem:[%s5 + $0x28] sm:$0xff]
    %v9180 = vld [vmem:[%s5 + $0x30] sm:$0xff]
    %v9181 = vld [vmem:[%s5 + $0x38] sm:$0xff]
    %v9182 = vld [vmem:[%s5 + $0x40] sm:$0xff]
    %v9183 = vld [vmem:[%s5 + $0x48] sm:$0xff]
    %v9184 = vld [vmem:[%s5 + $0x50] sm:$0xff]
    %v9185 = vld [vmem:[%s5 + $0x58] sm:$0xff]
    %v9186 = vld [vmem:[%s5 + $0x60] sm:$0xff]
    %v9187 = vld [vmem:[%s5 + $0x68] sm:$0xff]
    %v9188 = vld [vmem:[%s5 + $0x70] sm:$0xff]
    %v9189 = vld [vmem:[%s5 + $0x78] sm:$0xff]
    %v9190 = vld [vmem:[%s5 + $0x80] sm:$0xff]
    %v9191 = vld [vmem:[%s5 + $0x88] sm:$0xff]
    %v9192 = vld [vmem:[%s5 + $0x90] sm:$0xff]
    %v9193 = vld [vmem:[%s5 + $0x98] sm:$0xff]
    %v9194 = vld [vmem:[%s5 + $0xa0] sm:$0xff]
    %v9195 = vld [vmem:[%s5 + $0xa8] sm:$0xff]
    %v9196 = vld [vmem:[%s5 + $0xb0] sm:$0xff]
    %v9197 = vld [vmem:[%s5 + $0xb8] sm:$0xff]
    %v9198 = vld [vmem:[%s5 + $0xc0] sm:$0xff]
    %v9199 = vld [vmem:[%s5 + $0xc8] sm:$0xff]
    %v9200 = vld [vmem:[%s5 + $0xd0] sm:$0xff]
    %v9201 = vld [vmem:[%s5 + $0xd8] sm:$0xff]
    %v9202 = vld [vmem:[%s5 + $0xe0] sm:$0xff]
    %v9203 = vld [vmem:[%s5 + $0xe8] sm:$0xff]
    %v9204 = vld [vmem:[%s5 + $0xf0] sm:$0xff]
    %v9205 = vld [vmem:[%s5 + $0xf8] sm:$0xff]
    %v9206 = vld [vmem:[%s5 + $0x100] sm:$0xff]
    %v9207 = vld [vmem:[%s5 + $0x108] sm:$0xff]
    %v9208 = vld [vmem:[%s5 + $0x110] sm:$0xff]
    %v9209 = vld [vmem:[%s5 + $0x118] sm:$0xff]
    %v9210 = vld [vmem:[%s5 + $0x120] sm:$0xff]
    %v9211 = vld [vmem:[%s5 + $0x128] sm:$0xff]
    %v9212 = vld [vmem:[%s5 + $0x130] sm:$0xff]
    %v9213 = vld [vmem:[%s5 + $0x138] sm:$0xff]
    %v9214 = vld [vmem:[%s5 + $0x140] sm:$0xff]
    %v9215 = vld [vmem:[%s5 + $0x148] sm:$0xff]
    %v9216 = vld [vmem:[%s5 + $0x150] sm:$0xff]
    %v9217 = vld [vmem:[%s5 + $0x158] sm:$0xff]
    %v9218 = vld [vmem:[%s5 + $0x160] sm:$0xff]
    %v9219 = vld [vmem:[%s5 + $0x168] sm:$0xff]
    %v9220 = vld [vmem:[%s5 + $0x170] sm:$0xff]
    %v9221 = vld [vmem:[%s5 + $0x178] sm:$0xff]
    %v9222 = vld [vmem:[%s5 + $0x180] sm:$0xff]
    %v9223 = vld [vmem:[%s5 + $0x188] sm:$0xff]
    %v9224 = vld [vmem:[%s6] sm:$0x1]
    %v9251 = vrot.slane %v9140, 1
    %v9252 = vrot.slane %v9157, 1
    %v9253 = vsel %vm266, %v9251, %v9252
    %v9254 = vrot.slane %v9141, 1
    %v9255 = vrot.slane %v9158, 1
    %v9256 = vsel %vm266, %v9254, %v9255
    %v9257 = vrot.slane %v9142, 1
    %v9258 = vrot.slane %v9159, 1
    %v9259 = vsel %vm266, %v9257, %v9258
    %v9260 = vrot.slane %v9143, 1
    %v9261 = vrot.slane %v9160, 1
    %v9262 = vsel %vm266, %v9260, %v9261
    %v9263 = vrot.slane %v9144, 1
    %v9264 = vrot.slane %v9161, 1
    %v9265 = vsel %vm266, %v9263, %v9264
    %v9266 = vrot.slane %v9145, 1
    %v9267 = vrot.slane %v9162, 1
    %v9268 = vsel %vm266, %v9266, %v9267
    %v9269 = vrot.slane %v9146, 1
    %v9270 = vrot.slane %v9163, 1
    %v9271 = vsel %vm266, %v9269, %v9270
    %v9272 = vrot.slane %v9149, 1
    %v9273 = vrot.slane %v9166, 1
    %v9274 = vsel %vm266, %v9272, %v9273
    %v9275 = vrot.slane %v9150, 1
    %v9276 = vrot.slane %v9167, 1
    %v9277 = vsel %vm266, %v9275, %v9276
    %v9278 = vrot.slane %v9151, 1
    %v9279 = vrot.slane %v9168, 1
    %v9280 = vsel %vm266, %v9278, %v9279
    %v9281 = vrot.slane %v9152, 1
    %v9282 = vrot.slane %v9169, 1
    %v9283 = vsel %vm266, %v9281, %v9282
    %v9284 = vrot.slane %v9153, 1
    %v9285 = vrot.slane %v9170, 1
    %v9286 = vsel %vm266, %v9284, %v9285
    %v9287 = vrot.slane %v9154, 1
    %v9288 = vrot.slane %v9171, 1
    %v9289 = vsel %vm266, %v9287, %v9288
    %9290 = vrot.lane.b32.xlu0 %v9253, 16
    %v9291 = vpop.permute.xlu0 %9290
    %9292 = vrot.lane.b32.xlu0 %v9256, 16
    %v9293 = vpop.permute.xlu0 %9292
    %9294 = vrot.lane.b32.xlu0 %v9259, 16
    %v9295 = vpop.permute.xlu0 %9294
    %9296 = vrot.lane.b32.xlu0 %v9262, 16
    %v9297 = vpop.permute.xlu0 %9296
    %9298 = vrot.lane.b32.xlu0 %v9265, 16
    %v9299 = vpop.permute.xlu0 %9298
    %9300 = vrot.lane.b32.xlu0 %v9268, 16
    %v9301 = vpop.permute.xlu0 %9300
    %9302 = vrot.lane.b32.xlu0 %v9271, 16
    %v9303 = vpop.permute.xlu0 %9302
    %9304 = vrot.lane.b32.xlu0 %v9274, 16
    %v9305 = vpop.permute.xlu0 %9304
    %9306 = vrot.lane.b32.xlu0 %v9277, 16
    %v9307 = vpop.permute.xlu0 %9306
    %9308 = vrot.lane.b32.xlu0 %v9280, 16
    %v9309 = vpop.permute.xlu0 %9308
    %9310 = vrot.lane.b32.xlu0 %v9283, 16
    %v9311 = vpop.permute.xlu0 %9310
    %9312 = vrot.lane.b32.xlu0 %v9286, 16
    %v9313 = vpop.permute.xlu0 %9312
    %9314 = vrot.lane.b32.xlu0 %v9289, 16
    %v9315 = vpop.permute.xlu0 %9314
    %v9329 = vrot.slane %v9140, 2
    %v9330 = vrot.slane %v9157, 2
    %v9331 = vsel %vm619, %v9329, %v9330
    %v9332 = vrot.slane %v9141, 2
    %v9333 = vrot.slane %v9158, 2
    %v9334 = vsel %vm619, %v9332, %v9333
    %v9335 = vrot.slane %v9142, 2
    %v9336 = vrot.slane %v9159, 2
    %v9337 = vsel %vm619, %v9335, %v9336
    %v9338 = vrot.slane %v9143, 2
    %v9339 = vrot.slane %v9160, 2
    %v9340 = vsel %vm619, %v9338, %v9339
    %v9341 = vrot.slane %v9144, 2
    %v9342 = vrot.slane %v9161, 2
    %v9343 = vsel %vm619, %v9341, %v9342
    %v9344 = vrot.slane %v9145, 2
    %v9345 = vrot.slane %v9162, 2
    %v9346 = vsel %vm619, %v9344, %v9345
    %v9347 = vrot.slane %v9146, 2
    %v9348 = vrot.slane %v9163, 2
    %v9349 = vsel %vm619, %v9347, %v9348
    %v9350 = vrot.slane %v9149, 2
    %v9351 = vrot.slane %v9166, 2
    %v9352 = vsel %vm619, %v9350, %v9351
    %v9353 = vrot.slane %v9150, 2
    %v9354 = vrot.slane %v9167, 2
    %v9355 = vsel %vm619, %v9353, %v9354
    %v9356 = vrot.slane %v9151, 2
    %v9357 = vrot.slane %v9168, 2
    %v9358 = vsel %vm619, %v9356, %v9357
    %v9359 = vrot.slane %v9152, 2
    %v9360 = vrot.slane %v9169, 2
    %v9361 = vsel %vm619, %v9359, %v9360
    %v9362 = vrot.slane %v9153, 2
    %v9363 = vrot.slane %v9170, 2
    %v9364 = vsel %vm619, %v9362, %v9363
    %v9365 = vrot.slane %v9154, 2
    %v9366 = vrot.slane %v9171, 2
    %v9367 = vsel %vm619, %v9365, %v9366
    %9368 = vrot.lane.b32.xlu0 %v9331, 32
    %v9369 = vpop.permute.xlu0 %9368
    %9370 = vrot.lane.b32.xlu0 %v9334, 32
    %v9371 = vpop.permute.xlu0 %9370
    %9372 = vrot.lane.b32.xlu0 %v9337, 32
    %v9373 = vpop.permute.xlu0 %9372
    %9374 = vrot.lane.b32.xlu0 %v9340, 32
    %v9375 = vpop.permute.xlu0 %9374
    %9376 = vrot.lane.b32.xlu0 %v9343, 32
    %v9377 = vpop.permute.xlu0 %9376
    %9378 = vrot.lane.b32.xlu0 %v9346, 32
    %v9379 = vpop.permute.xlu0 %9378
    %9380 = vrot.lane.b32.xlu0 %v9349, 32
    %v9381 = vpop.permute.xlu0 %9380
    %9382 = vrot.lane.b32.xlu0 %v9352, 32
    %v9383 = vpop.permute.xlu0 %9382
    %9384 = vrot.lane.b32.xlu0 %v9355, 32
    %v9385 = vpop.permute.xlu0 %9384
    %9386 = vrot.lane.b32.xlu0 %v9358, 32
    %v9387 = vpop.permute.xlu0 %9386
    %9388 = vrot.lane.b32.xlu0 %v9361, 32
    %v9389 = vpop.permute.xlu0 %9388
    %9390 = vrot.lane.b32.xlu0 %v9364, 32
    %v9391 = vpop.permute.xlu0 %9390
    %9392 = vrot.lane.b32.xlu0 %v9367, 32
    %v9393 = vpop.permute.xlu0 %9392
    %v9407 = vrot.slane %v9140, 3
    %v9408 = vrot.slane %v9157, 3
    %v9409 = vsel %vm972, %v9407, %v9408
    %v9410 = vrot.slane %v9141, 3
    %v9411 = vrot.slane %v9158, 3
    %v9412 = vsel %vm972, %v9410, %v9411
    %v9413 = vrot.slane %v9142, 3
    %v9414 = vrot.slane %v9159, 3
    %v9415 = vsel %vm972, %v9413, %v9414
    %v9416 = vrot.slane %v9143, 3
    %v9417 = vrot.slane %v9160, 3
    %v9418 = vsel %vm972, %v9416, %v9417
    %v9419 = vrot.slane %v9144, 3
    %v9420 = vrot.slane %v9161, 3
    %v9421 = vsel %vm972, %v9419, %v9420
    %v9422 = vrot.slane %v9145, 3
    %v9423 = vrot.slane %v9162, 3
    %v9424 = vsel %vm972, %v9422, %v9423
    %v9425 = vrot.slane %v9146, 3
    %v9426 = vrot.slane %v9163, 3
    %v9427 = vsel %vm972, %v9425, %v9426
    %v9428 = vrot.slane %v9149, 3
    %v9429 = vrot.slane %v9166, 3
    %v9430 = vsel %vm972, %v9428, %v9429
    %v9431 = vrot.slane %v9150, 3
    %v9432 = vrot.slane %v9167, 3
    %v9433 = vsel %vm972, %v9431, %v9432
    %v9434 = vrot.slane %v9151, 3
    %v9435 = vrot.slane %v9168, 3
    %v9436 = vsel %vm972, %v9434, %v9435
    %v9437 = vrot.slane %v9152, 3
    %v9438 = vrot.slane %v9169, 3
    %v9439 = vsel %vm972, %v9437, %v9438
    %v9440 = vrot.slane %v9153, 3
    %v9441 = vrot.slane %v9170, 3
    %v9442 = vsel %vm972, %v9440, %v9441
    %v9443 = vrot.slane %v9154, 3
    %v9444 = vrot.slane %v9171, 3
    %v9445 = vsel %vm972, %v9443, %v9444
    %9446 = vrot.lane.b32.xlu0 %v9409, 48
    %v9447 = vpop.permute.xlu0 %9446
    %9448 = vrot.lane.b32.xlu0 %v9412, 48
    %v9449 = vpop.permute.xlu0 %9448
    %9450 = vrot.lane.b32.xlu0 %v9415, 48
    %v9451 = vpop.permute.xlu0 %9450
    %9452 = vrot.lane.b32.xlu0 %v9418, 48
    %v9453 = vpop.permute.xlu0 %9452
    %9454 = vrot.lane.b32.xlu0 %v9421, 48
    %v9455 = vpop.permute.xlu0 %9454
    %9456 = vrot.lane.b32.xlu0 %v9424, 48
    %v9457 = vpop.permute.xlu0 %9456
    %9458 = vrot.lane.b32.xlu0 %v9427, 48
    %v9459 = vpop.permute.xlu0 %9458
    %9460 = vrot.lane.b32.xlu0 %v9430, 48
    %v9461 = vpop.permute.xlu0 %9460
    %9462 = vrot.lane.b32.xlu0 %v9433, 48
    %v9463 = vpop.permute.xlu0 %9462
    %9464 = vrot.lane.b32.xlu0 %v9436, 48
    %v9465 = vpop.permute.xlu0 %9464
    %9466 = vrot.lane.b32.xlu0 %v9439, 48
    %v9467 = vpop.permute.xlu0 %9466
    %9468 = vrot.lane.b32.xlu0 %v9442, 48
    %v9469 = vpop.permute.xlu0 %9468
    %9470 = vrot.lane.b32.xlu0 %v9445, 48
    %v9471 = vpop.permute.xlu0 %9470
    %v9485 = vrot.slane %v9140, 4
    %v9486 = vrot.slane %v9157, 4
    %v9487 = vsel %vm1325, %v9485, %v9486
    %v9488 = vrot.slane %v9141, 4
    %v9489 = vrot.slane %v9158, 4
    %v9490 = vsel %vm1325, %v9488, %v9489
    %v9491 = vrot.slane %v9142, 4
    %v9492 = vrot.slane %v9159, 4
    %v9493 = vsel %vm1325, %v9491, %v9492
    %v9494 = vrot.slane %v9143, 4
    %v9495 = vrot.slane %v9160, 4
    %v9496 = vsel %vm1325, %v9494, %v9495
    %v9497 = vrot.slane %v9144, 4
    %v9498 = vrot.slane %v9161, 4
    %v9499 = vsel %vm1325, %v9497, %v9498
    %v9500 = vrot.slane %v9145, 4
    %v9501 = vrot.slane %v9162, 4
    %v9502 = vsel %vm1325, %v9500, %v9501
    %v9503 = vrot.slane %v9146, 4
    %v9504 = vrot.slane %v9163, 4
    %v9505 = vsel %vm1325, %v9503, %v9504
    %v9506 = vrot.slane %v9149, 4
    %v9507 = vrot.slane %v9166, 4
    %v9508 = vsel %vm1325, %v9506, %v9507
    %v9509 = vrot.slane %v9150, 4
    %v9510 = vrot.slane %v9167, 4
    %v9511 = vsel %vm1325, %v9509, %v9510
    %v9512 = vrot.slane %v9151, 4
    %v9513 = vrot.slane %v9168, 4
    %v9514 = vsel %vm1325, %v9512, %v9513
    %v9515 = vrot.slane %v9152, 4
    %v9516 = vrot.slane %v9169, 4
    %v9517 = vsel %vm1325, %v9515, %v9516
    %v9518 = vrot.slane %v9153, 4
    %v9519 = vrot.slane %v9170, 4
    %v9520 = vsel %vm1325, %v9518, %v9519
    %v9521 = vrot.slane %v9154, 4
    %v9522 = vrot.slane %v9171, 4
    %v9523 = vsel %vm1325, %v9521, %v9522
    %9524 = vrot.lane.b32.xlu0 %v9487, 64
    %v9525 = vpop.permute.xlu0 %9524
    %9526 = vrot.lane.b32.xlu0 %v9490, 64
    %v9527 = vpop.permute.xlu0 %9526
    %9528 = vrot.lane.b32.xlu0 %v9493, 64
    %v9529 = vpop.permute.xlu0 %9528
    %9530 = vrot.lane.b32.xlu0 %v9496, 64
    %v9531 = vpop.permute.xlu0 %9530
    %9532 = vrot.lane.b32.xlu0 %v9499, 64
    %v9533 = vpop.permute.xlu0 %9532
    %9534 = vrot.lane.b32.xlu0 %v9502, 64
    %v9535 = vpop.permute.xlu0 %9534
    %9536 = vrot.lane.b32.xlu0 %v9505, 64
    %v9537 = vpop.permute.xlu0 %9536
    %9538 = vrot.lane.b32.xlu0 %v9508, 64
    %v9539 = vpop.permute.xlu0 %9538
    %9540 = vrot.lane.b32.xlu0 %v9511, 64
    %v9541 = vpop.permute.xlu0 %9540
    %9542 = vrot.lane.b32.xlu0 %v9514, 64
    %v9543 = vpop.permute.xlu0 %9542
    %9544 = vrot.lane.b32.xlu0 %v9517, 64
    %v9545 = vpop.permute.xlu0 %9544
    %9546 = vrot.lane.b32.xlu0 %v9520, 64
    %v9547 = vpop.permute.xlu0 %9546
    %9548 = vrot.lane.b32.xlu0 %v9523, 64
    %v9549 = vpop.permute.xlu0 %9548
    %9565 = vrot.lane.b32.xlu0 %v9140, 80
    %v9566 = vpop.permute.xlu0 %9565
    %9567 = vrot.lane.b32.xlu0 %v9141, 80
    %v9568 = vpop.permute.xlu0 %9567
    %9569 = vrot.lane.b32.xlu0 %v9142, 80
    %v9570 = vpop.permute.xlu0 %9569
    %9571 = vrot.lane.b32.xlu0 %v9143, 80
    %v9572 = vpop.permute.xlu0 %9571
    %9573 = vrot.lane.b32.xlu0 %v9144, 80
    %v9574 = vpop.permute.xlu0 %9573
    %9575 = vrot.lane.b32.xlu0 %v9145, 80
    %v9576 = vpop.permute.xlu0 %9575
    %9577 = vrot.lane.b32.xlu0 %v9146, 80
    %v9578 = vpop.permute.xlu0 %9577
    %9579 = vrot.lane.b32.xlu0 %v9147, 80
    %v9580 = vpop.permute.xlu0 %9579
    %9581 = vrot.lane.b32.xlu0 %v9149, 80
    %v9582 = vpop.permute.xlu0 %9581
    %9583 = vrot.lane.b32.xlu0 %v9150, 80
    %v9584 = vpop.permute.xlu0 %9583
    %9585 = vrot.lane.b32.xlu0 %v9151, 80
    %v9586 = vpop.permute.xlu0 %9585
    %9587 = vrot.lane.b32.xlu0 %v9152, 80
    %v9588 = vpop.permute.xlu0 %9587
    %9589 = vrot.lane.b32.xlu0 %v9153, 80
    %v9590 = vpop.permute.xlu0 %9589
    %9591 = vrot.lane.b32.xlu0 %v9154, 80
    %v9592 = vpop.permute.xlu0 %9591
    %9593 = vrot.lane.b32.xlu0 %v9155, 80
    %v9594 = vpop.permute.xlu0 %9593
    %v9612 = vrot.slane %v9147, 1
    %v9613 = vrot.slane %v9164, 1
    %v9614 = vsel %vm266, %v9612, %v9613
    %v9615 = vrot.slane %v9155, 1
    %v9616 = vrot.slane %v9172, 1
    %v9617 = vsel %vm266, %v9615, %v9616
    %9618 = vrot.lane.b32.xlu0 %v9253, 96
    %v9619 = vpop.permute.xlu0 %9618
    %9620 = vrot.lane.b32.xlu0 %v9256, 96
    %v9621 = vpop.permute.xlu0 %9620
    %9622 = vrot.lane.b32.xlu0 %v9259, 96
    %v9623 = vpop.permute.xlu0 %9622
    %9624 = vrot.lane.b32.xlu0 %v9262, 96
    %v9625 = vpop.permute.xlu0 %9624
    %9626 = vrot.lane.b32.xlu0 %v9265, 96
    %v9627 = vpop.permute.xlu0 %9626
    %9628 = vrot.lane.b32.xlu0 %v9268, 96
    %v9629 = vpop.permute.xlu0 %9628
    %9630 = vrot.lane.b32.xlu0 %v9271, 96
    %v9631 = vpop.permute.xlu0 %9630
    %9632 = vrot.lane.b32.xlu0 %v9614, 96
    %v9633 = vpop.permute.xlu0 %9632
    %9634 = vrot.lane.b32.xlu0 %v9274, 96
    %v9635 = vpop.permute.xlu0 %9634
    %9636 = vrot.lane.b32.xlu0 %v9277, 96
    %v9637 = vpop.permute.xlu0 %9636
    %9638 = vrot.lane.b32.xlu0 %v9280, 96
    %v9639 = vpop.permute.xlu0 %9638
    %9640 = vrot.lane.b32.xlu0 %v9283, 96
    %v9641 = vpop.permute.xlu0 %9640
    %9642 = vrot.lane.b32.xlu0 %v9286, 96
    %v9643 = vpop.permute.xlu0 %9642
    %9644 = vrot.lane.b32.xlu0 %v9289, 96
    %v9645 = vpop.permute.xlu0 %9644
    %9646 = vrot.lane.b32.xlu0 %v9617, 96
    %v9647 = vpop.permute.xlu0 %9646
    %v9663 = vrot.slane %v9147, 2
    %v9664 = vrot.slane %v9164, 2
    %v9665 = vsel %vm619, %v9663, %v9664
    %v9666 = vrot.slane %v9155, 2
    %v9667 = vrot.slane %v9172, 2
    %v9668 = vsel %vm619, %v9666, %v9667
    %9669 = vrot.lane.b32.xlu0 %v9331, 112
    %v9670 = vpop.permute.xlu0 %9669
    %9671 = vrot.lane.b32.xlu0 %v9334, 112
    %v9672 = vpop.permute.xlu0 %9671
    %9673 = vrot.lane.b32.xlu0 %v9337, 112
    %v9674 = vpop.permute.xlu0 %9673
    %9675 = vrot.lane.b32.xlu0 %v9340, 112
    %v9676 = vpop.permute.xlu0 %9675
    %9677 = vrot.lane.b32.xlu0 %v9343, 112
    %v9678 = vpop.permute.xlu0 %9677
    %9679 = vrot.lane.b32.xlu0 %v9346, 112
    %v9680 = vpop.permute.xlu0 %9679
    %9681 = vrot.lane.b32.xlu0 %v9349, 112
    %v9682 = vpop.permute.xlu0 %9681
    %9683 = vrot.lane.b32.xlu0 %v9665, 112
    %v9684 = vpop.permute.xlu0 %9683
    %9685 = vrot.lane.b32.xlu0 %v9352, 112
    %v9686 = vpop.permute.xlu0 %9685
    %9687 = vrot.lane.b32.xlu0 %v9355, 112
    %v9688 = vpop.permute.xlu0 %9687
    %9689 = vrot.lane.b32.xlu0 %v9358, 112
    %v9690 = vpop.permute.xlu0 %9689
    %9691 = vrot.lane.b32.xlu0 %v9361, 112
    %v9692 = vpop.permute.xlu0 %9691
    %9693 = vrot.lane.b32.xlu0 %v9364, 112
    %v9694 = vpop.permute.xlu0 %9693
    %9695 = vrot.lane.b32.xlu0 %v9367, 112
    %v9696 = vpop.permute.xlu0 %9695
    %9697 = vrot.lane.b32.xlu0 %v9668, 112
    %v9698 = vpop.permute.xlu0 %9697
    %v9714 = vrot.slane %v9147, 3
    %v9715 = vrot.slane %v9164, 3
    %v9716 = vsel %vm972, %v9714, %v9715
    %v9717 = vrot.slane %v9155, 3
    %v9718 = vrot.slane %v9172, 3
    %v9719 = vsel %vm972, %v9717, %v9718
    %v9735 = vrot.slane %v9147, 4
    %v9736 = vrot.slane %v9164, 4
    %v9737 = vsel %vm1325, %v9735, %v9736
    %v9738 = vrot.slane %v9155, 4
    %v9739 = vrot.slane %v9172, 4
    %v9740 = vsel %vm1325, %v9738, %v9739
    %9741 = vrot.lane.b32.xlu0 %v9487, 16
    %v9742 = vpop.permute.xlu0 %9741
    %9743 = vrot.lane.b32.xlu0 %v9490, 16
    %v9744 = vpop.permute.xlu0 %9743
    %9745 = vrot.lane.b32.xlu0 %v9493, 16
    %v9746 = vpop.permute.xlu0 %9745
    %9747 = vrot.lane.b32.xlu0 %v9496, 16
    %v9748 = vpop.permute.xlu0 %9747
    %9749 = vrot.lane.b32.xlu0 %v9499, 16
    %v9750 = vpop.permute.xlu0 %9749
    %9751 = vrot.lane.b32.xlu0 %v9502, 16
    %v9752 = vpop.permute.xlu0 %9751
    %9753 = vrot.lane.b32.xlu0 %v9505, 16
    %v9754 = vpop.permute.xlu0 %9753
    %9755 = vrot.lane.b32.xlu0 %v9737, 16
    %v9756 = vpop.permute.xlu0 %9755
    %9757 = vrot.lane.b32.xlu0 %v9508, 16
    %v9758 = vpop.permute.xlu0 %9757
    %9759 = vrot.lane.b32.xlu0 %v9511, 16
    %v9760 = vpop.permute.xlu0 %9759
    %9761 = vrot.lane.b32.xlu0 %v9514, 16
    %v9762 = vpop.permute.xlu0 %9761
    %9763 = vrot.lane.b32.xlu0 %v9517, 16
    %v9764 = vpop.permute.xlu0 %9763
    %9765 = vrot.lane.b32.xlu0 %v9520, 16
    %v9766 = vpop.permute.xlu0 %9765
    %9767 = vrot.lane.b32.xlu0 %v9523, 16
    %v9768 = vpop.permute.xlu0 %9767
    %9769 = vrot.lane.b32.xlu0 %v9740, 16
    %v9770 = vpop.permute.xlu0 %9769
    %9788 = vrot.lane.b32.xlu0 %v9141, 32
    %v9789 = vpop.permute.xlu0 %9788
    %9790 = vrot.lane.b32.xlu0 %v9142, 32
    %v9791 = vpop.permute.xlu0 %9790
    %9792 = vrot.lane.b32.xlu0 %v9143, 32
    %v9793 = vpop.permute.xlu0 %9792
    %9794 = vrot.lane.b32.xlu0 %v9144, 32
    %v9795 = vpop.permute.xlu0 %9794
    %9796 = vrot.lane.b32.xlu0 %v9145, 32
    %v9797 = vpop.permute.xlu0 %9796
    %9798 = vrot.lane.b32.xlu0 %v9146, 32
    %v9799 = vpop.permute.xlu0 %9798
    %9800 = vrot.lane.b32.xlu0 %v9147, 32
    %v9801 = vpop.permute.xlu0 %9800
    %9802 = vrot.lane.b32.xlu0 %v9148, 32
    %v9803 = vpop.permute.xlu0 %9802
    %9804 = vrot.lane.b32.xlu0 %v9149, 32
    %v9805 = vpop.permute.xlu0 %9804
    %9806 = vrot.lane.b32.xlu0 %v9150, 32
    %v9807 = vpop.permute.xlu0 %9806
    %9808 = vrot.lane.b32.xlu0 %v9151, 32
    %v9809 = vpop.permute.xlu0 %9808
    %9810 = vrot.lane.b32.xlu0 %v9152, 32
    %v9811 = vpop.permute.xlu0 %9810
    %9812 = vrot.lane.b32.xlu0 %v9153, 32
    %v9813 = vpop.permute.xlu0 %9812
    %9814 = vrot.lane.b32.xlu0 %v9154, 32
    %v9815 = vpop.permute.xlu0 %9814
    %9816 = vrot.lane.b32.xlu0 %v9155, 32
    %v9817 = vpop.permute.xlu0 %9816
    %9818 = vrot.lane.b32.xlu0 %v9156, 32
    %v9819 = vpop.permute.xlu0 %9818
    %v9838 = vrot.slane %v9148, 1
    %v9839 = vrot.slane %v9165, 1
    %v9840 = vsel %vm266, %v9838, %v9839
    %v9841 = vrot.slane %v9156, 1
    %v9842 = vrot.slane %v9173, 1
    %v9843 = vsel %vm266, %v9841, %v9842
    %9844 = vrot.lane.b32.xlu0 %v9256, 48
    %v9845 = vpop.permute.xlu0 %9844
    %9846 = vrot.lane.b32.xlu0 %v9259, 48
    %v9847 = vpop.permute.xlu0 %9846
    %9848 = vrot.lane.b32.xlu0 %v9262, 48
    %v9849 = vpop.permute.xlu0 %9848
    %9850 = vrot.lane.b32.xlu0 %v9265, 48
    %v9851 = vpop.permute.xlu0 %9850
    %9852 = vrot.lane.b32.xlu0 %v9268, 48
    %v9853 = vpop.permute.xlu0 %9852
    %9854 = vrot.lane.b32.xlu0 %v9271, 48
    %v9855 = vpop.permute.xlu0 %9854
    %9856 = vrot.lane.b32.xlu0 %v9614, 48
    %v9857 = vpop.permute.xlu0 %9856
    %9858 = vrot.lane.b32.xlu0 %v9840, 48
    %v9859 = vpop.permute.xlu0 %9858
    %9860 = vrot.lane.b32.xlu0 %v9274, 48
    %v9861 = vpop.permute.xlu0 %9860
    %9862 = vrot.lane.b32.xlu0 %v9277, 48
    %v9863 = vpop.permute.xlu0 %9862
    %9864 = vrot.lane.b32.xlu0 %v9280, 48
    %v9865 = vpop.permute.xlu0 %9864
    %9866 = vrot.lane.b32.xlu0 %v9283, 48
    %v9867 = vpop.permute.xlu0 %9866
    %9868 = vrot.lane.b32.xlu0 %v9286, 48
    %v9869 = vpop.permute.xlu0 %9868
    %9870 = vrot.lane.b32.xlu0 %v9289, 48
    %v9871 = vpop.permute.xlu0 %9870
    %9872 = vrot.lane.b32.xlu0 %v9617, 48
    %v9873 = vpop.permute.xlu0 %9872
    %9874 = vrot.lane.b32.xlu0 %v9843, 48
    %v9875 = vpop.permute.xlu0 %9874
    %v9892 = vrot.slane %v9148, 2
    %v9893 = vrot.slane %v9165, 2
    %v9894 = vsel %vm619, %v9892, %v9893
    %v9895 = vrot.slane %v9156, 2
    %v9896 = vrot.slane %v9173, 2
    %v9897 = vsel %vm619, %v9895, %v9896
    %9898 = vrot.lane.b32.xlu0 %v9334, 64
    %v9899 = vpop.permute.xlu0 %9898
    %9900 = vrot.lane.b32.xlu0 %v9337, 64
    %v9901 = vpop.permute.xlu0 %9900
    %9902 = vrot.lane.b32.xlu0 %v9340, 64
    %v9903 = vpop.permute.xlu0 %9902
    %9904 = vrot.lane.b32.xlu0 %v9343, 64
    %v9905 = vpop.permute.xlu0 %9904
    %9906 = vrot.lane.b32.xlu0 %v9346, 64
    %v9907 = vpop.permute.xlu0 %9906
    %9908 = vrot.lane.b32.xlu0 %v9349, 64
    %v9909 = vpop.permute.xlu0 %9908
    %9910 = vrot.lane.b32.xlu0 %v9665, 64
    %v9911 = vpop.permute.xlu0 %9910
    %9912 = vrot.lane.b32.xlu0 %v9894, 64
    %v9913 = vpop.permute.xlu0 %9912
    %9914 = vrot.lane.b32.xlu0 %v9352, 64
    %v9915 = vpop.permute.xlu0 %9914
    %9916 = vrot.lane.b32.xlu0 %v9355, 64
    %v9917 = vpop.permute.xlu0 %9916
    %9918 = vrot.lane.b32.xlu0 %v9358, 64
    %v9919 = vpop.permute.xlu0 %9918
    %9920 = vrot.lane.b32.xlu0 %v9361, 64
    %v9921 = vpop.permute.xlu0 %9920
    %9922 = vrot.lane.b32.xlu0 %v9364, 64
    %v9923 = vpop.permute.xlu0 %9922
    %9924 = vrot.lane.b32.xlu0 %v9367, 64
    %v9925 = vpop.permute.xlu0 %9924
    %9926 = vrot.lane.b32.xlu0 %v9668, 64
    %v9927 = vpop.permute.xlu0 %9926
    %9928 = vrot.lane.b32.xlu0 %v9897, 64
    %v9929 = vpop.permute.xlu0 %9928
    %v9946 = vrot.slane %v9148, 3
    %v9947 = vrot.slane %v9165, 3
    %v9948 = vsel %vm972, %v9946, %v9947
    %v9949 = vrot.slane %v9156, 3
    %v9950 = vrot.slane %v9173, 3
    %v9951 = vsel %vm972, %v9949, %v9950
    %9952 = vrot.lane.b32.xlu0 %v9412, 80
    %v9953 = vpop.permute.xlu0 %9952
    %9954 = vrot.lane.b32.xlu0 %v9415, 80
    %v9955 = vpop.permute.xlu0 %9954
    %9956 = vrot.lane.b32.xlu0 %v9418, 80
    %v9957 = vpop.permute.xlu0 %9956
    %9958 = vrot.lane.b32.xlu0 %v9421, 80
    %v9959 = vpop.permute.xlu0 %9958
    %9960 = vrot.lane.b32.xlu0 %v9424, 80
    %v9961 = vpop.permute.xlu0 %9960
    %9962 = vrot.lane.b32.xlu0 %v9427, 80
    %v9963 = vpop.permute.xlu0 %9962
    %9964 = vrot.lane.b32.xlu0 %v9716, 80
    %v9965 = vpop.permute.xlu0 %9964
    %9966 = vrot.lane.b32.xlu0 %v9948, 80
    %v9967 = vpop.permute.xlu0 %9966
    %9968 = vrot.lane.b32.xlu0 %v9430, 80
    %v9969 = vpop.permute.xlu0 %9968
    %9970 = vrot.lane.b32.xlu0 %v9433, 80
    %v9971 = vpop.permute.xlu0 %9970
    %9972 = vrot.lane.b32.xlu0 %v9436, 80
    %v9973 = vpop.permute.xlu0 %9972
    %9974 = vrot.lane.b32.xlu0 %v9439, 80
    %v9975 = vpop.permute.xlu0 %9974
    %9976 = vrot.lane.b32.xlu0 %v9442, 80
    %v9977 = vpop.permute.xlu0 %9976
    %9978 = vrot.lane.b32.xlu0 %v9445, 80
    %v9979 = vpop.permute.xlu0 %9978
    %9980 = vrot.lane.b32.xlu0 %v9719, 80
    %v9981 = vpop.permute.xlu0 %9980
    %9982 = vrot.lane.b32.xlu0 %v9951, 80
    %v9983 = vpop.permute.xlu0 %9982
    %v10000 = vrot.slane %v9148, 4
    %v10001 = vrot.slane %v9165, 4
    %v10002 = vsel %vm1325, %v10000, %v10001
    %v10003 = vrot.slane %v9156, 4
    %v10004 = vrot.slane %v9173, 4
    %v10005 = vsel %vm1325, %v10003, %v10004
    %10006 = vrot.lane.b32.xlu0 %v9490, 96
    %v10007 = vpop.permute.xlu0 %10006
    %10008 = vrot.lane.b32.xlu0 %v9493, 96
    %v10009 = vpop.permute.xlu0 %10008
    %10010 = vrot.lane.b32.xlu0 %v9496, 96
    %v10011 = vpop.permute.xlu0 %10010
    %10012 = vrot.lane.b32.xlu0 %v9499, 96
    %v10013 = vpop.permute.xlu0 %10012
    %10014 = vrot.lane.b32.xlu0 %v9502, 96
    %v10015 = vpop.permute.xlu0 %10014
    %10016 = vrot.lane.b32.xlu0 %v9505, 96
    %v10017 = vpop.permute.xlu0 %10016
    %10018 = vrot.lane.b32.xlu0 %v9737, 96
    %v10019 = vpop.permute.xlu0 %10018
    %10020 = vrot.lane.b32.xlu0 %v10002, 96
    %v10021 = vpop.permute.xlu0 %10020
    %10022 = vrot.lane.b32.xlu0 %v9508, 96
    %v10023 = vpop.permute.xlu0 %10022
    %10024 = vrot.lane.b32.xlu0 %v9511, 96
    %v10025 = vpop.permute.xlu0 %10024
    %10026 = vrot.lane.b32.xlu0 %v9514, 96
    %v10027 = vpop.permute.xlu0 %10026
    %10028 = vrot.lane.b32.xlu0 %v9517, 96
    %v10029 = vpop.permute.xlu0 %10028
    %10030 = vrot.lane.b32.xlu0 %v9520, 96
    %v10031 = vpop.permute.xlu0 %10030
    %10032 = vrot.lane.b32.xlu0 %v9523, 96
    %v10033 = vpop.permute.xlu0 %10032
    %10034 = vrot.lane.b32.xlu0 %v9740, 96
    %v10035 = vpop.permute.xlu0 %10034
    %10036 = vrot.lane.b32.xlu0 %v10005, 96
    %v10037 = vpop.permute.xlu0 %10036
    %10054 = vrot.lane.b32.xlu0 %v9142, 112
    %v10055 = vpop.permute.xlu0 %10054
    %10056 = vrot.lane.b32.xlu0 %v9143, 112
    %v10057 = vpop.permute.xlu0 %10056
    %10058 = vrot.lane.b32.xlu0 %v9144, 112
    %v10059 = vpop.permute.xlu0 %10058
    %10060 = vrot.lane.b32.xlu0 %v9145, 112
    %v10061 = vpop.permute.xlu0 %10060
    %10062 = vrot.lane.b32.xlu0 %v9146, 112
    %v10063 = vpop.permute.xlu0 %10062
    %10064 = vrot.lane.b32.xlu0 %v9147, 112
    %v10065 = vpop.permute.xlu0 %10064
    %10066 = vrot.lane.b32.xlu0 %v9148, 112
    %v10067 = vpop.permute.xlu0 %10066
    %10068 = vrot.lane.b32.xlu0 %v9140, 112
    %v10069 = vpop.permute.xlu0 %10068
    %10070 = vrot.lane.b32.xlu0 %v9150, 112
    %v10071 = vpop.permute.xlu0 %10070
    %10072 = vrot.lane.b32.xlu0 %v9151, 112
    %v10073 = vpop.permute.xlu0 %10072
    %10074 = vrot.lane.b32.xlu0 %v9152, 112
    %v10075 = vpop.permute.xlu0 %10074
    %10076 = vrot.lane.b32.xlu0 %v9153, 112
    %v10077 = vpop.permute.xlu0 %10076
    %10078 = vrot.lane.b32.xlu0 %v9154, 112
    %v10079 = vpop.permute.xlu0 %10078
    %10080 = vrot.lane.b32.xlu0 %v9155, 112
    %v10081 = vpop.permute.xlu0 %10080
    %10082 = vrot.lane.b32.xlu0 %v9156, 112
    %v10083 = vpop.permute.xlu0 %10082
    %v10099 = vsel %vm7953, %v9140, %v9291
    %v10100 = vsel %vm7953, %v9141, %v9293
    %v10101 = vsel %vm7953, %v9142, %v9295
    %v10102 = vsel %vm7953, %v9143, %v9297
    %v10103 = vsel %vm7953, %v9144, %v9299
    %v10104 = vsel %vm7953, %v9145, %v9301
    %v10105 = vsel %vm7953, %v9146, %v9303
    %v10106 = vsel %vm7953, %v9149, %v9305
    %v10107 = vsel %vm7953, %v9150, %v9307
    %v10108 = vsel %vm7953, %v9151, %v9309
    %v10109 = vsel %vm7953, %v9152, %v9311
    %v10110 = vsel %vm7953, %v9153, %v9313
    %v10111 = vsel %vm7953, %v9154, %v9315
    %vm10112 = vcmask 261120
    %v10113 = vsel %vm10112, %v10099, %v9369
    %v10114 = vsel %vm10112, %v10100, %v9371
    %v10115 = vsel %vm10112, %v10101, %v9373
    %v10116 = vsel %vm10112, %v10102, %v9375
    %v10117 = vsel %vm10112, %v10103, %v9377
    %v10118 = vsel %vm10112, %v10104, %v9379
    %v10119 = vsel %vm10112, %v10105, %v9381
    %v10120 = vsel %vm10112, %v10106, %v9383
    %v10121 = vsel %vm10112, %v10107, %v9385
    %v10122 = vsel %vm10112, %v10108, %v9387
    %v10123 = vsel %vm10112, %v10109, %v9389
    %v10124 = vsel %vm10112, %v10110, %v9391
    %v10125 = vsel %vm10112, %v10111, %v9393
    %v10126 = vsel %vm7298, %v10113, %v9447
    %v10127 = vsel %vm7298, %v10114, %v9449
    %v10128 = vsel %vm7298, %v10115, %v9451
    %v10129 = vsel %vm7298, %v10116, %v9453
    %v10130 = vsel %vm7298, %v10117, %v9455
    %v10131 = vsel %vm7298, %v10118, %v9457
    %v10132 = vsel %vm7298, %v10119, %v9459
    %v10133 = vsel %vm7298, %v10120, %v9461
    %v10134 = vsel %vm7298, %v10121, %v9463
    %v10135 = vsel %vm7298, %v10122, %v9465
    %v10136 = vsel %vm7298, %v10123, %v9467
    %v10137 = vsel %vm7298, %v10124, %v9469
    %v10138 = vsel %vm7298, %v10125, %v9471
    %vm10139 = vcmask 523264
    %v10140 = vsel %vm10139, %v10126, %v9525
    %v10141 = vsel %vm10139, %v10127, %v9527
    %v10142 = vsel %vm10139, %v10128, %v9529
    %v10143 = vsel %vm10139, %v10129, %v9531
    %v10144 = vsel %vm10139, %v10130, %v9533
    %v10145 = vsel %vm10139, %v10131, %v9535
    %v10146 = vsel %vm10139, %v10132, %v9537
    %v10147 = vsel %vm10139, %v10133, %v9539
    %v10148 = vsel %vm10139, %v10134, %v9541
    %v10149 = vsel %vm10139, %v10135, %v9543
    %v10150 = vsel %vm10139, %v10136, %v9545
    %v10151 = vsel %vm10139, %v10137, %v9547
    %v10152 = vsel %vm10139, %v10138, %v9549
    %vm10153 = vcmask 654336
    %v10154 = vsel %vm10153, %v10140, %v9566
    %v10155 = vsel %vm10153, %v10140, %v9568
    %v10156 = vsel %vm10153, %v10141, %v9570
    %v10157 = vsel %vm10153, %v10142, %v9572
    %v10158 = vsel %vm10153, %v10143, %v9574
    %v10159 = vsel %vm10153, %v10144, %v9576
    %v10160 = vsel %vm10153, %v10145, %v9578
    %v10161 = vsel %vm10153, %v10146, %v9580
    %v10162 = vsel %vm10153, %v10140, %v9582
    %v10163 = vsel %vm10153, %v10147, %v9584
    %v10164 = vsel %vm10153, %v10148, %v9586
    %v10165 = vsel %vm10153, %v10149, %v9588
    %v10166 = vsel %vm10153, %v10150, %v9590
    %v10167 = vsel %vm10153, %v10151, %v9592
    %v10168 = vsel %vm10153, %v10152, %v9594
    %vm10169 = vcmask 785408
    %v10170 = vsel %vm10169, %v10154, %v9619
    %v10171 = vsel %vm10169, %v10155, %v9621
    %v10172 = vsel %vm10169, %v10156, %v9623
    %v10173 = vsel %vm10169, %v10157, %v9625
    %v10174 = vsel %vm10169, %v10158, %v9627
    %v10175 = vsel %vm10169, %v10159, %v9629
    %v10176 = vsel %vm10169, %v10160, %v9631
    %v10177 = vsel %vm10169, %v10161, %v9633
    %v10178 = vsel %vm10169, %v10162, %v9635
    %v10179 = vsel %vm10169, %v10163, %v9637
    %v10180 = vsel %vm10169, %v10164, %v9639
    %v10181 = vsel %vm10169, %v10165, %v9641
    %v10182 = vsel %vm10169, %v10166, %v9643
    %v10183 = vsel %vm10169, %v10167, %v9645
    %v10184 = vsel %vm10169, %v10168, %v9647
    %vm10185 = vcmask 916480
    %v10186 = vsel %vm10185, %v10170, %v9670
    %v10187 = vsel %vm10185, %v10171, %v9672
    %v10188 = vsel %vm10185, %v10172, %v9674
    %v10189 = vsel %vm10185, %v10173, %v9676
    %v10190 = vsel %vm10185, %v10174, %v9678
    %v10191 = vsel %vm10185, %v10175, %v9680
    %v10192 = vsel %vm10185, %v10176, %v9682
    %v10193 = vsel %vm10185, %v10177, %v9684
    %v10194 = vsel %vm10185, %v10178, %v9686
    %v10195 = vsel %vm10185, %v10179, %v9688
    %v10196 = vsel %vm10185, %v10180, %v9690
    %v10197 = vsel %vm10185, %v10181, %v9692
    %v10198 = vsel %vm10185, %v10182, %v9694
    %v10199 = vsel %vm10185, %v10183, %v9696
    %v10200 = vsel %vm10185, %v10184, %v9698
    %v10201 = vsel %vm7953, %v9409, %v9742
    %v10202 = vsel %vm7953, %v9412, %v9744
    %v10203 = vsel %vm7953, %v9415, %v9746
    %v10204 = vsel %vm7953, %v9418, %v9748
    %v10205 = vsel %vm7953, %v9421, %v9750
    %v10206 = vsel %vm7953, %v9424, %v9752
    %v10207 = vsel %vm7953, %v9427, %v9754
    %v10208 = vsel %vm7953, %v9716, %v9756
    %v10209 = vsel %vm7953, %v9430, %v9758
    %v10210 = vsel %vm7953, %v9433, %v9760
    %v10211 = vsel %vm7953, %v9436, %v9762
    %v10212 = vsel %vm7953, %v9439, %v9764
    %v10213 = vsel %vm7953, %v9442, %v9766
    %v10214 = vsel %vm7953, %v9445, %v9768
    %v10215 = vsel %vm7953, %v9719, %v9770
    %v10216 = vsel %vm10112, %v10201, %v9789
    %v10217 = vsel %vm10112, %v10202, %v9791
    %v10218 = vsel %vm10112, %v10203, %v9793
    %v10219 = vsel %vm10112, %v10204, %v9795
    %v10220 = vsel %vm10112, %v10205, %v9797
    %v10221 = vsel %vm10112, %v10206, %v9799
    %v10222 = vsel %vm10112, %v10207, %v9801
    %v10223 = vsel %vm10112, %v10208, %v9803
    %v10224 = vsel %vm10112, %v10201, %v9805
    %v10225 = vsel %vm10112, %v10209, %v9807
    %v10226 = vsel %vm10112, %v10210, %v9809
    %v10227 = vsel %vm10112, %v10211, %v9811
    %v10228 = vsel %vm10112, %v10212, %v9813
    %v10229 = vsel %vm10112, %v10213, %v9815
    %v10230 = vsel %vm10112, %v10214, %v9817
    %v10231 = vsel %vm10112, %v10215, %v9819
    %v10232 = vsel %vm7298, %v10216, %v9845
    %v10233 = vsel %vm7298, %v10217, %v9847
    %v10234 = vsel %vm7298, %v10218, %v9849
    %v10235 = vsel %vm7298, %v10219, %v9851
    %v10236 = vsel %vm7298, %v10220, %v9853
    %v10237 = vsel %vm7298, %v10221, %v9855
    %v10238 = vsel %vm7298, %v10222, %v9857
    %v10239 = vsel %vm7298, %v10223, %v9859
    %v10240 = vsel %vm7298, %v10224, %v9861
    %v10241 = vsel %vm7298, %v10225, %v9863
    %v10242 = vsel %vm7298, %v10226, %v9865
    %v10243 = vsel %vm7298, %v10227, %v9867
    %v10244 = vsel %vm7298, %v10228, %v9869
    %v10245 = vsel %vm7298, %v10229, %v9871
    %v10246 = vsel %vm7298, %v10230, %v9873
    %v10247 = vsel %vm7298, %v10231, %v9875
    %v10248 = vsel %vm10139, %v10232, %v9899
    %v10249 = vsel %vm10139, %v10233, %v9901
    %v10250 = vsel %vm10139, %v10234, %v9903
    %v10251 = vsel %vm10139, %v10235, %v9905
    %v10252 = vsel %vm10139, %v10236, %v9907
    %v10253 = vsel %vm10139, %v10237, %v9909
    %v10254 = vsel %vm10139, %v10238, %v9911
    %v10255 = vsel %vm10139, %v10239, %v9913
    %v10256 = vsel %vm10139, %v10240, %v9915
    %v10257 = vsel %vm10139, %v10241, %v9917
    %v10258 = vsel %vm10139, %v10242, %v9919
    %v10259 = vsel %vm10139, %v10243, %v9921
    %v10260 = vsel %vm10139, %v10244, %v9923
    %v10261 = vsel %vm10139, %v10245, %v9925
    %v10262 = vsel %vm10139, %v10246, %v9927
    %v10263 = vsel %vm10139, %v10247, %v9929
    %v10264 = vsel %vm10153, %v10248, %v9953
    %v10265 = vsel %vm10153, %v10249, %v9955
    %v10266 = vsel %vm10153, %v10250, %v9957
    %v10267 = vsel %vm10153, %v10251, %v9959
    %v10268 = vsel %vm10153, %v10252, %v9961
    %v10269 = vsel %vm10153, %v10253, %v9963
    %v10270 = vsel %vm10153, %v10254, %v9965
    %v10271 = vsel %vm10153, %v10255, %v9967
    %v10272 = vsel %vm10153, %v10256, %v9969
    %v10273 = vsel %vm10153, %v10257, %v9971
    %v10274 = vsel %vm10153, %v10258, %v9973
    %v10275 = vsel %vm10153, %v10259, %v9975
    %v10276 = vsel %vm10153, %v10260, %v9977
    %v10277 = vsel %vm10153, %v10261, %v9979
    %v10278 = vsel %vm10153, %v10262, %v9981
    %v10279 = vsel %vm10153, %v10263, %v9983
    %v10280 = vsel %vm10169, %v10264, %v10007
    %v10281 = vsel %vm10169, %v10265, %v10009
    %v10282 = vsel %vm10169, %v10266, %v10011
    %v10283 = vsel %vm10169, %v10267, %v10013
    %v10284 = vsel %vm10169, %v10268, %v10015
    %v10285 = vsel %vm10169, %v10269, %v10017
    %v10286 = vsel %vm10169, %v10270, %v10019
    %v10287 = vsel %vm10169, %v10271, %v10021
    %v10288 = vsel %vm10169, %v10272, %v10023
    %v10289 = vsel %vm10169, %v10273, %v10025
    %v10290 = vsel %vm10169, %v10274, %v10027
    %v10291 = vsel %vm10169, %v10275, %v10029
    %v10292 = vsel %vm10169, %v10276, %v10031
    %v10293 = vsel %vm10169, %v10277, %v10033
    %v10294 = vsel %vm10169, %v10278, %v10035
    %v10295 = vsel %vm10169, %v10279, %v10037
    %v10296 = vsel %vm10185, %v10280, %v10055
    %v10297 = vsel %vm10185, %v10281, %v10057
    %v10298 = vsel %vm10185, %v10282, %v10059
    %v10299 = vsel %vm10185, %v10283, %v10061
    %v10300 = vsel %vm10185, %v10284, %v10063
    %v10301 = vsel %vm10185, %v10285, %v10065
    %v10302 = vsel %vm10185, %v10286, %v10067
    %v10303 = vsel %vm10185, %v10287, %v10069
    %v10304 = vsel %vm10185, %v10288, %v10071
    %v10305 = vsel %vm10185, %v10289, %v10073
    %v10306 = vsel %vm10185, %v10290, %v10075
    %v10307 = vsel %vm10185, %v10291, %v10077
    %v10308 = vsel %vm10185, %v10292, %v10079
    %v10309 = vsel %vm10185, %v10293, %v10081
    %v10310 = vsel %vm10185, %v10294, %v10083
    %v10311 = vsel %vm10185, %v10295, %v10069
    %10312 = vrot.lane.b32.xlu0 %v9258, 16
    %v10313 = vpop.permute.xlu0 %10312
    %10314 = vrot.lane.b32.xlu0 %v9261, 16
    %v10315 = vpop.permute.xlu0 %10314
    %10316 = vrot.lane.b32.xlu0 %v9264, 16
    %v10317 = vpop.permute.xlu0 %10316
    %10318 = vrot.lane.b32.xlu0 %v9267, 16
    %v10319 = vpop.permute.xlu0 %10318
    %10320 = vrot.lane.b32.xlu0 %v9270, 16
    %v10321 = vpop.permute.xlu0 %10320
    %10322 = vrot.lane.b32.xlu0 %v9614, 16
    %v10323 = vpop.permute.xlu0 %10322
    %10324 = vrot.lane.b32.xlu0 %v9613, 16
    %v10325 = vpop.permute.xlu0 %10324
    %10326 = vrot.lane.b32.xlu0 %v9840, 16
    %v10327 = vpop.permute.xlu0 %10326
    %10328 = vrot.lane.b32.xlu0 %v9839, 16
    %v10329 = vpop.permute.xlu0 %10328
    %10330 = vrot.lane.b32.xlu0 %v9252, 16
    %v10331 = vpop.permute.xlu0 %10330
    %10332 = vrot.lane.b32.xlu0 %v9276, 16
    %v10333 = vpop.permute.xlu0 %10332
    %10334 = vrot.lane.b32.xlu0 %v9279, 16
    %v10335 = vpop.permute.xlu0 %10334
    %10336 = vrot.lane.b32.xlu0 %v9282, 16
    %v10337 = vpop.permute.xlu0 %10336
    %10338 = vrot.lane.b32.xlu0 %v9285, 16
    %v10339 = vpop.permute.xlu0 %10338
    %10340 = vrot.lane.b32.xlu0 %v9288, 16
    %v10341 = vpop.permute.xlu0 %10340
    %10342 = vrot.lane.b32.xlu0 %v9617, 16
    %v10343 = vpop.permute.xlu0 %10342
    %10344 = vrot.lane.b32.xlu0 %v9616, 16
    %v10345 = vpop.permute.xlu0 %10344
    %10346 = vrot.lane.b32.xlu0 %v9843, 16
    %v10347 = vpop.permute.xlu0 %10346
    %10348 = vrot.lane.b32.xlu0 %v9842, 16
    %v10349 = vpop.permute.xlu0 %10348
    %10369 = vrot.lane.b32.xlu0 %v9336, 32
    %v10370 = vpop.permute.xlu0 %10369
    %10371 = vrot.lane.b32.xlu0 %v9339, 32
    %v10372 = vpop.permute.xlu0 %10371
    %10373 = vrot.lane.b32.xlu0 %v9342, 32
    %v10374 = vpop.permute.xlu0 %10373
    %10375 = vrot.lane.b32.xlu0 %v9345, 32
    %v10376 = vpop.permute.xlu0 %10375
    %10377 = vrot.lane.b32.xlu0 %v9348, 32
    %v10378 = vpop.permute.xlu0 %10377
    %10379 = vrot.lane.b32.xlu0 %v9665, 32
    %v10380 = vpop.permute.xlu0 %10379
    %10381 = vrot.lane.b32.xlu0 %v9664, 32
    %v10382 = vpop.permute.xlu0 %10381
    %10383 = vrot.lane.b32.xlu0 %v9894, 32
    %v10384 = vpop.permute.xlu0 %10383
    %10385 = vrot.lane.b32.xlu0 %v9893, 32
    %v10386 = vpop.permute.xlu0 %10385
    %10387 = vrot.lane.b32.xlu0 %v9330, 32
    %v10388 = vpop.permute.xlu0 %10387
    %10389 = vrot.lane.b32.xlu0 %v9354, 32
    %v10390 = vpop.permute.xlu0 %10389
    %10391 = vrot.lane.b32.xlu0 %v9357, 32
    %v10392 = vpop.permute.xlu0 %10391
    %10393 = vrot.lane.b32.xlu0 %v9360, 32
    %v10394 = vpop.permute.xlu0 %10393
    %10395 = vrot.lane.b32.xlu0 %v9363, 32
    %v10396 = vpop.permute.xlu0 %10395
    %10397 = vrot.lane.b32.xlu0 %v9366, 32
    %v10398 = vpop.permute.xlu0 %10397
    %10399 = vrot.lane.b32.xlu0 %v9668, 32
    %v10400 = vpop.permute.xlu0 %10399
    %10401 = vrot.lane.b32.xlu0 %v9667, 32
    %v10402 = vpop.permute.xlu0 %10401
    %10403 = vrot.lane.b32.xlu0 %v9897, 32
    %v10404 = vpop.permute.xlu0 %10403
    %10405 = vrot.lane.b32.xlu0 %v9896, 32
    %v10406 = vpop.permute.xlu0 %10405
    %10426 = vrot.lane.b32.xlu0 %v9414, 48
    %v10427 = vpop.permute.xlu0 %10426
    %10428 = vrot.lane.b32.xlu0 %v9417, 48
    %v10429 = vpop.permute.xlu0 %10428
    %10430 = vrot.lane.b32.xlu0 %v9420, 48
    %v10431 = vpop.permute.xlu0 %10430
    %10432 = vrot.lane.b32.xlu0 %v9423, 48
    %v10433 = vpop.permute.xlu0 %10432
    %10434 = vrot.lane.b32.xlu0 %v9426, 48
    %v10435 = vpop.permute.xlu0 %10434
    %10436 = vrot.lane.b32.xlu0 %v9716, 48
    %v10437 = vpop.permute.xlu0 %10436
    %10438 = vrot.lane.b32.xlu0 %v9715, 48
    %v10439 = vpop.permute.xlu0 %10438
    %10440 = vrot.lane.b32.xlu0 %v9948, 48
    %v10441 = vpop.permute.xlu0 %10440
    %10442 = vrot.lane.b32.xlu0 %v9947, 48
    %v10443 = vpop.permute.xlu0 %10442
    %10444 = vrot.lane.b32.xlu0 %v9408, 48
    %v10445 = vpop.permute.xlu0 %10444
    %10446 = vrot.lane.b32.xlu0 %v9432, 48
    %v10447 = vpop.permute.xlu0 %10446
    %10448 = vrot.lane.b32.xlu0 %v9435, 48
    %v10449 = vpop.permute.xlu0 %10448
    %10450 = vrot.lane.b32.xlu0 %v9438, 48
    %v10451 = vpop.permute.xlu0 %10450
    %10452 = vrot.lane.b32.xlu0 %v9441, 48
    %v10453 = vpop.permute.xlu0 %10452
    %10454 = vrot.lane.b32.xlu0 %v9444, 48
    %v10455 = vpop.permute.xlu0 %10454
    %10456 = vrot.lane.b32.xlu0 %v9719, 48
    %v10457 = vpop.permute.xlu0 %10456
    %10458 = vrot.lane.b32.xlu0 %v9718, 48
    %v10459 = vpop.permute.xlu0 %10458
    %10460 = vrot.lane.b32.xlu0 %v9951, 48
    %v10461 = vpop.permute.xlu0 %10460
    %10462 = vrot.lane.b32.xlu0 %v9950, 48
    %v10463 = vpop.permute.xlu0 %10462
    %v10483 = vrot.slane %v9143, 7
    %v10484 = vrot.slane %v9144, 7
    %v10485 = vrot.slane %v9145, 7
    %v10486 = vrot.slane %v9146, 7
    %v10487 = vrot.slane %v9147, 7
    %v10488 = vrot.slane %v9148, 7
    %v10489 = vrot.slane %v9140, 7
    %v10490 = vrot.slane %v9151, 7
    %v10491 = vrot.slane %v9152, 7
    %v10492 = vrot.slane %v9153, 7
    %v10493 = vrot.slane %v9154, 7
    %v10494 = vrot.slane %v9155, 7
    %v10495 = vrot.slane %v9156, 7
    %10496 = vrot.lane.b32.xlu0 %v10483, 64
    %v10497 = vpop.permute.xlu0 %10496
    %10498 = vrot.lane.b32.xlu0 %v10484, 64
    %v10499 = vpop.permute.xlu0 %10498
    %10500 = vrot.lane.b32.xlu0 %v10485, 64
    %v10501 = vpop.permute.xlu0 %10500
    %10502 = vrot.lane.b32.xlu0 %v10486, 64
    %v10503 = vpop.permute.xlu0 %10502
    %10504 = vrot.lane.b32.xlu0 %v10487, 64
    %v10505 = vpop.permute.xlu0 %10504
    %10506 = vrot.lane.b32.xlu0 %v10488, 64
    %v10507 = vpop.permute.xlu0 %10506
    %10508 = vrot.lane.b32.xlu0 %v10489, 64
    %v10509 = vpop.permute.xlu0 %10508
    %10510 = vrot.lane.b32.xlu0 %v10490, 64
    %v10511 = vpop.permute.xlu0 %10510
    %10512 = vrot.lane.b32.xlu0 %v10491, 64
    %v10513 = vpop.permute.xlu0 %10512
    %10514 = vrot.lane.b32.xlu0 %v10492, 64
    %v10515 = vpop.permute.xlu0 %10514
    %10516 = vrot.lane.b32.xlu0 %v10493, 64
    %v10517 = vpop.permute.xlu0 %10516
    %10518 = vrot.lane.b32.xlu0 %v10494, 64
    %v10519 = vpop.permute.xlu0 %10518
    %10520 = vrot.lane.b32.xlu0 %v10495, 64
    %v10521 = vpop.permute.xlu0 %10520
    %10535 = vrot.lane.b32.xlu0 %v9160, 80
    %v10536 = vpop.permute.xlu0 %10535
    %10537 = vrot.lane.b32.xlu0 %v9161, 80
    %v10538 = vpop.permute.xlu0 %10537
    %10539 = vrot.lane.b32.xlu0 %v9162, 80
    %v10540 = vpop.permute.xlu0 %10539
    %10541 = vrot.lane.b32.xlu0 %v9163, 80
    %v10542 = vpop.permute.xlu0 %10541
    %10543 = vrot.lane.b32.xlu0 %v9164, 80
    %v10544 = vpop.permute.xlu0 %10543
    %10545 = vrot.lane.b32.xlu0 %v9148, 80
    %v10546 = vpop.permute.xlu0 %10545
    %10547 = vrot.lane.b32.xlu0 %v9165, 80
    %v10548 = vpop.permute.xlu0 %10547
    %10549 = vrot.lane.b32.xlu0 %v9157, 80
    %v10550 = vpop.permute.xlu0 %10549
    %10551 = vrot.lane.b32.xlu0 %v9168, 80
    %v10552 = vpop.permute.xlu0 %10551
    %10553 = vrot.lane.b32.xlu0 %v9169, 80
    %v10554 = vpop.permute.xlu0 %10553
    %10555 = vrot.lane.b32.xlu0 %v9170, 80
    %v10556 = vpop.permute.xlu0 %10555
    %10557 = vrot.lane.b32.xlu0 %v9171, 80
    %v10558 = vpop.permute.xlu0 %10557
    %10559 = vrot.lane.b32.xlu0 %v9172, 80
    %v10560 = vpop.permute.xlu0 %10559
    %10561 = vrot.lane.b32.xlu0 %v9156, 80
    %v10562 = vpop.permute.xlu0 %10561
    %10563 = vrot.lane.b32.xlu0 %v9173, 80
    %v10564 = vpop.permute.xlu0 %10563
    %10580 = vrot.lane.b32.xlu0 %v9261, 96
    %v10581 = vpop.permute.xlu0 %10580
    %10582 = vrot.lane.b32.xlu0 %v9264, 96
    %v10583 = vpop.permute.xlu0 %10582
    %10584 = vrot.lane.b32.xlu0 %v9267, 96
    %v10585 = vpop.permute.xlu0 %10584
    %10586 = vrot.lane.b32.xlu0 %v9270, 96
    %v10587 = vpop.permute.xlu0 %10586
    %10588 = vrot.lane.b32.xlu0 %v9613, 96
    %v10589 = vpop.permute.xlu0 %10588
    %10590 = vrot.lane.b32.xlu0 %v9840, 96
    %v10591 = vpop.permute.xlu0 %10590
    %10592 = vrot.lane.b32.xlu0 %v9839, 96
    %v10593 = vpop.permute.xlu0 %10592
    %10594 = vrot.lane.b32.xlu0 %v9252, 96
    %v10595 = vpop.permute.xlu0 %10594
    %10596 = vrot.lane.b32.xlu0 %v9279, 96
    %v10597 = vpop.permute.xlu0 %10596
    %10598 = vrot.lane.b32.xlu0 %v9282, 96
    %v10599 = vpop.permute.xlu0 %10598
    %10600 = vrot.lane.b32.xlu0 %v9285, 96
    %v10601 = vpop.permute.xlu0 %10600
    %10602 = vrot.lane.b32.xlu0 %v9288, 96
    %v10603 = vpop.permute.xlu0 %10602
    %10604 = vrot.lane.b32.xlu0 %v9616, 96
    %v10605 = vpop.permute.xlu0 %10604
    %10606 = vrot.lane.b32.xlu0 %v9843, 96
    %v10607 = vpop.permute.xlu0 %10606
    %10608 = vrot.lane.b32.xlu0 %v9842, 96
    %v10609 = vpop.permute.xlu0 %10608
    %10625 = vrot.lane.b32.xlu0 %v9339, 112
    %v10626 = vpop.permute.xlu0 %10625
    %10627 = vrot.lane.b32.xlu0 %v9342, 112
    %v10628 = vpop.permute.xlu0 %10627
    %10629 = vrot.lane.b32.xlu0 %v9345, 112
    %v10630 = vpop.permute.xlu0 %10629
    %10631 = vrot.lane.b32.xlu0 %v9348, 112
    %v10632 = vpop.permute.xlu0 %10631
    %10633 = vrot.lane.b32.xlu0 %v9664, 112
    %v10634 = vpop.permute.xlu0 %10633
    %10635 = vrot.lane.b32.xlu0 %v9894, 112
    %v10636 = vpop.permute.xlu0 %10635
    %10637 = vrot.lane.b32.xlu0 %v9893, 112
    %v10638 = vpop.permute.xlu0 %10637
    %10639 = vrot.lane.b32.xlu0 %v9330, 112
    %v10640 = vpop.permute.xlu0 %10639
    %10641 = vrot.lane.b32.xlu0 %v9357, 112
    %v10642 = vpop.permute.xlu0 %10641
    %10643 = vrot.lane.b32.xlu0 %v9360, 112
    %v10644 = vpop.permute.xlu0 %10643
    %10645 = vrot.lane.b32.xlu0 %v9363, 112
    %v10646 = vpop.permute.xlu0 %10645
    %10647 = vrot.lane.b32.xlu0 %v9366, 112
    %v10648 = vpop.permute.xlu0 %10647
    %10649 = vrot.lane.b32.xlu0 %v9667, 112
    %v10650 = vpop.permute.xlu0 %10649
    %10651 = vrot.lane.b32.xlu0 %v9897, 112
    %v10652 = vpop.permute.xlu0 %10651
    %10653 = vrot.lane.b32.xlu0 %v9896, 112
    %v10654 = vpop.permute.xlu0 %10653
    %v10670 = vsel %vm7953, %v9159, %v10313
    %v10671 = vsel %vm7953, %v9160, %v10315
    %v10672 = vsel %vm7953, %v9161, %v10317
    %v10673 = vsel %vm7953, %v9162, %v10319
    %v10674 = vsel %vm7953, %v9163, %v10321
    %v10675 = vsel %vm7953, %v9147, %v10323
    %v10676 = vsel %vm7953, %v9164, %v10325
    %v10677 = vsel %vm7953, %v9148, %v10327
    %v10678 = vsel %vm7953, %v9165, %v10329
    %v10679 = vsel %vm7953, %v9157, %v10331
    %v10680 = vsel %vm7953, %v9167, %v10333
    %v10681 = vsel %vm7953, %v9168, %v10335
    %v10682 = vsel %vm7953, %v9169, %v10337
    %v10683 = vsel %vm7953, %v9170, %v10339
    %v10684 = vsel %vm7953, %v9171, %v10341
    %v10685 = vsel %vm7953, %v9155, %v10343
    %v10686 = vsel %vm7953, %v9172, %v10345
    %v10687 = vsel %vm7953, %v9156, %v10347
    %v10688 = vsel %vm7953, %v9173, %v10349
    %v10689 = vsel %vm10112, %v10670, %v10370
    %v10690 = vsel %vm10112, %v10671, %v10372
    %v10691 = vsel %vm10112, %v10672, %v10374
    %v10692 = vsel %vm10112, %v10673, %v10376
    %v10693 = vsel %vm10112, %v10674, %v10378
    %v10694 = vsel %vm10112, %v10675, %v10380
    %v10695 = vsel %vm10112, %v10676, %v10382
    %v10696 = vsel %vm10112, %v10677, %v10384
    %v10697 = vsel %vm10112, %v10678, %v10386
    %v10698 = vsel %vm10112, %v10679, %v10388
    %v10699 = vsel %vm10112, %v10680, %v10390
    %v10700 = vsel %vm10112, %v10681, %v10392
    %v10701 = vsel %vm10112, %v10682, %v10394
    %v10702 = vsel %vm10112, %v10683, %v10396
    %v10703 = vsel %vm10112, %v10684, %v10398
    %v10704 = vsel %vm10112, %v10685, %v10400
    %v10705 = vsel %vm10112, %v10686, %v10402
    %v10706 = vsel %vm10112, %v10687, %v10404
    %v10707 = vsel %vm10112, %v10688, %v10406
    %v10708 = vsel %vm7298, %v10689, %v10427
    %v10709 = vsel %vm7298, %v10690, %v10429
    %v10710 = vsel %vm7298, %v10691, %v10431
    %v10711 = vsel %vm7298, %v10692, %v10433
    %v10712 = vsel %vm7298, %v10693, %v10435
    %v10713 = vsel %vm7298, %v10694, %v10437
    %v10714 = vsel %vm7298, %v10695, %v10439
    %v10715 = vsel %vm7298, %v10696, %v10441
    %v10716 = vsel %vm7298, %v10697, %v10443
    %v10717 = vsel %vm7298, %v10698, %v10445
    %v10718 = vsel %vm7298, %v10699, %v10447
    %v10719 = vsel %vm7298, %v10700, %v10449
    %v10720 = vsel %vm7298, %v10701, %v10451
    %v10721 = vsel %vm7298, %v10702, %v10453
    %v10722 = vsel %vm7298, %v10703, %v10455
    %v10723 = vsel %vm7298, %v10704, %v10457
    %v10724 = vsel %vm7298, %v10705, %v10459
    %v10725 = vsel %vm7298, %v10706, %v10461
    %v10726 = vsel %vm7298, %v10707, %v10463
    %v10727 = vsel %vm10139, %v10128, %v10497
    %v10728 = vsel %vm10139, %v10708, %v10497
    %v10729 = vsel %vm10139, %v10129, %v10499
    %v10730 = vsel %vm10139, %v10709, %v10499
    %v10731 = vsel %vm10139, %v10130, %v10501
    %v10732 = vsel %vm10139, %v10710, %v10501
    %v10733 = vsel %vm10139, %v10131, %v10503
    %v10734 = vsel %vm10139, %v10711, %v10503
    %v10735 = vsel %vm10139, %v10132, %v10505
    %v10736 = vsel %vm10139, %v10712, %v10505
    %v10737 = vsel %vm10139, %v10713, %v10507
    %v10738 = vsel %vm10139, %v10714, %v10507
    %v10739 = vsel %vm10139, %v10715, %v10509
    %v10740 = vsel %vm10139, %v10716, %v10509
    %v10741 = vsel %vm10139, %v10126, %v10509
    %v10742 = vsel %vm10139, %v10717, %v10509
    %v10743 = vsel %vm10139, %v10134, %v10511
    %v10744 = vsel %vm10139, %v10718, %v10511
    %v10745 = vsel %vm10139, %v10135, %v10513
    %v10746 = vsel %vm10139, %v10719, %v10513
    %v10747 = vsel %vm10139, %v10136, %v10515
    %v10748 = vsel %vm10139, %v10720, %v10515
    %v10749 = vsel %vm10139, %v10137, %v10517
    %v10750 = vsel %vm10139, %v10721, %v10517
    %v10751 = vsel %vm10139, %v10138, %v10519
    %v10752 = vsel %vm10139, %v10722, %v10519
    %v10753 = vsel %vm10139, %v10723, %v10521
    %v10754 = vsel %vm10139, %v10724, %v10521
    %v10755 = vsel %vm10139, %v10725, %v10509
    %v10756 = vsel %vm10139, %v10726, %v10509
    %v10757 = vsel %vm10153, %v10727, %v9572
    %v10758 = vsel %vm10153, %v10728, %v10536
    %v10759 = vsel %vm10153, %v10729, %v9574
    %v10760 = vsel %vm10153, %v10730, %v10538
    %v10761 = vsel %vm10153, %v10731, %v9576
    %v10762 = vsel %vm10153, %v10732, %v10540
    %v10763 = vsel %vm10153, %v10733, %v9578
    %v10764 = vsel %vm10153, %v10734, %v10542
    %v10765 = vsel %vm10153, %v10735, %v9580
    %v10766 = vsel %vm10153, %v10736, %v10544
    %v10767 = vsel %vm10153, %v10737, %v10546
    %v10768 = vsel %vm10153, %v10738, %v10548
    %v10769 = vsel %vm10153, %v10739, %v9566
    %v10770 = vsel %vm10153, %v10740, %v10550
    %v10771 = vsel %vm10153, %v10741, %v9566
    %v10772 = vsel %vm10153, %v10742, %v10550
    %v10773 = vsel %vm10153, %v10743, %v9586
    %v10774 = vsel %vm10153, %v10744, %v10552
    %v10775 = vsel %vm10153, %v10745, %v9588
    %v10776 = vsel %vm10153, %v10746, %v10554
    %v10777 = vsel %vm10153, %v10747, %v9590
    %v10778 = vsel %vm10153, %v10748, %v10556
    %v10779 = vsel %vm10153, %v10749, %v9592
    %v10780 = vsel %vm10153, %v10750, %v10558
    %v10781 = vsel %vm10153, %v10751, %v9594
    %v10782 = vsel %vm10153, %v10752, %v10560
    %v10783 = vsel %vm10153, %v10753, %v10562
    %v10784 = vsel %vm10153, %v10754, %v10564
    %v10785 = vsel %vm10153, %v10755, %v9566
    %v10786 = vsel %vm10153, %v10756, %v10550
    %v10787 = vsel %vm10169, %v10757, %v9625
    %v10788 = vsel %vm10169, %v10758, %v10581
    %v10789 = vsel %vm10169, %v10759, %v9627
    %v10790 = vsel %vm10169, %v10760, %v10583
    %v10791 = vsel %vm10169, %v10761, %v9629
    %v10792 = vsel %vm10169, %v10762, %v10585
    %v10793 = vsel %vm10169, %v10763, %v9631
    %v10794 = vsel %vm10169, %v10764, %v10587
    %v10795 = vsel %vm10169, %v10765, %v9633
    %v10796 = vsel %vm10169, %v10766, %v10589
    %v10797 = vsel %vm10169, %v10767, %v10591
    %v10798 = vsel %vm10169, %v10768, %v10593
    %v10799 = vsel %vm10169, %v10769, %v9619
    %v10800 = vsel %vm10169, %v10770, %v10595
    %v10801 = vsel %vm10169, %v10771, %v9619
    %v10802 = vsel %vm10169, %v10772, %v10595
    %v10803 = vsel %vm10169, %v10773, %v9639
    %v10804 = vsel %vm10169, %v10774, %v10597
    %v10805 = vsel %vm10169, %v10775, %v9641
    %v10806 = vsel %vm10169, %v10776, %v10599
    %v10807 = vsel %vm10169, %v10777, %v9643
    %v10808 = vsel %vm10169, %v10778, %v10601
    %v10809 = vsel %vm10169, %v10779, %v9645
    %v10810 = vsel %vm10169, %v10780, %v10603
    %v10811 = vsel %vm10169, %v10781, %v9647
    %v10812 = vsel %vm10169, %v10782, %v10605
    %v10813 = vsel %vm10169, %v10783, %v10607
    %v10814 = vsel %vm10169, %v10784, %v10609
    %v10815 = vsel %vm10169, %v10785, %v9619
    %v10816 = vsel %vm10169, %v10786, %v10595
    %v10817 = vsel %vm10185, %v10787, %v9676
    %v10818 = vsel %vm10185, %v10788, %v10626
    %v10819 = vsel %vm10185, %v10789, %v9678
    %v10820 = vsel %vm10185, %v10790, %v10628
    %v10821 = vsel %vm10185, %v10791, %v9680
    %v10822 = vsel %vm10185, %v10792, %v10630
    %v10823 = vsel %vm10185, %v10793, %v9682
    %v10824 = vsel %vm10185, %v10794, %v10632
    %v10825 = vsel %vm10185, %v10795, %v9684
    %v10826 = vsel %vm10185, %v10796, %v10634
    %v10827 = vsel %vm10185, %v10797, %v10636
    %v10828 = vsel %vm10185, %v10798, %v10638
    %v10829 = vsel %vm10185, %v10799, %v9670
    %v10830 = vsel %vm10185, %v10800, %v10640
    %v10831 = vsel %vm10185, %v10801, %v9670
    %v10832 = vsel %vm10185, %v10802, %v10640
    %v10833 = vsel %vm10185, %v10803, %v9690
    %v10834 = vsel %vm10185, %v10804, %v10642
    %v10835 = vsel %vm10185, %v10805, %v9692
    %v10836 = vsel %vm10185, %v10806, %v10644
    %v10837 = vsel %vm10185, %v10807, %v9694
    %v10838 = vsel %vm10185, %v10808, %v10646
    %v10839 = vsel %vm10185, %v10809, %v9696
    %v10840 = vsel %vm10185, %v10810, %v10648
    %v10841 = vsel %vm10185, %v10811, %v9698
    %v10842 = vsel %vm10185, %v10812, %v10650
    %v10843 = vsel %vm10185, %v10813, %v10652
    %v10844 = vsel %vm10185, %v10814, %v10654
    %v10845 = vsel %vm10185, %v10815, %v9670
    %v10846 = vsel %vm10185, %v10816, %v10640
    %v10877 = vrot.slane %v10817, 1
    %v10878 = vrot.slane %v10818, 1
    %v10879 = vsel %vm266, %v10877, %v10878
    %v10880 = vrot.slane %v9418, 1
    %v10881 = vrot.slane %v9417, 1
    %v10882 = vsel %vm266, %v10880, %v10881
    %v10883 = vrot.slane %v10819, 1
    %v10884 = vrot.slane %v10820, 1
    %v10885 = vsel %vm266, %v10883, %v10884
    %v10886 = vrot.slane %v9421, 1
    %v10887 = vrot.slane %v9420, 1
    %v10888 = vsel %vm266, %v10886, %v10887
    %v10889 = vrot.slane %v10821, 1
    %v10890 = vrot.slane %v10822, 1
    %v10891 = vsel %vm266, %v10889, %v10890
    %v10892 = vrot.slane %v9424, 1
    %v10893 = vrot.slane %v9423, 1
    %v10894 = vsel %vm266, %v10892, %v10893
    %v10895 = vrot.slane %v10823, 1
    %v10896 = vrot.slane %v10824, 1
    %v10897 = vsel %vm266, %v10895, %v10896
    %v10898 = vrot.slane %v9427, 1
    %v10899 = vrot.slane %v9426, 1
    %v10900 = vsel %vm266, %v10898, %v10899
    %v10901 = vrot.slane %v10825, 1
    %v10902 = vrot.slane %v10826, 1
    %v10903 = vsel %vm266, %v10901, %v10902
    %v10904 = vrot.slane %v9716, 1
    %v10905 = vrot.slane %v9715, 1
    %v10906 = vsel %vm266, %v10904, %v10905
    %v10907 = vrot.slane %v10827, 1
    %v10908 = vrot.slane %v10828, 1
    %v10909 = vsel %vm266, %v10907, %v10908
    %v10910 = vrot.slane %v9948, 1
    %v10911 = vrot.slane %v9947, 1
    %v10912 = vsel %vm266, %v10910, %v10911
    %v10913 = vrot.slane %v10829, 1
    %v10914 = vrot.slane %v10830, 1
    %v10915 = vsel %vm266, %v10913, %v10914
    %v10916 = vrot.slane %v9409, 1
    %v10917 = vrot.slane %v9408, 1
    %v10918 = vsel %vm266, %v10916, %v10917
    %v10919 = vrot.slane %v10831, 1
    %v10920 = vrot.slane %v10832, 1
    %v10921 = vsel %vm266, %v10919, %v10920
    %v10922 = vrot.slane %v10833, 1
    %v10923 = vrot.slane %v10834, 1
    %v10924 = vsel %vm266, %v10922, %v10923
    %v10925 = vrot.slane %v9436, 1
    %v10926 = vrot.slane %v9435, 1
    %v10927 = vsel %vm266, %v10925, %v10926
    %v10928 = vrot.slane %v10835, 1
    %v10929 = vrot.slane %v10836, 1
    %v10930 = vsel %vm266, %v10928, %v10929
    %v10931 = vrot.slane %v9439, 1
    %v10932 = vrot.slane %v9438, 1
    %v10933 = vsel %vm266, %v10931, %v10932
    %v10934 = vrot.slane %v10837, 1
    %v10935 = vrot.slane %v10838, 1
    %v10936 = vsel %vm266, %v10934, %v10935
    %v10937 = vrot.slane %v9442, 1
    %v10938 = vrot.slane %v9441, 1
    %v10939 = vsel %vm266, %v10937, %v10938
    %v10940 = vrot.slane %v10839, 1
    %v10941 = vrot.slane %v10840, 1
    %v10942 = vsel %vm266, %v10940, %v10941
    %v10943 = vrot.slane %v9445, 1
    %v10944 = vrot.slane %v9444, 1
    %v10945 = vsel %vm266, %v10943, %v10944
    %v10946 = vrot.slane %v10841, 1
    %v10947 = vrot.slane %v10842, 1
    %v10948 = vsel %vm266, %v10946, %v10947
    %v10949 = vrot.slane %v9719, 1
    %v10950 = vrot.slane %v9718, 1
    %v10951 = vsel %vm266, %v10949, %v10950
    %v10952 = vrot.slane %v10843, 1
    %v10953 = vrot.slane %v10844, 1
    %v10954 = vsel %vm266, %v10952, %v10953
    %v10955 = vrot.slane %v9951, 1
    %v10956 = vrot.slane %v9950, 1
    %v10957 = vsel %vm266, %v10955, %v10956
    %v10958 = vrot.slane %v10845, 1
    %v10959 = vrot.slane %v10846, 1
    %v10960 = vsel %vm266, %v10958, %v10959
    %v10977 = vlaneseq
    %v10978 = vshrl.u32 %v10977, 7
    %v10979 = vsub.s32 0, %v10978
    %v10980 = vrot.slane %v9224, %v10979
    %v10982 = vsel %vm7953, %v10882, 0
    %v10984 = vsel %vm7953, %v10888, 0
    %v10986 = vsel %vm7953, %v10894, 0
    %v10988 = vsel %vm7953, %v10900, 0
    %v10990 = vsel %vm7953, %v10906, 0
    %v10992 = vsel %vm7953, %v10912, 0
    %v10994 = vsel %vm7953, %v10918, 0
    %v10996 = vsel %vm7953, %v10927, 0
    %v10998 = vsel %vm7953, %v10933, 0
    %v11000 = vsel %vm7953, %v10939, 0
    %v11002 = vsel %vm7953, %v10945, 0
    %v11004 = vsel %vm7953, %v10951, 0
    %v11006 = vsel %vm7953, %v10957, 0
    %11008 = vmatprep.subr.mxu0 0.0
    %11009 = vmatpush1.msra.mxu0 %v9174
    %11010 = vmatprep.subr.mxu0 0.0
    %11011 = vmatpush1.msra.mxu0 %v9175
    %11012 = vmatprep.subr.mxu0 0.0
    %11013 = vmatpush1.msra.mxu0 %v9176
    %11014 = vmatprep.subr.mxu0 0.0
    %11015 = vmatpush1.msra.mxu0 %v9177
    %11016 = vmatprep.subr.mxu0 0.0
    %11017 = vmatpush1.msra.mxu0 %v9178
    %11018 = vmatprep.subr.mxu0 0.0
    %11019 = vmatpush1.msra.mxu0 %v9179
    %11020 = vmatprep.subr.mxu0 0.0
    %11021 = vmatpush1.msra.mxu0 %v9180
    %11022 = vmatprep.subr.mxu0 0.0
    %11023 = vmatpush1.msra.mxu0 %v9181
    %11024 = vmatprep.subr.mxu0 0.0
    %11025 = vmatpush1.msra.mxu0 %v9182
    %11026 = vmatprep.subr.mxu0 0.0
    %11027 = vmatpush1.msra.mxu0 %v9183
    %11028 = vmatprep.subr.mxu0 0.0
    %11029 = vmatpush1.msra.mxu0 %v9184
    %11030 = vmatprep.subr.mxu0 0.0
    %11031 = vmatpush1.msra.mxu0 %v9185
    %11032 = vmatprep.subr.mxu0 0.0
    %11033 = vmatpush1.msra.mxu0 %v9186
    %11034 = vmatprep.subr.mxu0 0.0
    %11035 = vmatpush1.msra.mxu0 %v9187
    %11036 = vmatprep.subr.mxu0 0.0
    %11037 = vmatpush1.msra.mxu0 %v9188
    %11038 = vmatprep.subr.mxu0 0.0
    %11039 = vmatpush1.msra.mxu0 %v9189
    %11040 = vmatprep.subr.mxu0 0.0
    %11041 = vmatpush1.msra.mxu0 %v9190
    %11042 = vmatprep.subr.mxu0 0.0
    %11043 = vmatpush1.msra.mxu0 %v9191
    %11044 = vmatprep.subr.mxu0 0.0
    %11045 = vmatpush1.msra.mxu0 %v9192
    %11046 = vmatprep.subr.mxu0 0.0
    %11047 = vmatpush1.msra.mxu0 %v9193
    %11048 = vmatprep.subr.mxu0 0.0
    %11049 = vmatpush1.msra.mxu0 %v9194
    %11050 = vmatprep.subr.mxu0 0.0
    %11051 = vmatpush1.msra.mxu0 %v9195
    %11052 = vmatprep.subr.mxu0 0.0
    %11053 = vmatpush1.msra.mxu0 %v9196
    %11054 = vmatprep.subr.mxu0 0.0
    %11055 = vmatpush1.msra.mxu0 %v9197
    %11056 = vmatprep.subr.mxu0 0.0
    %11057 = vmatpush1.msra.mxu0 %v9198
    %11058 = vmatprep.subr.mxu0 0.0
    %11059 = vmatpush1.msra.mxu0 %v9199
    %11060 = vmatprep.subr.mxu0 0.0
    %11061 = vmatpush1.msra.mxu0 %v9200
    %11062 = vmatprep.subr.mxu0 0.0
    %11063 = vmatpush1.msra.mxu0 %v9201
    %11064 = vmatprep.subr.mxu0 0.0
    %11065 = vmatpush1.msra.mxu0 %v9202
    %11066 = vmatprep.subr.mxu0 0.0
    %11067 = vmatpush1.msra.mxu0 %v9203
    %11068 = vmatprep.subr.mxu0 0.0
    %11069 = vmatpush1.msra.mxu0 %v9204
    %11070 = vmatprep.subr.mxu0 0.0
    %11071 = vmatpush1.msra.mxu0 %v9205
    %11072 = vmatprep.mubr.f32.mxu0 %v10296
    %11073 = vmatmul.mubr.f32.gmra.mrb[0].mxu0 %v10186
    %v11074 = vpop.f32.mrb[0].mxu0
    %v11075 = vadd.f32 %v10980, %v11074
    %v11076 = vpop.f32.mrb[0].mxu0
    %11077 = vmatprep.mubr.f32.mxu0 %v10297
    %11078 = vmatmul.mubr.f32.gmra.mrb[0].mxu0 %v10187
    %v11079 = vpop.f32.mrb[0].mxu0
    %v11080 = vadd.f32 %v10980, %v11079
    %v11081 = vpop.f32.mrb[0].mxu0
    %11082 = vmatprep.mubr.f32.mxu0 %v10298
    %11083 = vmatmul.mubr.f32.gmra.mrb[0].mxu0 %v10188
    %v11084 = vpop.f32.mrb[0].mxu0
    %v11085 = vadd.f32 %v10980, %v11084
    %v11086 = vpop.f32.mrb[0].mxu0
    %11087 = vmatprep.mubr.f32.mxu0 %v10299
    %11088 = vmatmul.mubr.f32.gmra.mrb[0].mxu0 %v10189
    %v11089 = vpop.f32.mrb[0].mxu0
    %v11090 = vadd.f32 %v10980, %v11089
    %v11091 = vpop.f32.mrb[0].mxu0
    %11092 = vmatprep.mubr.f32.mxu0 %v10300
    %11093 = vmatmul.mubr.f32.gmra.mrb[0].mxu0 %v10190
    %v11094 = vpop.f32.mrb[0].mxu0
    %v11095 = vadd.f32 %v10980, %v11094
    %v11096 = vpop.f32.mrb[0].mxu0
    %11097 = vmatprep.mubr.f32.mxu0 %v10301
    %11098 = vmatmul.mubr.f32.gmra.mrb[0].mxu0 %v10191
    %v11099 = vpop.f32.mrb[0].mxu0
    %v11100 = vadd.f32 %v10980, %v11099
    %v11101 = vpop.f32.mrb[0].mxu0
    %11102 = vmatprep.mubr.f32.mxu0 %v10302
    %11103 = vmatmul.mubr.f32.gmra.mrb[0].mxu0 %v10192
    %v11104 = vpop.f32.mrb[0].mxu0
    %v11105 = vadd.f32 %v10980, %v11104
    %v11106 = vpop.f32.mrb[0].mxu0
    %11107 = vmatprep.mubr.f32.mxu0 %v10303
    %11108 = vmatmul.mubr.f32.gmra.mrb[0].mxu0 %v10193
    %v11109 = vpop.f32.mrb[0].mxu0
    %v11110 = vadd.f32 %v10980, %v11109
    %v11111 = vpop.f32.mrb[0].mxu0
    %11112 = vmatprep.mubr.f32.mxu0 %v10304
    %11113 = vmatmul.mubr.f32.gmra.mrb[0].mxu0 %v10186
    %v11114 = vpop.f32.mrb[0].mxu0
    %v11115 = vadd.f32 %v10980, %v11114
    %v11116 = vpop.f32.mrb[0].mxu0
    %11117 = vmatprep.mubr.f32.mxu0 %v10305
    %11118 = vmatmul.mubr.f32.gmra.mrb[0].mxu0 %v10194
    %v11119 = vpop.f32.mrb[0].mxu0
    %v11120 = vadd.f32 %v10980, %v11119
    %v11121 = vpop.f32.mrb[0].mxu0
    %11122 = vmatprep.mubr.f32.mxu0 %v10306
    %11123 = vmatmul.mubr.f32.gmra.mrb[0].mxu0 %v10195
    %v11124 = vpop.f32.mrb[0].mxu0
    %v11125 = vadd.f32 %v10980, %v11124
    %v11126 = vpop.f32.mrb[0].mxu0
    %11127 = vmatprep.mubr.f32.mxu0 %v10307
    %11128 = vmatmul.mubr.f32.gmra.mrb[0].mxu0 %v10196
    %v11129 = vpop.f32.mrb[0].mxu0
    %v11130 = vadd.f32 %v10980, %v11129
    %v11131 = vpop.f32.mrb[0].mxu0
    %11132 = vmatprep.mubr.f32.mxu0 %v10308
    %11133 = vmatmul.mubr.f32.gmra.mrb[0].mxu0 %v10197
    %v11134 = vpop.f32.mrb[0].mxu0
    %v11135 = vadd.f32 %v10980, %v11134
    %v11136 = vpop.f32.mrb[0].mxu0
    %11137 = vmatprep.mubr.f32.mxu0 %v10309
    %11138 = vmatmul.mubr.f32.gmra.mrb[0].mxu0 %v10198
    %v11139 = vpop.f32.mrb[0].mxu0
    %v11140 = vadd.f32 %v10980, %v11139
    %v11141 = vpop.f32.mrb[0].mxu0
    %11142 = vmatprep.mubr.f32.mxu0 %v10310
    %11143 = vmatmul.mubr.f32.gmra.mrb[0].mxu0 %v10199
    %v11144 = vpop.f32.mrb[0].mxu0
    %v11145 = vadd.f32 %v10980, %v11144
    %v11146 = vpop.f32.mrb[0].mxu0
    %11147 = vmatprep.mubr.f32.mxu0 %v10311
    %11148 = vmatmul.mubr.f32.gmra.mrb[0].mxu0 %v10200
    %v11149 = vpop.f32.mrb[0].mxu0
    %v11150 = vadd.f32 %v10980, %v11149
    %v11151 = vpop.f32.mrb[0].mxu0
    %11152 = vdwg.mxu0
    %11153 = vmatprep.subr.mxu0 0.0
    %11154 = vmatpush1.msra.mxu0 %v9206
    %11155 = vmatprep.subr.mxu0 0.0
    %11156 = vmatpush1.msra.mxu0 %v9207
    %11157 = vmatprep.subr.mxu0 0.0
    %11158 = vmatpush1.msra.mxu0 %v9208
    %11159 = vmatprep.subr.mxu0 0.0
    %11160 = vmatpush1.msra.mxu0 %v9209
    %11161 = vmatprep.subr.mxu0 0.0
    %11162 = vmatpush1.msra.mxu0 %v9210
    %11163 = vmatprep.subr.mxu0 0.0
    %11164 = vmatpush1.msra.mxu0 %v9211
    %11165 = vmatprep.subr.mxu0 0.0
    %11166 = vmatpush1.msra.mxu0 %v9212
    %11167 = vmatprep.subr.mxu0 0.0
    %11168 = vmatpush1.msra.mxu0 %v9213
    %11169 = vmatprep.subr.mxu0 0.0
    %11170 = vmatpush1.msra.mxu0 %v9214
    %11171 = vmatprep.subr.mxu0 0.0
    %11172 = vmatpush1.msra.mxu0 %v9215
    %11173 = vmatprep.subr.mxu0 0.0
    %11174 = vmatpush1.msra.mxu0 %v9216
    %11175 = vmatprep.subr.mxu0 0.0
    %11176 = vmatpush1.msra.mxu0 %v9217
    %11177 = vmatprep.subr.mxu0 0.0
    %11178 = vmatpush1.msra.mxu0 %v9218
    %11179 = vmatprep.subr.mxu0 0.0
    %11180 = vmatpush1.msra.mxu0 %v9219
    %11181 = vmatprep.subr.mxu0 0.0
    %11182 = vmatpush1.msra.mxu0 %v9220
    %11183 = vmatprep.subr.mxu0 0.0
    %11184 = vmatpush1.msra.mxu0 %v9221
    %11185 = vmatprep.subr.mxu0 0.0
    %11186 = vmatpush1.msra.mxu0 %v9222
    %11187 = vmatprep.subr.mxu0 0.0
    %11188 = vmatpush1.msra.mxu0 %v9223
    %11189 = vmatprep.subr.mxu0 0.0
    %11190 = vmatpush1.msra.mxu0 0.0
    %11191 = vmatprep.subr.mxu0 0.0
    %11192 = vmatpush1.msra.mxu0 0.0
    %11193 = vmatprep.subr.mxu0 0.0
    %11194 = vmatpush1.msra.mxu0 0.0
    %11195 = vmatprep.subr.mxu0 0.0
    %11196 = vmatpush1.msra.mxu0 0.0
    %11197 = vmatprep.subr.mxu0 0.0
    %11198 = vmatpush1.msra.mxu0 0.0
    %11199 = vmatprep.subr.mxu0 0.0
    %11200 = vmatpush1.msra.mxu0 0.0
    %11201 = vmatprep.subr.mxu0 0.0
    %11202 = vmatpush1.msra.mxu0 0.0
    %11203 = vmatprep.subr.mxu0 0.0
    %11204 = vmatpush1.msra.mxu0 0.0
    %11205 = vmatprep.subr.mxu0 0.0
    %11206 = vmatpush1.msra.mxu0 0.0
    %11207 = vmatprep.subr.mxu0 0.0
    %11208 = vmatpush1.msra.mxu0 0.0
    %11209 = vmatprep.subr.mxu0 0.0
    %11210 = vmatpush1.msra.mxu0 0.0
    %11211 = vmatprep.subr.mxu0 0.0
    %11212 = vmatpush1.msra.mxu0 0.0
    %11213 = vmatprep.subr.mxu0 0.0
    %11214 = vmatpush1.msra.mxu0 0.0
    %11215 = vmatprep.subr.mxu0 0.0
    %11216 = vmatpush1.msra.mxu0 0.0
    %11217 = vmatprep.mubr.f32.mxu0 %v10982
    %11218 = vmatmul.mubr.f32.gmra.mrb[0].mxu0 %v10879
    %v11219 = vpop.f32.mrb[0].mxu0
    %v11220 = vadd.f32 %v11075, %v11219
    %v11221 = vpop.f32.mrb[0].mxu0
    %11222 = vmatprep.mubr.f32.mxu0 %v10984
    %11223 = vmatmul.mubr.f32.gmra.mrb[0].mxu0 %v10885
    %v11224 = vpop.f32.mrb[0].mxu0
    %v11225 = vadd.f32 %v11080, %v11224
    %v11226 = vpop.f32.mrb[0].mxu0
    %11227 = vmatprep.mubr.f32.mxu0 %v10986
    %11228 = vmatmul.mubr.f32.gmra.mrb[0].mxu0 %v10891
    %v11229 = vpop.f32.mrb[0].mxu0
    %v11230 = vadd.f32 %v11085, %v11229
    %v11231 = vpop.f32.mrb[0].mxu0
    %11232 = vmatprep.mubr.f32.mxu0 %v10988
    %11233 = vmatmul.mubr.f32.gmra.mrb[0].mxu0 %v10897
    %v11234 = vpop.f32.mrb[0].mxu0
    %v11235 = vadd.f32 %v11090, %v11234
    %v11236 = vpop.f32.mrb[0].mxu0
    %11237 = vmatprep.mubr.f32.mxu0 %v10990
    %11238 = vmatmul.mubr.f32.gmra.mrb[0].mxu0 %v10903
    %v11239 = vpop.f32.mrb[0].mxu0
    %v11240 = vadd.f32 %v11095, %v11239
    %v11241 = vpop.f32.mrb[0].mxu0
    %11242 = vmatprep.mubr.f32.mxu0 %v10992
    %11243 = vmatmul.mubr.f32.gmra.mrb[0].mxu0 %v10909
    %v11244 = vpop.f32.mrb[0].mxu0
    %v11245 = vadd.f32 %v11100, %v11244
    %v11246 = vpop.f32.mrb[0].mxu0
    %11247 = vmatprep.mubr.f32.mxu0 %v10994
    %11248 = vmatmul.mubr.f32.gmra.mrb[0].mxu0 %v10915
    %v11249 = vpop.f32.mrb[0].mxu0
    %v11250 = vadd.f32 %v11105, %v11249
    %v11251 = vpop.f32.mrb[0].mxu0
    %11252 = vmatprep.mubr.f32.mxu0 %v10994
    %11253 = vmatmul.mubr.f32.gmra.mrb[0].mxu0 %v10921
    %v11254 = vpop.f32.mrb[0].mxu0
    %v11255 = vadd.f32 %v11110, %v11254
    %v11256 = vpop.f32.mrb[0].mxu0
    %11257 = vmatprep.mubr.f32.mxu0 %v10996
    %11258 = vmatmul.mubr.f32.gmra.mrb[0].mxu0 %v10924
    %v11259 = vpop.f32.mrb[0].mxu0
    %v11260 = vadd.f32 %v11115, %v11259
    %v11261 = vpop.f32.mrb[0].mxu0
    %11262 = vmatprep.mubr.f32.mxu0 %v10998
    %11263 = vmatmul.mubr.f32.gmra.mrb[0].mxu0 %v10930
    %v11264 = vpop.f32.mrb[0].mxu0
    %v11265 = vadd.f32 %v11120, %v11264
    %v11266 = vpop.f32.mrb[0].mxu0
    %11267 = vmatprep.mubr.f32.mxu0 %v11000
    %11268 = vmatmul.mubr.f32.gmra.mrb[0].mxu0 %v10936
    %v11269 = vpop.f32.mrb[0].mxu0
    %v11270 = vadd.f32 %v11125, %v11269
    %v11271 = vpop.f32.mrb[0].mxu0
    %11272 = vmatprep.mubr.f32.mxu0 %v11002
    %11273 = vmatmul.mubr.f32.gmra.mrb[0].mxu0 %v10942
    %v11274 = vpop.f32.mrb[0].mxu0
    %v11275 = vadd.f32 %v11130, %v11274
    %v11276 = vpop.f32.mrb[0].mxu0
    %11277 = vmatprep.mubr.f32.mxu0 %v11004
    %11278 = vmatmul.mubr.f32.gmra.mrb[0].mxu0 %v10948
    %v11279 = vpop.f32.mrb[0].mxu0
    %v11280 = vadd.f32 %v11135, %v11279
    %v11281 = vpop.f32.mrb[0].mxu0
    %11282 = vmatprep.mubr.f32.mxu0 %v11006
    %11283 = vmatmul.mubr.f32.gmra.mrb[0].mxu0 %v10954
    %v11284 = vpop.f32.mrb[0].mxu0
    %v11285 = vadd.f32 %v11140, %v11284
    %v11286 = vpop.f32.mrb[0].mxu0
    %11287 = vmatprep.mubr.f32.mxu0 %v10994
    %11288 = vmatmul.mubr.f32.gmra.mrb[0].mxu0 %v10960
    %v11289 = vpop.f32.mrb[0].mxu0
    %v11290 = vadd.f32 %v11145, %v11289
    %v11291 = vpop.f32.mrb[0].mxu0
    %11292 = vmatprep.mubr.f32.mxu0 %v10994
    %11293 = vmatmul.mubr.f32.gmra.mrb[0].mxu0 %v10921
    %v11294 = vpop.f32.mrb[0].mxu0
    %v11295 = vadd.f32 %v11150, %v11294
    %v11296 = vpop.f32.mrb[0].mxu0
    %11297 = vdwg.mxu0
    %v11298 = vld [vmem:[%s7] sm:$0x1]
    %v11299 = vld [vmem:[%s8] sm:$0x1]
    %v11300 = vsel %vm10112, %v11220, 0.0
    %v11301 = vsel %vm10112, %v11225, 0.0
    %v11302 = vadd.f32 %v11300, %v11301
    %v11303 = vsel %vm10112, %v11230, 0.0
    %v11304 = vadd.f32 %v11302, %v11303
    %v11305 = vsel %vm10112, %v11235, 0.0
    %v11306 = vadd.f32 %v11304, %v11305
    %v11307 = vsel %vm10112, %v11240, 0.0
    %v11308 = vadd.f32 %v11306, %v11307
    %v11309 = vsel %vm10112, %v11245, 0.0
    %v11310 = vadd.f32 %v11308, %v11309
    %v11311 = vsel %vm10112, %v11250, 0.0
    %v11312 = vadd.f32 %v11310, %v11311
    %v11313 = vsel %vm10112, %v11255, 0.0
    %v11314 = vadd.f32 %v11312, %v11313
    %v11315 = vsel %vm10112, %v11260, 0.0
    %v11316 = vadd.f32 %v11314, %v11315
    %v11317 = vsel %vm10112, %v11265, 0.0
    %v11318 = vadd.f32 %v11316, %v11317
    %v11319 = vsel %vm10112, %v11270, 0.0
    %v11320 = vadd.f32 %v11318, %v11319
    %v11321 = vsel %vm10112, %v11275, 0.0
    %v11322 = vadd.f32 %v11320, %v11321
    %v11323 = vsel %vm10112, %v11280, 0.0
    %v11324 = vadd.f32 %v11322, %v11323
    %v11325 = vsel %vm10112, %v11285, 0.0
    %v11326 = vadd.f32 %v11324, %v11325
    %v11327 = vsel %vm10112, %v11290, 0.0
    %v11328 = vadd.f32 %v11326, %v11327
    %v11329 = vsel %vm10112, %v11295, 0.0
    %v11330 = vadd.f32 %v11328, %v11329
    %v11331 = vrot.slane %v11330, 4
    %v11332 = vadd.f32 %v11330, %v11331
    %v11333 = vrot.slane %v11332, 2
    %v11334 = vadd.f32 %v11332, %v11333
    %v11335 = vrot.slane %v11334, 1
    %v11336 = vadd.f32 %v11334, %v11335
    %v11337 = vrcp.pop 128.0
    %v11338 = vmul.f32 %v11336, %v11337
    %v11339 = vsub.f32 %v11220, %v11338
    %v11340 = vsub.f32 %v11225, %v11338
    %v11341 = vsub.f32 %v11230, %v11338
    %v11342 = vsub.f32 %v11235, %v11338
    %v11343 = vsub.f32 %v11240, %v11338
    %v11344 = vsub.f32 %v11245, %v11338
    %v11345 = vsub.f32 %v11250, %v11338
    %v11346 = vsub.f32 %v11255, %v11338
    %v11347 = vsub.f32 %v11260, %v11338
    %v11348 = vsub.f32 %v11265, %v11338
    %v11349 = vsub.f32 %v11270, %v11338
    %v11350 = vsub.f32 %v11275, %v11338
    %v11351 = vsub.f32 %v11280, %v11338
    %v11352 = vsub.f32 %v11285, %v11338
    %v11353 = vsub.f32 %v11290, %v11338
    %v11354 = vsub.f32 %v11295, %v11338
    %v11355 = vmul.f32 %v11339, %v11339
    %v11356 = vmul.f32 %v11340, %v11340
    %v11357 = vmul.f32 %v11341, %v11341
    %v11358 = vmul.f32 %v11342, %v11342
    %v11359 = vmul.f32 %v11343, %v11343
    %v11360 = vmul.f32 %v11344, %v11344
    %v11361 = vmul.f32 %v11345, %v11345
    %v11362 = vmul.f32 %v11346, %v11346
    %v11363 = vmul.f32 %v11347, %v11347
    %v11364 = vmul.f32 %v11348, %v11348
    %v11365 = vmul.f32 %v11349, %v11349
    %v11366 = vmul.f32 %v11350, %v11350
    %v11367 = vmul.f32 %v11351, %v11351
    %v11368 = vmul.f32 %v11352, %v11352
    %v11369 = vmul.f32 %v11353, %v11353
    %v11370 = vmul.f32 %v11354, %v11354
    %v11371 = vsel %vm10112, %v11355, 0.0
    %v11372 = vsel %vm10112, %v11356, 0.0
    %v11373 = vadd.f32 %v11371, %v11372
    %v11374 = vsel %vm10112, %v11357, 0.0
    %v11375 = vadd.f32 %v11373, %v11374
    %v11376 = vsel %vm10112, %v11358, 0.0
    %v11377 = vadd.f32 %v11375, %v11376
    %v11378 = vsel %vm10112, %v11359, 0.0
    %v11379 = vadd.f32 %v11377, %v11378
    %v11380 = vsel %vm10112, %v11360, 0.0
    %v11381 = vadd.f32 %v11379, %v11380
    %v11382 = vsel %vm10112, %v11361, 0.0
    %v11383 = vadd.f32 %v11381, %v11382
    %v11384 = vsel %vm10112, %v11362, 0.0
    %v11385 = vadd.f32 %v11383, %v11384
    %v11386 = vsel %vm10112, %v11363, 0.0
    %v11387 = vadd.f32 %v11385, %v11386
    %v11388 = vsel %vm10112, %v11364, 0.0
    %v11389 = vadd.f32 %v11387, %v11388
    %v11390 = vsel %vm10112, %v11365, 0.0
    %v11391 = vadd.f32 %v11389, %v11390
    %v11392 = vsel %vm10112, %v11366, 0.0
    %v11393 = vadd.f32 %v11391, %v11392
    %v11394 = vsel %vm10112, %v11367, 0.0
    %v11395 = vadd.f32 %v11393, %v11394
    %v11396 = vsel %vm10112, %v11368, 0.0
    %v11397 = vadd.f32 %v11395, %v11396
    %v11398 = vsel %vm10112, %v11369, 0.0
    %v11399 = vadd.f32 %v11397, %v11398
    %v11400 = vsel %vm10112, %v11370, 0.0
    %v11401 = vadd.f32 %v11399, %v11400
    %v11402 = vrot.slane %v11401, 4
    %v11403 = vadd.f32 %v11401, %v11402
    %v11404 = vrot.slane %v11403, 2
    %v11405 = vadd.f32 %v11403, %v11404
    %v11406 = vrot.slane %v11405, 1
    %v11407 = vadd.f32 %v11405, %v11406
    %v11408 = vmul.f32 %v11407, %v11337
    %v11409 = vadd.f32 %v11408, 1e-05
    %v11410 = vrsqrt.pop %v11409
    %v11411 = vmul.f32 %v11298, %v11410
    %v11412 = vmul.f32 %v11338, %v11411
    %v11413 = vsub.f32 %v11299, %v11412
    %v11415 = vlaneseq
    %v11416 = vshrl.u32 %v11415, 7
    %v11417 = vsub.s32 0, %v11416
    %v11418 = vrot.slane %v11411, %v11417
    %v11420 = vmul.f32 %v11220, %v11418
    %v11421 = vmul.f32 %v11225, %v11418
    %v11422 = vmul.f32 %v11230, %v11418
    %v11423 = vmul.f32 %v11235, %v11418
    %v11424 = vmul.f32 %v11240, %v11418
    %v11425 = vmul.f32 %v11245, %v11418
    %v11426 = vmul.f32 %v11250, %v11418
    %v11427 = vmul.f32 %v11255, %v11418
    %v11428 = vmul.f32 %v11260, %v11418
    %v11429 = vmul.f32 %v11265, %v11418
    %v11430 = vmul.f32 %v11270, %v11418
    %v11431 = vmul.f32 %v11275, %v11418
    %v11432 = vmul.f32 %v11280, %v11418
    %v11433 = vmul.f32 %v11285, %v11418
    %v11434 = vmul.f32 %v11290, %v11418
    %v11435 = vmul.f32 %v11295, %v11418
    %v11437 = vlaneseq
    %v11438 = vshrl.u32 %v11437, 7
    %v11439 = vsub.s32 0, %v11438
    %v11440 = vrot.slane %v11413, %v11439
    %v11442 = vadd.f32 %v11420, %v11440
    %v11443 = vadd.f32 %v11421, %v11440
    %v11444 = vadd.f32 %v11422, %v11440
    %v11445 = vadd.f32 %v11423, %v11440
    %v11446 = vadd.f32 %v11424, %v11440
    %v11447 = vadd.f32 %v11425, %v11440
    %v11448 = vadd.f32 %v11426, %v11440
    %v11449 = vadd.f32 %v11427, %v11440
    %v11450 = vadd.f32 %v11428, %v11440
    %v11451 = vadd.f32 %v11429, %v11440
    %v11452 = vadd.f32 %v11430, %v11440
    %v11453 = vadd.f32 %v11431, %v11440
    %v11454 = vadd.f32 %v11432, %v11440
    %v11455 = vadd.f32 %v11433, %v11440
    %v11456 = vadd.f32 %v11434, %v11440
    %v11457 = vadd.f32 %v11435, %v11440
    %v11458 = vmax.f32 %v11442, 0.0
    %v11459 = vmax.f32 %v11443, 0.0
    %v11460 = vmax.f32 %v11444, 0.0
    %v11461 = vmax.f32 %v11445, 0.0
    %v11462 = vmax.f32 %v11446, 0.0
    %v11463 = vmax.f32 %v11447, 0.0
    %v11464 = vmax.f32 %v11448, 0.0
    %v11465 = vmax.f32 %v11449, 0.0
    %v11466 = vmax.f32 %v11450, 0.0
    %v11467 = vmax.f32 %v11451, 0.0
    %v11468 = vmax.f32 %v11452, 0.0
    %v11469 = vmax.f32 %v11453, 0.0
    %v11470 = vmax.f32 %v11454, 0.0
    %v11471 = vmax.f32 %v11455, 0.0
    %v11472 = vmax.f32 %v11456, 0.0
    %v11473 = vmax.f32 %v11457, 0.0
    %v11474 = vmax.f32 %v11458, %v11459
    %v11475 = vmax.f32 %v11466, %v11467
    %v11476 = vmax.f32 %v11460, %v11461
    %v11477 = vmax.f32 %v11468, %v11469
    %v11478 = vmax.f32 %v11462, %v11463
    %v11479 = vmax.f32 %v11470, %v11471
    %v11480 = vmax.f32 %v11464, %v11465
    %v11481 = vmax.f32 %v11472, %v11473
    %v11490 = vrot.slane %v11474, 1
    %v11491 = vrot.slane %v11476, 1
    %v11492 = vrot.slane %v11478, 1
    %v11493 = vrot.slane %v11480, 1
    %v11494 = vrot.slane %v11475, 1
    %v11495 = vrot.slane %v11477, 1
    %v11496 = vrot.slane %v11479, 1
    %v11497 = vrot.slane %v11481, 1
    %v11506 = vmax.f32 %v11474, %v11490
    %v11507 = vmax.f32 %v11476, %v11491
    %v11508 = vmax.f32 %v11478, %v11492
    %v11509 = vmax.f32 %v11480, %v11493
    %v11510 = vmax.f32 %v11475, %v11494
    %v11511 = vmax.f32 %v11477, %v11495
    %v11512 = vmax.f32 %v11479, %v11496
    %v11513 = vmax.f32 %v11481, %v11497
    %v11522 = vrot.slane %v11506, 1
    %v11523 = vrot.slane %v11507, 1
    %v11524 = vrot.slane %v11508, 1
    %v11525 = vrot.slane %v11509, 1
    %v11526 = vrot.slane %v11510, 1
    %v11527 = vrot.slane %v11511, 1
    %v11528 = vrot.slane %v11512, 1
    %v11529 = vrot.slane %v11513, 1
    %v11538 = vrot.slane %v11506, 2
    %v11539 = vrot.slane %v11507, 2
    %v11540 = vrot.slane %v11508, 2
    %v11541 = vrot.slane %v11509, 2
    %v11542 = vrot.slane %v11510, 2
    %v11543 = vrot.slane %v11511, 2
    %v11544 = vrot.slane %v11512, 2
    %v11545 = vrot.slane %v11513, 2
    %v11554 = vrot.slane %v11506, 3
    %v11555 = vrot.slane %v11507, 3
    %v11556 = vrot.slane %v11508, 3
    %v11557 = vrot.slane %v11509, 3
    %v11558 = vrot.slane %v11510, 3
    %v11559 = vrot.slane %v11511, 3
    %v11560 = vrot.slane %v11512, 3
    %v11561 = vrot.slane %v11513, 3
    %v11570 = vsel %vm5293, %v11506, %v11522
    %v11571 = vsel %vm5293, %v11507, %v11523
    %v11572 = vsel %vm5293, %v11508, %v11524
    %v11573 = vsel %vm5293, %v11509, %v11525
    %v11574 = vsel %vm5293, %v11510, %v11526
    %v11575 = vsel %vm5293, %v11511, %v11527
    %v11576 = vsel %vm5293, %v11512, %v11528
    %v11577 = vsel %vm5293, %v11513, %v11529
    %v11578 = vsel %vm8992, %v11570, %v11538
    %v11579 = vsel %vm8992, %v11571, %v11539
    %v11580 = vsel %vm8992, %v11572, %v11540
    %v11581 = vsel %vm8992, %v11573, %v11541
    %v11582 = vsel %vm8992, %v11574, %v11542
    %v11583 = vsel %vm8992, %v11575, %v11543
    %v11584 = vsel %vm8992, %v11576, %v11544
    %v11585 = vsel %vm8992, %v11577, %v11545
    %v11586 = vsel %vm7562, %v11578, %v11554
    %v11587 = vsel %vm7562, %v11579, %v11555
    %v11588 = vsel %vm7562, %v11580, %v11556
    %v11589 = vsel %vm7562, %v11581, %v11557
    %v11590 = vsel %vm7562, %v11582, %v11558
    %v11591 = vsel %vm7562, %v11583, %v11559
    %v11592 = vsel %vm7562, %v11584, %v11560
    %v11593 = vsel %vm7562, %v11585, %v11561
    %v11596 = vrot.slane %v11586, 1
    %v11597 = vrot.slane %v11590, 1
    %11598 = vrot.lane.b32.xlu0 %v11596, 32
    %v11599 = vpop.permute.xlu0 %11598
    %11600 = vrot.lane.b32.xlu0 %v11597, 32
    %v11601 = vpop.permute.xlu0 %11600
    %v11604 = vrot.slane %v11586, 2
    %v11605 = vrot.slane %v11590, 2
    %11606 = vrot.lane.b32.xlu0 %v11604, 64
    %v11607 = vpop.permute.xlu0 %11606
    %11608 = vrot.lane.b32.xlu0 %v11605, 64
    %v11609 = vpop.permute.xlu0 %11608
    %v11612 = vrot.slane %v11586, 3
    %v11613 = vrot.slane %v11590, 3
    %11614 = vrot.lane.b32.xlu0 %v11612, 96
    %v11615 = vpop.permute.xlu0 %11614
    %11616 = vrot.lane.b32.xlu0 %v11613, 96
    %v11617 = vpop.permute.xlu0 %11616
    %v11622 = vrot.slane %v11587, 1
    %v11623 = vrot.slane %v11591, 1
    %11624 = vrot.lane.b32.xlu0 %v11622, 32
    %v11625 = vpop.permute.xlu0 %11624
    %11626 = vrot.lane.b32.xlu0 %v11623, 32
    %v11627 = vpop.permute.xlu0 %11626
    %v11630 = vrot.slane %v11587, 2
    %v11631 = vrot.slane %v11591, 2
    %11632 = vrot.lane.b32.xlu0 %v11630, 64
    %v11633 = vpop.permute.xlu0 %11632
    %11634 = vrot.lane.b32.xlu0 %v11631, 64
    %v11635 = vpop.permute.xlu0 %11634
    %v11638 = vrot.slane %v11587, 3
    %v11639 = vrot.slane %v11591, 3
    %11640 = vrot.lane.b32.xlu0 %v11638, 96
    %v11641 = vpop.permute.xlu0 %11640
    %11642 = vrot.lane.b32.xlu0 %v11639, 96
    %v11643 = vpop.permute.xlu0 %11642
    %v11648 = vrot.slane %v11588, 1
    %v11649 = vrot.slane %v11592, 1
    %11650 = vrot.lane.b32.xlu0 %v11648, 32
    %v11651 = vpop.permute.xlu0 %11650
    %11652 = vrot.lane.b32.xlu0 %v11649, 32
    %v11653 = vpop.permute.xlu0 %11652
    %v11656 = vrot.slane %v11588, 2
    %v11657 = vrot.slane %v11592, 2
    %11658 = vrot.lane.b32.xlu0 %v11656, 64
    %v11659 = vpop.permute.xlu0 %11658
    %11660 = vrot.lane.b32.xlu0 %v11657, 64
    %v11661 = vpop.permute.xlu0 %11660
    %v11664 = vrot.slane %v11588, 3
    %v11665 = vrot.slane %v11592, 3
    %11666 = vrot.lane.b32.xlu0 %v11664, 96
    %v11667 = vpop.permute.xlu0 %11666
    %11668 = vrot.lane.b32.xlu0 %v11665, 96
    %v11669 = vpop.permute.xlu0 %11668
    %v11674 = vrot.slane %v11589, 1
    %v11675 = vrot.slane %v11593, 1
    %11676 = vrot.lane.b32.xlu0 %v11674, 32
    %v11677 = vpop.permute.xlu0 %11676
    %11678 = vrot.lane.b32.xlu0 %v11675, 32
    %v11679 = vpop.permute.xlu0 %11678
    %v11682 = vrot.slane %v11589, 2
    %v11683 = vrot.slane %v11593, 2
    %11684 = vrot.lane.b32.xlu0 %v11682, 64
    %v11685 = vpop.permute.xlu0 %11684
    %11686 = vrot.lane.b32.xlu0 %v11683, 64
    %v11687 = vpop.permute.xlu0 %11686
    %v11690 = vrot.slane %v11589, 3
    %v11691 = vrot.slane %v11593, 3
    %11692 = vrot.lane.b32.xlu0 %v11690, 96
    %v11693 = vpop.permute.xlu0 %11692
    %11694 = vrot.lane.b32.xlu0 %v11691, 96
    %v11695 = vpop.permute.xlu0 %11694
    %v11698 = vsel %vm10112, %v11586, %v11599
    %v11699 = vsel %vm10112, %v11590, %v11601
    %v11700 = vsel %vm10139, %v11698, %v11607
    %v11701 = vsel %vm10139, %v11699, %v11609
    %v11702 = vsel %vm10169, %v11700, %v11615
    %v11703 = vsel %vm10169, %v11701, %v11617
    %v11704 = vsel %vm10112, %v11587, %v11625
    %v11705 = vsel %vm10112, %v11591, %v11627
    %v11706 = vsel %vm10139, %v11704, %v11633
    %v11707 = vsel %vm10139, %v11705, %v11635
    %v11708 = vsel %vm10169, %v11706, %v11641
    %v11709 = vsel %vm10169, %v11707, %v11643
    %v11710 = vsel %vm10112, %v11588, %v11651
    %v11711 = vsel %vm10112, %v11592, %v11653
    %v11712 = vsel %vm10139, %v11710, %v11659
    %v11713 = vsel %vm10139, %v11711, %v11661
    %v11714 = vsel %vm10169, %v11712, %v11667
    %v11715 = vsel %vm10169, %v11713, %v11669
    %v11716 = vsel %vm10112, %v11589, %v11677
    %v11717 = vsel %vm10112, %v11593, %v11679
    %v11718 = vsel %vm10139, %v11716, %v11685
    %v11719 = vsel %vm10139, %v11717, %v11687
    %v11720 = vsel %vm10169, %v11718, %v11693
    %v11721 = vsel %vm10169, %v11719, %v11695
    %v11722 = vld [vmem:[%s9] sm:$0xff]
    %v11723 = vld [vmem:[%s9 + $0x8] sm:$0xff]
    %v11724 = vld [vmem:[%s9 + $0x10] sm:$0xff]
    %v11725 = vld [vmem:[%s9 + $0x18] sm:$0xff]
    %v11726 = vld [vmem:[%s9 + $0x20] sm:$0xff]
    %v11727 = vld [vmem:[%s9 + $0x28] sm:$0xff]
    %v11728 = vld [vmem:[%s9 + $0x30] sm:$0xff]
    %v11729 = vld [vmem:[%s9 + $0x38] sm:$0xff]
    %v11730 = vld [vmem:[%s9 + $0x40] sm:$0xff]
    %v11731 = vld [vmem:[%s9 + $0x48] sm:$0xff]
    %v11732 = vld [vmem:[%s9 + $0x50] sm:$0xff]
    %v11733 = vld [vmem:[%s9 + $0x58] sm:$0xff]
    %v11734 = vld [vmem:[%s9 + $0x60] sm:$0xff]
    %v11735 = vld [vmem:[%s9 + $0x68] sm:$0xff]
    %v11736 = vld [vmem:[%s9 + $0x70] sm:$0xff]
    %v11737 = vld [vmem:[%s9 + $0x78] sm:$0xff]
    %v11738 = vld [vmem:[%s9 + $0x80] sm:$0xff]
    %v11739 = vld [vmem:[%s9 + $0x88] sm:$0xff]
    %v11740 = vld [vmem:[%s9 + $0x90] sm:$0xff]
    %v11741 = vld [vmem:[%s9 + $0x98] sm:$0xff]
    %v11742 = vld [vmem:[%s9 + $0xa0] sm:$0xff]
    %v11743 = vld [vmem:[%s9 + $0xa8] sm:$0xff]
    %v11744 = vld [vmem:[%s9 + $0xb0] sm:$0xff]
    %v11745 = vld [vmem:[%s9 + $0xb8] sm:$0xff]
    %v11746 = vld [vmem:[%s9 + $0xc0] sm:$0xff]
    %v11747 = vld [vmem:[%s9 + $0xc8] sm:$0xff]
    %v11748 = vld [vmem:[%s9 + $0xd0] sm:$0xff]
    %v11749 = vld [vmem:[%s9 + $0xd8] sm:$0xff]
    %v11750 = vld [vmem:[%s9 + $0xe0] sm:$0xff]
    %v11751 = vld [vmem:[%s9 + $0xe8] sm:$0xff]
    %v11752 = vld [vmem:[%s9 + $0xf0] sm:$0xff]
    %v11753 = vld [vmem:[%s9 + $0xf8] sm:$0xff]
    %v11754 = vld [vmem:[%s9 + $0x100] sm:$0xff]
    %v11755 = vld [vmem:[%s9 + $0x108] sm:$0xff]
    %v11756 = vld [vmem:[%s9 + $0x110] sm:$0xff]
    %v11757 = vld [vmem:[%s9 + $0x118] sm:$0xff]
    %v11758 = vld [vmem:[%s9 + $0x120] sm:$0xff]
    %v11759 = vld [vmem:[%s9 + $0x128] sm:$0xff]
    %v11760 = vld [vmem:[%s9 + $0x130] sm:$0xff]
    %v11761 = vld [vmem:[%s9 + $0x138] sm:$0xff]
    %v11762 = vld [vmem:[%s9 + $0x140] sm:$0xff]
    %v11763 = vld [vmem:[%s9 + $0x148] sm:$0xff]
    %v11764 = vld [vmem:[%s9 + $0x150] sm:$0xff]
    %v11765 = vld [vmem:[%s9 + $0x158] sm:$0xff]
    %v11766 = vld [vmem:[%s9 + $0x160] sm:$0xff]
    %v11767 = vld [vmem:[%s9 + $0x168] sm:$0xff]
    %v11768 = vld [vmem:[%s9 + $0x170] sm:$0xff]
    %v11769 = vld [vmem:[%s9 + $0x178] sm:$0xff]
    %v11770 = vld [vmem:[%s9 + $0x180] sm:$0xff]
    %v11771 = vld [vmem:[%s9 + $0x188] sm:$0xff]
    %v11772 = vld [vmem:[%s9 + $0x190] sm:$0xff]
    %v11773 = vld [vmem:[%s9 + $0x198] sm:$0xff]
    %v11774 = vld [vmem:[%s9 + $0x1a0] sm:$0xff]
    %v11775 = vld [vmem:[%s9 + $0x1a8] sm:$0xff]
    %v11776 = vld [vmem:[%s9 + $0x1b0] sm:$0xff]
    %v11777 = vld [vmem:[%s9 + $0x1b8] sm:$0xff]
    %v11778 = vld [vmem:[%s9 + $0x1c0] sm:$0xff]
    %v11779 = vld [vmem:[%s9 + $0x1c8] sm:$0xff]
    %v11780 = vld [vmem:[%s9 + $0x1d0] sm:$0xff]
    %v11781 = vld [vmem:[%s9 + $0x1d8] sm:$0xff]
    %v11782 = vld [vmem:[%s9 + $0x1e0] sm:$0xff]
    %v11783 = vld [vmem:[%s9 + $0x1e8] sm:$0xff]
    %v11784 = vld [vmem:[%s9 + $0x1f0] sm:$0xff]
    %v11785 = vld [vmem:[%s9 + $0x1f8] sm:$0xff]
    %v11786 = vld [vmem:[%s10] sm:$0x1]
    %v11788 = vlaneseq
    %v11789 = vshrl.u32 %v11788, 7
    %v11790 = vsub.s32 0, %v11789
    %v11791 = vrot.slane %v11786, %v11790
    %v11801 = vrot.slane %v11703, 7
    %vm11802 = vcmask 1041409
    %v11803 = vsel %vm11802, %v11801, %v11702
    %v11804 = vrot.slane %v11709, 7
    %v11805 = vsel %vm11802, %v11804, %v11708
    %v11806 = vrot.slane %v11715, 7
    %v11807 = vsel %vm11802, %v11806, %v11714
    %v11808 = vrot.slane %v11721, 7
    %v11809 = vsel %vm11802, %v11808, %v11720
    %11814 = vmatprep.subr.mxu0 0.0
    %11815 = vmatpush1.msra.mxu0 %v11722
    %11816 = vmatprep.subr.mxu0 0.0
    %11817 = vmatpush1.msra.mxu0 %v11723
    %11818 = vmatprep.subr.mxu0 0.0
    %11819 = vmatpush1.msra.mxu0 %v11724
    %11820 = vmatprep.subr.mxu0 0.0
    %11821 = vmatpush1.msra.mxu0 %v11725
    %11822 = vmatprep.subr.mxu0 0.0
    %11823 = vmatpush1.msra.mxu0 %v11726
    %11824 = vmatprep.subr.mxu0 0.0
    %11825 = vmatpush1.msra.mxu0 %v11727
    %11826 = vmatprep.subr.mxu0 0.0
    %11827 = vmatpush1.msra.mxu0 %v11728
    %11828 = vmatprep.subr.mxu0 0.0
    %11829 = vmatpush1.msra.mxu0 %v11729
    %11830 = vmatprep.subr.mxu0 0.0
    %11831 = vmatpush1.msra.mxu0 %v11730
    %11832 = vmatprep.subr.mxu0 0.0
    %11833 = vmatpush1.msra.mxu0 %v11731
    %11834 = vmatprep.subr.mxu0 0.0
    %11835 = vmatpush1.msra.mxu0 %v11732
    %11836 = vmatprep.subr.mxu0 0.0
    %11837 = vmatpush1.msra.mxu0 %v11733
    %11838 = vmatprep.subr.mxu0 0.0
    %11839 = vmatpush1.msra.mxu0 %v11734
    %11840 = vmatprep.subr.mxu0 0.0
    %11841 = vmatpush1.msra.mxu0 %v11735
    %11842 = vmatprep.subr.mxu0 0.0
    %11843 = vmatpush1.msra.mxu0 %v11736
    %11844 = vmatprep.subr.mxu0 0.0
    %11845 = vmatpush1.msra.mxu0 %v11737
    %11846 = vmatprep.subr.mxu0 0.0
    %11847 = vmatpush1.msra.mxu0 %v11738
    %11848 = vmatprep.subr.mxu0 0.0
    %11849 = vmatpush1.msra.mxu0 %v11739
    %11850 = vmatprep.subr.mxu0 0.0
    %11851 = vmatpush1.msra.mxu0 %v11740
    %11852 = vmatprep.subr.mxu0 0.0
    %11853 = vmatpush1.msra.mxu0 %v11741
    %11854 = vmatprep.subr.mxu0 0.0
    %11855 = vmatpush1.msra.mxu0 %v11742
    %11856 = vmatprep.subr.mxu0 0.0
    %11857 = vmatpush1.msra.mxu0 %v11743
    %11858 = vmatprep.subr.mxu0 0.0
    %11859 = vmatpush1.msra.mxu0 %v11744
    %11860 = vmatprep.subr.mxu0 0.0
    %11861 = vmatpush1.msra.mxu0 %v11745
    %11862 = vmatprep.subr.mxu0 0.0
    %11863 = vmatpush1.msra.mxu0 %v11746
    %11864 = vmatprep.subr.mxu0 0.0
    %11865 = vmatpush1.msra.mxu0 %v11747
    %11866 = vmatprep.subr.mxu0 0.0
    %11867 = vmatpush1.msra.mxu0 %v11748
    %11868 = vmatprep.subr.mxu0 0.0
    %11869 = vmatpush1.msra.mxu0 %v11749
    %11870 = vmatprep.subr.mxu0 0.0
    %11871 = vmatpush1.msra.mxu0 %v11750
    %11872 = vmatprep.subr.mxu0 0.0
    %11873 = vmatpush1.msra.mxu0 %v11751
    %11874 = vmatprep.subr.mxu0 0.0
    %11875 = vmatpush1.msra.mxu0 %v11752
    %11876 = vmatprep.subr.mxu0 0.0
    %11877 = vmatpush1.msra.mxu0 %v11753
    %11878 = vmatprep.mubr.f32.mxu0 %v11805
    %11879 = vmatmul.mubr.f32.gmra.mrb[0].mxu0 %v11803
    %v11880 = vpop.f32.mrb[0].mxu0
    %v11881 = vadd.f32 %v11791, %v11880
    %v11882 = vpop.f32.mrb[0].mxu0
    %11883 = vdwg.mxu0
    %11884 = vmatprep.subr.mxu0 0.0
    %11885 = vmatpush1.msra.mxu0 %v11754
    %11886 = vmatprep.subr.mxu0 0.0
    %11887 = vmatpush1.msra.mxu0 %v11755
    %11888 = vmatprep.subr.mxu0 0.0
    %11889 = vmatpush1.msra.mxu0 %v11756
    %11890 = vmatprep.subr.mxu0 0.0
    %11891 = vmatpush1.msra.mxu0 %v11757
    %11892 = vmatprep.subr.mxu0 0.0
    %11893 = vmatpush1.msra.mxu0 %v11758
    %11894 = vmatprep.subr.mxu0 0.0
    %11895 = vmatpush1.msra.mxu0 %v11759
    %11896 = vmatprep.subr.mxu0 0.0
    %11897 = vmatpush1.msra.mxu0 %v11760
    %11898 = vmatprep.subr.mxu0 0.0
    %11899 = vmatpush1.msra.mxu0 %v11761
    %11900 = vmatprep.subr.mxu0 0.0
    %11901 = vmatpush1.msra.mxu0 %v11762
    %11902 = vmatprep.subr.mxu0 0.0
    %11903 = vmatpush1.msra.mxu0 %v11763
    %11904 = vmatprep.subr.mxu0 0.0
    %11905 = vmatpush1.msra.mxu0 %v11764
    %11906 = vmatprep.subr.mxu0 0.0
    %11907 = vmatpush1.msra.mxu0 %v11765
    %11908 = vmatprep.subr.mxu0 0.0
    %11909 = vmatpush1.msra.mxu0 %v11766
    %11910 = vmatprep.subr.mxu0 0.0
    %11911 = vmatpush1.msra.mxu0 %v11767
    %11912 = vmatprep.subr.mxu0 0.0
    %11913 = vmatpush1.msra.mxu0 %v11768
    %11914 = vmatprep.subr.mxu0 0.0
    %11915 = vmatpush1.msra.mxu0 %v11769
    %11916 = vmatprep.subr.mxu0 0.0
    %11917 = vmatpush1.msra.mxu0 %v11770
    %11918 = vmatprep.subr.mxu0 0.0
    %11919 = vmatpush1.msra.mxu0 %v11771
    %11920 = vmatprep.subr.mxu0 0.0
    %11921 = vmatpush1.msra.mxu0 %v11772
    %11922 = vmatprep.subr.mxu0 0.0
    %11923 = vmatpush1.msra.mxu0 %v11773
    %11924 = vmatprep.subr.mxu0 0.0
    %11925 = vmatpush1.msra.mxu0 %v11774
    %11926 = vmatprep.subr.mxu0 0.0
    %11927 = vmatpush1.msra.mxu0 %v11775
    %11928 = vmatprep.subr.mxu0 0.0
    %11929 = vmatpush1.msra.mxu0 %v11776
    %11930 = vmatprep.subr.mxu0 0.0
    %11931 = vmatpush1.msra.mxu0 %v11777
    %11932 = vmatprep.subr.mxu0 0.0
    %11933 = vmatpush1.msra.mxu0 %v11778
    %11934 = vmatprep.subr.mxu0 0.0
    %11935 = vmatpush1.msra.mxu0 %v11779
    %11936 = vmatprep.subr.mxu0 0.0
    %11937 = vmatpush1.msra.mxu0 %v11780
    %11938 = vmatprep.subr.mxu0 0.0
    %11939 = vmatpush1.msra.mxu0 %v11781
    %11940 = vmatprep.subr.mxu0 0.0
    %11941 = vmatpush1.msra.mxu0 %v11782
    %11942 = vmatprep.subr.mxu0 0.0
    %11943 = vmatpush1.msra.mxu0 %v11783
    %11944 = vmatprep.subr.mxu0 0.0
    %11945 = vmatpush1.msra.mxu0 %v11784
    %11946 = vmatprep.subr.mxu0 0.0
    %11947 = vmatpush1.msra.mxu0 %v11785
    %11948 = vmatprep.mubr.f32.mxu0 %v11809
    %11949 = vmatmul.mubr.f32.gmra.mrb[0].mxu0 %v11807
    %v11950 = vpop.f32.mrb[0].mxu0
    %v11951 = vadd.f32 %v11881, %v11950
    %v11952 = vpop.f32.mrb[0].mxu0
    %11953 = vdwg.mxu0
    %11954 = vst [vmem:[#allocation2] sm:$0x3] %v11951
    // Predicated region
    $region46: #{cnn_forward.1} parent=1 // pred_check
      _
    $region47: #{cnn_forward.1} parent=1 // pred_check_branch
      %11956 = sbr.rel (0) target = $region49
    $region48: #{cnn_forward.1} parent=1 // pred_region
      %s11958 = ssub.s32 32, 32
      %11959 = vsyncadd [#allocation3], %s11958
      %s11961 = sshll.u32 [#allocation2], 4
      %s11962 = int_to_ptr.vmem [resolvable:$true] %s11961
      %11964 = dma.vmem_to_hbm [thread:$0]  %s11962, 32, %s11, [#allocation3]
    $region49: #{cnn_forward.1} parent=1 // pred_fallthru
      _
    // Predicated region
    $region50: #{cnn_forward.1} parent=1 // pred_check
      _
    $region51: #{cnn_forward.1} parent=1 // pred_check_branch
      %11966 = sbr.rel (0) target = $region53
    $region52: #{cnn_forward.1} parent=1 // pred_region
      %11967 = dma.done [#allocation3], 32
    $region53: #{cnn_forward.1} parent=1 // pred_fallthru
      _
    %11968 = vsyncpa [#allocation3], 1

</llo_original>
